<compile_context>
chip_gen: v6e
topology: v6e:2x2x1
jax: 0.10.0
libtpu: 0.0.40
codegen_flags: <defaults>
</compile_context>

<pallas_src>
import functools
import math

import jax
import jax.numpy as jnp
import numpy as np
from jax import lax
from jax.experimental import pallas as pl
from jax.experimental.pallas import tpu as pltpu


# ----------------------------- kernel helpers ------------------------------ #

def _layer_norm(x, gamma, beta, eps=1e-5):
    mu = jnp.mean(x, axis=-1, keepdims=True)
    var = jnp.mean((x - mu) ** 2, axis=-1, keepdims=True)
    return (x - mu) * lax.rsqrt(var + eps) * gamma + beta


_GELU_C = math.sqrt(2.0 / math.pi)


def _gelu_tanh(x):
    # tanh-approximate GELU (PointRCNNBlock.activation_pts is nn.GELU();
    # the tanh form keeps the transcendental on the EUP slot, matches
    # erf-GELU to ~1e-3 and is used identically in the reference below).
    return 0.5 * x * (1.0 + jnp.tanh(_GELU_C * (x + 0.044715 * x * x * x)))


def decoder_layer_kernel(q_ref, k_ref,
                         s_wqkv, s_bqkv, s_wo, s_bo,
                         c_wq, c_bq, c_wkv, c_bkv, c_wo, c_bo,
                         w1, b1, w2, b2,
                         g1, be1, g2, be2, g3, be3,
                         o_ref, *, num_heads, mxu_dtype, approx_softmax):
    bb, Pq, C = q_ref.shape           # block: (batch_block, queries, channels)
    Pk = k_ref.shape[1]
    H = num_heads
    hd = C // H
    f32 = jnp.float32

    def split_heads(t2, seq):
        # (bb*seq, C) -> (bb*H, seq, hd): pure lane-slices + leading-dim
        # reshapes (no replicated matmuls, no per-batch weight copies).
        heads = [t2[:, h * hd:(h + 1) * hd].reshape(bb, seq, hd)
                 for h in range(H)]
        return jnp.stack(heads, axis=1).reshape(bb * H, seq, hd)

    def merge_heads(t3, seq):
        # (bb*H, seq, hd) -> (bb*seq, C) with heads contiguous in lanes, so the
        # output projection is ONE full C-deep (bb*seq, C)@(C, C) matmul.
        t4 = t3.reshape(bb, H, seq, hd)
        return jnp.concatenate([t4[:, h] for h in range(H)],
                               axis=-1).reshape(bb * seq, C)

    def softmax_rows(s):
        s = s - jnp.max(s, axis=-1, keepdims=True)
        p = jnp.exp(s)
        denom = jnp.sum(p, axis=-1, keepdims=True)
        if approx_softmax:
            # EUP vrcp; ~1e-3 relative deviation vs exact divide (documented).
            return p * pl.reciprocal(denom, approx=True)
        return p / denom

    def attention(q2, k2, v2, wo, bo, lq, lk):
        q3 = split_heads(q2, lq)
        k3 = split_heads(k2, lk)
        v3 = split_heads(v2, lk)
        s = jnp.einsum('bqd,bkd->bqk', q3, k3, preferred_element_type=f32)
        p = softmax_rows(s).astype(mxu_dtype)
        o3 = jnp.einsum('bqk,bkd->bqd', p, v3, preferred_element_type=f32)
        o2 = merge_heads(o3, lq).astype(mxu_dtype)
        return jnp.dot(o2, wo[...], preferred_element_type=f32) + bo[...]

    # --- fold the lane-dense (bb, P, C) activations into (bb*P, C) rows -------
    x = q_ref[...].astype(f32).reshape(bb * Pq, C)
    xk = k_ref[...].astype(f32).reshape(bb * Pk, C)

    # ---- self-attention: ONE (bb*Pq, C) @ (C, 3C) fused QKV projection -------
    qkv = (jnp.dot(x.astype(mxu_dtype), s_wqkv[...], preferred_element_type=f32)
           + s_bqkv[...]).astype(mxu_dtype)
    sa = attention(qkv[:, :C], qkv[:, C:2 * C], qkv[:, 2 * C:],
                   s_wo, s_bo, Pq, Pq)
    x = _layer_norm(x + sa, g1[...], be1[...])

    # ---- cross-attention: (C, C) Q on queries, fused (C, 2C) KV on keys ------
    q2 = (jnp.dot(x.astype(mxu_dtype), c_wq[...], preferred_element_type=f32)
          + c_bq[...]).astype(mxu_dtype)
    kv = (jnp.dot(xk.astype(mxu_dtype), c_wkv[...], preferred_element_type=f32)
          + c_bkv[...]).astype(mxu_dtype)
    ca = attention(q2, kv[:, :C], kv[:, C:], c_wo, c_bo, Pq, Pk)
    x = _layer_norm(x + ca, g2[...], be2[...])

    # ---- FFN (GELU, matching activation_pts) on folded (bb*Pq, C) rows -------
    h = _gelu_tanh(jnp.dot(x.astype(mxu_dtype), w1[...],
                           preferred_element_type=f32) + b1[...])
    ff = jnp.dot(h.astype(mxu_dtype), w2[...], preferred_element_type=f32) + b2[...]
    x = _layer_norm(x + ff, g3[...], be3[...])

    # ---- store lane-dense (bb, Pq, C); C == 128 in production -> unmasked vst
    o_ref[...] = x.reshape(bb, Pq, C).astype(o_ref.dtype)


PARAM_ORDER = [
    "s_wqkv", "s_bqkv", "s_wo", "s_bo",
    "c_wq", "c_bq", "c_wkv", "c_bkv", "c_wo", "c_bo",
    "w1", "b1", "w2", "b2",
    "g1", "be1", "g2", "be2", "g3", "be3",
]


# ------------------------------ JAX wrapper -------------------------------- #

def make_kernel_params(p, d_model, dim_ff, num_heads, mxu_dtype):
    """PyTorch-convention parameters -> kernel-ready 2D fused weight blocks.

    Matmul weights are cast to `mxu_dtype`; biases / LayerNorm params stay f32.
    The 1/sqrt(head_dim) Q scaling is folded into the Q weights & bias."""
    E, F, H = d_model, dim_ff, num_heads
    hd = E // H
    scale = float(hd) ** -0.5

    def block(w, b, idx, scaled):
        wi = w[idx * E:(idx + 1) * E, :].T                   # (E_in, E_out)
        bi = b[idx * E:(idx + 1) * E]
        if scaled:
            wi, bi = wi * scale, bi * scale
        return wi, bi

    out = {}
    # self-attention: single fused [Q|K|V] weight (C, 3C) + bias row (1, 3C)
    sq, sk, sv = (block(p["self_in_w"], p["self_in_b"], i, i == 0)
                  for i in range(3))
    out["s_wqkv"] = jnp.concatenate([sq[0], sk[0], sv[0]], axis=1).astype(mxu_dtype)
    out["s_bqkv"] = jnp.concatenate([sq[1], sk[1], sv[1]]).reshape(1, 3 * E)
    out["s_wo"] = p["self_out_w"].T.astype(mxu_dtype)
    out["s_bo"] = p["self_out_b"].reshape(1, E)
    # cross-attention: Q weight (C, C) + fused [K|V] weight (C, 2C)
    cq, ck, cv = (block(p["cross_in_w"], p["cross_in_b"], i, i == 0)
                  for i in range(3))
    out["c_wq"] = cq[0].astype(mxu_dtype)
    out["c_bq"] = cq[1].reshape(1, E)
    out["c_wkv"] = jnp.concatenate([ck[0], cv[0]], axis=1).astype(mxu_dtype)
    out["c_bkv"] = jnp.concatenate([ck[1], cv[1]]).reshape(1, 2 * E)
    out["c_wo"] = p["cross_out_w"].T.astype(mxu_dtype)
    out["c_bo"] = p["cross_out_b"].reshape(1, E)
    # FFN + LayerNorms
    out["w1"] = p["lin1_w"].T.astype(mxu_dtype)              # (E, F)
    out["b1"] = p["lin1_b"].reshape(1, F)
    out["w2"] = p["lin2_w"].T.astype(mxu_dtype)              # (F, E)
    out["b2"] = p["lin2_b"].reshape(1, E)
    out["g1"], out["be1"] = p["n1_g"].reshape(1, E), p["n1_b"].reshape(1, E)
    out["g2"], out["be2"] = p["n2_g"].reshape(1, E), p["n2_b"].reshape(1, E)
    out["g3"], out["be3"] = p["n3_g"].reshape(1, E), p["n3_b"].reshape(1, E)
    return out


def _default_vmem_budget_bytes():
    # v5e/v6e: 128 MiB physical VMEM -> ~96 MiB budget; v7x (and unknown):
    # 64 MiB physical -> leave headroom at ~48 MiB.
    try:
        kind = jax.devices()[0].device_kind.lower()
    except Exception:
        kind = ""
    if "v5" in kind or "v6" in kind:
        return 96 * 1024 * 1024
    return 48 * 1024 * 1024


def _estimate_block_vmem(bb, C, Pq, Pk, F, H, weight_bytes, mxu_itemsize):
    """Rough per-grid-step VMEM estimate (bytes) used to size batch_block."""
    f32 = 4
    # double-buffered query/key input blocks + output block
    io = 2 * bb * (Pq + Pk) * C * f32 + 2 * bb * Pq * C * f32
    work = bb * (
        Pq * 3 * C * (f32 + mxu_itemsize)        # fused QKV (acc + MXU copy)
        + Pk * 2 * C * (f32 + mxu_itemsize)      # fused KV
        + 3 * (Pq + Pk) * C * mxu_itemsize       # head-split q/k/v copies
        + 2 * H * Pq * max(Pq, Pk) * f32         # score / prob tiles
        + Pq * F * f32                           # FFN hidden
        + 6 * Pq * C * f32)                      # residual / LN temporaries
    return io + work + weight_bytes


def _choose_batch_block(B, C, Pq, Pk, F, H, weight_bytes, mxu_itemsize, budget):
    # Largest divisor of B that (a) keeps >= 2 grid steps when B > 1 (v7x
    # megacore sharding + DMA/compute pipelining) and (b) fits the VMEM budget.
    max_bb = max(1, B // 2) if B > 1 else 1
    best = 1
    for d in range(1, max_bb + 1):
        if B % d == 0 and _estimate_block_vmem(
                d, C, Pq, Pk, F, H, weight_bytes, mxu_itemsize) <= budget:
            best = d
    return best


def transformer_decoder_layer(query, key, query_pos, key_pos, torch_params,
                              num_heads, dim_feedforward, *,
                              mxu_dtype=jnp.bfloat16, approx_softmax=True,
                              batch_block=None, vmem_budget_bytes=None,
                              single_buffer_weights=True):
    """query: (B, C, Pq), key: (B, C, Pk) -> (B, C, Pq)  (float32).

    mxu_dtype=bfloat16 (default) is the production path on v5e/v6e/v7x (all
    have bf16-native MXUs); float32 is the exact/debug configuration."""
    del query_pos, key_pos  # posembed modules are None in this configuration
    B, C, Pq = query.shape
    Pk = key.shape[2]
    if C % num_heads != 0:
        raise ValueError(f"hidden_channel {C} must be divisible by num_heads "
                         f"{num_heads}")

    # Module-native (B, C, P) -> lane-dense (B, P, C) once in XLA (HBM side);
    # C == hidden_channel == 128 in production, so kernel loads/stores are
    # 128-lane dense and no in-kernel transposes are needed.
    q_t = jnp.swapaxes(query, 1, 2).astype(jnp.float32)
    k_t = jnp.swapaxes(key, 1, 2).astype(jnp.float32)

    kparams = make_kernel_params(torch_params, C, dim_feedforward,
                                 num_heads, mxu_dtype)
    weights = [kparams[name] for name in PARAM_ORDER]
    weight_bytes = sum(int(np.prod(w.shape)) * w.dtype.itemsize for w in weights)

    if vmem_budget_bytes is None:
        vmem_budget_bytes = _default_vmem_budget_bytes()
    mxu_itemsize = jnp.dtype(mxu_dtype).itemsize
    if batch_block is None:
        batch_block = _choose_batch_block(B, C, Pq, Pk, dim_feedforward,
                                          num_heads, weight_bytes,
                                          mxu_itemsize, vmem_budget_bytes)
    elif B % batch_block != 0:
        raise ValueError(f"batch_block {batch_block} must divide batch {B}")
    nblk = B // batch_block

    def build(weight_pipeline_mode):
        def wspec(arr):
            nd = arr.ndim
            if weight_pipeline_mode is None:
                return pl.BlockSpec(arr.shape, lambda b, _n=nd: (0,) * _n)
            return pl.BlockSpec(arr.shape, lambda b, _n=nd: (0,) * _n,
                                pipeline_mode=weight_pipeline_mode)

        in_specs = (
            [pl.BlockSpec((batch_block, Pq, C), lambda b: (b, 0, 0)),
             pl.BlockSpec((batch_block, Pk, C), lambda b: (b, 0, 0))]
            + [wspec(w) for w in weights]
        )
        out_spec = pl.BlockSpec((batch_block, Pq, C), lambda b: (b, 0, 0))
        return pl.pallas_call(
            functools.partial(decoder_layer_kernel, num_heads=num_heads,
                              mxu_dtype=mxu_dtype,
                              approx_softmax=approx_softmax),
            out_shape=jax.ShapeDtypeStruct((B, Pq, C), jnp.float32),
            grid=(nblk,),
            in_specs=in_specs,
            out_specs=out_spec,
            compiler_params=pltpu.CompilerParams(
                dimension_semantics=("parallel",),   # independent batch blocks
                vmem_limit_bytes=vmem_budget_bytes),
        )

    # Weights have constant index maps -> single-buffer them when the grid has
    # more than one step; fall back to default double-buffering if the
    # installed JAX rejects pipeline_mode=pl.Buffered(1).
    want_single = single_buffer_weights and nblk > 1
    try:
        call = build(pl.Buffered(1) if want_single else None)
        out = jax.block_until_ready(call(q_t, k_t, *weights))
    except Exception:
        if not want_single:
            raise
        out = jax.block_until_ready(build(None)(q_t, k_t, *weights))

    return jnp.swapaxes(out, 1, 2)  # back to module-native (B, C, Pq)


# ------------------------- pure-JAX reference ------------------------------ #

def reference_decoder_layer(query, key, torch_params, num_heads):
    """Direct transcription of the decoder-layer forward (eval, no posembed)."""
    p = torch_params
    x = jnp.transpose(query, (2, 0, 1)).astype(jnp.float32)   # (Pq, B, C)
    xk = jnp.transpose(key, (2, 0, 1)).astype(jnp.float32)    # (Pk, B, C)

    def mha(q_in, k_in, v_in, in_w, in_b, out_w, out_b):
        L, Bn, E = q_in.shape
        S = k_in.shape[0]
        hd = E // num_heads
        q = q_in @ in_w[:E].T + in_b[:E]
        k = k_in @ in_w[E:2 * E].T + in_b[E:2 * E]
        v = v_in @ in_w[2 * E:].T + in_b[2 * E:]
        q = q * (float(hd) ** -0.5)
        q = q.reshape(L, Bn * num_heads, hd).transpose(1, 0, 2)
        k = k.reshape(S, Bn * num_heads, hd).transpose(1, 0, 2)
        v = v.reshape(S, Bn * num_heads, hd).transpose(1, 0, 2)
        w = jnp.einsum("bld,bsd->bls", q, k)
        w = jax.nn.softmax(w, axis=-1)
        o = jnp.einsum("bls,bsd->bld", w, v)
        o = o.transpose(1, 0, 2).reshape(L, Bn, E)
        return o @ out_w.T + out_b

    def ln(z, g, b):
        mu = z.mean(-1, keepdims=True)
        var = ((z - mu) ** 2).mean(-1, keepdims=True)
        return (z - mu) / jnp.sqrt(var + 1e-5) * g + b

    sa = mha(x, x, x, p["self_in_w"], p["self_in_b"],
             p["self_out_w"], p["self_out_b"])
    x = ln(x + sa, p["n1_g"], p["n1_b"])
    ca = mha(x, xk, xk, p["cross_in_w"], p["cross_in_b"],
             p["cross_out_w"], p["cross_out_b"])
    x = ln(x + ca, p["n2_g"], p["n2_b"])
    ff = _gelu_tanh(x @ p["lin1_w"].T + p["lin1_b"]) @ p["lin2_w"].T + p["lin2_b"]
    x = ln(x + ff, p["n3_g"], p["n3_b"])
    return jnp.transpose(x, (1, 2, 0))  # (B, C, Pq)


# --------------------------------- main ------------------------------------ #

if __name__ == "__main__":
    B, C, Pq, Pk = 2, 32, 8, 16          # batch, d_model, #queries, #keys
    NHEAD, DFF = 4, 4 * 32               # heads, dim_feedforward (= 4 * C)

    root = jax.random.PRNGKey(0)
    keys = jax.random.split(root, 24)

    def rnd(k, shape, scale=0.1):
        return (scale * jax.random.normal(k, shape)).astype(jnp.float32)

    torch_params = {
        "self_in_w":  rnd(keys[0], (3 * C, C)),
        "self_in_b":  rnd(keys[1], (3 * C,)),
        "self_out_w": rnd(keys[2], (C, C)),
        "self_out_b": rnd(keys[3], (C,)),
        "cross_in_w":  rnd(keys[4], (3 * C, C)),
        "cross_in_b":  rnd(keys[5], (3 * C,)),
        "cross_out_w": rnd(keys[6], (C, C)),
        "cross_out_b": rnd(keys[7], (C,)),
        "lin1_w": rnd(keys[8], (DFF, C)),
        "lin1_b": rnd(keys[9], (DFF,)),
        "lin2_w": rnd(keys[10], (C, DFF)),
        "lin2_b": rnd(keys[11], (C,)),
        "n1_g": 1.0 + rnd(keys[12], (C,)), "n1_b": rnd(keys[13], (C,)),
        "n2_g": 1.0 + rnd(keys[14], (C,)), "n2_b": rnd(keys[15], (C,)),
        "n3_g": 1.0 + rnd(keys[16], (C,)), "n3_b": rnd(keys[17], (C,)),
    }

    query = rnd(keys[18], (B, C, Pq), scale=1.0)      # (B, C, Pq)
    key_t = rnd(keys[19], (B, C, Pk), scale=1.0)      # (B, C, Pk)
    query_pos = rnd(keys[20], (B, Pq, 3), scale=1.0)  # unused (posembed=None)
    key_pos = rnd(keys[21], (B, Pk, 3), scale=1.0)    # unused (posembed=None)

    ref = jax.block_until_ready(
        reference_decoder_layer(query, key_t, torch_params, NHEAD))

    # Exact/debug config: f32 MXU operands, exact softmax divide.
    out_f32 = transformer_decoder_layer(query, key_t, query_pos, key_pos,
                                        torch_params, NHEAD, DFF,
                                        mxu_dtype=jnp.float32,
                                        approx_softmax=False)
    assert out_f32.shape == (B, C, Pq)
    np.testing.assert_allclose(np.asarray(out_f32), np.asarray(ref),
                               rtol=1e-2, atol=1e-2)

    # Production config (all generations): bf16 MXU operands, f32 accumulation
    # and f32 LayerNorm/softmax statistics, approximate reciprocal in softmax.
    out_bf16 = transformer_decoder_layer(query, key_t, query_pos, key_pos,
                                         torch_params, NHEAD, DFF,
                                         mxu_dtype=jnp.bfloat16,
                                         approx_softmax=True)
    assert out_bf16.shape == (B, C, Pq)
    np.testing.assert_allclose(np.asarray(out_bf16), np.asarray(ref),
                               rtol=5e-2, atol=5e-2)

    print("KERNEL_OK")
</pallas_src>

<mosaic_0001>
module attributes {stable_mosaic.version = 11 : i64} {
  func.func @decoder_layer_kernel(%arg0: i32, %arg1: memref<1x8x32xf32, #tpu.memory_space<vmem>>, %arg2: memref<1x16x32xf32, #tpu.memory_space<vmem>>, %arg3: memref<32x96xf32, #tpu.memory_space<vmem>>, %arg4: memref<1x96xf32, #tpu.memory_space<vmem>>, %arg5: memref<32x32xf32, #tpu.memory_space<vmem>>, %arg6: memref<1x32xf32, #tpu.memory_space<vmem>>, %arg7: memref<32x32xf32, #tpu.memory_space<vmem>>, %arg8: memref<1x32xf32, #tpu.memory_space<vmem>>, %arg9: memref<32x64xf32, #tpu.memory_space<vmem>>, %arg10: memref<1x64xf32, #tpu.memory_space<vmem>>, %arg11: memref<32x32xf32, #tpu.memory_space<vmem>>, %arg12: memref<1x32xf32, #tpu.memory_space<vmem>>, %arg13: memref<32x128xf32, #tpu.memory_space<vmem>>, %arg14: memref<1x128xf32, #tpu.memory_space<vmem>>, %arg15: memref<128x32xf32, #tpu.memory_space<vmem>>, %arg16: memref<1x32xf32, #tpu.memory_space<vmem>>, %arg17: memref<1x32xf32, #tpu.memory_space<vmem>>, %arg18: memref<1x32xf32, #tpu.memory_space<vmem>>, %arg19: memref<1x32xf32, #tpu.memory_space<vmem>>, %arg20: memref<1x32xf32, #tpu.memory_space<vmem>>, %arg21: memref<1x32xf32, #tpu.memory_space<vmem>>, %arg22: memref<1x32xf32, #tpu.memory_space<vmem>>, %arg23: memref<1x8x32xf32, #tpu.memory_space<vmem>>) attributes {dimension_semantics = [#tpu.dimension_semantics<parallel>], iteration_bounds = array<i64: 2>, scalar_prefetch = 0 : i64, scratch_operands = 0 : i64, tpu.core_type = #tpu.core_type<tc>, window_params = [{transform_indices = @transform_0, window_bounds = array<i64: 1, 8, 32>}, {transform_indices = @transform_1, window_bounds = array<i64: 1, 16, 32>}, {pipeline_mode = #tpu.pipeline_mode<synchronous>, transform_indices = @transform_2, window_bounds = array<i64: 32, 96>}, {pipeline_mode = #tpu.pipeline_mode<synchronous>, transform_indices = @transform_3, window_bounds = array<i64: 1, 96>}, {pipeline_mode = #tpu.pipeline_mode<synchronous>, transform_indices = @transform_4, window_bounds = array<i64: 32, 32>}, {pipeline_mode = #tpu.pipeline_mode<synchronous>, transform_indices = @transform_5, window_bounds = array<i64: 1, 32>}, {pipeline_mode = #tpu.pipeline_mode<synchronous>, transform_indices = @transform_6, window_bounds = array<i64: 32, 32>}, {pipeline_mode = #tpu.pipeline_mode<synchronous>, transform_indices = @transform_7, window_bounds = array<i64: 1, 32>}, {pipeline_mode = #tpu.pipeline_mode<synchronous>, transform_indices = @transform_8, window_bounds = array<i64: 32, 64>}, {pipeline_mode = #tpu.pipeline_mode<synchronous>, transform_indices = @transform_9, window_bounds = array<i64: 1, 64>}, {pipeline_mode = #tpu.pipeline_mode<synchronous>, transform_indices = @transform_10, window_bounds = array<i64: 32, 32>}, {pipeline_mode = #tpu.pipeline_mode<synchronous>, transform_indices = @transform_11, window_bounds = array<i64: 1, 32>}, {pipeline_mode = #tpu.pipeline_mode<synchronous>, transform_indices = @transform_12, window_bounds = array<i64: 32, 128>}, {pipeline_mode = #tpu.pipeline_mode<synchronous>, transform_indices = @transform_13, window_bounds = array<i64: 1, 128>}, {pipeline_mode = #tpu.pipeline_mode<synchronous>, transform_indices = @transform_14, window_bounds = array<i64: 128, 32>}, {pipeline_mode = #tpu.pipeline_mode<synchronous>, transform_indices = @transform_15, window_bounds = array<i64: 1, 32>}, {pipeline_mode = #tpu.pipeline_mode<synchronous>, transform_indices = @transform_16, window_bounds = array<i64: 1, 32>}, {pipeline_mode = #tpu.pipeline_mode<synchronous>, transform_indices = @transform_17, window_bounds = array<i64: 1, 32>}, {pipeline_mode = #tpu.pipeline_mode<synchronous>, transform_indices = @transform_18, window_bounds = array<i64: 1, 32>}, {pipeline_mode = #tpu.pipeline_mode<synchronous>, transform_indices = @transform_19, window_bounds = array<i64: 1, 32>}, {pipeline_mode = #tpu.pipeline_mode<synchronous>, transform_indices = @transform_20, window_bounds = array<i64: 1, 32>}, {pipeline_mode = #tpu.pipeline_mode<synchronous>, transform_indices = @transform_21, window_bounds = array<i64: 1, 32>}, {transform_indices = @transform_22, window_bounds = array<i64: 1, 8, 32>}]} {
    %c0 = arith.constant 0 : index
    %c0_0 = arith.constant 0 : index
    %c0_1 = arith.constant 0 : index
    %0 = vector.load %arg1[%c0, %c0_0, %c0_1] : memref<1x8x32xf32, #tpu.memory_space<vmem>>, vector<1x8x32xf32>
    %1 = vector.shape_cast %0 : vector<1x8x32xf32> to vector<8x32xf32>
    %c0_2 = arith.constant 0 : index
    %c0_3 = arith.constant 0 : index
    %c0_4 = arith.constant 0 : index
    %2 = vector.load %arg2[%c0_2, %c0_3, %c0_4] : memref<1x16x32xf32, #tpu.memory_space<vmem>>, vector<1x16x32xf32>
    %3 = vector.shape_cast %2 : vector<1x16x32xf32> to vector<16x32xf32>
    %c0_5 = arith.constant 0 : index
    %c0_6 = arith.constant 0 : index
    %4 = vector.load %arg3[%c0_5, %c0_6] : memref<32x96xf32, #tpu.memory_space<vmem>>, vector<32x96xf32>
    %cst = arith.constant dense<0.000000e+00> : vector<8x96xf32>
    %5 = tpu.matmul %1, %4, %cst {dimension_numbers = #tpu.dot_dimension_numbers<[1], [0], [0], [1], [0, 0, 1, 1], [], []>} : vector<8x32xf32>, vector<32x96xf32>, vector<8x96xf32> -> vector<8x96xf32>
    %c0_7 = arith.constant 0 : index
    %c0_8 = arith.constant 0 : index
    %6 = vector.load %arg4[%c0_7, %c0_8] : memref<1x96xf32, #tpu.memory_space<vmem>>, vector<1x96xf32>
    %7 = vector.broadcast %6 : vector<1x96xf32> to vector<8x96xf32>
    %8 = arith.addf %5, %7 : vector<8x96xf32>
    %9 = vector.extract_strided_slice %8 {offsets = [0, 0], sizes = [8, 32], strides = [1, 1]} : vector<8x96xf32> to vector<8x32xf32>
    %10 = vector.extract_strided_slice %8 {offsets = [0, 32], sizes = [8, 32], strides = [1, 1]} : vector<8x96xf32> to vector<8x32xf32>
    %11 = vector.extract_strided_slice %8 {offsets = [0, 64], sizes = [8, 32], strides = [1, 1]} : vector<8x96xf32> to vector<8x32xf32>
    %12 = vector.extract_strided_slice %9 {offsets = [0, 0], sizes = [8, 8], strides = [1, 1]} : vector<8x32xf32> to vector<8x8xf32>
    %13 = vector.shape_cast %12 : vector<8x8xf32> to vector<1x8x8xf32>
    %14 = vector.extract_strided_slice %9 {offsets = [0, 8], sizes = [8, 8], strides = [1, 1]} : vector<8x32xf32> to vector<8x8xf32>
    %15 = vector.shape_cast %14 : vector<8x8xf32> to vector<1x8x8xf32>
    %16 = vector.extract_strided_slice %9 {offsets = [0, 16], sizes = [8, 8], strides = [1, 1]} : vector<8x32xf32> to vector<8x8xf32>
    %17 = vector.shape_cast %16 : vector<8x8xf32> to vector<1x8x8xf32>
    %18 = vector.extract_strided_slice %9 {offsets = [0, 24], sizes = [8, 8], strides = [1, 1]} : vector<8x32xf32> to vector<8x8xf32>
    %19 = vector.shape_cast %18 : vector<8x8xf32> to vector<1x8x8xf32>
    %20 = vector.shape_cast %13 : vector<1x8x8xf32> to vector<1x1x8x8xf32>
    %21 = vector.shape_cast %15 : vector<1x8x8xf32> to vector<1x1x8x8xf32>
    %22 = vector.shape_cast %17 : vector<1x8x8xf32> to vector<1x1x8x8xf32>
    %23 = vector.shape_cast %19 : vector<1x8x8xf32> to vector<1x1x8x8xf32>
    %24 = tpu.concatenate %20, %21, %22, %23 in 1 : vector<1x1x8x8xf32>, vector<1x1x8x8xf32>, vector<1x1x8x8xf32>, vector<1x1x8x8xf32> -> vector<1x4x8x8xf32>
    %25 = vector.shape_cast %24 : vector<1x4x8x8xf32> to vector<4x8x8xf32>
    %26 = vector.extract_strided_slice %10 {offsets = [0, 0], sizes = [8, 8], strides = [1, 1]} : vector<8x32xf32> to vector<8x8xf32>
    %27 = vector.shape_cast %26 : vector<8x8xf32> to vector<1x8x8xf32>
    %28 = vector.extract_strided_slice %10 {offsets = [0, 8], sizes = [8, 8], strides = [1, 1]} : vector<8x32xf32> to vector<8x8xf32>
    %29 = vector.shape_cast %28 : vector<8x8xf32> to vector<1x8x8xf32>
    %30 = vector.extract_strided_slice %10 {offsets = [0, 16], sizes = [8, 8], strides = [1, 1]} : vector<8x32xf32> to vector<8x8xf32>
    %31 = vector.shape_cast %30 : vector<8x8xf32> to vector<1x8x8xf32>
    %32 = vector.extract_strided_slice %10 {offsets = [0, 24], sizes = [8, 8], strides = [1, 1]} : vector<8x32xf32> to vector<8x8xf32>
    %33 = vector.shape_cast %32 : vector<8x8xf32> to vector<1x8x8xf32>
    %34 = vector.shape_cast %27 : vector<1x8x8xf32> to vector<1x1x8x8xf32>
    %35 = vector.shape_cast %29 : vector<1x8x8xf32> to vector<1x1x8x8xf32>
    %36 = vector.shape_cast %31 : vector<1x8x8xf32> to vector<1x1x8x8xf32>
    %37 = vector.shape_cast %33 : vector<1x8x8xf32> to vector<1x1x8x8xf32>
    %38 = tpu.concatenate %34, %35, %36, %37 in 1 : vector<1x1x8x8xf32>, vector<1x1x8x8xf32>, vector<1x1x8x8xf32>, vector<1x1x8x8xf32> -> vector<1x4x8x8xf32>
    %39 = vector.shape_cast %38 : vector<1x4x8x8xf32> to vector<4x8x8xf32>
    %40 = vector.extract_strided_slice %11 {offsets = [0, 0], sizes = [8, 8], strides = [1, 1]} : vector<8x32xf32> to vector<8x8xf32>
    %41 = vector.shape_cast %40 : vector<8x8xf32> to vector<1x8x8xf32>
    %42 = vector.extract_strided_slice %11 {offsets = [0, 8], sizes = [8, 8], strides = [1, 1]} : vector<8x32xf32> to vector<8x8xf32>
    %43 = vector.shape_cast %42 : vector<8x8xf32> to vector<1x8x8xf32>
    %44 = vector.extract_strided_slice %11 {offsets = [0, 16], sizes = [8, 8], strides = [1, 1]} : vector<8x32xf32> to vector<8x8xf32>
    %45 = vector.shape_cast %44 : vector<8x8xf32> to vector<1x8x8xf32>
    %46 = vector.extract_strided_slice %11 {offsets = [0, 24], sizes = [8, 8], strides = [1, 1]} : vector<8x32xf32> to vector<8x8xf32>
    %47 = vector.shape_cast %46 : vector<8x8xf32> to vector<1x8x8xf32>
    %48 = vector.shape_cast %41 : vector<1x8x8xf32> to vector<1x1x8x8xf32>
    %49 = vector.shape_cast %43 : vector<1x8x8xf32> to vector<1x1x8x8xf32>
    %50 = vector.shape_cast %45 : vector<1x8x8xf32> to vector<1x1x8x8xf32>
    %51 = vector.shape_cast %47 : vector<1x8x8xf32> to vector<1x1x8x8xf32>
    %52 = tpu.concatenate %48, %49, %50, %51 in 1 : vector<1x1x8x8xf32>, vector<1x1x8x8xf32>, vector<1x1x8x8xf32>, vector<1x1x8x8xf32> -> vector<1x4x8x8xf32>
    %53 = vector.shape_cast %52 : vector<1x4x8x8xf32> to vector<4x8x8xf32>
    "tpu.trace_start"() <{level = 10 : i32, message = "bqd,bkd->bqk"}> : () -> ()
    %cst_9 = arith.constant dense<0.000000e+00> : vector<4x8x8xf32>
    %54 = tpu.matmul %25, %39, %cst_9 {dimension_numbers = #tpu.dot_dimension_numbers<[2], [2], [1], [1], [0, 0, 0, 1, 1, 1], [0], [0]>} : vector<4x8x8xf32>, vector<4x8x8xf32>, vector<4x8x8xf32> -> vector<4x8x8xf32>
    "tpu.trace_stop"() : () -> ()
    %cst_10 = arith.constant dense<0xFF800000> : vector<4x8xf32>
    %55 = vector.multi_reduction <maximumf>, %54, %cst_10 [2] : vector<4x8x8xf32> to vector<4x8xf32>
    %56 = vector.shape_cast %55 : vector<4x8xf32> to vector<4x8x1xf32>
    %57 = vector.broadcast %56 : vector<4x8x1xf32> to vector<4x8x8xf32>
    %58 = arith.subf %54, %57 : vector<4x8x8xf32>
    %59 = math.exp %58 : vector<4x8x8xf32>
    %cst_11 = arith.constant dense<0.000000e+00> : vector<4x8xf32>
    %60 = vector.multi_reduction <add>, %59, %cst_11 [2] : vector<4x8x8xf32> to vector<4x8xf32>
    %61 = vector.shape_cast %60 : vector<4x8xf32> to vector<4x8x1xf32>
    %62 = vector.broadcast %61 : vector<4x8x1xf32> to vector<4x8x8xf32>
    %63 = arith.divf %59, %62 : vector<4x8x8xf32>
    "tpu.trace_start"() <{level = 10 : i32, message = "bqk,bkd->bqd"}> : () -> ()
    %cst_12 = arith.constant dense<0.000000e+00> : vector<4x8x8xf32>
    %64 = tpu.matmul %63, %53, %cst_12 {dimension_numbers = #tpu.dot_dimension_numbers<[2], [1], [1], [2], [0, 0, 0, 1, 1, 2], [0], [0]>} : vector<4x8x8xf32>, vector<4x8x8xf32>, vector<4x8x8xf32> -> vector<4x8x8xf32>
    "tpu.trace_stop"() : () -> ()
    %65 = vector.shape_cast %64 : vector<4x8x8xf32> to vector<1x4x8x8xf32>
    %66 = vector.extract_strided_slice %65 {offsets = [0, 0, 0, 0], sizes = [1, 1, 8, 8], strides = [1, 1, 1, 1]} : vector<1x4x8x8xf32> to vector<1x1x8x8xf32>
    %67 = vector.shape_cast %66 : vector<1x1x8x8xf32> to vector<1x8x8xf32>
    %68 = vector.extract_strided_slice %65 {offsets = [0, 1, 0, 0], sizes = [1, 1, 8, 8], strides = [1, 1, 1, 1]} : vector<1x4x8x8xf32> to vector<1x1x8x8xf32>
    %69 = vector.shape_cast %68 : vector<1x1x8x8xf32> to vector<1x8x8xf32>
    %70 = vector.extract_strided_slice %65 {offsets = [0, 2, 0, 0], sizes = [1, 1, 8, 8], strides = [1, 1, 1, 1]} : vector<1x4x8x8xf32> to vector<1x1x8x8xf32>
    %71 = vector.shape_cast %70 : vector<1x1x8x8xf32> to vector<1x8x8xf32>
    %72 = vector.extract_strided_slice %65 {offsets = [0, 3, 0, 0], sizes = [1, 1, 8, 8], strides = [1, 1, 1, 1]} : vector<1x4x8x8xf32> to vector<1x1x8x8xf32>
    %73 = vector.shape_cast %72 : vector<1x1x8x8xf32> to vector<1x8x8xf32>
    %74 = tpu.concatenate %67, %69, %71, %73 in 2 : vector<1x8x8xf32>, vector<1x8x8xf32>, vector<1x8x8xf32>, vector<1x8x8xf32> -> vector<1x8x32xf32>
    %75 = vector.shape_cast %74 : vector<1x8x32xf32> to vector<8x32xf32>
    %c0_13 = arith.constant 0 : index
    %c0_14 = arith.constant 0 : index
    %76 = vector.load %arg5[%c0_13, %c0_14] : memref<32x32xf32, #tpu.memory_space<vmem>>, vector<32x32xf32>
    %cst_15 = arith.constant dense<0.000000e+00> : vector<8x32xf32>
    %77 = tpu.matmul %75, %76, %cst_15 {dimension_numbers = #tpu.dot_dimension_numbers<[1], [0], [0], [1], [0, 0, 1, 1], [], []>} : vector<8x32xf32>, vector<32x32xf32>, vector<8x32xf32> -> vector<8x32xf32>
    %c0_16 = arith.constant 0 : index
    %c0_17 = arith.constant 0 : index
    %78 = vector.load %arg6[%c0_16, %c0_17] : memref<1x32xf32, #tpu.memory_space<vmem>>, vector<1x32xf32>
    %79 = vector.broadcast %78 : vector<1x32xf32> to vector<8x32xf32>
    %80 = arith.addf %77, %79 : vector<8x32xf32>
    %81 = arith.addf %1, %80 : vector<8x32xf32>
    %c0_18 = arith.constant 0 : index
    %c0_19 = arith.constant 0 : index
    %82 = vector.load %arg17[%c0_18, %c0_19] : memref<1x32xf32, #tpu.memory_space<vmem>>, vector<1x32xf32>
    %c0_20 = arith.constant 0 : index
    %c0_21 = arith.constant 0 : index
    %83 = vector.load %arg18[%c0_20, %c0_21] : memref<1x32xf32, #tpu.memory_space<vmem>>, vector<1x32xf32>
    %cst_22 = arith.constant dense<0.000000e+00> : vector<8xf32>
    %84 = vector.multi_reduction <add>, %81, %cst_22 [1] : vector<8x32xf32> to vector<8xf32>
    %85 = vector.shape_cast %84 : vector<8xf32> to vector<8x1xf32>
    %cst_23 = arith.constant 3.200000e+01 : f32
    %86 = vector.broadcast %cst_23 : f32 to vector<8x1xf32>
    %87 = arith.divf %85, %86 : vector<8x1xf32>
    %88 = vector.broadcast %87 : vector<8x1xf32> to vector<8x32xf32>
    %89 = arith.subf %81, %88 : vector<8x32xf32>
    %90 = arith.mulf %89, %89 : vector<8x32xf32>
    %cst_24 = arith.constant dense<0.000000e+00> : vector<8xf32>
    %91 = vector.multi_reduction <add>, %90, %cst_24 [1] : vector<8x32xf32> to vector<8xf32>
    %92 = vector.shape_cast %91 : vector<8xf32> to vector<8x1xf32>
    %cst_25 = arith.constant 3.200000e+01 : f32
    %93 = vector.broadcast %cst_25 : f32 to vector<8x1xf32>
    %94 = arith.divf %92, %93 : vector<8x1xf32>
    %95 = vector.broadcast %87 : vector<8x1xf32> to vector<8x32xf32>
    %96 = arith.subf %81, %95 : vector<8x32xf32>
    %cst_26 = arith.constant 9.99999974E-6 : f32
    %97 = vector.broadcast %cst_26 : f32 to vector<8x1xf32>
    %98 = arith.addf %94, %97 : vector<8x1xf32>
    %99 = math.rsqrt %98 : vector<8x1xf32>
    %100 = vector.broadcast %99 : vector<8x1xf32> to vector<8x32xf32>
    %101 = arith.mulf %96, %100 : vector<8x32xf32>
    %102 = vector.broadcast %82 : vector<1x32xf32> to vector<8x32xf32>
    %103 = arith.mulf %101, %102 : vector<8x32xf32>
    %104 = vector.broadcast %83 : vector<1x32xf32> to vector<8x32xf32>
    %105 = arith.addf %103, %104 : vector<8x32xf32>
    %c0_27 = arith.constant 0 : index
    %c0_28 = arith.constant 0 : index
    %106 = vector.load %arg7[%c0_27, %c0_28] : memref<32x32xf32, #tpu.memory_space<vmem>>, vector<32x32xf32>
    %cst_29 = arith.constant dense<0.000000e+00> : vector<8x32xf32>
    %107 = tpu.matmul %105, %106, %cst_29 {dimension_numbers = #tpu.dot_dimension_numbers<[1], [0], [0], [1], [0, 0, 1, 1], [], []>} : vector<8x32xf32>, vector<32x32xf32>, vector<8x32xf32> -> vector<8x32xf32>
    %c0_30 = arith.constant 0 : index
    %c0_31 = arith.constant 0 : index
    %108 = vector.load %arg8[%c0_30, %c0_31] : memref<1x32xf32, #tpu.memory_space<vmem>>, vector<1x32xf32>
    %109 = vector.broadcast %108 : vector<1x32xf32> to vector<8x32xf32>
    %110 = arith.addf %107, %109 : vector<8x32xf32>
    %c0_32 = arith.constant 0 : index
    %c0_33 = arith.constant 0 : index
    %111 = vector.load %arg9[%c0_32, %c0_33] : memref<32x64xf32, #tpu.memory_space<vmem>>, vector<32x64xf32>
    %cst_34 = arith.constant dense<0.000000e+00> : vector<16x64xf32>
    %112 = tpu.matmul %3, %111, %cst_34 {dimension_numbers = #tpu.dot_dimension_numbers<[1], [0], [0], [1], [0, 0, 1, 1], [], []>} : vector<16x32xf32>, vector<32x64xf32>, vector<16x64xf32> -> vector<16x64xf32>
    %c0_35 = arith.constant 0 : index
    %c0_36 = arith.constant 0 : index
    %113 = vector.load %arg10[%c0_35, %c0_36] : memref<1x64xf32, #tpu.memory_space<vmem>>, vector<1x64xf32>
    %114 = vector.broadcast %113 : vector<1x64xf32> to vector<16x64xf32>
    %115 = arith.addf %112, %114 : vector<16x64xf32>
    %116 = vector.extract_strided_slice %115 {offsets = [0, 0], sizes = [16, 32], strides = [1, 1]} : vector<16x64xf32> to vector<16x32xf32>
    %117 = vector.extract_strided_slice %115 {offsets = [0, 32], sizes = [16, 32], strides = [1, 1]} : vector<16x64xf32> to vector<16x32xf32>
    %118 = vector.extract_strided_slice %110 {offsets = [0, 0], sizes = [8, 8], strides = [1, 1]} : vector<8x32xf32> to vector<8x8xf32>
    %119 = vector.shape_cast %118 : vector<8x8xf32> to vector<1x8x8xf32>
    %120 = vector.extract_strided_slice %110 {offsets = [0, 8], sizes = [8, 8], strides = [1, 1]} : vector<8x32xf32> to vector<8x8xf32>
    %121 = vector.shape_cast %120 : vector<8x8xf32> to vector<1x8x8xf32>
    %122 = vector.extract_strided_slice %110 {offsets = [0, 16], sizes = [8, 8], strides = [1, 1]} : vector<8x32xf32> to vector<8x8xf32>
    %123 = vector.shape_cast %122 : vector<8x8xf32> to vector<1x8x8xf32>
    %124 = vector.extract_strided_slice %110 {offsets = [0, 24], sizes = [8, 8], strides = [1, 1]} : vector<8x32xf32> to vector<8x8xf32>
    %125 = vector.shape_cast %124 : vector<8x8xf32> to vector<1x8x8xf32>
    %126 = vector.shape_cast %119 : vector<1x8x8xf32> to vector<1x1x8x8xf32>
    %127 = vector.shape_cast %121 : vector<1x8x8xf32> to vector<1x1x8x8xf32>
    %128 = vector.shape_cast %123 : vector<1x8x8xf32> to vector<1x1x8x8xf32>
    %129 = vector.shape_cast %125 : vector<1x8x8xf32> to vector<1x1x8x8xf32>
    %130 = tpu.concatenate %126, %127, %128, %129 in 1 : vector<1x1x8x8xf32>, vector<1x1x8x8xf32>, vector<1x1x8x8xf32>, vector<1x1x8x8xf32> -> vector<1x4x8x8xf32>
    %131 = vector.shape_cast %130 : vector<1x4x8x8xf32> to vector<4x8x8xf32>
    %132 = vector.extract_strided_slice %116 {offsets = [0, 0], sizes = [16, 8], strides = [1, 1]} : vector<16x32xf32> to vector<16x8xf32>
    %133 = vector.shape_cast %132 : vector<16x8xf32> to vector<1x16x8xf32>
    %134 = vector.extract_strided_slice %116 {offsets = [0, 8], sizes = [16, 8], strides = [1, 1]} : vector<16x32xf32> to vector<16x8xf32>
    %135 = vector.shape_cast %134 : vector<16x8xf32> to vector<1x16x8xf32>
    %136 = vector.extract_strided_slice %116 {offsets = [0, 16], sizes = [16, 8], strides = [1, 1]} : vector<16x32xf32> to vector<16x8xf32>
    %137 = vector.shape_cast %136 : vector<16x8xf32> to vector<1x16x8xf32>
    %138 = vector.extract_strided_slice %116 {offsets = [0, 24], sizes = [16, 8], strides = [1, 1]} : vector<16x32xf32> to vector<16x8xf32>
    %139 = vector.shape_cast %138 : vector<16x8xf32> to vector<1x16x8xf32>
    %140 = vector.shape_cast %133 : vector<1x16x8xf32> to vector<1x1x16x8xf32>
    %141 = vector.shape_cast %135 : vector<1x16x8xf32> to vector<1x1x16x8xf32>
    %142 = vector.shape_cast %137 : vector<1x16x8xf32> to vector<1x1x16x8xf32>
    %143 = vector.shape_cast %139 : vector<1x16x8xf32> to vector<1x1x16x8xf32>
    %144 = tpu.concatenate %140, %141, %142, %143 in 1 : vector<1x1x16x8xf32>, vector<1x1x16x8xf32>, vector<1x1x16x8xf32>, vector<1x1x16x8xf32> -> vector<1x4x16x8xf32>
    %145 = vector.shape_cast %144 : vector<1x4x16x8xf32> to vector<4x16x8xf32>
    %146 = vector.extract_strided_slice %117 {offsets = [0, 0], sizes = [16, 8], strides = [1, 1]} : vector<16x32xf32> to vector<16x8xf32>
    %147 = vector.shape_cast %146 : vector<16x8xf32> to vector<1x16x8xf32>
    %148 = vector.extract_strided_slice %117 {offsets = [0, 8], sizes = [16, 8], strides = [1, 1]} : vector<16x32xf32> to vector<16x8xf32>
    %149 = vector.shape_cast %148 : vector<16x8xf32> to vector<1x16x8xf32>
    %150 = vector.extract_strided_slice %117 {offsets = [0, 16], sizes = [16, 8], strides = [1, 1]} : vector<16x32xf32> to vector<16x8xf32>
    %151 = vector.shape_cast %150 : vector<16x8xf32> to vector<1x16x8xf32>
    %152 = vector.extract_strided_slice %117 {offsets = [0, 24], sizes = [16, 8], strides = [1, 1]} : vector<16x32xf32> to vector<16x8xf32>
    %153 = vector.shape_cast %152 : vector<16x8xf32> to vector<1x16x8xf32>
    %154 = vector.shape_cast %147 : vector<1x16x8xf32> to vector<1x1x16x8xf32>
    %155 = vector.shape_cast %149 : vector<1x16x8xf32> to vector<1x1x16x8xf32>
    %156 = vector.shape_cast %151 : vector<1x16x8xf32> to vector<1x1x16x8xf32>
    %157 = vector.shape_cast %153 : vector<1x16x8xf32> to vector<1x1x16x8xf32>
    %158 = tpu.concatenate %154, %155, %156, %157 in 1 : vector<1x1x16x8xf32>, vector<1x1x16x8xf32>, vector<1x1x16x8xf32>, vector<1x1x16x8xf32> -> vector<1x4x16x8xf32>
    %159 = vector.shape_cast %158 : vector<1x4x16x8xf32> to vector<4x16x8xf32>
    "tpu.trace_start"() <{level = 10 : i32, message = "bqd,bkd->bqk"}> : () -> ()
    %cst_37 = arith.constant dense<0.000000e+00> : vector<4x8x16xf32>
    %160 = tpu.matmul %131, %145, %cst_37 {dimension_numbers = #tpu.dot_dimension_numbers<[2], [2], [1], [1], [0, 0, 0, 1, 1, 1], [0], [0]>} : vector<4x8x8xf32>, vector<4x16x8xf32>, vector<4x8x16xf32> -> vector<4x8x16xf32>
    "tpu.trace_stop"() : () -> ()
    %cst_38 = arith.constant dense<0xFF800000> : vector<4x8xf32>
    %161 = vector.multi_reduction <maximumf>, %160, %cst_38 [2] : vector<4x8x16xf32> to vector<4x8xf32>
    %162 = vector.shape_cast %161 : vector<4x8xf32> to vector<4x8x1xf32>
    %163 = vector.broadcast %162 : vector<4x8x1xf32> to vector<4x8x16xf32>
    %164 = arith.subf %160, %163 : vector<4x8x16xf32>
    %165 = math.exp %164 : vector<4x8x16xf32>
    %cst_39 = arith.constant dense<0.000000e+00> : vector<4x8xf32>
    %166 = vector.multi_reduction <add>, %165, %cst_39 [2] : vector<4x8x16xf32> to vector<4x8xf32>
    %167 = vector.shape_cast %166 : vector<4x8xf32> to vector<4x8x1xf32>
    %168 = vector.broadcast %167 : vector<4x8x1xf32> to vector<4x8x16xf32>
    %169 = arith.divf %165, %168 : vector<4x8x16xf32>
    "tpu.trace_start"() <{level = 10 : i32, message = "bqk,bkd->bqd"}> : () -> ()
    %cst_40 = arith.constant dense<0.000000e+00> : vector<4x8x8xf32>
    %170 = tpu.matmul %169, %159, %cst_40 {dimension_numbers = #tpu.dot_dimension_numbers<[2], [1], [1], [2], [0, 0, 0, 1, 1, 2], [0], [0]>} : vector<4x8x16xf32>, vector<4x16x8xf32>, vector<4x8x8xf32> -> vector<4x8x8xf32>
    "tpu.trace_stop"() : () -> ()
    %171 = vector.shape_cast %170 : vector<4x8x8xf32> to vector<1x4x8x8xf32>
    %172 = vector.extract_strided_slice %171 {offsets = [0, 0, 0, 0], sizes = [1, 1, 8, 8], strides = [1, 1, 1, 1]} : vector<1x4x8x8xf32> to vector<1x1x8x8xf32>
    %173 = vector.shape_cast %172 : vector<1x1x8x8xf32> to vector<1x8x8xf32>
    %174 = vector.extract_strided_slice %171 {offsets = [0, 1, 0, 0], sizes = [1, 1, 8, 8], strides = [1, 1, 1, 1]} : vector<1x4x8x8xf32> to vector<1x1x8x8xf32>
    %175 = vector.shape_cast %174 : vector<1x1x8x8xf32> to vector<1x8x8xf32>
    %176 = vector.extract_strided_slice %171 {offsets = [0, 2, 0, 0], sizes = [1, 1, 8, 8], strides = [1, 1, 1, 1]} : vector<1x4x8x8xf32> to vector<1x1x8x8xf32>
    %177 = vector.shape_cast %176 : vector<1x1x8x8xf32> to vector<1x8x8xf32>
    %178 = vector.extract_strided_slice %171 {offsets = [0, 3, 0, 0], sizes = [1, 1, 8, 8], strides = [1, 1, 1, 1]} : vector<1x4x8x8xf32> to vector<1x1x8x8xf32>
    %179 = vector.shape_cast %178 : vector<1x1x8x8xf32> to vector<1x8x8xf32>
    %180 = tpu.concatenate %173, %175, %177, %179 in 2 : vector<1x8x8xf32>, vector<1x8x8xf32>, vector<1x8x8xf32>, vector<1x8x8xf32> -> vector<1x8x32xf32>
    %181 = vector.shape_cast %180 : vector<1x8x32xf32> to vector<8x32xf32>
    %c0_41 = arith.constant 0 : index
    %c0_42 = arith.constant 0 : index
    %182 = vector.load %arg11[%c0_41, %c0_42] : memref<32x32xf32, #tpu.memory_space<vmem>>, vector<32x32xf32>
    %cst_43 = arith.constant dense<0.000000e+00> : vector<8x32xf32>
    %183 = tpu.matmul %181, %182, %cst_43 {dimension_numbers = #tpu.dot_dimension_numbers<[1], [0], [0], [1], [0, 0, 1, 1], [], []>} : vector<8x32xf32>, vector<32x32xf32>, vector<8x32xf32> -> vector<8x32xf32>
    %c0_44 = arith.constant 0 : index
    %c0_45 = arith.constant 0 : index
    %184 = vector.load %arg12[%c0_44, %c0_45] : memref<1x32xf32, #tpu.memory_space<vmem>>, vector<1x32xf32>
    %185 = vector.broadcast %184 : vector<1x32xf32> to vector<8x32xf32>
    %186 = arith.addf %183, %185 : vector<8x32xf32>
    %187 = arith.addf %105, %186 : vector<8x32xf32>
    %c0_46 = arith.constant 0 : index
    %c0_47 = arith.constant 0 : index
    %188 = vector.load %arg19[%c0_46, %c0_47] : memref<1x32xf32, #tpu.memory_space<vmem>>, vector<1x32xf32>
    %c0_48 = arith.constant 0 : index
    %c0_49 = arith.constant 0 : index
    %189 = vector.load %arg20[%c0_48, %c0_49] : memref<1x32xf32, #tpu.memory_space<vmem>>, vector<1x32xf32>
    %cst_50 = arith.constant dense<0.000000e+00> : vector<8xf32>
    %190 = vector.multi_reduction <add>, %187, %cst_50 [1] : vector<8x32xf32> to vector<8xf32>
    %191 = vector.shape_cast %190 : vector<8xf32> to vector<8x1xf32>
    %cst_51 = arith.constant 3.200000e+01 : f32
    %192 = vector.broadcast %cst_51 : f32 to vector<8x1xf32>
    %193 = arith.divf %191, %192 : vector<8x1xf32>
    %194 = vector.broadcast %193 : vector<8x1xf32> to vector<8x32xf32>
    %195 = arith.subf %187, %194 : vector<8x32xf32>
    %196 = arith.mulf %195, %195 : vector<8x32xf32>
    %cst_52 = arith.constant dense<0.000000e+00> : vector<8xf32>
    %197 = vector.multi_reduction <add>, %196, %cst_52 [1] : vector<8x32xf32> to vector<8xf32>
    %198 = vector.shape_cast %197 : vector<8xf32> to vector<8x1xf32>
    %cst_53 = arith.constant 3.200000e+01 : f32
    %199 = vector.broadcast %cst_53 : f32 to vector<8x1xf32>
    %200 = arith.divf %198, %199 : vector<8x1xf32>
    %201 = vector.broadcast %193 : vector<8x1xf32> to vector<8x32xf32>
    %202 = arith.subf %187, %201 : vector<8x32xf32>
    %cst_54 = arith.constant 9.99999974E-6 : f32
    %203 = vector.broadcast %cst_54 : f32 to vector<8x1xf32>
    %204 = arith.addf %200, %203 : vector<8x1xf32>
    %205 = math.rsqrt %204 : vector<8x1xf32>
    %206 = vector.broadcast %205 : vector<8x1xf32> to vector<8x32xf32>
    %207 = arith.mulf %202, %206 : vector<8x32xf32>
    %208 = vector.broadcast %188 : vector<1x32xf32> to vector<8x32xf32>
    %209 = arith.mulf %207, %208 : vector<8x32xf32>
    %210 = vector.broadcast %189 : vector<1x32xf32> to vector<8x32xf32>
    %211 = arith.addf %209, %210 : vector<8x32xf32>
    %c0_55 = arith.constant 0 : index
    %c0_56 = arith.constant 0 : index
    %212 = vector.load %arg13[%c0_55, %c0_56] : memref<32x128xf32, #tpu.memory_space<vmem>>, vector<32x128xf32>
    %cst_57 = arith.constant dense<0.000000e+00> : vector<8x128xf32>
    %213 = tpu.matmul %211, %212, %cst_57 {dimension_numbers = #tpu.dot_dimension_numbers<[1], [0], [0], [1], [0, 0, 1, 1], [], []>} : vector<8x32xf32>, vector<32x128xf32>, vector<8x128xf32> -> vector<8x128xf32>
    %c0_58 = arith.constant 0 : index
    %c0_59 = arith.constant 0 : index
    %214 = vector.load %arg14[%c0_58, %c0_59] : memref<1x128xf32, #tpu.memory_space<vmem>>, vector<1x128xf32>
    %215 = vector.broadcast %214 : vector<1x128xf32> to vector<8x128xf32>
    %216 = arith.addf %213, %215 : vector<8x128xf32>
    %cst_60 = arith.constant 5.000000e-01 : f32
    %217 = vector.broadcast %cst_60 : f32 to vector<8x128xf32>
    %218 = arith.mulf %217, %216 : vector<8x128xf32>
    %cst_61 = arith.constant 4.471500e-02 : f32
    %219 = vector.broadcast %cst_61 : f32 to vector<8x128xf32>
    %220 = arith.mulf %219, %216 : vector<8x128xf32>
    %221 = arith.mulf %220, %216 : vector<8x128xf32>
    %222 = arith.mulf %221, %216 : vector<8x128xf32>
    %223 = arith.addf %216, %222 : vector<8x128xf32>
    %cst_62 = arith.constant 0.797884583 : f32
    %224 = vector.broadcast %cst_62 : f32 to vector<8x128xf32>
    %225 = arith.mulf %224, %223 : vector<8x128xf32>
    %226 = math.tanh %225 : vector<8x128xf32>
    %cst_63 = arith.constant 1.000000e+00 : f32
    %227 = vector.broadcast %cst_63 : f32 to vector<8x128xf32>
    %228 = arith.addf %227, %226 : vector<8x128xf32>
    %229 = arith.mulf %218, %228 : vector<8x128xf32>
    %c0_64 = arith.constant 0 : index
    %c0_65 = arith.constant 0 : index
    %230 = vector.load %arg15[%c0_64, %c0_65] : memref<128x32xf32, #tpu.memory_space<vmem>>, vector<128x32xf32>
    %cst_66 = arith.constant dense<0.000000e+00> : vector<8x32xf32>
    %231 = tpu.matmul %229, %230, %cst_66 {dimension_numbers = #tpu.dot_dimension_numbers<[1], [0], [0], [1], [0, 0, 1, 1], [], []>} : vector<8x128xf32>, vector<128x32xf32>, vector<8x32xf32> -> vector<8x32xf32>
    %c0_67 = arith.constant 0 : index
    %c0_68 = arith.constant 0 : index
    %232 = vector.load %arg16[%c0_67, %c0_68] : memref<1x32xf32, #tpu.memory_space<vmem>>, vector<1x32xf32>
    %233 = vector.broadcast %232 : vector<1x32xf32> to vector<8x32xf32>
    %234 = arith.addf %231, %233 : vector<8x32xf32>
    %235 = arith.addf %211, %234 : vector<8x32xf32>
    %c0_69 = arith.constant 0 : index
    %c0_70 = arith.constant 0 : index
    %236 = vector.load %arg21[%c0_69, %c0_70] : memref<1x32xf32, #tpu.memory_space<vmem>>, vector<1x32xf32>
    %c0_71 = arith.constant 0 : index
    %c0_72 = arith.constant 0 : index
    %237 = vector.load %arg22[%c0_71, %c0_72] : memref<1x32xf32, #tpu.memory_space<vmem>>, vector<1x32xf32>
    %cst_73 = arith.constant dense<0.000000e+00> : vector<8xf32>
    %238 = vector.multi_reduction <add>, %235, %cst_73 [1] : vector<8x32xf32> to vector<8xf32>
    %239 = vector.shape_cast %238 : vector<8xf32> to vector<8x1xf32>
    %cst_74 = arith.constant 3.200000e+01 : f32
    %240 = vector.broadcast %cst_74 : f32 to vector<8x1xf32>
    %241 = arith.divf %239, %240 : vector<8x1xf32>
    %242 = vector.broadcast %241 : vector<8x1xf32> to vector<8x32xf32>
    %243 = arith.subf %235, %242 : vector<8x32xf32>
    %244 = arith.mulf %243, %243 : vector<8x32xf32>
    %cst_75 = arith.constant dense<0.000000e+00> : vector<8xf32>
    %245 = vector.multi_reduction <add>, %244, %cst_75 [1] : vector<8x32xf32> to vector<8xf32>
    %246 = vector.shape_cast %245 : vector<8xf32> to vector<8x1xf32>
    %cst_76 = arith.constant 3.200000e+01 : f32
    %247 = vector.broadcast %cst_76 : f32 to vector<8x1xf32>
    %248 = arith.divf %246, %247 : vector<8x1xf32>
    %249 = vector.broadcast %241 : vector<8x1xf32> to vector<8x32xf32>
    %250 = arith.subf %235, %249 : vector<8x32xf32>
    %cst_77 = arith.constant 9.99999974E-6 : f32
    %251 = vector.broadcast %cst_77 : f32 to vector<8x1xf32>
    %252 = arith.addf %248, %251 : vector<8x1xf32>
    %253 = math.rsqrt %252 : vector<8x1xf32>
    %254 = vector.broadcast %253 : vector<8x1xf32> to vector<8x32xf32>
    %255 = arith.mulf %250, %254 : vector<8x32xf32>
    %256 = vector.broadcast %236 : vector<1x32xf32> to vector<8x32xf32>
    %257 = arith.mulf %255, %256 : vector<8x32xf32>
    %258 = vector.broadcast %237 : vector<1x32xf32> to vector<8x32xf32>
    %259 = arith.addf %257, %258 : vector<8x32xf32>
    %260 = vector.shape_cast %259 : vector<8x32xf32> to vector<1x8x32xf32>
    %c0_78 = arith.constant 0 : index
    %c0_79 = arith.constant 0 : index
    %c0_80 = arith.constant 0 : index
    %261 = vector.load %arg23[%c0_78, %c0_79, %c0_80] : memref<1x8x32xf32, #tpu.memory_space<vmem>>, vector<1x8x32xf32>
    tpu.vector_store %arg23[%c0_78, %c0_79, %c0_80], %260 {strides = array<i32>} : memref<1x8x32xf32, #tpu.memory_space<vmem>>, vector<1x8x32xf32>,
    return
  }
  func.func @transform_0(%arg0: i32) -> (i32, i32, i32) {
    %c0_i32 = arith.constant 0 : i32
    %c0_i32_0 = arith.constant 0 : i32
    %c0_i32_1 = arith.constant 0 : i32
    return %arg0, %c0_i32, %c0_i32_0 : i32, i32, i32
  }
  func.func @transform_1(%arg0: i32) -> (i32, i32, i32) {
    %c0_i32 = arith.constant 0 : i32
    %c0_i32_0 = arith.constant 0 : i32
    %c0_i32_1 = arith.constant 0 : i32
    return %arg0, %c0_i32, %c0_i32_0 : i32, i32, i32
  }
  func.func @transform_2(%arg0: i32) -> (i32, i32) {
    %c0_i32 = arith.constant 0 : i32
    %c0_i32_0 = arith.constant 0 : i32
    %c0_i32_1 = arith.constant 0 : i32
    return %c0_i32, %c0_i32_0 : i32, i32
  }
  func.func @transform_3(%arg0: i32) -> (i32, i32) {
    %c0_i32 = arith.constant 0 : i32
    %c0_i32_0 = arith.constant 0 : i32
    %c0_i32_1 = arith.constant 0 : i32
    return %c0_i32, %c0_i32_0 : i32, i32
  }
  func.func @transform_4(%arg0: i32) -> (i32, i32) {
    %c0_i32 = arith.constant 0 : i32
    %c0_i32_0 = arith.constant 0 : i32
    %c0_i32_1 = arith.constant 0 : i32
    return %c0_i32, %c0_i32_0 : i32, i32
  }
  func.func @transform_5(%arg0: i32) -> (i32, i32) {
    %c0_i32 = arith.constant 0 : i32
    %c0_i32_0 = arith.constant 0 : i32
    %c0_i32_1 = arith.constant 0 : i32
    return %c0_i32, %c0_i32_0 : i32, i32
  }
  func.func @transform_6(%arg0: i32) -> (i32, i32) {
    %c0_i32 = arith.constant 0 : i32
    %c0_i32_0 = arith.constant 0 : i32
    %c0_i32_1 = arith.constant 0 : i32
    return %c0_i32, %c0_i32_0 : i32, i32
  }
  func.func @transform_7(%arg0: i32) -> (i32, i32) {
    %c0_i32 = arith.constant 0 : i32
    %c0_i32_0 = arith.constant 0 : i32
    %c0_i32_1 = arith.constant 0 : i32
    return %c0_i32, %c0_i32_0 : i32, i32
  }
  func.func @transform_8(%arg0: i32) -> (i32, i32) {
    %c0_i32 = arith.constant 0 : i32
    %c0_i32_0 = arith.constant 0 : i32
    %c0_i32_1 = arith.constant 0 : i32
    return %c0_i32, %c0_i32_0 : i32, i32
  }
  func.func @transform_9(%arg0: i32) -> (i32, i32) {
    %c0_i32 = arith.constant 0 : i32
    %c0_i32_0 = arith.constant 0 : i32
    %c0_i32_1 = arith.constant 0 : i32
    return %c0_i32, %c0_i32_0 : i32, i32
  }
  func.func @transform_10(%arg0: i32) -> (i32, i32) {
    %c0_i32 = arith.constant 0 : i32
    %c0_i32_0 = arith.constant 0 : i32
    %c0_i32_1 = arith.constant 0 : i32
    return %c0_i32, %c0_i32_0 : i32, i32
  }
  func.func @transform_11(%arg0: i32) -> (i32, i32) {
    %c0_i32 = arith.constant 0 : i32
    %c0_i32_0 = arith.constant 0 : i32
    %c0_i32_1 = arith.constant 0 : i32
    return %c0_i32, %c0_i32_0 : i32, i32
  }
  func.func @transform_12(%arg0: i32) -> (i32, i32) {
    %c0_i32 = arith.constant 0 : i32
    %c0_i32_0 = arith.constant 0 : i32
    %c0_i32_1 = arith.constant 0 : i32
    return %c0_i32, %c0_i32_0 : i32, i32
  }
  func.func @transform_13(%arg0: i32) -> (i32, i32) {
    %c0_i32 = arith.constant 0 : i32
    %c0_i32_0 = arith.constant 0 : i32
    %c0_i32_1 = arith.constant 0 : i32
    return %c0_i32, %c0_i32_0 : i32, i32
  }
  func.func @transform_14(%arg0: i32) -> (i32, i32) {
    %c0_i32 = arith.constant 0 : i32
    %c0_i32_0 = arith.constant 0 : i32
    %c0_i32_1 = arith.constant 0 : i32
    return %c0_i32, %c0_i32_0 : i32, i32
  }
  func.func @transform_15(%arg0: i32) -> (i32, i32) {
    %c0_i32 = arith.constant 0 : i32
    %c0_i32_0 = arith.constant 0 : i32
    %c0_i32_1 = arith.constant 0 : i32
    return %c0_i32, %c0_i32_0 : i32, i32
  }
  func.func @transform_16(%arg0: i32) -> (i32, i32) {
    %c0_i32 = arith.constant 0 : i32
    %c0_i32_0 = arith.constant 0 : i32
    %c0_i32_1 = arith.constant 0 : i32
    return %c0_i32, %c0_i32_0 : i32, i32
  }
  func.func @transform_17(%arg0: i32) -> (i32, i32) {
    %c0_i32 = arith.constant 0 : i32
    %c0_i32_0 = arith.constant 0 : i32
    %c0_i32_1 = arith.constant 0 : i32
    return %c0_i32, %c0_i32_0 : i32, i32
  }
  func.func @transform_18(%arg0: i32) -> (i32, i32) {
    %c0_i32 = arith.constant 0 : i32
    %c0_i32_0 = arith.constant 0 : i32
    %c0_i32_1 = arith.constant 0 : i32
    return %c0_i32, %c0_i32_0 : i32, i32
  }
  func.func @transform_19(%arg0: i32) -> (i32, i32) {
    %c0_i32 = arith.constant 0 : i32
    %c0_i32_0 = arith.constant 0 : i32
    %c0_i32_1 = arith.constant 0 : i32
    return %c0_i32, %c0_i32_0 : i32, i32
  }
  func.func @transform_20(%arg0: i32) -> (i32, i32) {
    %c0_i32 = arith.constant 0 : i32
    %c0_i32_0 = arith.constant 0 : i32
    %c0_i32_1 = arith.constant 0 : i32
    return %c0_i32, %c0_i32_0 : i32, i32
  }
  func.func @transform_21(%arg0: i32) -> (i32, i32) {
    %c0_i32 = arith.constant 0 : i32
    %c0_i32_0 = arith.constant 0 : i32
    %c0_i32_1 = arith.constant 0 : i32
    return %c0_i32, %c0_i32_0 : i32, i32
  }
  func.func @transform_22(%arg0: i32) -> (i32, i32, i32) {
    %c0_i32 = arith.constant 0 : i32
    %c0_i32_0 = arith.constant 0 : i32
    %c0_i32_1 = arith.constant 0 : i32
    return %arg0, %c0_i32, %c0_i32_0 : i32, i32, i32
  }
}

module attributes {stable_mosaic.version = 11 : i64} {
  func.func @decoder_layer_kernel(%arg0: i32, %arg1: memref<1x8x32xf32, #tpu.memory_space<vmem>>, %arg2: memref<1x16x32xf32, #tpu.memory_space<vmem>>, %arg3: memref<32x96xf32, #tpu.memory_space<vmem>>, %arg4: memref<1x96xf32, #tpu.memory_space<vmem>>, %arg5: memref<32x32xf32, #tpu.memory_space<vmem>>, %arg6: memref<1x32xf32, #tpu.memory_space<vmem>>, %arg7: memref<32x32xf32, #tpu.memory_space<vmem>>, %arg8: memref<1x32xf32, #tpu.memory_space<vmem>>, %arg9: memref<32x64xf32, #tpu.memory_space<vmem>>, %arg10: memref<1x64xf32, #tpu.memory_space<vmem>>, %arg11: memref<32x32xf32, #tpu.memory_space<vmem>>, %arg12: memref<1x32xf32, #tpu.memory_space<vmem>>, %arg13: memref<32x128xf32, #tpu.memory_space<vmem>>, %arg14: memref<1x128xf32, #tpu.memory_space<vmem>>, %arg15: memref<128x32xf32, #tpu.memory_space<vmem>>, %arg16: memref<1x32xf32, #tpu.memory_space<vmem>>, %arg17: memref<1x32xf32, #tpu.memory_space<vmem>>, %arg18: memref<1x32xf32, #tpu.memory_space<vmem>>, %arg19: memref<1x32xf32, #tpu.memory_space<vmem>>, %arg20: memref<1x32xf32, #tpu.memory_space<vmem>>, %arg21: memref<1x32xf32, #tpu.memory_space<vmem>>, %arg22: memref<1x32xf32, #tpu.memory_space<vmem>>, %arg23: memref<1x8x32xf32, #tpu.memory_space<vmem>>) attributes {dimension_semantics = [#tpu.dimension_semantics<parallel>], iteration_bounds = array<i64: 2>, scalar_prefetch = 0 : i64, scratch_operands = 0 : i64, tpu.core_type = #tpu.core_type<tc>, window_params = [{transform_indices = @transform_0, window_bounds = array<i64: 1, 8, 32>}, {transform_indices = @transform_1, window_bounds = array<i64: 1, 16, 32>}, {pipeline_mode = #tpu.pipeline_mode<synchronous>, transform_indices = @transform_2, window_bounds = array<i64: 32, 96>}, {pipeline_mode = #tpu.pipeline_mode<synchronous>, transform_indices = @transform_3, window_bounds = array<i64: 1, 96>}, {pipeline_mode = #tpu.pipeline_mode<synchronous>, transform_indices = @transform_4, window_bounds = array<i64: 32, 32>}, {pipeline_mode = #tpu.pipeline_mode<synchronous>, transform_indices = @transform_5, window_bounds = array<i64: 1, 32>}, {pipeline_mode = #tpu.pipeline_mode<synchronous>, transform_indices = @transform_6, window_bounds = array<i64: 32, 32>}, {pipeline_mode = #tpu.pipeline_mode<synchronous>, transform_indices = @transform_7, window_bounds = array<i64: 1, 32>}, {pipeline_mode = #tpu.pipeline_mode<synchronous>, transform_indices = @transform_8, window_bounds = array<i64: 32, 64>}, {pipeline_mode = #tpu.pipeline_mode<synchronous>, transform_indices = @transform_9, window_bounds = array<i64: 1, 64>}, {pipeline_mode = #tpu.pipeline_mode<synchronous>, transform_indices = @transform_10, window_bounds = array<i64: 32, 32>}, {pipeline_mode = #tpu.pipeline_mode<synchronous>, transform_indices = @transform_11, window_bounds = array<i64: 1, 32>}, {pipeline_mode = #tpu.pipeline_mode<synchronous>, transform_indices = @transform_12, window_bounds = array<i64: 32, 128>}, {pipeline_mode = #tpu.pipeline_mode<synchronous>, transform_indices = @transform_13, window_bounds = array<i64: 1, 128>}, {pipeline_mode = #tpu.pipeline_mode<synchronous>, transform_indices = @transform_14, window_bounds = array<i64: 128, 32>}, {pipeline_mode = #tpu.pipeline_mode<synchronous>, transform_indices = @transform_15, window_bounds = array<i64: 1, 32>}, {pipeline_mode = #tpu.pipeline_mode<synchronous>, transform_indices = @transform_16, window_bounds = array<i64: 1, 32>}, {pipeline_mode = #tpu.pipeline_mode<synchronous>, transform_indices = @transform_17, window_bounds = array<i64: 1, 32>}, {pipeline_mode = #tpu.pipeline_mode<synchronous>, transform_indices = @transform_18, window_bounds = array<i64: 1, 32>}, {pipeline_mode = #tpu.pipeline_mode<synchronous>, transform_indices = @transform_19, window_bounds = array<i64: 1, 32>}, {pipeline_mode = #tpu.pipeline_mode<synchronous>, transform_indices = @transform_20, window_bounds = array<i64: 1, 32>}, {pipeline_mode = #tpu.pipeline_mode<synchronous>, transform_indices = @transform_21, window_bounds = array<i64: 1, 32>}, {transform_indices = @transform_22, window_bounds = array<i64: 1, 8, 32>}]} {
    %c0 = arith.constant 0 : index
    %c0_0 = arith.constant 0 : index
    %c0_1 = arith.constant 0 : index
    %0 = vector.load %arg1[%c0, %c0_0, %c0_1] : memref<1x8x32xf32, #tpu.memory_space<vmem>>, vector<1x8x32xf32>
    %1 = vector.shape_cast %0 : vector<1x8x32xf32> to vector<8x32xf32>
    %c0_2 = arith.constant 0 : index
    %c0_3 = arith.constant 0 : index
    %c0_4 = arith.constant 0 : index
    %2 = vector.load %arg2[%c0_2, %c0_3, %c0_4] : memref<1x16x32xf32, #tpu.memory_space<vmem>>, vector<1x16x32xf32>
    %3 = vector.shape_cast %2 : vector<1x16x32xf32> to vector<16x32xf32>
    %c0_5 = arith.constant 0 : index
    %c0_6 = arith.constant 0 : index
    %4 = vector.load %arg3[%c0_5, %c0_6] : memref<32x96xf32, #tpu.memory_space<vmem>>, vector<32x96xf32>
    %cst = arith.constant dense<0.000000e+00> : vector<8x96xf32>
    %5 = tpu.matmul %1, %4, %cst {dimension_numbers = #tpu.dot_dimension_numbers<[1], [0], [0], [1], [0, 0, 1, 1], [], []>} : vector<8x32xf32>, vector<32x96xf32>, vector<8x96xf32> -> vector<8x96xf32>
    %c0_7 = arith.constant 0 : index
    %c0_8 = arith.constant 0 : index
    %6 = vector.load %arg4[%c0_7, %c0_8] : memref<1x96xf32, #tpu.memory_space<vmem>>, vector<1x96xf32>
    %7 = vector.broadcast %6 : vector<1x96xf32> to vector<8x96xf32>
    %8 = arith.addf %5, %7 : vector<8x96xf32>
    %9 = vector.extract_strided_slice %8 {offsets = [0, 0], sizes = [8, 32], strides = [1, 1]} : vector<8x96xf32> to vector<8x32xf32>
    %10 = vector.extract_strided_slice %8 {offsets = [0, 32], sizes = [8, 32], strides = [1, 1]} : vector<8x96xf32> to vector<8x32xf32>
    %11 = vector.extract_strided_slice %8 {offsets = [0, 64], sizes = [8, 32], strides = [1, 1]} : vector<8x96xf32> to vector<8x32xf32>
    %12 = vector.extract_strided_slice %9 {offsets = [0, 0], sizes = [8, 8], strides = [1, 1]} : vector<8x32xf32> to vector<8x8xf32>
    %13 = vector.shape_cast %12 : vector<8x8xf32> to vector<1x8x8xf32>
    %14 = vector.extract_strided_slice %9 {offsets = [0, 8], sizes = [8, 8], strides = [1, 1]} : vector<8x32xf32> to vector<8x8xf32>
    %15 = vector.shape_cast %14 : vector<8x8xf32> to vector<1x8x8xf32>
    %16 = vector.extract_strided_slice %9 {offsets = [0, 16], sizes = [8, 8], strides = [1, 1]} : vector<8x32xf32> to vector<8x8xf32>
    %17 = vector.shape_cast %16 : vector<8x8xf32> to vector<1x8x8xf32>
    %18 = vector.extract_strided_slice %9 {offsets = [0, 24], sizes = [8, 8], strides = [1, 1]} : vector<8x32xf32> to vector<8x8xf32>
    %19 = vector.shape_cast %18 : vector<8x8xf32> to vector<1x8x8xf32>
    %20 = vector.shape_cast %13 : vector<1x8x8xf32> to vector<1x1x8x8xf32>
    %21 = vector.shape_cast %15 : vector<1x8x8xf32> to vector<1x1x8x8xf32>
    %22 = vector.shape_cast %17 : vector<1x8x8xf32> to vector<1x1x8x8xf32>
    %23 = vector.shape_cast %19 : vector<1x8x8xf32> to vector<1x1x8x8xf32>
    %24 = tpu.concatenate %20, %21, %22, %23 in 1 : vector<1x1x8x8xf32>, vector<1x1x8x8xf32>, vector<1x1x8x8xf32>, vector<1x1x8x8xf32> -> vector<1x4x8x8xf32>
    %25 = vector.shape_cast %24 : vector<1x4x8x8xf32> to vector<4x8x8xf32>
    %26 = vector.extract_strided_slice %10 {offsets = [0, 0], sizes = [8, 8], strides = [1, 1]} : vector<8x32xf32> to vector<8x8xf32>
    %27 = vector.shape_cast %26 : vector<8x8xf32> to vector<1x8x8xf32>
    %28 = vector.extract_strided_slice %10 {offsets = [0, 8], sizes = [8, 8], strides = [1, 1]} : vector<8x32xf32> to vector<8x8xf32>
    %29 = vector.shape_cast %28 : vector<8x8xf32> to vector<1x8x8xf32>
    %30 = vector.extract_strided_slice %10 {offsets = [0, 16], sizes = [8, 8], strides = [1, 1]} : vector<8x32xf32> to vector<8x8xf32>
    %31 = vector.shape_cast %30 : vector<8x8xf32> to vector<1x8x8xf32>
    %32 = vector.extract_strided_slice %10 {offsets = [0, 24], sizes = [8, 8], strides = [1, 1]} : vector<8x32xf32> to vector<8x8xf32>
    %33 = vector.shape_cast %32 : vector<8x8xf32> to vector<1x8x8xf32>
    %34 = vector.shape_cast %27 : vector<1x8x8xf32> to vector<1x1x8x8xf32>
    %35 = vector.shape_cast %29 : vector<1x8x8xf32> to vector<1x1x8x8xf32>
    %36 = vector.shape_cast %31 : vector<1x8x8xf32> to vector<1x1x8x8xf32>
    %37 = vector.shape_cast %33 : vector<1x8x8xf32> to vector<1x1x8x8xf32>
    %38 = tpu.concatenate %34, %35, %36, %37 in 1 : vector<1x1x8x8xf32>, vector<1x1x8x8xf32>, vector<1x1x8x8xf32>, vector<1x1x8x8xf32> -> vector<1x4x8x8xf32>
    %39 = vector.shape_cast %38 : vector<1x4x8x8xf32> to vector<4x8x8xf32>
    %40 = vector.extract_strided_slice %11 {offsets = [0, 0], sizes = [8, 8], strides = [1, 1]} : vector<8x32xf32> to vector<8x8xf32>
    %41 = vector.shape_cast %40 : vector<8x8xf32> to vector<1x8x8xf32>
    %42 = vector.extract_strided_slice %11 {offsets = [0, 8], sizes = [8, 8], strides = [1, 1]} : vector<8x32xf32> to vector<8x8xf32>
    %43 = vector.shape_cast %42 : vector<8x8xf32> to vector<1x8x8xf32>
    %44 = vector.extract_strided_slice %11 {offsets = [0, 16], sizes = [8, 8], strides = [1, 1]} : vector<8x32xf32> to vector<8x8xf32>
    %45 = vector.shape_cast %44 : vector<8x8xf32> to vector<1x8x8xf32>
    %46 = vector.extract_strided_slice %11 {offsets = [0, 24], sizes = [8, 8], strides = [1, 1]} : vector<8x32xf32> to vector<8x8xf32>
    %47 = vector.shape_cast %46 : vector<8x8xf32> to vector<1x8x8xf32>
    %48 = vector.shape_cast %41 : vector<1x8x8xf32> to vector<1x1x8x8xf32>
    %49 = vector.shape_cast %43 : vector<1x8x8xf32> to vector<1x1x8x8xf32>
    %50 = vector.shape_cast %45 : vector<1x8x8xf32> to vector<1x1x8x8xf32>
    %51 = vector.shape_cast %47 : vector<1x8x8xf32> to vector<1x1x8x8xf32>
    %52 = tpu.concatenate %48, %49, %50, %51 in 1 : vector<1x1x8x8xf32>, vector<1x1x8x8xf32>, vector<1x1x8x8xf32>, vector<1x1x8x8xf32> -> vector<1x4x8x8xf32>
    %53 = vector.shape_cast %52 : vector<1x4x8x8xf32> to vector<4x8x8xf32>
    "tpu.trace_start"() <{level = 10 : i32, message = "bqd,bkd->bqk"}> : () -> ()
    %cst_9 = arith.constant dense<0.000000e+00> : vector<4x8x8xf32>
    %54 = tpu.matmul %25, %39, %cst_9 {dimension_numbers = #tpu.dot_dimension_numbers<[2], [2], [1], [1], [0, 0, 0, 1, 1, 1], [0], [0]>} : vector<4x8x8xf32>, vector<4x8x8xf32>, vector<4x8x8xf32> -> vector<4x8x8xf32>
    "tpu.trace_stop"() : () -> ()
    %cst_10 = arith.constant dense<0xFF800000> : vector<4x8xf32>
    %55 = vector.multi_reduction <maximumf>, %54, %cst_10 [2] : vector<4x8x8xf32> to vector<4x8xf32>
    %56 = vector.shape_cast %55 : vector<4x8xf32> to vector<4x8x1xf32>
    %57 = vector.broadcast %56 : vector<4x8x1xf32> to vector<4x8x8xf32>
    %58 = arith.subf %54, %57 : vector<4x8x8xf32>
    %59 = math.exp %58 : vector<4x8x8xf32>
    %cst_11 = arith.constant dense<0.000000e+00> : vector<4x8xf32>
    %60 = vector.multi_reduction <add>, %59, %cst_11 [2] : vector<4x8x8xf32> to vector<4x8xf32>
    %61 = vector.shape_cast %60 : vector<4x8xf32> to vector<4x8x1xf32>
    %62 = vector.broadcast %61 : vector<4x8x1xf32> to vector<4x8x8xf32>
    %63 = arith.divf %59, %62 : vector<4x8x8xf32>
    "tpu.trace_start"() <{level = 10 : i32, message = "bqk,bkd->bqd"}> : () -> ()
    %cst_12 = arith.constant dense<0.000000e+00> : vector<4x8x8xf32>
    %64 = tpu.matmul %63, %53, %cst_12 {dimension_numbers = #tpu.dot_dimension_numbers<[2], [1], [1], [2], [0, 0, 0, 1, 1, 2], [0], [0]>} : vector<4x8x8xf32>, vector<4x8x8xf32>, vector<4x8x8xf32> -> vector<4x8x8xf32>
    "tpu.trace_stop"() : () -> ()
    %65 = vector.shape_cast %64 : vector<4x8x8xf32> to vector<1x4x8x8xf32>
    %66 = vector.extract_strided_slice %65 {offsets = [0, 0, 0, 0], sizes = [1, 1, 8, 8], strides = [1, 1, 1, 1]} : vector<1x4x8x8xf32> to vector<1x1x8x8xf32>
    %67 = vector.shape_cast %66 : vector<1x1x8x8xf32> to vector<1x8x8xf32>
    %68 = vector.extract_strided_slice %65 {offsets = [0, 1, 0, 0], sizes = [1, 1, 8, 8], strides = [1, 1, 1, 1]} : vector<1x4x8x8xf32> to vector<1x1x8x8xf32>
    %69 = vector.shape_cast %68 : vector<1x1x8x8xf32> to vector<1x8x8xf32>
    %70 = vector.extract_strided_slice %65 {offsets = [0, 2, 0, 0], sizes = [1, 1, 8, 8], strides = [1, 1, 1, 1]} : vector<1x4x8x8xf32> to vector<1x1x8x8xf32>
    %71 = vector.shape_cast %70 : vector<1x1x8x8xf32> to vector<1x8x8xf32>
    %72 = vector.extract_strided_slice %65 {offsets = [0, 3, 0, 0], sizes = [1, 1, 8, 8], strides = [1, 1, 1, 1]} : vector<1x4x8x8xf32> to vector<1x1x8x8xf32>
    %73 = vector.shape_cast %72 : vector<1x1x8x8xf32> to vector<1x8x8xf32>
    %74 = tpu.concatenate %67, %69, %71, %73 in 2 : vector<1x8x8xf32>, vector<1x8x8xf32>, vector<1x8x8xf32>, vector<1x8x8xf32> -> vector<1x8x32xf32>
    %75 = vector.shape_cast %74 : vector<1x8x32xf32> to vector<8x32xf32>
    %c0_13 = arith.constant 0 : index
    %c0_14 = arith.constant 0 : index
    %76 = vector.load %arg5[%c0_13, %c0_14] : memref<32x32xf32, #tpu.memory_space<vmem>>, vector<32x32xf32>
    %cst_15 = arith.constant dense<0.000000e+00> : vector<8x32xf32>
    %77 = tpu.matmul %75, %76, %cst_15 {dimension_numbers = #tpu.dot_dimension_numbers<[1], [0], [0], [1], [0, 0, 1, 1], [], []>} : vector<8x32xf32>, vector<32x32xf32>, vector<8x32xf32> -> vector<8x32xf32>
    %c0_16 = arith.constant 0 : index
    %c0_17 = arith.constant 0 : index
    %78 = vector.load %arg6[%c0_16, %c0_17] : memref<1x32xf32, #tpu.memory_space<vmem>>, vector<1x32xf32>
    %79 = vector.broadcast %78 : vector<1x32xf32> to vector<8x32xf32>
    %80 = arith.addf %77, %79 : vector<8x32xf32>
    %81 = arith.addf %1, %80 : vector<8x32xf32>
    %c0_18 = arith.constant 0 : index
    %c0_19 = arith.constant 0 : index
    %82 = vector.load %arg17[%c0_18, %c0_19] : memref<1x32xf32, #tpu.memory_space<vmem>>, vector<1x32xf32>
    %c0_20 = arith.constant 0 : index
    %c0_21 = arith.constant 0 : index
    %83 = vector.load %arg18[%c0_20, %c0_21] : memref<1x32xf32, #tpu.memory_space<vmem>>, vector<1x32xf32>
    %cst_22 = arith.constant dense<0.000000e+00> : vector<8xf32>
    %84 = vector.multi_reduction <add>, %81, %cst_22 [1] : vector<8x32xf32> to vector<8xf32>
    %85 = vector.shape_cast %84 : vector<8xf32> to vector<8x1xf32>
    %cst_23 = arith.constant 3.200000e+01 : f32
    %86 = vector.broadcast %cst_23 : f32 to vector<8x1xf32>
    %87 = arith.divf %85, %86 : vector<8x1xf32>
    %88 = vector.broadcast %87 : vector<8x1xf32> to vector<8x32xf32>
    %89 = arith.subf %81, %88 : vector<8x32xf32>
    %90 = arith.mulf %89, %89 : vector<8x32xf32>
    %cst_24 = arith.constant dense<0.000000e+00> : vector<8xf32>
    %91 = vector.multi_reduction <add>, %90, %cst_24 [1] : vector<8x32xf32> to vector<8xf32>
    %92 = vector.shape_cast %91 : vector<8xf32> to vector<8x1xf32>
    %cst_25 = arith.constant 3.200000e+01 : f32
    %93 = vector.broadcast %cst_25 : f32 to vector<8x1xf32>
    %94 = arith.divf %92, %93 : vector<8x1xf32>
    %95 = vector.broadcast %87 : vector<8x1xf32> to vector<8x32xf32>
    %96 = arith.subf %81, %95 : vector<8x32xf32>
    %cst_26 = arith.constant 9.99999974E-6 : f32
    %97 = vector.broadcast %cst_26 : f32 to vector<8x1xf32>
    %98 = arith.addf %94, %97 : vector<8x1xf32>
    %99 = math.rsqrt %98 : vector<8x1xf32>
    %100 = vector.broadcast %99 : vector<8x1xf32> to vector<8x32xf32>
    %101 = arith.mulf %96, %100 : vector<8x32xf32>
    %102 = vector.broadcast %82 : vector<1x32xf32> to vector<8x32xf32>
    %103 = arith.mulf %101, %102 : vector<8x32xf32>
    %104 = vector.broadcast %83 : vector<1x32xf32> to vector<8x32xf32>
    %105 = arith.addf %103, %104 : vector<8x32xf32>
    %c0_27 = arith.constant 0 : index
    %c0_28 = arith.constant 0 : index
    %106 = vector.load %arg7[%c0_27, %c0_28] : memref<32x32xf32, #tpu.memory_space<vmem>>, vector<32x32xf32>
    %cst_29 = arith.constant dense<0.000000e+00> : vector<8x32xf32>
    %107 = tpu.matmul %105, %106, %cst_29 {dimension_numbers = #tpu.dot_dimension_numbers<[1], [0], [0], [1], [0, 0, 1, 1], [], []>} : vector<8x32xf32>, vector<32x32xf32>, vector<8x32xf32> -> vector<8x32xf32>
    %c0_30 = arith.constant 0 : index
    %c0_31 = arith.constant 0 : index
    %108 = vector.load %arg8[%c0_30, %c0_31] : memref<1x32xf32, #tpu.memory_space<vmem>>, vector<1x32xf32>
    %109 = vector.broadcast %108 : vector<1x32xf32> to vector<8x32xf32>
    %110 = arith.addf %107, %109 : vector<8x32xf32>
    %c0_32 = arith.constant 0 : index
    %c0_33 = arith.constant 0 : index
    %111 = vector.load %arg9[%c0_32, %c0_33] : memref<32x64xf32, #tpu.memory_space<vmem>>, vector<32x64xf32>
    %cst_34 = arith.constant dense<0.000000e+00> : vector<16x64xf32>
    %112 = tpu.matmul %3, %111, %cst_34 {dimension_numbers = #tpu.dot_dimension_numbers<[1], [0], [0], [1], [0, 0, 1, 1], [], []>} : vector<16x32xf32>, vector<32x64xf32>, vector<16x64xf32> -> vector<16x64xf32>
    %c0_35 = arith.constant 0 : index
    %c0_36 = arith.constant 0 : index
    %113 = vector.load %arg10[%c0_35, %c0_36] : memref<1x64xf32, #tpu.memory_space<vmem>>, vector<1x64xf32>
    %114 = vector.broadcast %113 : vector<1x64xf32> to vector<16x64xf32>
    %115 = arith.addf %112, %114 : vector<16x64xf32>
    %116 = vector.extract_strided_slice %115 {offsets = [0, 0], sizes = [16, 32], strides = [1, 1]} : vector<16x64xf32> to vector<16x32xf32>
    %117 = vector.extract_strided_slice %115 {offsets = [0, 32], sizes = [16, 32], strides = [1, 1]} : vector<16x64xf32> to vector<16x32xf32>
    %118 = vector.extract_strided_slice %110 {offsets = [0, 0], sizes = [8, 8], strides = [1, 1]} : vector<8x32xf32> to vector<8x8xf32>
    %119 = vector.shape_cast %118 : vector<8x8xf32> to vector<1x8x8xf32>
    %120 = vector.extract_strided_slice %110 {offsets = [0, 8], sizes = [8, 8], strides = [1, 1]} : vector<8x32xf32> to vector<8x8xf32>
    %121 = vector.shape_cast %120 : vector<8x8xf32> to vector<1x8x8xf32>
    %122 = vector.extract_strided_slice %110 {offsets = [0, 16], sizes = [8, 8], strides = [1, 1]} : vector<8x32xf32> to vector<8x8xf32>
    %123 = vector.shape_cast %122 : vector<8x8xf32> to vector<1x8x8xf32>
    %124 = vector.extract_strided_slice %110 {offsets = [0, 24], sizes = [8, 8], strides = [1, 1]} : vector<8x32xf32> to vector<8x8xf32>
    %125 = vector.shape_cast %124 : vector<8x8xf32> to vector<1x8x8xf32>
    %126 = vector.shape_cast %119 : vector<1x8x8xf32> to vector<1x1x8x8xf32>
    %127 = vector.shape_cast %121 : vector<1x8x8xf32> to vector<1x1x8x8xf32>
    %128 = vector.shape_cast %123 : vector<1x8x8xf32> to vector<1x1x8x8xf32>
    %129 = vector.shape_cast %125 : vector<1x8x8xf32> to vector<1x1x8x8xf32>
    %130 = tpu.concatenate %126, %127, %128, %129 in 1 : vector<1x1x8x8xf32>, vector<1x1x8x8xf32>, vector<1x1x8x8xf32>, vector<1x1x8x8xf32> -> vector<1x4x8x8xf32>
    %131 = vector.shape_cast %130 : vector<1x4x8x8xf32> to vector<4x8x8xf32>
    %132 = vector.extract_strided_slice %116 {offsets = [0, 0], sizes = [16, 8], strides = [1, 1]} : vector<16x32xf32> to vector<16x8xf32>
    %133 = vector.shape_cast %132 : vector<16x8xf32> to vector<1x16x8xf32>
    %134 = vector.extract_strided_slice %116 {offsets = [0, 8], sizes = [16, 8], strides = [1, 1]} : vector<16x32xf32> to vector<16x8xf32>
    %135 = vector.shape_cast %134 : vector<16x8xf32> to vector<1x16x8xf32>
    %136 = vector.extract_strided_slice %116 {offsets = [0, 16], sizes = [16, 8], strides = [1, 1]} : vector<16x32xf32> to vector<16x8xf32>
    %137 = vector.shape_cast %136 : vector<16x8xf32> to vector<1x16x8xf32>
    %138 = vector.extract_strided_slice %116 {offsets = [0, 24], sizes = [16, 8], strides = [1, 1]} : vector<16x32xf32> to vector<16x8xf32>
    %139 = vector.shape_cast %138 : vector<16x8xf32> to vector<1x16x8xf32>
    %140 = vector.shape_cast %133 : vector<1x16x8xf32> to vector<1x1x16x8xf32>
    %141 = vector.shape_cast %135 : vector<1x16x8xf32> to vector<1x1x16x8xf32>
    %142 = vector.shape_cast %137 : vector<1x16x8xf32> to vector<1x1x16x8xf32>
    %143 = vector.shape_cast %139 : vector<1x16x8xf32> to vector<1x1x16x8xf32>
    %144 = tpu.concatenate %140, %141, %142, %143 in 1 : vector<1x1x16x8xf32>, vector<1x1x16x8xf32>, vector<1x1x16x8xf32>, vector<1x1x16x8xf32> -> vector<1x4x16x8xf32>
    %145 = vector.shape_cast %144 : vector<1x4x16x8xf32> to vector<4x16x8xf32>
    %146 = vector.extract_strided_slice %117 {offsets = [0, 0], sizes = [16, 8], strides = [1, 1]} : vector<16x32xf32> to vector<16x8xf32>
    %147 = vector.shape_cast %146 : vector<16x8xf32> to vector<1x16x8xf32>
    %148 = vector.extract_strided_slice %117 {offsets = [0, 8], sizes = [16, 8], strides = [1, 1]} : vector<16x32xf32> to vector<16x8xf32>
    %149 = vector.shape_cast %148 : vector<16x8xf32> to vector<1x16x8xf32>
    %150 = vector.extract_strided_slice %117 {offsets = [0, 16], sizes = [16, 8], strides = [1, 1]} : vector<16x32xf32> to vector<16x8xf32>
    %151 = vector.shape_cast %150 : vector<16x8xf32> to vector<1x16x8xf32>
    %152 = vector.extract_strided_slice %117 {offsets = [0, 24], sizes = [16, 8], strides = [1, 1]} : vector<16x32xf32> to vector<16x8xf32>
    %153 = vector.shape_cast %152 : vector<16x8xf32> to vector<1x16x8xf32>
    %154 = vector.shape_cast %147 : vector<1x16x8xf32> to vector<1x1x16x8xf32>
    %155 = vector.shape_cast %149 : vector<1x16x8xf32> to vector<1x1x16x8xf32>
    %156 = vector.shape_cast %151 : vector<1x16x8xf32> to vector<1x1x16x8xf32>
    %157 = vector.shape_cast %153 : vector<1x16x8xf32> to vector<1x1x16x8xf32>
    %158 = tpu.concatenate %154, %155, %156, %157 in 1 : vector<1x1x16x8xf32>, vector<1x1x16x8xf32>, vector<1x1x16x8xf32>, vector<1x1x16x8xf32> -> vector<1x4x16x8xf32>
    %159 = vector.shape_cast %158 : vector<1x4x16x8xf32> to vector<4x16x8xf32>
    "tpu.trace_start"() <{level = 10 : i32, message = "bqd,bkd->bqk"}> : () -> ()
    %cst_37 = arith.constant dense<0.000000e+00> : vector<4x8x16xf32>
    %160 = tpu.matmul %131, %145, %cst_37 {dimension_numbers = #tpu.dot_dimension_numbers<[2], [2], [1], [1], [0, 0, 0, 1, 1, 1], [0], [0]>} : vector<4x8x8xf32>, vector<4x16x8xf32>, vector<4x8x16xf32> -> vector<4x8x16xf32>
    "tpu.trace_stop"() : () -> ()
    %cst_38 = arith.constant dense<0xFF800000> : vector<4x8xf32>
    %161 = vector.multi_reduction <maximumf>, %160, %cst_38 [2] : vector<4x8x16xf32> to vector<4x8xf32>
    %162 = vector.shape_cast %161 : vector<4x8xf32> to vector<4x8x1xf32>
    %163 = vector.broadcast %162 : vector<4x8x1xf32> to vector<4x8x16xf32>
    %164 = arith.subf %160, %163 : vector<4x8x16xf32>
    %165 = math.exp %164 : vector<4x8x16xf32>
    %cst_39 = arith.constant dense<0.000000e+00> : vector<4x8xf32>
    %166 = vector.multi_reduction <add>, %165, %cst_39 [2] : vector<4x8x16xf32> to vector<4x8xf32>
    %167 = vector.shape_cast %166 : vector<4x8xf32> to vector<4x8x1xf32>
    %168 = vector.broadcast %167 : vector<4x8x1xf32> to vector<4x8x16xf32>
    %169 = arith.divf %165, %168 : vector<4x8x16xf32>
    "tpu.trace_start"() <{level = 10 : i32, message = "bqk,bkd->bqd"}> : () -> ()
    %cst_40 = arith.constant dense<0.000000e+00> : vector<4x8x8xf32>
    %170 = tpu.matmul %169, %159, %cst_40 {dimension_numbers = #tpu.dot_dimension_numbers<[2], [1], [1], [2], [0, 0, 0, 1, 1, 2], [0], [0]>} : vector<4x8x16xf32>, vector<4x16x8xf32>, vector<4x8x8xf32> -> vector<4x8x8xf32>
    "tpu.trace_stop"() : () -> ()
    %171 = vector.shape_cast %170 : vector<4x8x8xf32> to vector<1x4x8x8xf32>
    %172 = vector.extract_strided_slice %171 {offsets = [0, 0, 0, 0], sizes = [1, 1, 8, 8], strides = [1, 1, 1, 1]} : vector<1x4x8x8xf32> to vector<1x1x8x8xf32>
    %173 = vector.shape_cast %172 : vector<1x1x8x8xf32> to vector<1x8x8xf32>
    %174 = vector.extract_strided_slice %171 {offsets = [0, 1, 0, 0], sizes = [1, 1, 8, 8], strides = [1, 1, 1, 1]} : vector<1x4x8x8xf32> to vector<1x1x8x8xf32>
    %175 = vector.shape_cast %174 : vector<1x1x8x8xf32> to vector<1x8x8xf32>
    %176 = vector.extract_strided_slice %171 {offsets = [0, 2, 0, 0], sizes = [1, 1, 8, 8], strides = [1, 1, 1, 1]} : vector<1x4x8x8xf32> to vector<1x1x8x8xf32>
    %177 = vector.shape_cast %176 : vector<1x1x8x8xf32> to vector<1x8x8xf32>
    %178 = vector.extract_strided_slice %171 {offsets = [0, 3, 0, 0], sizes = [1, 1, 8, 8], strides = [1, 1, 1, 1]} : vector<1x4x8x8xf32> to vector<1x1x8x8xf32>
    %179 = vector.shape_cast %178 : vector<1x1x8x8xf32> to vector<1x8x8xf32>
    %180 = tpu.concatenate %173, %175, %177, %179 in 2 : vector<1x8x8xf32>, vector<1x8x8xf32>, vector<1x8x8xf32>, vector<1x8x8xf32> -> vector<1x8x32xf32>
    %181 = vector.shape_cast %180 : vector<1x8x32xf32> to vector<8x32xf32>
    %c0_41 = arith.constant 0 : index
    %c0_42 = arith.constant 0 : index
    %182 = vector.load %arg11[%c0_41, %c0_42] : memref<32x32xf32, #tpu.memory_space<vmem>>, vector<32x32xf32>
    %cst_43 = arith.constant dense<0.000000e+00> : vector<8x32xf32>
    %183 = tpu.matmul %181, %182, %cst_43 {dimension_numbers = #tpu.dot_dimension_numbers<[1], [0], [0], [1], [0, 0, 1, 1], [], []>} : vector<8x32xf32>, vector<32x32xf32>, vector<8x32xf32> -> vector<8x32xf32>
    %c0_44 = arith.constant 0 : index
    %c0_45 = arith.constant 0 : index
    %184 = vector.load %arg12[%c0_44, %c0_45] : memref<1x32xf32, #tpu.memory_space<vmem>>, vector<1x32xf32>
    %185 = vector.broadcast %184 : vector<1x32xf32> to vector<8x32xf32>
    %186 = arith.addf %183, %185 : vector<8x32xf32>
    %187 = arith.addf %105, %186 : vector<8x32xf32>
    %c0_46 = arith.constant 0 : index
    %c0_47 = arith.constant 0 : index
    %188 = vector.load %arg19[%c0_46, %c0_47] : memref<1x32xf32, #tpu.memory_space<vmem>>, vector<1x32xf32>
    %c0_48 = arith.constant 0 : index
    %c0_49 = arith.constant 0 : index
    %189 = vector.load %arg20[%c0_48, %c0_49] : memref<1x32xf32, #tpu.memory_space<vmem>>, vector<1x32xf32>
    %cst_50 = arith.constant dense<0.000000e+00> : vector<8xf32>
    %190 = vector.multi_reduction <add>, %187, %cst_50 [1] : vector<8x32xf32> to vector<8xf32>
    %191 = vector.shape_cast %190 : vector<8xf32> to vector<8x1xf32>
    %cst_51 = arith.constant 3.200000e+01 : f32
    %192 = vector.broadcast %cst_51 : f32 to vector<8x1xf32>
    %193 = arith.divf %191, %192 : vector<8x1xf32>
    %194 = vector.broadcast %193 : vector<8x1xf32> to vector<8x32xf32>
    %195 = arith.subf %187, %194 : vector<8x32xf32>
    %196 = arith.mulf %195, %195 : vector<8x32xf32>
    %cst_52 = arith.constant dense<0.000000e+00> : vector<8xf32>
    %197 = vector.multi_reduction <add>, %196, %cst_52 [1] : vector<8x32xf32> to vector<8xf32>
    %198 = vector.shape_cast %197 : vector<8xf32> to vector<8x1xf32>
    %cst_53 = arith.constant 3.200000e+01 : f32
    %199 = vector.broadcast %cst_53 : f32 to vector<8x1xf32>
    %200 = arith.divf %198, %199 : vector<8x1xf32>
    %201 = vector.broadcast %193 : vector<8x1xf32> to vector<8x32xf32>
    %202 = arith.subf %187, %201 : vector<8x32xf32>
    %cst_54 = arith.constant 9.99999974E-6 : f32
    %203 = vector.broadcast %cst_54 : f32 to vector<8x1xf32>
    %204 = arith.addf %200, %203 : vector<8x1xf32>
    %205 = math.rsqrt %204 : vector<8x1xf32>
    %206 = vector.broadcast %205 : vector<8x1xf32> to vector<8x32xf32>
    %207 = arith.mulf %202, %206 : vector<8x32xf32>
    %208 = vector.broadcast %188 : vector<1x32xf32> to vector<8x32xf32>
    %209 = arith.mulf %207, %208 : vector<8x32xf32>
    %210 = vector.broadcast %189 : vector<1x32xf32> to vector<8x32xf32>
    %211 = arith.addf %209, %210 : vector<8x32xf32>
    %c0_55 = arith.constant 0 : index
    %c0_56 = arith.constant 0 : index
    %212 = vector.load %arg13[%c0_55, %c0_56] : memref<32x128xf32, #tpu.memory_space<vmem>>, vector<32x128xf32>
    %cst_57 = arith.constant dense<0.000000e+00> : vector<8x128xf32>
    %213 = tpu.matmul %211, %212, %cst_57 {dimension_numbers = #tpu.dot_dimension_numbers<[1], [0], [0], [1], [0, 0, 1, 1], [], []>} : vector<8x32xf32>, vector<32x128xf32>, vector<8x128xf32> -> vector<8x128xf32>
    %c0_58 = arith.constant 0 : index
    %c0_59 = arith.constant 0 : index
    %214 = vector.load %arg14[%c0_58, %c0_59] : memref<1x128xf32, #tpu.memory_space<vmem>>, vector<1x128xf32>
    %215 = vector.broadcast %214 : vector<1x128xf32> to vector<8x128xf32>
    %216 = arith.addf %213, %215 : vector<8x128xf32>
    %cst_60 = arith.constant 5.000000e-01 : f32
    %217 = vector.broadcast %cst_60 : f32 to vector<8x128xf32>
    %218 = arith.mulf %217, %216 : vector<8x128xf32>
    %cst_61 = arith.constant 4.471500e-02 : f32
    %219 = vector.broadcast %cst_61 : f32 to vector<8x128xf32>
    %220 = arith.mulf %219, %216 : vector<8x128xf32>
    %221 = arith.mulf %220, %216 : vector<8x128xf32>
    %222 = arith.mulf %221, %216 : vector<8x128xf32>
    %223 = arith.addf %216, %222 : vector<8x128xf32>
    %cst_62 = arith.constant 0.797884583 : f32
    %224 = vector.broadcast %cst_62 : f32 to vector<8x128xf32>
    %225 = arith.mulf %224, %223 : vector<8x128xf32>
    %226 = math.tanh %225 : vector<8x128xf32>
    %cst_63 = arith.constant 1.000000e+00 : f32
    %227 = vector.broadcast %cst_63 : f32 to vector<8x128xf32>
    %228 = arith.addf %227, %226 : vector<8x128xf32>
    %229 = arith.mulf %218, %228 : vector<8x128xf32>
    %c0_64 = arith.constant 0 : index
    %c0_65 = arith.constant 0 : index
    %230 = vector.load %arg15[%c0_64, %c0_65] : memref<128x32xf32, #tpu.memory_space<vmem>>, vector<128x32xf32>
    %cst_66 = arith.constant dense<0.000000e+00> : vector<8x32xf32>
    %231 = tpu.matmul %229, %230, %cst_66 {dimension_numbers = #tpu.dot_dimension_numbers<[1], [0], [0], [1], [0, 0, 1, 1], [], []>} : vector<8x128xf32>, vector<128x32xf32>, vector<8x32xf32> -> vector<8x32xf32>
    %c0_67 = arith.constant 0 : index
    %c0_68 = arith.constant 0 : index
    %232 = vector.load %arg16[%c0_67, %c0_68] : memref<1x32xf32, #tpu.memory_space<vmem>>, vector<1x32xf32>
    %233 = vector.broadcast %232 : vector<1x32xf32> to vector<8x32xf32>
    %234 = arith.addf %231, %233 : vector<8x32xf32>
    %235 = arith.addf %211, %234 : vector<8x32xf32>
    %c0_69 = arith.constant 0 : index
    %c0_70 = arith.constant 0 : index
    %236 = vector.load %arg21[%c0_69, %c0_70] : memref<1x32xf32, #tpu.memory_space<vmem>>, vector<1x32xf32>
    %c0_71 = arith.constant 0 : index
    %c0_72 = arith.constant 0 : index
    %237 = vector.load %arg22[%c0_71, %c0_72] : memref<1x32xf32, #tpu.memory_space<vmem>>, vector<1x32xf32>
    %cst_73 = arith.constant dense<0.000000e+00> : vector<8xf32>
    %238 = vector.multi_reduction <add>, %235, %cst_73 [1] : vector<8x32xf32> to vector<8xf32>
    %239 = vector.shape_cast %238 : vector<8xf32> to vector<8x1xf32>
    %cst_74 = arith.constant 3.200000e+01 : f32
    %240 = vector.broadcast %cst_74 : f32 to vector<8x1xf32>
    %241 = arith.divf %239, %240 : vector<8x1xf32>
    %242 = vector.broadcast %241 : vector<8x1xf32> to vector<8x32xf32>
    %243 = arith.subf %235, %242 : vector<8x32xf32>
    %244 = arith.mulf %243, %243 : vector<8x32xf32>
    %cst_75 = arith.constant dense<0.000000e+00> : vector<8xf32>
    %245 = vector.multi_reduction <add>, %244, %cst_75 [1] : vector<8x32xf32> to vector<8xf32>
    %246 = vector.shape_cast %245 : vector<8xf32> to vector<8x1xf32>
    %cst_76 = arith.constant 3.200000e+01 : f32
    %247 = vector.broadcast %cst_76 : f32 to vector<8x1xf32>
    %248 = arith.divf %246, %247 : vector<8x1xf32>
    %249 = vector.broadcast %241 : vector<8x1xf32> to vector<8x32xf32>
    %250 = arith.subf %235, %249 : vector<8x32xf32>
    %cst_77 = arith.constant 9.99999974E-6 : f32
    %251 = vector.broadcast %cst_77 : f32 to vector<8x1xf32>
    %252 = arith.addf %248, %251 : vector<8x1xf32>
    %253 = math.rsqrt %252 : vector<8x1xf32>
    %254 = vector.broadcast %253 : vector<8x1xf32> to vector<8x32xf32>
    %255 = arith.mulf %250, %254 : vector<8x32xf32>
    %256 = vector.broadcast %236 : vector<1x32xf32> to vector<8x32xf32>
    %257 = arith.mulf %255, %256 : vector<8x32xf32>
    %258 = vector.broadcast %237 : vector<1x32xf32> to vector<8x32xf32>
    %259 = arith.addf %257, %258 : vector<8x32xf32>
    %260 = vector.shape_cast %259 : vector<8x32xf32> to vector<1x8x32xf32>
    %c0_78 = arith.constant 0 : index
    %c0_79 = arith.constant 0 : index
    %c0_80 = arith.constant 0 : index
    %261 = vector.load %arg23[%c0_78, %c0_79, %c0_80] : memref<1x8x32xf32, #tpu.memory_space<vmem>>, vector<1x8x32xf32>
    tpu.vector_store %arg23[%c0_78, %c0_79, %c0_80], %260 {strides = array<i32>} : memref<1x8x32xf32, #tpu.memory_space<vmem>>, vector<1x8x32xf32>,
    return
  }
  func.func @transform_0(%arg0: i32) -> (i32, i32, i32) {
    %c0_i32 = arith.constant 0 : i32
    %c0_i32_0 = arith.constant 0 : i32
    %c0_i32_1 = arith.constant 0 : i32
    return %arg0, %c0_i32, %c0_i32_0 : i32, i32, i32
  }
  func.func @transform_1(%arg0: i32) -> (i32, i32, i32) {
    %c0_i32 = arith.constant 0 : i32
    %c0_i32_0 = arith.constant 0 : i32
    %c0_i32_1 = arith.constant 0 : i32
    return %arg0, %c0_i32, %c0_i32_0 : i32, i32, i32
  }
  func.func @transform_2(%arg0: i32) -> (i32, i32) {
    %c0_i32 = arith.constant 0 : i32
    %c0_i32_0 = arith.constant 0 : i32
    %c0_i32_1 = arith.constant 0 : i32
    return %c0_i32, %c0_i32_0 : i32, i32
  }
  func.func @transform_3(%arg0: i32) -> (i32, i32) {
    %c0_i32 = arith.constant 0 : i32
    %c0_i32_0 = arith.constant 0 : i32
    %c0_i32_1 = arith.constant 0 : i32
    return %c0_i32, %c0_i32_0 : i32, i32
  }
  func.func @transform_4(%arg0: i32) -> (i32, i32) {
    %c0_i32 = arith.constant 0 : i32
    %c0_i32_0 = arith.constant 0 : i32
    %c0_i32_1 = arith.constant 0 : i32
    return %c0_i32, %c0_i32_0 : i32, i32
  }
  func.func @transform_5(%arg0: i32) -> (i32, i32) {
    %c0_i32 = arith.constant 0 : i32
    %c0_i32_0 = arith.constant 0 : i32
    %c0_i32_1 = arith.constant 0 : i32
    return %c0_i32, %c0_i32_0 : i32, i32
  }
  func.func @transform_6(%arg0: i32) -> (i32, i32) {
    %c0_i32 = arith.constant 0 : i32
    %c0_i32_0 = arith.constant 0 : i32
    %c0_i32_1 = arith.constant 0 : i32
    return %c0_i32, %c0_i32_0 : i32, i32
  }
  func.func @transform_7(%arg0: i32) -> (i32, i32) {
    %c0_i32 = arith.constant 0 : i32
    %c0_i32_0 = arith.constant 0 : i32
    %c0_i32_1 = arith.constant 0 : i32
    return %c0_i32, %c0_i32_0 : i32, i32
  }
  func.func @transform_8(%arg0: i32) -> (i32, i32) {
    %c0_i32 = arith.constant 0 : i32
    %c0_i32_0 = arith.constant 0 : i32
    %c0_i32_1 = arith.constant 0 : i32
    return %c0_i32, %c0_i32_0 : i32, i32
  }
  func.func @transform_9(%arg0: i32) -> (i32, i32) {
    %c0_i32 = arith.constant 0 : i32
    %c0_i32_0 = arith.constant 0 : i32
    %c0_i32_1 = arith.constant 0 : i32
    return %c0_i32, %c0_i32_0 : i32, i32
  }
  func.func @transform_10(%arg0: i32) -> (i32, i32) {
    %c0_i32 = arith.constant 0 : i32
    %c0_i32_0 = arith.constant 0 : i32
    %c0_i32_1 = arith.constant 0 : i32
    return %c0_i32, %c0_i32_0 : i32, i32
  }
  func.func @transform_11(%arg0: i32) -> (i32, i32) {
    %c0_i32 = arith.constant 0 : i32
    %c0_i32_0 = arith.constant 0 : i32
    %c0_i32_1 = arith.constant 0 : i32
    return %c0_i32, %c0_i32_0 : i32, i32
  }
  func.func @transform_12(%arg0: i32) -> (i32, i32) {
    %c0_i32 = arith.constant 0 : i32
    %c0_i32_0 = arith.constant 0 : i32
    %c0_i32_1 = arith.constant 0 : i32
    return %c0_i32, %c0_i32_0 : i32, i32
  }
  func.func @transform_13(%arg0: i32) -> (i32, i32) {
    %c0_i32 = arith.constant 0 : i32
    %c0_i32_0 = arith.constant 0 : i32
    %c0_i32_1 = arith.constant 0 : i32
    return %c0_i32, %c0_i32_0 : i32, i32
  }
  func.func @transform_14(%arg0: i32) -> (i32, i32) {
    %c0_i32 = arith.constant 0 : i32
    %c0_i32_0 = arith.constant 0 : i32
    %c0_i32_1 = arith.constant 0 : i32
    return %c0_i32, %c0_i32_0 : i32, i32
  }
  func.func @transform_15(%arg0: i32) -> (i32, i32) {
    %c0_i32 = arith.constant 0 : i32
    %c0_i32_0 = arith.constant 0 : i32
    %c0_i32_1 = arith.constant 0 : i32
    return %c0_i32, %c0_i32_0 : i32, i32
  }
  func.func @transform_16(%arg0: i32) -> (i32, i32) {
    %c0_i32 = arith.constant 0 : i32
    %c0_i32_0 = arith.constant 0 : i32
    %c0_i32_1 = arith.constant 0 : i32
    return %c0_i32, %c0_i32_0 : i32, i32
  }
  func.func @transform_17(%arg0: i32) -> (i32, i32) {
    %c0_i32 = arith.constant 0 : i32
    %c0_i32_0 = arith.constant 0 : i32
    %c0_i32_1 = arith.constant 0 : i32
    return %c0_i32, %c0_i32_0 : i32, i32
  }
  func.func @transform_18(%arg0: i32) -> (i32, i32) {
    %c0_i32 = arith.constant 0 : i32
    %c0_i32_0 = arith.constant 0 : i32
    %c0_i32_1 = arith.constant 0 : i32
    return %c0_i32, %c0_i32_0 : i32, i32
  }
  func.func @transform_19(%arg0: i32) -> (i32, i32) {
    %c0_i32 = arith.constant 0 : i32
    %c0_i32_0 = arith.constant 0 : i32
    %c0_i32_1 = arith.constant 0 : i32
    return %c0_i32, %c0_i32_0 : i32, i32
  }
  func.func @transform_20(%arg0: i32) -> (i32, i32) {
    %c0_i32 = arith.constant 0 : i32
    %c0_i32_0 = arith.constant 0 : i32
    %c0_i32_1 = arith.constant 0 : i32
    return %c0_i32, %c0_i32_0 : i32, i32
  }
  func.func @transform_21(%arg0: i32) -> (i32, i32) {
    %c0_i32 = arith.constant 0 : i32
    %c0_i32_0 = arith.constant 0 : i32
    %c0_i32_1 = arith.constant 0 : i32
    return %c0_i32, %c0_i32_0 : i32, i32
  }
  func.func @transform_22(%arg0: i32) -> (i32, i32, i32) {
    %c0_i32 = arith.constant 0 : i32
    %c0_i32_0 = arith.constant 0 : i32
    %c0_i32_1 = arith.constant 0 : i32
    return %arg0, %c0_i32, %c0_i32_0 : i32, i32, i32
  }
}

</mosaic_0001>

<llo_original>
// kernel: tpu_custom_call.1
$region0: #{tpu_custom_call.1}
  #allocation0 [shape = 'u32[]', space=smem, size = 0x4, offset = 0x4, fixed_abs, tag = 'smem constant byte address 0x4 - core index']
  #allocation1 [shape = 'u32[144,128]{1,0:T(1,128)}', space=vmem, size = 0x12000, scoped, tag = 'internal scratch']
  %s0 = inlined_call_operand.hbm [shape: f32[2,8,32], index: 0, kind: input, shape index: {}]
  %s1 = inlined_call_operand.vmem [shape: f32[2,16,32], index: 1, kind: input, shape index: {}]
  %s2 = inlined_call_operand.vmem [shape: f32[32,96], index: 2, kind: input, shape index: {}]
  %s3 = inlined_call_operand.vmem [shape: f32[1,96], index: 3, kind: input, shape index: {}]
  %s4 = inlined_call_operand.vmem [shape: f32[32,32], index: 4, kind: input, shape index: {}]
  %s5 = inlined_call_operand.vmem [shape: f32[1,32], index: 5, kind: input, shape index: {}]
  %s6 = inlined_call_operand.vmem [shape: f32[32,32], index: 6, kind: input, shape index: {}]
  %s7 = inlined_call_operand.vmem [shape: f32[1,32], index: 7, kind: input, shape index: {}]
  %s8 = inlined_call_operand.vmem [shape: f32[32,64], index: 8, kind: input, shape index: {}]
  %s9 = inlined_call_operand.vmem [shape: f32[1,64], index: 9, kind: input, shape index: {}]
  %s10 = inlined_call_operand.hbm [shape: f32[32,32], index: 10, kind: input, shape index: {}]
  %s11 = inlined_call_operand.vmem [shape: f32[1,32], index: 11, kind: input, shape index: {}]
  %s12 = inlined_call_operand.hbm [shape: f32[32,128], index: 12, kind: input, shape index: {}]
  %s13 = inlined_call_operand.vmem [shape: f32[1,128], index: 13, kind: input, shape index: {}]
  %s14 = inlined_call_operand.vmem [shape: f32[128,32], index: 14, kind: input, shape index: {}]
  %s15 = inlined_call_operand.vmem [shape: f32[1,32], index: 15, kind: input, shape index: {}]
  %s16 = inlined_call_operand.vmem [shape: f32[1,32], index: 16, kind: input, shape index: {}]
  %s17 = inlined_call_operand.vmem [shape: f32[1,32], index: 17, kind: input, shape index: {}]
  %s18 = inlined_call_operand.vmem [shape: f32[1,32], index: 18, kind: input, shape index: {}]
  %s19 = inlined_call_operand.vmem [shape: f32[1,32], index: 19, kind: input, shape index: {}]
  %s20 = inlined_call_operand.vmem [shape: f32[1,32], index: 20, kind: input, shape index: {}]
  %s21 = inlined_call_operand.vmem [shape: f32[1,32], index: 21, kind: input, shape index: {}]
  %s22 = inlined_call_operand.hbm [shape: f32[2,8,32], index: 22, kind: output, shape index: {}]
  %s23 = sld [smem:[#allocation0]]
  $region133: #{tpu_custom_call.1} parent=0
    _
  %s25 = ssub.s32 1, %s23
  %s26 = scalar_select 0, %s25, %s23
  $region1: #{tpu_custom_call.1} parent=0
    #allocation2 [shape = 'u8[8192]{0}', space=vmem, size = 0x2000, scoped, tag = 'input window, operand 0']
    #allocation3 [shape = 's32[2]{0}', space=sflag, size = 0x8, scoped, tag = 'scoped memory for tpu_custom_call.1']
    #allocation4 [shape = 's32[2]{0}', space=sflag, size = 0x8, scoped, tag = 'scoped memory for tpu_custom_call.1']
    #allocation5 [shape = 'u8[16384]{0}', space=vmem, size = 0x4000, scoped, tag = 'input window, operand 10, single buffered']
    #allocation6 [shape = 's32[1]{0}', space=sflag, size = 0x4, scoped, tag = 'scoped memory for tpu_custom_call.1']
    #allocation7 [shape = 'u8[16384]{0}', space=vmem, size = 0x4000, scoped, tag = 'input window, operand 12, single buffered']
    #allocation8 [shape = 'u8[8192]{0}', space=vmem, size = 0x2000, scoped, tag = 'output window, operand 0']
    %27 = vsyncpa [#allocation3], 0
    %s28 = scalar_lea.sflag [#allocation3], 1
    %29 = vsyncpa %s28, 0
    %30 = vsyncpa [#allocation6], 0
    %31 = vsyncpa [#allocation4], 0
    %s32 = scalar_lea.sflag [#allocation4], 1
    %33 = vsyncpa %s32, 0
    loop: start=0, step=1, limit=4
    $region2: #{tpu_custom_call.1} parent=1 // loop_pre_header
      _
    $region3: #{tpu_custom_call.1} parent=1 // loop_header
      %s35 = sphi 0, %s39
      %p36 = scmp.ge.s32.totalorder %s35, 4
      %s45 = sphi 0, %s47
      %s48 = sphi 0, %s45
      %s49 = sphi 0, %s48
      %s65 = sphi 0, %s49
      %s71 = sphi 0, %s73
      %s74 = sphi 0, %s71
      %s75 = sphi 0, %s74
      %s91 = sphi 0, %s75
      %s95 = sphi 0, %s95
      %s97 = sphi 0, %s95
      %s98 = sphi 0, %s97
      %s112 = sphi 0, %s98
      %s116 = sphi 0, %s116
      %s118 = sphi 0, %s116
      %s119 = sphi 0, %s118
      %s133 = sphi 0, %s119
      %s137 = sphi 0, %s137
      %s139 = sphi 0, %s137
      %s140 = sphi 0, %s139
      %s154 = sphi 0, %s140
      %s158 = sphi 0, %s158
      %s160 = sphi 0, %s158
      %s161 = sphi 0, %s160
      %s175 = sphi 0, %s161
      %s179 = sphi 0, %s179
      %s181 = sphi 0, %s179
      %s182 = sphi 0, %s181
      %s196 = sphi 0, %s182
      %s200 = sphi 0, %s200
      %s202 = sphi 0, %s200
      %s203 = sphi 0, %s202
      %s217 = sphi 0, %s203
      %s221 = sphi 0, %s221
      %s223 = sphi 0, %s221
      %s224 = sphi 0, %s223
      %s238 = sphi 0, %s224
      %s242 = sphi 0, %s242
      %s244 = sphi 0, %s242
      %s245 = sphi 0, %s244
      %s259 = sphi 0, %s245
      %s263 = sphi 0, %s263
      %s265 = sphi 0, %s263
      %s266 = sphi 0, %s265
      %s280 = sphi 0, %s266
      %s284 = sphi 0, %s284
      %s286 = sphi 0, %s284
      %s287 = sphi 0, %s286
      %s301 = sphi 0, %s287
      %s305 = sphi 0, %s305
      %s307 = sphi 0, %s305
      %s308 = sphi 0, %s307
      %s322 = sphi 0, %s308
      %s326 = sphi 0, %s326
      %s328 = sphi 0, %s326
      %s329 = sphi 0, %s328
      %s343 = sphi 0, %s329
      %s347 = sphi 0, %s347
      %s349 = sphi 0, %s347
      %s350 = sphi 0, %s349
      %s364 = sphi 0, %s350
      %s368 = sphi 0, %s368
      %s370 = sphi 0, %s368
      %s371 = sphi 0, %s370
      %s385 = sphi 0, %s371
      %s389 = sphi 0, %s389
      %s391 = sphi 0, %s389
      %s392 = sphi 0, %s391
      %s406 = sphi 0, %s392
      %s410 = sphi 0, %s410
      %s412 = sphi 0, %s410
      %s413 = sphi 0, %s412
      %s427 = sphi 0, %s413
      %s431 = sphi 0, %s431
      %s433 = sphi 0, %s431
      %s434 = sphi 0, %s433
      %s448 = sphi 0, %s434
      %s452 = sphi 0, %s452
      %s454 = sphi 0, %s452
      %s455 = sphi 0, %s454
      %s469 = sphi 0, %s455
      %s473 = sphi 0, %s473
      %s475 = sphi 0, %s473
      %s476 = sphi 0, %s475
      %s490 = sphi 0, %s476
      %s494 = sphi 0, %s494
      %s496 = sphi 0, %s494
      %s497 = sphi 0, %s496
      %s511 = sphi 0, %s497
      %s517 = sphi 0, %s519
      %s520 = sphi 0, %s517
      %s521 = sphi 0, %s520
      %s537 = sphi 0, %s521
    $region4: #{tpu_custom_call.1} parent=1 // loop_header_branch
      %38 = sbr.rel (%p36) target = $region8
    $region5: #{tpu_custom_call.1} parent=1 // loop_body
      %s40 = ssub.s32 %s35, 1
      %s41 = ssub.s32 %s35, 2
      %s42 = sadd.s32 %s35, 1
      %s43 = ssub.s32 %s35, %s42
      %p44 = scmp.eq.s32.totalorder %s43, 0
      %s46 = sadd.s32 %s45, 1
      %s47 = scalar_select %p44, %s45, %s46
      %p50 = pneg %p44
      %p51 = scmp.eq.s32.totalorder %s35, 1
      %p52 = por %p50, %p51
      %p53 = scmp.ne.s32.totalorder %s45, %s48
      %p54 = scmp.eq.s32.totalorder %s35, 0
      %p55 = por %p53, %p54
      %p56 = scmp.ne.s32.totalorder %s45, %s48
      %p57 = scmp.eq.s32.totalorder %s40, 1
      %p58 = por %p56, %p57
      %p59 = scmp.ne.s32.totalorder %s48, %s49
      %p60 = scmp.eq.s32.totalorder %s40, 0
      %p61 = por %p59, %p60
      %p62 = scmp.ne.s32.totalorder %s48, %s49
      %p63 = scmp.eq.s32.totalorder %s41, 1
      %p64 = por %p62, %p63
      %p66 = scmp.ne.s32.totalorder %s49, %s65
      %p67 = scmp.eq.s32.totalorder %s41, 0
      %p68 = por %p66, %p67
      %s69 = ssub.s32 %s35, %s42
      %p70 = scmp.eq.s32.totalorder %s69, 0
      %s72 = sadd.s32 %s71, 1
      %s73 = scalar_select %p70, %s71, %s72
      %p76 = pneg %p70
      %p77 = scmp.eq.s32.totalorder %s35, 1
      %p78 = por %p76, %p77
      %p79 = scmp.ne.s32.totalorder %s71, %s74
      %p80 = scmp.eq.s32.totalorder %s35, 0
      %p81 = por %p79, %p80
      %p82 = scmp.ne.s32.totalorder %s71, %s74
      %p83 = scmp.eq.s32.totalorder %s40, 1
      %p84 = por %p82, %p83
      %p85 = scmp.ne.s32.totalorder %s74, %s75
      %p86 = scmp.eq.s32.totalorder %s40, 0
      %p87 = por %p85, %p86
      %p88 = scmp.ne.s32.totalorder %s74, %s75
      %p89 = scmp.eq.s32.totalorder %s41, 1
      %p90 = por %p88, %p89
      %p92 = scmp.ne.s32.totalorder %s75, %s91
      %p93 = scmp.eq.s32.totalorder %s41, 0
      %p94 = por %p92, %p93
      %s96 = sadd.s32 %s95, 1
      %p99 = scmp.eq.s32.totalorder %s35, 1
      %p100 = scmp.ne.s32.totalorder %s95, %s97
      %p101 = scmp.eq.s32.totalorder %s35, 0
      %p102 = por %p100, %p101
      %p103 = scmp.ne.s32.totalorder %s95, %s97
      %p104 = scmp.eq.s32.totalorder %s40, 1
      %p105 = por %p103, %p104
      %p106 = scmp.ne.s32.totalorder %s97, %s98
      %p107 = scmp.eq.s32.totalorder %s40, 0
      %p108 = por %p106, %p107
      %p109 = scmp.ne.s32.totalorder %s97, %s98
      %p110 = scmp.eq.s32.totalorder %s41, 1
      %p111 = por %p109, %p110
      %p113 = scmp.ne.s32.totalorder %s98, %s112
      %p114 = scmp.eq.s32.totalorder %s41, 0
      %p115 = por %p113, %p114
      %s117 = sadd.s32 %s116, 1
      %p120 = scmp.eq.s32.totalorder %s35, 1
      %p121 = scmp.ne.s32.totalorder %s116, %s118
      %p122 = scmp.eq.s32.totalorder %s35, 0
      %p123 = por %p121, %p122
      %p124 = scmp.ne.s32.totalorder %s116, %s118
      %p125 = scmp.eq.s32.totalorder %s40, 1
      %p126 = por %p124, %p125
      %p127 = scmp.ne.s32.totalorder %s118, %s119
      %p128 = scmp.eq.s32.totalorder %s40, 0
      %p129 = por %p127, %p128
      %p130 = scmp.ne.s32.totalorder %s118, %s119
      %p131 = scmp.eq.s32.totalorder %s41, 1
      %p132 = por %p130, %p131
      %p134 = scmp.ne.s32.totalorder %s119, %s133
      %p135 = scmp.eq.s32.totalorder %s41, 0
      %p136 = por %p134, %p135
      %s138 = sadd.s32 %s137, 1
      %p141 = scmp.eq.s32.totalorder %s35, 1
      %p142 = scmp.ne.s32.totalorder %s137, %s139
      %p143 = scmp.eq.s32.totalorder %s35, 0
      %p144 = por %p142, %p143
      %p145 = scmp.ne.s32.totalorder %s137, %s139
      %p146 = scmp.eq.s32.totalorder %s40, 1
      %p147 = por %p145, %p146
      %p148 = scmp.ne.s32.totalorder %s139, %s140
      %p149 = scmp.eq.s32.totalorder %s40, 0
      %p150 = por %p148, %p149
      %p151 = scmp.ne.s32.totalorder %s139, %s140
      %p152 = scmp.eq.s32.totalorder %s41, 1
      %p153 = por %p151, %p152
      %p155 = scmp.ne.s32.totalorder %s140, %s154
      %p156 = scmp.eq.s32.totalorder %s41, 0
      %p157 = por %p155, %p156
      %s159 = sadd.s32 %s158, 1
      %p162 = scmp.eq.s32.totalorder %s35, 1
      %p163 = scmp.ne.s32.totalorder %s158, %s160
      %p164 = scmp.eq.s32.totalorder %s35, 0
      %p165 = por %p163, %p164
      %p166 = scmp.ne.s32.totalorder %s158, %s160
      %p167 = scmp.eq.s32.totalorder %s40, 1
      %p168 = por %p166, %p167
      %p169 = scmp.ne.s32.totalorder %s160, %s161
      %p170 = scmp.eq.s32.totalorder %s40, 0
      %p171 = por %p169, %p170
      %p172 = scmp.ne.s32.totalorder %s160, %s161
      %p173 = scmp.eq.s32.totalorder %s41, 1
      %p174 = por %p172, %p173
      %p176 = scmp.ne.s32.totalorder %s161, %s175
      %p177 = scmp.eq.s32.totalorder %s41, 0
      %p178 = por %p176, %p177
      %s180 = sadd.s32 %s179, 1
      %p183 = scmp.eq.s32.totalorder %s35, 1
      %p184 = scmp.ne.s32.totalorder %s179, %s181
      %p185 = scmp.eq.s32.totalorder %s35, 0
      %p186 = por %p184, %p185
      %p187 = scmp.ne.s32.totalorder %s179, %s181
      %p188 = scmp.eq.s32.totalorder %s40, 1
      %p189 = por %p187, %p188
      %p190 = scmp.ne.s32.totalorder %s181, %s182
      %p191 = scmp.eq.s32.totalorder %s40, 0
      %p192 = por %p190, %p191
      %p193 = scmp.ne.s32.totalorder %s181, %s182
      %p194 = scmp.eq.s32.totalorder %s41, 1
      %p195 = por %p193, %p194
      %p197 = scmp.ne.s32.totalorder %s182, %s196
      %p198 = scmp.eq.s32.totalorder %s41, 0
      %p199 = por %p197, %p198
      %s201 = sadd.s32 %s200, 1
      %p204 = scmp.eq.s32.totalorder %s35, 1
      %p205 = scmp.ne.s32.totalorder %s200, %s202
      %p206 = scmp.eq.s32.totalorder %s35, 0
      %p207 = por %p205, %p206
      %p208 = scmp.ne.s32.totalorder %s200, %s202
      %p209 = scmp.eq.s32.totalorder %s40, 1
      %p210 = por %p208, %p209
      %p211 = scmp.ne.s32.totalorder %s202, %s203
      %p212 = scmp.eq.s32.totalorder %s40, 0
      %p213 = por %p211, %p212
      %p214 = scmp.ne.s32.totalorder %s202, %s203
      %p215 = scmp.eq.s32.totalorder %s41, 1
      %p216 = por %p214, %p215
      %p218 = scmp.ne.s32.totalorder %s203, %s217
      %p219 = scmp.eq.s32.totalorder %s41, 0
      %p220 = por %p218, %p219
      %s222 = sadd.s32 %s221, 1
      %p225 = scmp.eq.s32.totalorder %s35, 1
      %p226 = scmp.ne.s32.totalorder %s221, %s223
      %p227 = scmp.eq.s32.totalorder %s35, 0
      %p228 = por %p226, %p227
      %p229 = scmp.ne.s32.totalorder %s221, %s223
      %p230 = scmp.eq.s32.totalorder %s40, 1
      %p231 = por %p229, %p230
      %p232 = scmp.ne.s32.totalorder %s223, %s224
      %p233 = scmp.eq.s32.totalorder %s40, 0
      %p234 = por %p232, %p233
      %p235 = scmp.ne.s32.totalorder %s223, %s224
      %p236 = scmp.eq.s32.totalorder %s41, 1
      %p237 = por %p235, %p236
      %p239 = scmp.ne.s32.totalorder %s224, %s238
      %p240 = scmp.eq.s32.totalorder %s41, 0
      %p241 = por %p239, %p240
      %s243 = sadd.s32 %s242, 1
      %p246 = scmp.eq.s32.totalorder %s35, 1
      %p247 = scmp.ne.s32.totalorder %s242, %s244
      %p248 = scmp.eq.s32.totalorder %s35, 0
      %p249 = por %p247, %p248
      %p250 = scmp.ne.s32.totalorder %s242, %s244
      %p251 = scmp.eq.s32.totalorder %s40, 1
      %p252 = por %p250, %p251
      %p253 = scmp.ne.s32.totalorder %s244, %s245
      %p254 = scmp.eq.s32.totalorder %s40, 0
      %p255 = por %p253, %p254
      %p256 = scmp.ne.s32.totalorder %s244, %s245
      %p257 = scmp.eq.s32.totalorder %s41, 1
      %p258 = por %p256, %p257
      %p260 = scmp.ne.s32.totalorder %s245, %s259
      %p261 = scmp.eq.s32.totalorder %s41, 0
      %p262 = por %p260, %p261
      %s264 = sadd.s32 %s263, 1
      %p267 = scmp.eq.s32.totalorder %s35, 1
      %p268 = scmp.ne.s32.totalorder %s263, %s265
      %p269 = scmp.eq.s32.totalorder %s35, 0
      %p270 = por %p268, %p269
      %p271 = scmp.ne.s32.totalorder %s263, %s265
      %p272 = scmp.eq.s32.totalorder %s40, 1
      %p273 = por %p271, %p272
      %p274 = scmp.ne.s32.totalorder %s265, %s266
      %p275 = scmp.eq.s32.totalorder %s40, 0
      %p276 = por %p274, %p275
      %p277 = scmp.ne.s32.totalorder %s265, %s266
      %p278 = scmp.eq.s32.totalorder %s41, 1
      %p279 = por %p277, %p278
      %p281 = scmp.ne.s32.totalorder %s266, %s280
      %p282 = scmp.eq.s32.totalorder %s41, 0
      %p283 = por %p281, %p282
      %s285 = sadd.s32 %s284, 1
      %p288 = scmp.eq.s32.totalorder %s35, 1
      %p289 = scmp.ne.s32.totalorder %s284, %s286
      %p290 = scmp.eq.s32.totalorder %s35, 0
      %p291 = por %p289, %p290
      %p292 = scmp.ne.s32.totalorder %s284, %s286
      %p293 = scmp.eq.s32.totalorder %s40, 1
      %p294 = por %p292, %p293
      %p295 = scmp.ne.s32.totalorder %s286, %s287
      %p296 = scmp.eq.s32.totalorder %s40, 0
      %p297 = por %p295, %p296
      %p298 = scmp.ne.s32.totalorder %s286, %s287
      %p299 = scmp.eq.s32.totalorder %s41, 1
      %p300 = por %p298, %p299
      %p302 = scmp.ne.s32.totalorder %s287, %s301
      %p303 = scmp.eq.s32.totalorder %s41, 0
      %p304 = por %p302, %p303
      %s306 = sadd.s32 %s305, 1
      %p309 = scmp.eq.s32.totalorder %s35, 1
      %p310 = scmp.ne.s32.totalorder %s305, %s307
      %p311 = scmp.eq.s32.totalorder %s35, 0
      %p312 = por %p310, %p311
      %p313 = scmp.ne.s32.totalorder %s305, %s307
      %p314 = scmp.eq.s32.totalorder %s40, 1
      %p315 = por %p313, %p314
      %p316 = scmp.ne.s32.totalorder %s307, %s308
      %p317 = scmp.eq.s32.totalorder %s40, 0
      %p318 = por %p316, %p317
      %p319 = scmp.ne.s32.totalorder %s307, %s308
      %p320 = scmp.eq.s32.totalorder %s41, 1
      %p321 = por %p319, %p320
      %p323 = scmp.ne.s32.totalorder %s308, %s322
      %p324 = scmp.eq.s32.totalorder %s41, 0
      %p325 = por %p323, %p324
      %s327 = sadd.s32 %s326, 1
      %p330 = scmp.eq.s32.totalorder %s35, 1
      %p331 = scmp.ne.s32.totalorder %s326, %s328
      %p332 = scmp.eq.s32.totalorder %s35, 0
      %p333 = por %p331, %p332
      %p334 = scmp.ne.s32.totalorder %s326, %s328
      %p335 = scmp.eq.s32.totalorder %s40, 1
      %p336 = por %p334, %p335
      %p337 = scmp.ne.s32.totalorder %s328, %s329
      %p338 = scmp.eq.s32.totalorder %s40, 0
      %p339 = por %p337, %p338
      %p340 = scmp.ne.s32.totalorder %s328, %s329
      %p341 = scmp.eq.s32.totalorder %s41, 1
      %p342 = por %p340, %p341
      %p344 = scmp.ne.s32.totalorder %s329, %s343
      %p345 = scmp.eq.s32.totalorder %s41, 0
      %p346 = por %p344, %p345
      %s348 = sadd.s32 %s347, 1
      %p351 = scmp.eq.s32.totalorder %s35, 1
      %p352 = scmp.ne.s32.totalorder %s347, %s349
      %p353 = scmp.eq.s32.totalorder %s35, 0
      %p354 = por %p352, %p353
      %p355 = scmp.ne.s32.totalorder %s347, %s349
      %p356 = scmp.eq.s32.totalorder %s40, 1
      %p357 = por %p355, %p356
      %p358 = scmp.ne.s32.totalorder %s349, %s350
      %p359 = scmp.eq.s32.totalorder %s40, 0
      %p360 = por %p358, %p359
      %p361 = scmp.ne.s32.totalorder %s349, %s350
      %p362 = scmp.eq.s32.totalorder %s41, 1
      %p363 = por %p361, %p362
      %p365 = scmp.ne.s32.totalorder %s350, %s364
      %p366 = scmp.eq.s32.totalorder %s41, 0
      %p367 = por %p365, %p366
      %s369 = sadd.s32 %s368, 1
      %p372 = scmp.eq.s32.totalorder %s35, 1
      %p373 = scmp.ne.s32.totalorder %s368, %s370
      %p374 = scmp.eq.s32.totalorder %s35, 0
      %p375 = por %p373, %p374
      %p376 = scmp.ne.s32.totalorder %s368, %s370
      %p377 = scmp.eq.s32.totalorder %s40, 1
      %p378 = por %p376, %p377
      %p379 = scmp.ne.s32.totalorder %s370, %s371
      %p380 = scmp.eq.s32.totalorder %s40, 0
      %p381 = por %p379, %p380
      %p382 = scmp.ne.s32.totalorder %s370, %s371
      %p383 = scmp.eq.s32.totalorder %s41, 1
      %p384 = por %p382, %p383
      %p386 = scmp.ne.s32.totalorder %s371, %s385
      %p387 = scmp.eq.s32.totalorder %s41, 0
      %p388 = por %p386, %p387
      %s390 = sadd.s32 %s389, 1
      %p393 = scmp.eq.s32.totalorder %s35, 1
      %p394 = scmp.ne.s32.totalorder %s389, %s391
      %p395 = scmp.eq.s32.totalorder %s35, 0
      %p396 = por %p394, %p395
      %p397 = scmp.ne.s32.totalorder %s389, %s391
      %p398 = scmp.eq.s32.totalorder %s40, 1
      %p399 = por %p397, %p398
      %p400 = scmp.ne.s32.totalorder %s391, %s392
      %p401 = scmp.eq.s32.totalorder %s40, 0
      %p402 = por %p400, %p401
      %p403 = scmp.ne.s32.totalorder %s391, %s392
      %p404 = scmp.eq.s32.totalorder %s41, 1
      %p405 = por %p403, %p404
      %p407 = scmp.ne.s32.totalorder %s392, %s406
      %p408 = scmp.eq.s32.totalorder %s41, 0
      %p409 = por %p407, %p408
      %s411 = sadd.s32 %s410, 1
      %p414 = scmp.eq.s32.totalorder %s35, 1
      %p415 = scmp.ne.s32.totalorder %s410, %s412
      %p416 = scmp.eq.s32.totalorder %s35, 0
      %p417 = por %p415, %p416
      %p418 = scmp.ne.s32.totalorder %s410, %s412
      %p419 = scmp.eq.s32.totalorder %s40, 1
      %p420 = por %p418, %p419
      %p421 = scmp.ne.s32.totalorder %s412, %s413
      %p422 = scmp.eq.s32.totalorder %s40, 0
      %p423 = por %p421, %p422
      %p424 = scmp.ne.s32.totalorder %s412, %s413
      %p425 = scmp.eq.s32.totalorder %s41, 1
      %p426 = por %p424, %p425
      %p428 = scmp.ne.s32.totalorder %s413, %s427
      %p429 = scmp.eq.s32.totalorder %s41, 0
      %p430 = por %p428, %p429
      %s432 = sadd.s32 %s431, 1
      %p435 = scmp.eq.s32.totalorder %s35, 1
      %p436 = scmp.ne.s32.totalorder %s431, %s433
      %p437 = scmp.eq.s32.totalorder %s35, 0
      %p438 = por %p436, %p437
      %p439 = scmp.ne.s32.totalorder %s431, %s433
      %p440 = scmp.eq.s32.totalorder %s40, 1
      %p441 = por %p439, %p440
      %p442 = scmp.ne.s32.totalorder %s433, %s434
      %p443 = scmp.eq.s32.totalorder %s40, 0
      %p444 = por %p442, %p443
      %p445 = scmp.ne.s32.totalorder %s433, %s434
      %p446 = scmp.eq.s32.totalorder %s41, 1
      %p447 = por %p445, %p446
      %p449 = scmp.ne.s32.totalorder %s434, %s448
      %p450 = scmp.eq.s32.totalorder %s41, 0
      %p451 = por %p449, %p450
      %s453 = sadd.s32 %s452, 1
      %p456 = scmp.eq.s32.totalorder %s35, 1
      %p457 = scmp.ne.s32.totalorder %s452, %s454
      %p458 = scmp.eq.s32.totalorder %s35, 0
      %p459 = por %p457, %p458
      %p460 = scmp.ne.s32.totalorder %s452, %s454
      %p461 = scmp.eq.s32.totalorder %s40, 1
      %p462 = por %p460, %p461
      %p463 = scmp.ne.s32.totalorder %s454, %s455
      %p464 = scmp.eq.s32.totalorder %s40, 0
      %p465 = por %p463, %p464
      %p466 = scmp.ne.s32.totalorder %s454, %s455
      %p467 = scmp.eq.s32.totalorder %s41, 1
      %p468 = por %p466, %p467
      %p470 = scmp.ne.s32.totalorder %s455, %s469
      %p471 = scmp.eq.s32.totalorder %s41, 0
      %p472 = por %p470, %p471
      %s474 = sadd.s32 %s473, 1
      %p477 = scmp.eq.s32.totalorder %s35, 1
      %p478 = scmp.ne.s32.totalorder %s473, %s475
      %p479 = scmp.eq.s32.totalorder %s35, 0
      %p480 = por %p478, %p479
      %p481 = scmp.ne.s32.totalorder %s473, %s475
      %p482 = scmp.eq.s32.totalorder %s40, 1
      %p483 = por %p481, %p482
      %p484 = scmp.ne.s32.totalorder %s475, %s476
      %p485 = scmp.eq.s32.totalorder %s40, 0
      %p486 = por %p484, %p485
      %p487 = scmp.ne.s32.totalorder %s475, %s476
      %p488 = scmp.eq.s32.totalorder %s41, 1
      %p489 = por %p487, %p488
      %p491 = scmp.ne.s32.totalorder %s476, %s490
      %p492 = scmp.eq.s32.totalorder %s41, 0
      %p493 = por %p491, %p492
      %s495 = sadd.s32 %s494, 1
      %p498 = scmp.eq.s32.totalorder %s35, 1
      %p499 = scmp.ne.s32.totalorder %s494, %s496
      %p500 = scmp.eq.s32.totalorder %s35, 0
      %p501 = por %p499, %p500
      %p502 = scmp.ne.s32.totalorder %s494, %s496
      %p503 = scmp.eq.s32.totalorder %s40, 1
      %p504 = por %p502, %p503
      %p505 = scmp.ne.s32.totalorder %s496, %s497
      %p506 = scmp.eq.s32.totalorder %s40, 0
      %p507 = por %p505, %p506
      %p508 = scmp.ne.s32.totalorder %s496, %s497
      %p509 = scmp.eq.s32.totalorder %s41, 1
      %p510 = por %p508, %p509
      %p512 = scmp.ne.s32.totalorder %s497, %s511
      %p513 = scmp.eq.s32.totalorder %s41, 0
      %p514 = por %p512, %p513
      %s515 = ssub.s32 %s35, %s42
      %p516 = scmp.eq.s32.totalorder %s515, 0
      %s518 = sadd.s32 %s517, 1
      %s519 = scalar_select %p516, %s517, %s518
      %p522 = pneg %p516
      %p523 = scmp.eq.s32.totalorder %s35, 1
      %p524 = por %p522, %p523
      %p525 = scmp.ne.s32.totalorder %s517, %s520
      %p526 = scmp.eq.s32.totalorder %s35, 0
      %p527 = por %p525, %p526
      %p528 = scmp.ne.s32.totalorder %s517, %s520
      %p529 = scmp.eq.s32.totalorder %s40, 1
      %p530 = por %p528, %p529
      %p531 = scmp.ne.s32.totalorder %s520, %s521
      %p532 = scmp.eq.s32.totalorder %s40, 0
      %p533 = por %p531, %p532
      %p534 = scmp.ne.s32.totalorder %s520, %s521
      %p535 = scmp.eq.s32.totalorder %s41, 1
      %p536 = por %p534, %p535
      %p538 = scmp.ne.s32.totalorder %s521, %s537
      %p539 = scmp.eq.s32.totalorder %s41, 0
      %p540 = por %p538, %p539
      %p541 = scmp.le.s32.totalorder 1, %s35
      %p542 = scmp.lt.s32.totalorder %s35, 3
      %p543 = pnand %p541, %p542
      %p544 = pneg %p543
      // Predicated region
      $region9: #{tpu_custom_call.1} parent=5 // pred_check
        _
      $region10: #{tpu_custom_call.1} parent=5 // pred_check_branch
        %546 = sbr.rel (%p543) target = $region12
      $region11: #{tpu_custom_call.1} parent=5 // pred_region
        %s547 = ssub.s32 %s35, 1
        // Predicated region
        $region13: #{tpu_custom_call.1} parent=11 // pred_check
          %p548 = pneg %p108
        $region14: #{tpu_custom_call.1} parent=11 // pred_check_branch
          %550 = sbr.rel (%p548) target = $region16
        $region15: #{tpu_custom_call.1} parent=11 // pred_region
          _
        $region16: #{tpu_custom_call.1} parent=11 // pred_fallthru
          _
        // Predicated region
        $region17: #{tpu_custom_call.1} parent=11 // pred_check
          %p551 = pneg %p129
        $region18: #{tpu_custom_call.1} parent=11 // pred_check_branch
          %553 = sbr.rel (%p551) target = $region20
        $region19: #{tpu_custom_call.1} parent=11 // pred_region
          _
        $region20: #{tpu_custom_call.1} parent=11 // pred_fallthru
          _
        // Predicated region
        $region21: #{tpu_custom_call.1} parent=11 // pred_check
          %p554 = pneg %p150
        $region22: #{tpu_custom_call.1} parent=11 // pred_check_branch
          %556 = sbr.rel (%p554) target = $region24
        $region23: #{tpu_custom_call.1} parent=11 // pred_region
          _
        $region24: #{tpu_custom_call.1} parent=11 // pred_fallthru
          _
        // Predicated region
        $region25: #{tpu_custom_call.1} parent=11 // pred_check
          %p557 = pneg %p171
        $region26: #{tpu_custom_call.1} parent=11 // pred_check_branch
          %559 = sbr.rel (%p557) target = $region28
        $region27: #{tpu_custom_call.1} parent=11 // pred_region
          _
        $region28: #{tpu_custom_call.1} parent=11 // pred_fallthru
          _
        // Predicated region
        $region29: #{tpu_custom_call.1} parent=11 // pred_check
          %p560 = pneg %p192
        $region30: #{tpu_custom_call.1} parent=11 // pred_check_branch
          %562 = sbr.rel (%p560) target = $region32
        $region31: #{tpu_custom_call.1} parent=11 // pred_region
          _
        $region32: #{tpu_custom_call.1} parent=11 // pred_fallthru
          _
        // Predicated region
        $region33: #{tpu_custom_call.1} parent=11 // pred_check
          %p563 = pneg %p213
        $region34: #{tpu_custom_call.1} parent=11 // pred_check_branch
          %565 = sbr.rel (%p563) target = $region36
        $region35: #{tpu_custom_call.1} parent=11 // pred_region
          _
        $region36: #{tpu_custom_call.1} parent=11 // pred_fallthru
          _
        // Predicated region
        $region37: #{tpu_custom_call.1} parent=11 // pred_check
          %p566 = pneg %p234
        $region38: #{tpu_custom_call.1} parent=11 // pred_check_branch
          %568 = sbr.rel (%p566) target = $region40
        $region39: #{tpu_custom_call.1} parent=11 // pred_region
          _
        $region40: #{tpu_custom_call.1} parent=11 // pred_fallthru
          _
        // Predicated region
        $region41: #{tpu_custom_call.1} parent=11 // pred_check
          %p569 = pneg %p255
        $region42: #{tpu_custom_call.1} parent=11 // pred_check_branch
          %571 = sbr.rel (%p569) target = $region44
        $region43: #{tpu_custom_call.1} parent=11 // pred_region
          _
        $region44: #{tpu_custom_call.1} parent=11 // pred_fallthru
          _
        // Predicated region
        $region45: #{tpu_custom_call.1} parent=11 // pred_check
          %p572 = pneg %p276
        $region46: #{tpu_custom_call.1} parent=11 // pred_check_branch
          %574 = sbr.rel (%p572) target = $region48
        $region47: #{tpu_custom_call.1} parent=11 // pred_region
          %s576 = ssub.s32 512, 512
          %577 = vsyncadd [#allocation6], %s576
          %s578 = sshll.u32 [#allocation5], 4
          %s579 = int_to_ptr.vmem [resolvable:$true] %s578
          %584 = dma.hbm_to_vmem [thread:$0]  %s10, 512, %s579, [#allocation6], 128, 128, 8
        $region48: #{tpu_custom_call.1} parent=11 // pred_fallthru
          _
        // Predicated region
        $region49: #{tpu_custom_call.1} parent=11 // pred_check
          %p585 = pneg %p297
        $region50: #{tpu_custom_call.1} parent=11 // pred_check_branch
          %587 = sbr.rel (%p585) target = $region52
        $region51: #{tpu_custom_call.1} parent=11 // pred_region
          _
        $region52: #{tpu_custom_call.1} parent=11 // pred_fallthru
          _
        // Predicated region
        $region53: #{tpu_custom_call.1} parent=11 // pred_check
          %p588 = pneg %p318
        $region54: #{tpu_custom_call.1} parent=11 // pred_check_branch
          %590 = sbr.rel (%p588) target = $region56
        $region55: #{tpu_custom_call.1} parent=11 // pred_region
          %s592 = ssub.s32 512, 512
          %593 = vsyncadd [#allocation6], %s592
          %s594 = sshll.u32 [#allocation7], 4
          %s595 = int_to_ptr.vmem [resolvable:$true] %s594
          %600 = dma.hbm_to_vmem [thread:$0]  %s12, 512, %s595, [#allocation6], 128, 128, 8
        $region56: #{tpu_custom_call.1} parent=11 // pred_fallthru
          _
        // Predicated region
        $region57: #{tpu_custom_call.1} parent=11 // pred_check
          %p601 = pneg %p339
        $region58: #{tpu_custom_call.1} parent=11 // pred_check_branch
          %603 = sbr.rel (%p601) target = $region60
        $region59: #{tpu_custom_call.1} parent=11 // pred_region
          _
        $region60: #{tpu_custom_call.1} parent=11 // pred_fallthru
          _
        // Predicated region
        $region61: #{tpu_custom_call.1} parent=11 // pred_check
          %p604 = pneg %p360
        $region62: #{tpu_custom_call.1} parent=11 // pred_check_branch
          %606 = sbr.rel (%p604) target = $region64
        $region63: #{tpu_custom_call.1} parent=11 // pred_region
          _
        $region64: #{tpu_custom_call.1} parent=11 // pred_fallthru
          _
        // Predicated region
        $region65: #{tpu_custom_call.1} parent=11 // pred_check
          %p607 = pneg %p381
        $region66: #{tpu_custom_call.1} parent=11 // pred_check_branch
          %609 = sbr.rel (%p607) target = $region68
        $region67: #{tpu_custom_call.1} parent=11 // pred_region
          _
        $region68: #{tpu_custom_call.1} parent=11 // pred_fallthru
          _
        // Predicated region
        $region69: #{tpu_custom_call.1} parent=11 // pred_check
          %p610 = pneg %p402
        $region70: #{tpu_custom_call.1} parent=11 // pred_check_branch
          %612 = sbr.rel (%p610) target = $region72
        $region71: #{tpu_custom_call.1} parent=11 // pred_region
          _
        $region72: #{tpu_custom_call.1} parent=11 // pred_fallthru
          _
        // Predicated region
        $region73: #{tpu_custom_call.1} parent=11 // pred_check
          %p613 = pneg %p423
        $region74: #{tpu_custom_call.1} parent=11 // pred_check_branch
          %615 = sbr.rel (%p613) target = $region76
        $region75: #{tpu_custom_call.1} parent=11 // pred_region
          _
        $region76: #{tpu_custom_call.1} parent=11 // pred_fallthru
          _
        // Predicated region
        $region77: #{tpu_custom_call.1} parent=11 // pred_check
          %p616 = pneg %p444
        $region78: #{tpu_custom_call.1} parent=11 // pred_check_branch
          %618 = sbr.rel (%p616) target = $region80
        $region79: #{tpu_custom_call.1} parent=11 // pred_region
          _
        $region80: #{tpu_custom_call.1} parent=11 // pred_fallthru
          _
        // Predicated region
        $region81: #{tpu_custom_call.1} parent=11 // pred_check
          %p619 = pneg %p465
        $region82: #{tpu_custom_call.1} parent=11 // pred_check_branch
          %621 = sbr.rel (%p619) target = $region84
        $region83: #{tpu_custom_call.1} parent=11 // pred_region
          _
        $region84: #{tpu_custom_call.1} parent=11 // pred_fallthru
          _
        // Predicated region
        $region85: #{tpu_custom_call.1} parent=11 // pred_check
          %p622 = pneg %p486
        $region86: #{tpu_custom_call.1} parent=11 // pred_check_branch
          %624 = sbr.rel (%p622) target = $region88
        $region87: #{tpu_custom_call.1} parent=11 // pred_region
          _
        $region88: #{tpu_custom_call.1} parent=11 // pred_fallthru
          _
        // Predicated region
        $region89: #{tpu_custom_call.1} parent=11 // pred_check
          %p625 = pneg %p507
        $region90: #{tpu_custom_call.1} parent=11 // pred_check_branch
          %627 = sbr.rel (%p625) target = $region92
        $region91: #{tpu_custom_call.1} parent=11 // pred_region
          _
        $region92: #{tpu_custom_call.1} parent=11 // pred_fallthru
          _
      $region12: #{tpu_custom_call.1} parent=5 // pred_fallthru
        _
      %p628 = scmp.lt.s32.totalorder %s35, 2
      // Predicated region
      $region93: #{tpu_custom_call.1} parent=5 // pred_check
        %p629 = pneg %p628
      $region94: #{tpu_custom_call.1} parent=5 // pred_check_branch
        %631 = sbr.rel (%p629) target = $region96
      $region95: #{tpu_custom_call.1} parent=5 // pred_region
        // Predicated region
        $region97: #{tpu_custom_call.1} parent=95 // pred_check
          %p632 = pneg %p55
        $region98: #{tpu_custom_call.1} parent=95 // pred_check_branch
          %634 = sbr.rel (%p632) target = $region100
        $region99: #{tpu_custom_call.1} parent=95 // pred_region
          %s635 = sand.u32 %s45, 1
          %s636 = scalar_lea.sflag [#allocation3], %s635
          %s637 = sand.u32 %s45, 1
          %s638 = smul.addr %s637, 8
          %s639 = scalar_lea.vmem [#allocation2], %s638
          %s641 = ssub.s32 128, 128
          %642 = vsyncadd %s636, %s641
          %s643 = smul.addr %s35, 128
          %s644 = scalar_lea.hbm %s0, %s643
          %s646 = sshll.u32 %s639, 4
          %s647 = int_to_ptr.vmem [resolvable:$true] %s646
          %649 = dma.hbm_to_vmem [thread:$0]  %s644, 128, %s647, %s636
        $region100: #{tpu_custom_call.1} parent=95 // pred_fallthru
          _
        // Predicated region
        $region101: #{tpu_custom_call.1} parent=95 // pred_check
          %p650 = pneg %p81
        $region102: #{tpu_custom_call.1} parent=95 // pred_check_branch
          %652 = sbr.rel (%p650) target = $region104
        $region103: #{tpu_custom_call.1} parent=95 // pred_region
          %p653 = scmp.lt.s32.totalorder %s35, 1
          %s654 = scalar_select %p653, %s35, 1
          %s655 = smul.addr %s654, 2
          %s656 = smul.addr %s655, 8
          %s657 = scalar_lea.vmem %s1, %s656
        $region104: #{tpu_custom_call.1} parent=95 // pred_fallthru
          _
      $region96: #{tpu_custom_call.1} parent=5 // pred_fallthru
        _
      %p658 = scmp.le.s32.totalorder 1, %s35
      %p659 = scmp.lt.s32.totalorder %s35, 3
      %p660 = pnand %p658, %p659
      %p661 = pneg %p660
      // Predicated region
      $region105: #{tpu_custom_call.1} parent=5 // pred_check
        _
      $region106: #{tpu_custom_call.1} parent=5 // pred_check_branch
        %663 = sbr.rel (%p660) target = $region108
      $region107: #{tpu_custom_call.1} parent=5 // pred_region
        %s664 = ssub.s32 %s35, 1
        %s665 = sand.u32 %s48, 1
        %s666 = scalar_lea.sflag [#allocation3], %s665
        %s667 = sand.u32 %s48, 1
        %s668 = smul.addr %s667, 8
        %s669 = scalar_lea.vmem [#allocation2], %s668
        // Predicated region
        $region109: #{tpu_custom_call.1} parent=107 // pred_check
          %p670 = pneg %p61
        $region110: #{tpu_custom_call.1} parent=107 // pred_check_branch
          %672 = sbr.rel (%p670) target = $region112
        $region111: #{tpu_custom_call.1} parent=107 // pred_region
          %673 = dma.done %s666, 128
        $region112: #{tpu_custom_call.1} parent=107 // pred_fallthru
          _
        // Predicated region
        $region113: #{tpu_custom_call.1} parent=107 // pred_check
          %p674 = pneg %p276
        $region114: #{tpu_custom_call.1} parent=107 // pred_check_branch
          %676 = sbr.rel (%p674) target = $region116
        $region115: #{tpu_custom_call.1} parent=107 // pred_region
          %677 = dma.done [#allocation6], 512
        $region116: #{tpu_custom_call.1} parent=107 // pred_fallthru
          _
        // Predicated region
        $region117: #{tpu_custom_call.1} parent=107 // pred_check
          %p678 = pneg %p318
        $region118: #{tpu_custom_call.1} parent=107 // pred_check_branch
          %680 = sbr.rel (%p678) target = $region120
        $region119: #{tpu_custom_call.1} parent=107 // pred_region
          %681 = dma.done [#allocation6], 512
        $region120: #{tpu_custom_call.1} parent=107 // pred_fallthru
          _
        %s682 = sand.u32 %s48, 1
        %s683 = scalar_lea.sflag [#allocation3], %s682
        %s684 = sand.u32 %s48, 1
        %s685 = smul.addr %s684, 8
        %s686 = scalar_lea.vmem [#allocation2], %s685
        %p687 = pneg %p61
        %p688 = pneg %p58
        %p689 = scmp.lt.s32.totalorder %s40, 1
        %s690 = scalar_select %p689, %s40, 1
        %s691 = smul.addr %s690, 2
        %s692 = smul.addr %s691, 8
        %s693 = scalar_lea.vmem %s1, %s692
        %p694 = pneg %p87
        %p695 = pneg %p84
        %p696 = pneg %p108
        %p697 = pneg %p105
        %p698 = pneg %p129
        %p699 = pneg %p126
        %p700 = pneg %p150
        %p701 = pneg %p147
        %p702 = pneg %p171
        %p703 = pneg %p168
        %p704 = pneg %p192
        %p705 = pneg %p189
        %p706 = pneg %p213
        %p707 = pneg %p210
        %p708 = pneg %p234
        %p709 = pneg %p231
        %p710 = pneg %p255
        %p711 = pneg %p252
        %p712 = pneg %p276
        %p713 = pneg %p273
        %p714 = pneg %p297
        %p715 = pneg %p294
        %p716 = pneg %p318
        %p717 = pneg %p315
        %p718 = pneg %p339
        %p719 = pneg %p336
        %p720 = pneg %p360
        %p721 = pneg %p357
        %p722 = pneg %p381
        %p723 = pneg %p378
        %p724 = pneg %p402
        %p725 = pneg %p399
        %p726 = pneg %p423
        %p727 = pneg %p420
        %p728 = pneg %p444
        %p729 = pneg %p441
        %p730 = pneg %p465
        %p731 = pneg %p462
        %p732 = pneg %p486
        %p733 = pneg %p483
        %p734 = pneg %p507
        %p735 = pneg %p504
        %p736 = pneg %p533
        %p737 = pneg %p530
        %s738 = sand.u32 %s520, 1
        %s739 = scalar_lea.sflag [#allocation4], %s738
        %s740 = sand.u32 %s520, 1
        %s741 = smul.addr %s740, 8
        %s742 = scalar_lea.vmem [#allocation8], %s741
        %p743 = scmp.lt.s32.totalorder %s40, 1
        %s744 = scalar_select %p743, %s40, 1
        %s745 = smul.addr %s744, 2
        %s746 = smul.addr %s745, 8
        %s747 = scalar_lea.vmem %s1, %s746
        %v748 = vld [vmem:[%s669] sm:$0xff]
        %v749 = vld [vmem:[%s747] sm:$0xff]
        %v750 = vld [vmem:[%s747 + $0x8] sm:$0xff]
        %v751 = vld [vmem:[%s2] sm:$0xff]
        %v752 = vld [vmem:[%s2 + $0x8] sm:$0xff]
        %v753 = vld [vmem:[%s2 + $0x10] sm:$0xff]
        %v754 = vld [vmem:[%s2 + $0x18] sm:$0xff]
        %v755 = vld [vmem:[%s3] sm:$0x1]
        %v757 = vlaneseq
        %v758 = vshrl.u32 %v757, 7
        %v759 = vsub.s32 0, %v758
        %v760 = vrot.slane %v755, %v759
        %vm762 = vcmask 261120
        %v764 = vsel %vm762, %v748, 0
        %766 = vmatprep.subr.mxu0 0.0
        %767 = vmatpush1.msra.mxu0 0.0
        %768 = vmatprep.subr.mxu0 0.0
        %769 = vmatpush1.msra.mxu0 0.0
        %770 = vmatprep.subr.mxu0 0.0
        %771 = vmatpush1.msra.mxu0 0.0
        %772 = vmatprep.subr.mxu0 0.0
        %773 = vmatpush1.msra.mxu0 0.0
        %774 = vmatprep.subr.mxu0 0.0
        %775 = vmatpush1.msra.mxu0 0.0
        %776 = vmatprep.subr.mxu0 0.0
        %777 = vmatpush1.msra.mxu0 0.0
        %778 = vmatprep.subr.mxu0 0.0
        %779 = vmatpush1.msra.mxu0 0.0
        %780 = vmatprep.subr.mxu0 0.0
        %781 = vmatpush1.msra.mxu0 0.0
        %782 = vmatprep.subr.mxu0 0.0
        %783 = vmatpush1.msra.mxu0 0.0
        %784 = vmatprep.subr.mxu0 0.0
        %785 = vmatpush1.msra.mxu0 0.0
        %786 = vmatprep.subr.mxu0 0.0
        %787 = vmatpush1.msra.mxu0 0.0
        %788 = vmatprep.subr.mxu0 0.0
        %789 = vmatpush1.msra.mxu0 0.0
        %790 = vmatprep.subr.mxu0 0.0
        %791 = vmatpush1.msra.mxu0 %v754
        %792 = vmatprep.subr.mxu0 0.0
        %793 = vmatpush1.msra.mxu0 %v753
        %794 = vmatprep.subr.mxu0 0.0
        %795 = vmatpush1.msra.mxu0 %v752
        %796 = vmatprep.subr.mxu0 0.0
        %797 = vmatpush1.msra.mxu0 %v751
        %798 = vmatprep.subr.mxu0 0.0
        %799 = vmatpush2.msra.mxu0 0.0
        %800 = vmatprep.subr.mxu0 0.0
        %801 = vmatpush2.msra.mxu0 0.0
        %802 = vmatprep.subr.mxu0 0.0
        %803 = vmatpush2.msra.mxu0 0.0
        %804 = vmatprep.subr.mxu0 0.0
        %805 = vmatpush2.msra.mxu0 0.0
        %806 = vmatprep.subr.mxu0 0.0
        %807 = vmatpush2.msra.mxu0 0.0
        %808 = vmatprep.subr.mxu0 0.0
        %809 = vmatpush2.msra.mxu0 0.0
        %810 = vmatprep.subr.mxu0 0.0
        %811 = vmatpush2.msra.mxu0 0.0
        %812 = vmatprep.subr.mxu0 0.0
        %813 = vmatpush2.msra.mxu0 0.0
        %814 = vmatprep.subr.mxu0 0.0
        %815 = vmatpush2.msra.mxu0 0.0
        %816 = vmatprep.subr.mxu0 0.0
        %817 = vmatpush2.msra.mxu0 0.0
        %818 = vmatprep.subr.mxu0 0.0
        %819 = vmatpush2.msra.mxu0 0.0
        %820 = vmatprep.subr.mxu0 0.0
        %821 = vmatpush2.msra.mxu0 0.0
        %822 = vmatprep.subr.mxu0 0.0
        %823 = vmatpush2.msra.mxu0 0.0
        %824 = vmatprep.subr.mxu0 0.0
        %825 = vmatpush2.msra.mxu0 0.0
        %826 = vmatprep.subr.mxu0 0.0
        %827 = vmatpush2.msra.mxu0 0.0
        %828 = vmatprep.subr.mxu0 0.0
        %829 = vmatpush2.msra.mxu0 0.0
        %830 = vmatprep.mubr.f32.mxu0 0.0
        %831 = vmatmul.mubr.f32.gmra.mxu0 %v764
        %v832 = vpop.f32.mrf.mxu0
        %v833 = vadd.f32 %v760, %v832
        %v834 = vpop.f32.mrf.mxu0
        %835 = vdwg.mxu0
        %837 = vrot.lane.b32.xlu0 %v833, 120
        %v838 = vpop.permute.xlu0 %837
        %839 = vrot.lane.b32.xlu0 %v833, 112
        %v840 = vpop.permute.xlu0 %839
        %841 = vrot.lane.b32.xlu0 %v833, 104
        %v842 = vpop.permute.xlu0 %841
        %843 = vrot.lane.b32.xlu0 %v833, 96
        %v844 = vpop.permute.xlu0 %843
        %vm845 = vcmask 64512
        %v846 = vsel %vm845, %v833, 0
        %v848 = vsel %vm845, %v844, 0
        %850 = vmatprep.subr.mxu0 0.0
        %851 = vmatpush1.xpose.msra.mxu0 0.0
        %852 = vmatprep.subr.mxu0 0.0
        %853 = vmatpush1.xpose.msra.mxu0 0.0
        %854 = vmatprep.subr.mxu0 0.0
        %855 = vmatpush1.xpose.msra.mxu0 0.0
        %856 = vmatprep.subr.mxu0 0.0
        %857 = vmatpush1.xpose.msra.mxu0 0.0
        %858 = vmatprep.subr.mxu0 0.0
        %859 = vmatpush1.xpose.msra.mxu0 0.0
        %860 = vmatprep.subr.mxu0 0.0
        %861 = vmatpush1.xpose.msra.mxu0 0.0
        %862 = vmatprep.subr.mxu0 0.0
        %863 = vmatpush1.xpose.msra.mxu0 0.0
        %864 = vmatprep.subr.mxu0 0.0
        %865 = vmatpush1.xpose.msra.mxu0 0.0
        %866 = vmatprep.subr.mxu0 0.0
        %867 = vmatpush1.xpose.msra.mxu0 0.0
        %868 = vmatprep.subr.mxu0 0.0
        %869 = vmatpush1.xpose.msra.mxu0 0.0
        %870 = vmatprep.subr.mxu0 0.0
        %871 = vmatpush1.xpose.msra.mxu0 0.0
        %872 = vmatprep.subr.mxu0 0.0
        %873 = vmatpush1.xpose.msra.mxu0 0.0
        %874 = vmatprep.subr.mxu0 0.0
        %875 = vmatpush1.xpose.msra.mxu0 0.0
        %876 = vmatprep.subr.mxu0 0.0
        %877 = vmatpush1.xpose.msra.mxu0 0.0
        %878 = vmatprep.subr.mxu0 0.0
        %879 = vmatpush1.xpose.msra.mxu0 0.0
        %880 = vmatprep.subr.mxu0 0.0
        %881 = vmatpush1.xpose.msra.mxu0 %v848
        %882 = vmatprep.subr.mxu0 0.0
        %883 = vmatpush2.xpose.msra.mxu0 0.0
        %884 = vmatprep.subr.mxu0 0.0
        %885 = vmatpush2.xpose.msra.mxu0 0.0
        %886 = vmatprep.subr.mxu0 0.0
        %887 = vmatpush2.xpose.msra.mxu0 0.0
        %888 = vmatprep.subr.mxu0 0.0
        %889 = vmatpush2.xpose.msra.mxu0 0.0
        %890 = vmatprep.subr.mxu0 0.0
        %891 = vmatpush2.xpose.msra.mxu0 0.0
        %892 = vmatprep.subr.mxu0 0.0
        %893 = vmatpush2.xpose.msra.mxu0 0.0
        %894 = vmatprep.subr.mxu0 0.0
        %895 = vmatpush2.xpose.msra.mxu0 0.0
        %896 = vmatprep.subr.mxu0 0.0
        %897 = vmatpush2.xpose.msra.mxu0 0.0
        %898 = vmatprep.subr.mxu0 0.0
        %899 = vmatpush2.xpose.msra.mxu0 0.0
        %900 = vmatprep.subr.mxu0 0.0
        %901 = vmatpush2.xpose.msra.mxu0 0.0
        %902 = vmatprep.subr.mxu0 0.0
        %903 = vmatpush2.xpose.msra.mxu0 0.0
        %904 = vmatprep.subr.mxu0 0.0
        %905 = vmatpush2.xpose.msra.mxu0 0.0
        %906 = vmatprep.subr.mxu0 0.0
        %907 = vmatpush2.xpose.msra.mxu0 0.0
        %908 = vmatprep.subr.mxu0 0.0
        %909 = vmatpush2.xpose.msra.mxu0 0.0
        %910 = vmatprep.subr.mxu0 0.0
        %911 = vmatpush2.xpose.msra.mxu0 0.0
        %912 = vmatprep.subr.mxu0 0.0
        %913 = vmatpush2.xpose.msra.mxu0 0.0
        %914 = vmatprep.mubr.f32.mxu0 0.0
        %915 = vmatmul.mubr.f32.gmra.mxu0 %v846
        %v916 = vpop.f32.mrf.mxu0
        %v917 = vadd.f32 0.0, %v916
        %v918 = vpop.f32.mrf.mxu0
        %919 = vdwg.mxu0
        %920 = vrot.lane.b32.xlu0 %v838, 96
        %v921 = vpop.permute.xlu0 %920
        %v922 = vsel %vm845, %v838, 0
        %v924 = vsel %vm845, %v921, 0
        %926 = vmatprep.subr.mxu0 0.0
        %927 = vmatpush1.xpose.msra.mxu0 0.0
        %928 = vmatprep.subr.mxu0 0.0
        %929 = vmatpush1.xpose.msra.mxu0 0.0
        %930 = vmatprep.subr.mxu0 0.0
        %931 = vmatpush1.xpose.msra.mxu0 0.0
        %932 = vmatprep.subr.mxu0 0.0
        %933 = vmatpush1.xpose.msra.mxu0 0.0
        %934 = vmatprep.subr.mxu0 0.0
        %935 = vmatpush1.xpose.msra.mxu0 0.0
        %936 = vmatprep.subr.mxu0 0.0
        %937 = vmatpush1.xpose.msra.mxu0 0.0
        %938 = vmatprep.subr.mxu0 0.0
        %939 = vmatpush1.xpose.msra.mxu0 0.0
        %940 = vmatprep.subr.mxu0 0.0
        %941 = vmatpush1.xpose.msra.mxu0 0.0
        %942 = vmatprep.subr.mxu0 0.0
        %943 = vmatpush1.xpose.msra.mxu0 0.0
        %944 = vmatprep.subr.mxu0 0.0
        %945 = vmatpush1.xpose.msra.mxu0 0.0
        %946 = vmatprep.subr.mxu0 0.0
        %947 = vmatpush1.xpose.msra.mxu0 0.0
        %948 = vmatprep.subr.mxu0 0.0
        %949 = vmatpush1.xpose.msra.mxu0 0.0
        %950 = vmatprep.subr.mxu0 0.0
        %951 = vmatpush1.xpose.msra.mxu0 0.0
        %952 = vmatprep.subr.mxu0 0.0
        %953 = vmatpush1.xpose.msra.mxu0 0.0
        %954 = vmatprep.subr.mxu0 0.0
        %955 = vmatpush1.xpose.msra.mxu0 0.0
        %956 = vmatprep.subr.mxu0 0.0
        %957 = vmatpush1.xpose.msra.mxu0 %v924
        %958 = vmatprep.subr.mxu0 0.0
        %959 = vmatpush2.xpose.msra.mxu0 0.0
        %960 = vmatprep.subr.mxu0 0.0
        %961 = vmatpush2.xpose.msra.mxu0 0.0
        %962 = vmatprep.subr.mxu0 0.0
        %963 = vmatpush2.xpose.msra.mxu0 0.0
        %964 = vmatprep.subr.mxu0 0.0
        %965 = vmatpush2.xpose.msra.mxu0 0.0
        %966 = vmatprep.subr.mxu0 0.0
        %967 = vmatpush2.xpose.msra.mxu0 0.0
        %968 = vmatprep.subr.mxu0 0.0
        %969 = vmatpush2.xpose.msra.mxu0 0.0
        %970 = vmatprep.subr.mxu0 0.0
        %971 = vmatpush2.xpose.msra.mxu0 0.0
        %972 = vmatprep.subr.mxu0 0.0
        %973 = vmatpush2.xpose.msra.mxu0 0.0
        %974 = vmatprep.subr.mxu0 0.0
        %975 = vmatpush2.xpose.msra.mxu0 0.0
        %976 = vmatprep.subr.mxu0 0.0
        %977 = vmatpush2.xpose.msra.mxu0 0.0
        %978 = vmatprep.subr.mxu0 0.0
        %979 = vmatpush2.xpose.msra.mxu0 0.0
        %980 = vmatprep.subr.mxu0 0.0
        %981 = vmatpush2.xpose.msra.mxu0 0.0
        %982 = vmatprep.subr.mxu0 0.0
        %983 = vmatpush2.xpose.msra.mxu0 0.0
        %984 = vmatprep.subr.mxu0 0.0
        %985 = vmatpush2.xpose.msra.mxu0 0.0
        %986 = vmatprep.subr.mxu0 0.0
        %987 = vmatpush2.xpose.msra.mxu0 0.0
        %988 = vmatprep.subr.mxu0 0.0
        %989 = vmatpush2.xpose.msra.mxu0 0.0
        %990 = vmatprep.mubr.f32.mxu0 0.0
        %991 = vmatmul.mubr.f32.gmra.mxu0 %v922
        %v992 = vpop.f32.mrf.mxu0
        %v993 = vadd.f32 0.0, %v992
        %v994 = vpop.f32.mrf.mxu0
        %995 = vdwg.mxu0
        %996 = vrot.lane.b32.xlu0 %v840, 96
        %v997 = vpop.permute.xlu0 %996
        %v998 = vsel %vm845, %v840, 0
        %v1000 = vsel %vm845, %v997, 0
        %1002 = vmatprep.subr.mxu0 0.0
        %1003 = vmatpush1.xpose.msra.mxu0 0.0
        %1004 = vmatprep.subr.mxu0 0.0
        %1005 = vmatpush1.xpose.msra.mxu0 0.0
        %1006 = vmatprep.subr.mxu0 0.0
        %1007 = vmatpush1.xpose.msra.mxu0 0.0
        %1008 = vmatprep.subr.mxu0 0.0
        %1009 = vmatpush1.xpose.msra.mxu0 0.0
        %1010 = vmatprep.subr.mxu0 0.0
        %1011 = vmatpush1.xpose.msra.mxu0 0.0
        %1012 = vmatprep.subr.mxu0 0.0
        %1013 = vmatpush1.xpose.msra.mxu0 0.0
        %1014 = vmatprep.subr.mxu0 0.0
        %1015 = vmatpush1.xpose.msra.mxu0 0.0
        %1016 = vmatprep.subr.mxu0 0.0
        %1017 = vmatpush1.xpose.msra.mxu0 0.0
        %1018 = vmatprep.subr.mxu0 0.0
        %1019 = vmatpush1.xpose.msra.mxu0 0.0
        %1020 = vmatprep.subr.mxu0 0.0
        %1021 = vmatpush1.xpose.msra.mxu0 0.0
        %1022 = vmatprep.subr.mxu0 0.0
        %1023 = vmatpush1.xpose.msra.mxu0 0.0
        %1024 = vmatprep.subr.mxu0 0.0
        %1025 = vmatpush1.xpose.msra.mxu0 0.0
        %1026 = vmatprep.subr.mxu0 0.0
        %1027 = vmatpush1.xpose.msra.mxu0 0.0
        %1028 = vmatprep.subr.mxu0 0.0
        %1029 = vmatpush1.xpose.msra.mxu0 0.0
        %1030 = vmatprep.subr.mxu0 0.0
        %1031 = vmatpush1.xpose.msra.mxu0 0.0
        %1032 = vmatprep.subr.mxu0 0.0
        %1033 = vmatpush1.xpose.msra.mxu0 %v1000
        %1034 = vmatprep.subr.mxu0 0.0
        %1035 = vmatpush2.xpose.msra.mxu0 0.0
        %1036 = vmatprep.subr.mxu0 0.0
        %1037 = vmatpush2.xpose.msra.mxu0 0.0
        %1038 = vmatprep.subr.mxu0 0.0
        %1039 = vmatpush2.xpose.msra.mxu0 0.0
        %1040 = vmatprep.subr.mxu0 0.0
        %1041 = vmatpush2.xpose.msra.mxu0 0.0
        %1042 = vmatprep.subr.mxu0 0.0
        %1043 = vmatpush2.xpose.msra.mxu0 0.0
        %1044 = vmatprep.subr.mxu0 0.0
        %1045 = vmatpush2.xpose.msra.mxu0 0.0
        %1046 = vmatprep.subr.mxu0 0.0
        %1047 = vmatpush2.xpose.msra.mxu0 0.0
        %1048 = vmatprep.subr.mxu0 0.0
        %1049 = vmatpush2.xpose.msra.mxu0 0.0
        %1050 = vmatprep.subr.mxu0 0.0
        %1051 = vmatpush2.xpose.msra.mxu0 0.0
        %1052 = vmatprep.subr.mxu0 0.0
        %1053 = vmatpush2.xpose.msra.mxu0 0.0
        %1054 = vmatprep.subr.mxu0 0.0
        %1055 = vmatpush2.xpose.msra.mxu0 0.0
        %1056 = vmatprep.subr.mxu0 0.0
        %1057 = vmatpush2.xpose.msra.mxu0 0.0
        %1058 = vmatprep.subr.mxu0 0.0
        %1059 = vmatpush2.xpose.msra.mxu0 0.0
        %1060 = vmatprep.subr.mxu0 0.0
        %1061 = vmatpush2.xpose.msra.mxu0 0.0
        %1062 = vmatprep.subr.mxu0 0.0
        %1063 = vmatpush2.xpose.msra.mxu0 0.0
        %1064 = vmatprep.subr.mxu0 0.0
        %1065 = vmatpush2.xpose.msra.mxu0 0.0
        %1066 = vmatprep.mubr.f32.mxu0 0.0
        %1067 = vmatmul.mubr.f32.gmra.mxu0 %v998
        %v1068 = vpop.f32.mrf.mxu0
        %v1069 = vadd.f32 0.0, %v1068
        %v1070 = vpop.f32.mrf.mxu0
        %1071 = vdwg.mxu0
        %1072 = vrot.lane.b32.xlu0 %v842, 96
        %v1073 = vpop.permute.xlu0 %1072
        %v1074 = vsel %vm845, %v842, 0
        %v1076 = vsel %vm845, %v1073, 0
        %1078 = vmatprep.subr.mxu0 0.0
        %1079 = vmatpush1.xpose.msra.mxu0 0.0
        %1080 = vmatprep.subr.mxu0 0.0
        %1081 = vmatpush1.xpose.msra.mxu0 0.0
        %1082 = vmatprep.subr.mxu0 0.0
        %1083 = vmatpush1.xpose.msra.mxu0 0.0
        %1084 = vmatprep.subr.mxu0 0.0
        %1085 = vmatpush1.xpose.msra.mxu0 0.0
        %1086 = vmatprep.subr.mxu0 0.0
        %1087 = vmatpush1.xpose.msra.mxu0 0.0
        %1088 = vmatprep.subr.mxu0 0.0
        %1089 = vmatpush1.xpose.msra.mxu0 0.0
        %1090 = vmatprep.subr.mxu0 0.0
        %1091 = vmatpush1.xpose.msra.mxu0 0.0
        %1092 = vmatprep.subr.mxu0 0.0
        %1093 = vmatpush1.xpose.msra.mxu0 0.0
        %1094 = vmatprep.subr.mxu0 0.0
        %1095 = vmatpush1.xpose.msra.mxu0 0.0
        %1096 = vmatprep.subr.mxu0 0.0
        %1097 = vmatpush1.xpose.msra.mxu0 0.0
        %1098 = vmatprep.subr.mxu0 0.0
        %1099 = vmatpush1.xpose.msra.mxu0 0.0
        %1100 = vmatprep.subr.mxu0 0.0
        %1101 = vmatpush1.xpose.msra.mxu0 0.0
        %1102 = vmatprep.subr.mxu0 0.0
        %1103 = vmatpush1.xpose.msra.mxu0 0.0
        %1104 = vmatprep.subr.mxu0 0.0
        %1105 = vmatpush1.xpose.msra.mxu0 0.0
        %1106 = vmatprep.subr.mxu0 0.0
        %1107 = vmatpush1.xpose.msra.mxu0 0.0
        %1108 = vmatprep.subr.mxu0 0.0
        %1109 = vmatpush1.xpose.msra.mxu0 %v1076
        %1110 = vmatprep.subr.mxu0 0.0
        %1111 = vmatpush2.xpose.msra.mxu0 0.0
        %1112 = vmatprep.subr.mxu0 0.0
        %1113 = vmatpush2.xpose.msra.mxu0 0.0
        %1114 = vmatprep.subr.mxu0 0.0
        %1115 = vmatpush2.xpose.msra.mxu0 0.0
        %1116 = vmatprep.subr.mxu0 0.0
        %1117 = vmatpush2.xpose.msra.mxu0 0.0
        %1118 = vmatprep.subr.mxu0 0.0
        %1119 = vmatpush2.xpose.msra.mxu0 0.0
        %1120 = vmatprep.subr.mxu0 0.0
        %1121 = vmatpush2.xpose.msra.mxu0 0.0
        %1122 = vmatprep.subr.mxu0 0.0
        %1123 = vmatpush2.xpose.msra.mxu0 0.0
        %1124 = vmatprep.subr.mxu0 0.0
        %1125 = vmatpush2.xpose.msra.mxu0 0.0
        %1126 = vmatprep.subr.mxu0 0.0
        %1127 = vmatpush2.xpose.msra.mxu0 0.0
        %1128 = vmatprep.subr.mxu0 0.0
        %1129 = vmatpush2.xpose.msra.mxu0 0.0
        %1130 = vmatprep.subr.mxu0 0.0
        %1131 = vmatpush2.xpose.msra.mxu0 0.0
        %1132 = vmatprep.subr.mxu0 0.0
        %1133 = vmatpush2.xpose.msra.mxu0 0.0
        %1134 = vmatprep.subr.mxu0 0.0
        %1135 = vmatpush2.xpose.msra.mxu0 0.0
        %1136 = vmatprep.subr.mxu0 0.0
        %1137 = vmatpush2.xpose.msra.mxu0 0.0
        %1138 = vmatprep.subr.mxu0 0.0
        %1139 = vmatpush2.xpose.msra.mxu0 0.0
        %1140 = vmatprep.subr.mxu0 0.0
        %1141 = vmatpush2.xpose.msra.mxu0 0.0
        %1142 = vmatprep.mubr.f32.mxu0 0.0
        %1143 = vmatmul.mubr.f32.gmra.mxu0 %v1074
        %v1144 = vpop.f32.mrf.mxu0
        %v1145 = vadd.f32 0.0, %v1144
        %v1146 = vpop.f32.mrf.mxu0
        %1147 = vdwg.mxu0
        %v1148 = vsel %vm845, %v917, -inf
        %1149 = vmax.xlane.f32.xlu0 %v1148
        %v1150 = vpop.xlane.xlu0 %1149
        %v1151 = vsel %vm845, %v993, -inf
        %1152 = vmax.xlane.f32.xlu0 %v1151
        %v1153 = vpop.xlane.xlu0 %1152
        %v1154 = vsel %vm845, %v1069, -inf
        %1155 = vmax.xlane.f32.xlu0 %v1154
        %v1156 = vpop.xlane.xlu0 %1155
        %v1157 = vsel %vm845, %v1145, -inf
        %1158 = vmax.xlane.f32.xlu0 %v1157
        %v1159 = vpop.xlane.xlu0 %1158
        %v1160 = vsub.f32 %v917, %v1150
        %v1161 = vsub.f32 %v993, %v1153
        %v1162 = vsub.f32 %v1069, %v1156
        %v1163 = vsub.f32 %v1145, %v1159
        %v1164 = vmul.f32 %v1160, 1.442695
        %v1165 = vpow.pop %v1164
        %v1166 = vmul.f32 %v1161, 1.442695
        %v1167 = vpow.pop %v1166
        %v1168 = vmul.f32 %v1162, 1.442695
        %v1169 = vpow.pop %v1168
        %v1170 = vmul.f32 %v1163, 1.442695
        %v1171 = vpow.pop %v1170
        %v1172 = vsel %vm845, %v1165, 0.0
        %1173 = vadd.xlane.f32.xlu0 %v1172
        %v1174 = vpop.xlane.xlu0 %1173
        %v1175 = vsel %vm845, %v1167, 0.0
        %1176 = vadd.xlane.f32.xlu0 %v1175
        %v1177 = vpop.xlane.xlu0 %1176
        %v1178 = vsel %vm845, %v1169, 0.0
        %1179 = vadd.xlane.f32.xlu0 %v1178
        %v1180 = vpop.xlane.xlu0 %1179
        %v1181 = vsel %vm845, %v1171, 0.0
        %1182 = vadd.xlane.f32.xlu0 %v1181
        %v1183 = vpop.xlane.xlu0 %1182
        %v1184 = vrcp.pop %v1174
        %v1185 = vmul.f32 %v1165, %v1184
        %v1186 = vrcp.pop %v1177
        %v1187 = vmul.f32 %v1167, %v1186
        %v1188 = vrcp.pop %v1180
        %v1189 = vmul.f32 %v1169, %v1188
        %v1190 = vrcp.pop %v1183
        %v1191 = vmul.f32 %v1171, %v1190
        %1192 = vrot.lane.b32.xlu0 %v833, 64
        %v1193 = vpop.permute.xlu0 %1192
        %v1196 = vsel %vm845, %v1185, 0
        %1198 = vmatprep.subr.mxu0 0.0
        %1199 = vmatpush1.msra.mxu0 0.0
        %1200 = vmatprep.subr.mxu0 0.0
        %1201 = vmatpush1.msra.mxu0 0.0
        %1202 = vmatprep.subr.mxu0 0.0
        %1203 = vmatpush1.msra.mxu0 0.0
        %1204 = vmatprep.subr.mxu0 0.0
        %1205 = vmatpush1.msra.mxu0 0.0
        %1206 = vmatprep.subr.mxu0 0.0
        %1207 = vmatpush1.msra.mxu0 0.0
        %1208 = vmatprep.subr.mxu0 0.0
        %1209 = vmatpush1.msra.mxu0 0.0
        %1210 = vmatprep.subr.mxu0 0.0
        %1211 = vmatpush1.msra.mxu0 0.0
        %1212 = vmatprep.subr.mxu0 0.0
        %1213 = vmatpush1.msra.mxu0 0.0
        %1214 = vmatprep.subr.mxu0 0.0
        %1215 = vmatpush1.msra.mxu0 0.0
        %1216 = vmatprep.subr.mxu0 0.0
        %1217 = vmatpush1.msra.mxu0 0.0
        %1218 = vmatprep.subr.mxu0 0.0
        %1219 = vmatpush1.msra.mxu0 0.0
        %1220 = vmatprep.subr.mxu0 0.0
        %1221 = vmatpush1.msra.mxu0 0.0
        %1222 = vmatprep.subr.mxu0 0.0
        %1223 = vmatpush1.msra.mxu0 0.0
        %1224 = vmatprep.subr.mxu0 0.0
        %1225 = vmatpush1.msra.mxu0 0.0
        %1226 = vmatprep.subr.mxu0 0.0
        %1227 = vmatpush1.msra.mxu0 0.0
        %1228 = vmatprep.subr.mxu0 0.0
        %1229 = vmatpush1.msra.mxu0 %v1193
        %1230 = vmatprep.subr.mxu0 0.0
        %1231 = vmatpush2.msra.mxu0 0.0
        %1232 = vmatprep.subr.mxu0 0.0
        %1233 = vmatpush2.msra.mxu0 0.0
        %1234 = vmatprep.subr.mxu0 0.0
        %1235 = vmatpush2.msra.mxu0 0.0
        %1236 = vmatprep.subr.mxu0 0.0
        %1237 = vmatpush2.msra.mxu0 0.0
        %1238 = vmatprep.subr.mxu0 0.0
        %1239 = vmatpush2.msra.mxu0 0.0
        %1240 = vmatprep.subr.mxu0 0.0
        %1241 = vmatpush2.msra.mxu0 0.0
        %1242 = vmatprep.subr.mxu0 0.0
        %1243 = vmatpush2.msra.mxu0 0.0
        %1244 = vmatprep.subr.mxu0 0.0
        %1245 = vmatpush2.msra.mxu0 0.0
        %1246 = vmatprep.subr.mxu0 0.0
        %1247 = vmatpush2.msra.mxu0 0.0
        %1248 = vmatprep.subr.mxu0 0.0
        %1249 = vmatpush2.msra.mxu0 0.0
        %1250 = vmatprep.subr.mxu0 0.0
        %1251 = vmatpush2.msra.mxu0 0.0
        %1252 = vmatprep.subr.mxu0 0.0
        %1253 = vmatpush2.msra.mxu0 0.0
        %1254 = vmatprep.subr.mxu0 0.0
        %1255 = vmatpush2.msra.mxu0 0.0
        %1256 = vmatprep.subr.mxu0 0.0
        %1257 = vmatpush2.msra.mxu0 0.0
        %1258 = vmatprep.subr.mxu0 0.0
        %1259 = vmatpush2.msra.mxu0 0.0
        %1260 = vmatprep.subr.mxu0 0.0
        %1261 = vmatpush2.msra.mxu0 0.0
        %1262 = vmatprep.mubr.f32.mxu0 0.0
        %1263 = vmatmul.mubr.f32.gmra.mxu0 %v1196
        %v1264 = vpop.f32.mrf.mxu0
        %v1265 = vadd.f32 0.0, %v1264
        %v1266 = vpop.f32.mrf.mxu0
        %1267 = vdwg.mxu0
        %1268 = vrot.lane.b32.xlu0 %v838, 64
        %v1269 = vpop.permute.xlu0 %1268
        %v1272 = vsel %vm845, %v1187, 0
        %1274 = vmatprep.subr.mxu0 0.0
        %1275 = vmatpush1.msra.mxu0 0.0
        %1276 = vmatprep.subr.mxu0 0.0
        %1277 = vmatpush1.msra.mxu0 0.0
        %1278 = vmatprep.subr.mxu0 0.0
        %1279 = vmatpush1.msra.mxu0 0.0
        %1280 = vmatprep.subr.mxu0 0.0
        %1281 = vmatpush1.msra.mxu0 0.0
        %1282 = vmatprep.subr.mxu0 0.0
        %1283 = vmatpush1.msra.mxu0 0.0
        %1284 = vmatprep.subr.mxu0 0.0
        %1285 = vmatpush1.msra.mxu0 0.0
        %1286 = vmatprep.subr.mxu0 0.0
        %1287 = vmatpush1.msra.mxu0 0.0
        %1288 = vmatprep.subr.mxu0 0.0
        %1289 = vmatpush1.msra.mxu0 0.0
        %1290 = vmatprep.subr.mxu0 0.0
        %1291 = vmatpush1.msra.mxu0 0.0
        %1292 = vmatprep.subr.mxu0 0.0
        %1293 = vmatpush1.msra.mxu0 0.0
        %1294 = vmatprep.subr.mxu0 0.0
        %1295 = vmatpush1.msra.mxu0 0.0
        %1296 = vmatprep.subr.mxu0 0.0
        %1297 = vmatpush1.msra.mxu0 0.0
        %1298 = vmatprep.subr.mxu0 0.0
        %1299 = vmatpush1.msra.mxu0 0.0
        %1300 = vmatprep.subr.mxu0 0.0
        %1301 = vmatpush1.msra.mxu0 0.0
        %1302 = vmatprep.subr.mxu0 0.0
        %1303 = vmatpush1.msra.mxu0 0.0
        %1304 = vmatprep.subr.mxu0 0.0
        %1305 = vmatpush1.msra.mxu0 %v1269
        %1306 = vmatprep.subr.mxu0 0.0
        %1307 = vmatpush2.msra.mxu0 0.0
        %1308 = vmatprep.subr.mxu0 0.0
        %1309 = vmatpush2.msra.mxu0 0.0
        %1310 = vmatprep.subr.mxu0 0.0
        %1311 = vmatpush2.msra.mxu0 0.0
        %1312 = vmatprep.subr.mxu0 0.0
        %1313 = vmatpush2.msra.mxu0 0.0
        %1314 = vmatprep.subr.mxu0 0.0
        %1315 = vmatpush2.msra.mxu0 0.0
        %1316 = vmatprep.subr.mxu0 0.0
        %1317 = vmatpush2.msra.mxu0 0.0
        %1318 = vmatprep.subr.mxu0 0.0
        %1319 = vmatpush2.msra.mxu0 0.0
        %1320 = vmatprep.subr.mxu0 0.0
        %1321 = vmatpush2.msra.mxu0 0.0
        %1322 = vmatprep.subr.mxu0 0.0
        %1323 = vmatpush2.msra.mxu0 0.0
        %1324 = vmatprep.subr.mxu0 0.0
        %1325 = vmatpush2.msra.mxu0 0.0
        %1326 = vmatprep.subr.mxu0 0.0
        %1327 = vmatpush2.msra.mxu0 0.0
        %1328 = vmatprep.subr.mxu0 0.0
        %1329 = vmatpush2.msra.mxu0 0.0
        %1330 = vmatprep.subr.mxu0 0.0
        %1331 = vmatpush2.msra.mxu0 0.0
        %1332 = vmatprep.subr.mxu0 0.0
        %1333 = vmatpush2.msra.mxu0 0.0
        %1334 = vmatprep.subr.mxu0 0.0
        %1335 = vmatpush2.msra.mxu0 0.0
        %1336 = vmatprep.subr.mxu0 0.0
        %1337 = vmatpush2.msra.mxu0 0.0
        %1338 = vmatprep.mubr.f32.mxu0 0.0
        %1339 = vmatmul.mubr.f32.gmra.mxu0 %v1272
        %v1340 = vpop.f32.mrf.mxu0
        %v1341 = vadd.f32 0.0, %v1340
        %v1342 = vpop.f32.mrf.mxu0
        %1343 = vdwg.mxu0
        %1344 = vrot.lane.b32.xlu0 %v840, 64
        %v1345 = vpop.permute.xlu0 %1344
        %v1348 = vsel %vm845, %v1189, 0
        %1350 = vmatprep.subr.mxu0 0.0
        %1351 = vmatpush1.msra.mxu0 0.0
        %1352 = vmatprep.subr.mxu0 0.0
        %1353 = vmatpush1.msra.mxu0 0.0
        %1354 = vmatprep.subr.mxu0 0.0
        %1355 = vmatpush1.msra.mxu0 0.0
        %1356 = vmatprep.subr.mxu0 0.0
        %1357 = vmatpush1.msra.mxu0 0.0
        %1358 = vmatprep.subr.mxu0 0.0
        %1359 = vmatpush1.msra.mxu0 0.0
        %1360 = vmatprep.subr.mxu0 0.0
        %1361 = vmatpush1.msra.mxu0 0.0
        %1362 = vmatprep.subr.mxu0 0.0
        %1363 = vmatpush1.msra.mxu0 0.0
        %1364 = vmatprep.subr.mxu0 0.0
        %1365 = vmatpush1.msra.mxu0 0.0
        %1366 = vmatprep.subr.mxu0 0.0
        %1367 = vmatpush1.msra.mxu0 0.0
        %1368 = vmatprep.subr.mxu0 0.0
        %1369 = vmatpush1.msra.mxu0 0.0
        %1370 = vmatprep.subr.mxu0 0.0
        %1371 = vmatpush1.msra.mxu0 0.0
        %1372 = vmatprep.subr.mxu0 0.0
        %1373 = vmatpush1.msra.mxu0 0.0
        %1374 = vmatprep.subr.mxu0 0.0
        %1375 = vmatpush1.msra.mxu0 0.0
        %1376 = vmatprep.subr.mxu0 0.0
        %1377 = vmatpush1.msra.mxu0 0.0
        %1378 = vmatprep.subr.mxu0 0.0
        %1379 = vmatpush1.msra.mxu0 0.0
        %1380 = vmatprep.subr.mxu0 0.0
        %1381 = vmatpush1.msra.mxu0 %v1345
        %1382 = vmatprep.subr.mxu0 0.0
        %1383 = vmatpush2.msra.mxu0 0.0
        %1384 = vmatprep.subr.mxu0 0.0
        %1385 = vmatpush2.msra.mxu0 0.0
        %1386 = vmatprep.subr.mxu0 0.0
        %1387 = vmatpush2.msra.mxu0 0.0
        %1388 = vmatprep.subr.mxu0 0.0
        %1389 = vmatpush2.msra.mxu0 0.0
        %1390 = vmatprep.subr.mxu0 0.0
        %1391 = vmatpush2.msra.mxu0 0.0
        %1392 = vmatprep.subr.mxu0 0.0
        %1393 = vmatpush2.msra.mxu0 0.0
        %1394 = vmatprep.subr.mxu0 0.0
        %1395 = vmatpush2.msra.mxu0 0.0
        %1396 = vmatprep.subr.mxu0 0.0
        %1397 = vmatpush2.msra.mxu0 0.0
        %1398 = vmatprep.subr.mxu0 0.0
        %1399 = vmatpush2.msra.mxu0 0.0
        %1400 = vmatprep.subr.mxu0 0.0
        %1401 = vmatpush2.msra.mxu0 0.0
        %1402 = vmatprep.subr.mxu0 0.0
        %1403 = vmatpush2.msra.mxu0 0.0
        %1404 = vmatprep.subr.mxu0 0.0
        %1405 = vmatpush2.msra.mxu0 0.0
        %1406 = vmatprep.subr.mxu0 0.0
        %1407 = vmatpush2.msra.mxu0 0.0
        %1408 = vmatprep.subr.mxu0 0.0
        %1409 = vmatpush2.msra.mxu0 0.0
        %1410 = vmatprep.subr.mxu0 0.0
        %1411 = vmatpush2.msra.mxu0 0.0
        %1412 = vmatprep.subr.mxu0 0.0
        %1413 = vmatpush2.msra.mxu0 0.0
        %1414 = vmatprep.mubr.f32.mxu0 0.0
        %1415 = vmatmul.mubr.f32.gmra.mxu0 %v1348
        %v1416 = vpop.f32.mrf.mxu0
        %v1417 = vadd.f32 0.0, %v1416
        %v1418 = vpop.f32.mrf.mxu0
        %1419 = vdwg.mxu0
        %1420 = vrot.lane.b32.xlu0 %v842, 64
        %v1421 = vpop.permute.xlu0 %1420
        %v1424 = vsel %vm845, %v1191, 0
        %1426 = vmatprep.subr.mxu0 0.0
        %1427 = vmatpush1.msra.mxu0 0.0
        %1428 = vmatprep.subr.mxu0 0.0
        %1429 = vmatpush1.msra.mxu0 0.0
        %1430 = vmatprep.subr.mxu0 0.0
        %1431 = vmatpush1.msra.mxu0 0.0
        %1432 = vmatprep.subr.mxu0 0.0
        %1433 = vmatpush1.msra.mxu0 0.0
        %1434 = vmatprep.subr.mxu0 0.0
        %1435 = vmatpush1.msra.mxu0 0.0
        %1436 = vmatprep.subr.mxu0 0.0
        %1437 = vmatpush1.msra.mxu0 0.0
        %1438 = vmatprep.subr.mxu0 0.0
        %1439 = vmatpush1.msra.mxu0 0.0
        %1440 = vmatprep.subr.mxu0 0.0
        %1441 = vmatpush1.msra.mxu0 0.0
        %1442 = vmatprep.subr.mxu0 0.0
        %1443 = vmatpush1.msra.mxu0 0.0
        %1444 = vmatprep.subr.mxu0 0.0
        %1445 = vmatpush1.msra.mxu0 0.0
        %1446 = vmatprep.subr.mxu0 0.0
        %1447 = vmatpush1.msra.mxu0 0.0
        %1448 = vmatprep.subr.mxu0 0.0
        %1449 = vmatpush1.msra.mxu0 0.0
        %1450 = vmatprep.subr.mxu0 0.0
        %1451 = vmatpush1.msra.mxu0 0.0
        %1452 = vmatprep.subr.mxu0 0.0
        %1453 = vmatpush1.msra.mxu0 0.0
        %1454 = vmatprep.subr.mxu0 0.0
        %1455 = vmatpush1.msra.mxu0 0.0
        %1456 = vmatprep.subr.mxu0 0.0
        %1457 = vmatpush1.msra.mxu0 %v1421
        %1458 = vmatprep.subr.mxu0 0.0
        %1459 = vmatpush2.msra.mxu0 0.0
        %1460 = vmatprep.subr.mxu0 0.0
        %1461 = vmatpush2.msra.mxu0 0.0
        %1462 = vmatprep.subr.mxu0 0.0
        %1463 = vmatpush2.msra.mxu0 0.0
        %1464 = vmatprep.subr.mxu0 0.0
        %1465 = vmatpush2.msra.mxu0 0.0
        %1466 = vmatprep.subr.mxu0 0.0
        %1467 = vmatpush2.msra.mxu0 0.0
        %1468 = vmatprep.subr.mxu0 0.0
        %1469 = vmatpush2.msra.mxu0 0.0
        %1470 = vmatprep.subr.mxu0 0.0
        %1471 = vmatpush2.msra.mxu0 0.0
        %1472 = vmatprep.subr.mxu0 0.0
        %1473 = vmatpush2.msra.mxu0 0.0
        %1474 = vmatprep.subr.mxu0 0.0
        %1475 = vmatpush2.msra.mxu0 0.0
        %1476 = vmatprep.subr.mxu0 0.0
        %1477 = vmatpush2.msra.mxu0 0.0
        %1478 = vmatprep.subr.mxu0 0.0
        %1479 = vmatpush2.msra.mxu0 0.0
        %1480 = vmatprep.subr.mxu0 0.0
        %1481 = vmatpush2.msra.mxu0 0.0
        %1482 = vmatprep.subr.mxu0 0.0
        %1483 = vmatpush2.msra.mxu0 0.0
        %1484 = vmatprep.subr.mxu0 0.0
        %1485 = vmatpush2.msra.mxu0 0.0
        %1486 = vmatprep.subr.mxu0 0.0
        %1487 = vmatpush2.msra.mxu0 0.0
        %1488 = vmatprep.subr.mxu0 0.0
        %1489 = vmatpush2.msra.mxu0 0.0
        %1490 = vmatprep.mubr.f32.mxu0 0.0
        %1491 = vmatmul.mubr.f32.gmra.mxu0 %v1424
        %v1492 = vpop.f32.mrf.mxu0
        %v1493 = vadd.f32 0.0, %v1492
        %v1494 = vpop.f32.mrf.mxu0
        %1495 = vdwg.mxu0
        %1497 = vrot.lane.b32.xlu0 %v1341, 8
        %v1498 = vpop.permute.xlu0 %1497
        %1501 = vrot.lane.b32.xlu0 %v1417, 16
        %v1502 = vpop.permute.xlu0 %1501
        %1505 = vrot.lane.b32.xlu0 %v1493, 24
        %v1506 = vpop.permute.xlu0 %1505
        %v1508 = vsel %vm845, %v1265, %v1498
        %vm1509 = vcmask 130048
        %v1510 = vsel %vm1509, %v1508, %v1502
        %vm1511 = vcmask 195584
        %v1512 = vsel %vm1511, %v1510, %v1506
        %v1513 = vld [vmem:[%s4] sm:$0xff]
        %v1514 = vld [vmem:[%s4 + $0x8] sm:$0xff]
        %v1515 = vld [vmem:[%s4 + $0x10] sm:$0xff]
        %v1516 = vld [vmem:[%s4 + $0x18] sm:$0xff]
        %v1517 = vld [vmem:[%s5] sm:$0x1]
        %v1519 = vlaneseq
        %v1520 = vshrl.u32 %v1519, 7
        %v1521 = vsub.s32 0, %v1520
        %v1522 = vrot.slane %v1517, %v1521
        %v1525 = vsel %vm762, %v1512, 0
        %1527 = vmatprep.subr.mxu0 0.0
        %1528 = vmatpush1.msra.mxu0 0.0
        %1529 = vmatprep.subr.mxu0 0.0
        %1530 = vmatpush1.msra.mxu0 0.0
        %1531 = vmatprep.subr.mxu0 0.0
        %1532 = vmatpush1.msra.mxu0 0.0
        %1533 = vmatprep.subr.mxu0 0.0
        %1534 = vmatpush1.msra.mxu0 0.0
        %1535 = vmatprep.subr.mxu0 0.0
        %1536 = vmatpush1.msra.mxu0 0.0
        %1537 = vmatprep.subr.mxu0 0.0
        %1538 = vmatpush1.msra.mxu0 0.0
        %1539 = vmatprep.subr.mxu0 0.0
        %1540 = vmatpush1.msra.mxu0 0.0
        %1541 = vmatprep.subr.mxu0 0.0
        %1542 = vmatpush1.msra.mxu0 0.0
        %1543 = vmatprep.subr.mxu0 0.0
        %1544 = vmatpush1.msra.mxu0 0.0
        %1545 = vmatprep.subr.mxu0 0.0
        %1546 = vmatpush1.msra.mxu0 0.0
        %1547 = vmatprep.subr.mxu0 0.0
        %1548 = vmatpush1.msra.mxu0 0.0
        %1549 = vmatprep.subr.mxu0 0.0
        %1550 = vmatpush1.msra.mxu0 0.0
        %1551 = vmatprep.subr.mxu0 0.0
        %1552 = vmatpush1.msra.mxu0 %v1516
        %1553 = vmatprep.subr.mxu0 0.0
        %1554 = vmatpush1.msra.mxu0 %v1515
        %1555 = vmatprep.subr.mxu0 0.0
        %1556 = vmatpush1.msra.mxu0 %v1514
        %1557 = vmatprep.subr.mxu0 0.0
        %1558 = vmatpush1.msra.mxu0 %v1513
        %1559 = vmatprep.subr.mxu0 0.0
        %1560 = vmatpush2.msra.mxu0 0.0
        %1561 = vmatprep.subr.mxu0 0.0
        %1562 = vmatpush2.msra.mxu0 0.0
        %1563 = vmatprep.subr.mxu0 0.0
        %1564 = vmatpush2.msra.mxu0 0.0
        %1565 = vmatprep.subr.mxu0 0.0
        %1566 = vmatpush2.msra.mxu0 0.0
        %1567 = vmatprep.subr.mxu0 0.0
        %1568 = vmatpush2.msra.mxu0 0.0
        %1569 = vmatprep.subr.mxu0 0.0
        %1570 = vmatpush2.msra.mxu0 0.0
        %1571 = vmatprep.subr.mxu0 0.0
        %1572 = vmatpush2.msra.mxu0 0.0
        %1573 = vmatprep.subr.mxu0 0.0
        %1574 = vmatpush2.msra.mxu0 0.0
        %1575 = vmatprep.subr.mxu0 0.0
        %1576 = vmatpush2.msra.mxu0 0.0
        %1577 = vmatprep.subr.mxu0 0.0
        %1578 = vmatpush2.msra.mxu0 0.0
        %1579 = vmatprep.subr.mxu0 0.0
        %1580 = vmatpush2.msra.mxu0 0.0
        %1581 = vmatprep.subr.mxu0 0.0
        %1582 = vmatpush2.msra.mxu0 0.0
        %1583 = vmatprep.subr.mxu0 0.0
        %1584 = vmatpush2.msra.mxu0 0.0
        %1585 = vmatprep.subr.mxu0 0.0
        %1586 = vmatpush2.msra.mxu0 0.0
        %1587 = vmatprep.subr.mxu0 0.0
        %1588 = vmatpush2.msra.mxu0 0.0
        %1589 = vmatprep.subr.mxu0 0.0
        %1590 = vmatpush2.msra.mxu0 0.0
        %1591 = vmatprep.mubr.f32.mxu0 0.0
        %1592 = vmatmul.mubr.f32.gmra.mxu0 %v1525
        %v1593 = vpop.f32.mrf.mxu0
        %v1594 = vadd.f32 %v1522, %v1593
        %v1595 = vpop.f32.mrf.mxu0
        %1596 = vdwg.mxu0
        %v1597 = vadd.f32 %v748, %v1594
        %v1598 = vld [vmem:[%s16] sm:$0x1]
        %v1599 = vld [vmem:[%s17] sm:$0x1]
        %v1600 = vsel %vm762, %v1597, 0.0
        %1601 = vadd.xlane.f32.xlu0 %v1600
        %v1602 = vpop.xlane.xlu0 %1601
        %v1603 = vrcp.pop 32.0
        %v1604 = vmul.f32 %v1602, %v1603
        %v1605 = vsub.f32 %v1597, %v1604
        %v1606 = vmul.f32 %v1605, %v1605
        %v1607 = vsel %vm762, %v1606, 0.0
        %1608 = vadd.xlane.f32.xlu0 %v1607
        %v1609 = vpop.xlane.xlu0 %1608
        %v1610 = vmul.f32 %v1609, %v1603
        %v1611 = vadd.f32 %v1610, 1e-05
        %v1612 = vrsqrt.pop %v1611
        %v1613 = vmul.f32 %v1605, %v1612
        %v1615 = vlaneseq
        %v1616 = vshrl.u32 %v1615, 7
        %v1617 = vsub.s32 0, %v1616
        %v1618 = vrot.slane %v1598, %v1617
        %v1620 = vmul.f32 %v1613, %v1618
        %v1622 = vlaneseq
        %v1623 = vshrl.u32 %v1622, 7
        %v1624 = vsub.s32 0, %v1623
        %v1625 = vrot.slane %v1599, %v1624
        %v1627 = vadd.f32 %v1620, %v1625
        %v1628 = vld [vmem:[%s6] sm:$0xff]
        %v1629 = vld [vmem:[%s6 + $0x8] sm:$0xff]
        %v1630 = vld [vmem:[%s6 + $0x10] sm:$0xff]
        %v1631 = vld [vmem:[%s6 + $0x18] sm:$0xff]
        %v1632 = vld [vmem:[%s7] sm:$0x1]
        %v1634 = vlaneseq
        %v1635 = vshrl.u32 %v1634, 7
        %v1636 = vsub.s32 0, %v1635
        %v1637 = vrot.slane %v1632, %v1636
        %v1640 = vsel %vm762, %v1627, 0
        %1642 = vmatprep.subr.mxu0 0.0
        %1643 = vmatpush1.msra.mxu0 0.0
        %1644 = vmatprep.subr.mxu0 0.0
        %1645 = vmatpush1.msra.mxu0 0.0
        %1646 = vmatprep.subr.mxu0 0.0
        %1647 = vmatpush1.msra.mxu0 0.0
        %1648 = vmatprep.subr.mxu0 0.0
        %1649 = vmatpush1.msra.mxu0 0.0
        %1650 = vmatprep.subr.mxu0 0.0
        %1651 = vmatpush1.msra.mxu0 0.0
        %1652 = vmatprep.subr.mxu0 0.0
        %1653 = vmatpush1.msra.mxu0 0.0
        %1654 = vmatprep.subr.mxu0 0.0
        %1655 = vmatpush1.msra.mxu0 0.0
        %1656 = vmatprep.subr.mxu0 0.0
        %1657 = vmatpush1.msra.mxu0 0.0
        %1658 = vmatprep.subr.mxu0 0.0
        %1659 = vmatpush1.msra.mxu0 0.0
        %1660 = vmatprep.subr.mxu0 0.0
        %1661 = vmatpush1.msra.mxu0 0.0
        %1662 = vmatprep.subr.mxu0 0.0
        %1663 = vmatpush1.msra.mxu0 0.0
        %1664 = vmatprep.subr.mxu0 0.0
        %1665 = vmatpush1.msra.mxu0 0.0
        %1666 = vmatprep.subr.mxu0 0.0
        %1667 = vmatpush1.msra.mxu0 %v1631
        %1668 = vmatprep.subr.mxu0 0.0
        %1669 = vmatpush1.msra.mxu0 %v1630
        %1670 = vmatprep.subr.mxu0 0.0
        %1671 = vmatpush1.msra.mxu0 %v1629
        %1672 = vmatprep.subr.mxu0 0.0
        %1673 = vmatpush1.msra.mxu0 %v1628
        %1674 = vmatprep.subr.mxu0 0.0
        %1675 = vmatpush2.msra.mxu0 0.0
        %1676 = vmatprep.subr.mxu0 0.0
        %1677 = vmatpush2.msra.mxu0 0.0
        %1678 = vmatprep.subr.mxu0 0.0
        %1679 = vmatpush2.msra.mxu0 0.0
        %1680 = vmatprep.subr.mxu0 0.0
        %1681 = vmatpush2.msra.mxu0 0.0
        %1682 = vmatprep.subr.mxu0 0.0
        %1683 = vmatpush2.msra.mxu0 0.0
        %1684 = vmatprep.subr.mxu0 0.0
        %1685 = vmatpush2.msra.mxu0 0.0
        %1686 = vmatprep.subr.mxu0 0.0
        %1687 = vmatpush2.msra.mxu0 0.0
        %1688 = vmatprep.subr.mxu0 0.0
        %1689 = vmatpush2.msra.mxu0 0.0
        %1690 = vmatprep.subr.mxu0 0.0
        %1691 = vmatpush2.msra.mxu0 0.0
        %1692 = vmatprep.subr.mxu0 0.0
        %1693 = vmatpush2.msra.mxu0 0.0
        %1694 = vmatprep.subr.mxu0 0.0
        %1695 = vmatpush2.msra.mxu0 0.0
        %1696 = vmatprep.subr.mxu0 0.0
        %1697 = vmatpush2.msra.mxu0 0.0
        %1698 = vmatprep.subr.mxu0 0.0
        %1699 = vmatpush2.msra.mxu0 0.0
        %1700 = vmatprep.subr.mxu0 0.0
        %1701 = vmatpush2.msra.mxu0 0.0
        %1702 = vmatprep.subr.mxu0 0.0
        %1703 = vmatpush2.msra.mxu0 0.0
        %1704 = vmatprep.subr.mxu0 0.0
        %1705 = vmatpush2.msra.mxu0 0.0
        %1706 = vmatprep.mubr.f32.mxu0 0.0
        %1707 = vmatmul.mubr.f32.gmra.mxu0 %v1640
        %v1708 = vpop.f32.mrf.mxu0
        %v1709 = vadd.f32 %v1637, %v1708
        %v1710 = vpop.f32.mrf.mxu0
        %1711 = vdwg.mxu0
        %v1712 = vld [vmem:[%s8] sm:$0xff]
        %v1713 = vld [vmem:[%s8 + $0x8] sm:$0xff]
        %v1714 = vld [vmem:[%s8 + $0x10] sm:$0xff]
        %v1715 = vld [vmem:[%s8 + $0x18] sm:$0xff]
        %v1716 = vld [vmem:[%s9] sm:$0x1]
        %v1718 = vlaneseq
        %v1719 = vshrl.u32 %v1718, 7
        %v1720 = vsub.s32 0, %v1719
        %v1721 = vrot.slane %v1716, %v1720
        %v1724 = vsel %vm762, %v749, 0
        %v1727 = vsel %vm762, %v750, 0
        %1729 = vmatprep.subr.mxu0 0.0
        %1730 = vmatpush1.msra.mxu0 0.0
        %1731 = vmatprep.subr.mxu0 0.0
        %1732 = vmatpush1.msra.mxu0 0.0
        %1733 = vmatprep.subr.mxu0 0.0
        %1734 = vmatpush1.msra.mxu0 0.0
        %1735 = vmatprep.subr.mxu0 0.0
        %1736 = vmatpush1.msra.mxu0 0.0
        %1737 = vmatprep.subr.mxu0 0.0
        %1738 = vmatpush1.msra.mxu0 0.0
        %1739 = vmatprep.subr.mxu0 0.0
        %1740 = vmatpush1.msra.mxu0 0.0
        %1741 = vmatprep.subr.mxu0 0.0
        %1742 = vmatpush1.msra.mxu0 0.0
        %1743 = vmatprep.subr.mxu0 0.0
        %1744 = vmatpush1.msra.mxu0 0.0
        %1745 = vmatprep.subr.mxu0 0.0
        %1746 = vmatpush1.msra.mxu0 0.0
        %1747 = vmatprep.subr.mxu0 0.0
        %1748 = vmatpush1.msra.mxu0 0.0
        %1749 = vmatprep.subr.mxu0 0.0
        %1750 = vmatpush1.msra.mxu0 0.0
        %1751 = vmatprep.subr.mxu0 0.0
        %1752 = vmatpush1.msra.mxu0 0.0
        %1753 = vmatprep.subr.mxu0 0.0
        %1754 = vmatpush1.msra.mxu0 %v1715
        %1755 = vmatprep.subr.mxu0 0.0
        %1756 = vmatpush1.msra.mxu0 %v1714
        %1757 = vmatprep.subr.mxu0 0.0
        %1758 = vmatpush1.msra.mxu0 %v1713
        %1759 = vmatprep.subr.mxu0 0.0
        %1760 = vmatpush1.msra.mxu0 %v1712
        %1761 = vmatprep.subr.mxu0 0.0
        %1762 = vmatpush2.msra.mxu0 0.0
        %1763 = vmatprep.subr.mxu0 0.0
        %1764 = vmatpush2.msra.mxu0 0.0
        %1765 = vmatprep.subr.mxu0 0.0
        %1766 = vmatpush2.msra.mxu0 0.0
        %1767 = vmatprep.subr.mxu0 0.0
        %1768 = vmatpush2.msra.mxu0 0.0
        %1769 = vmatprep.subr.mxu0 0.0
        %1770 = vmatpush2.msra.mxu0 0.0
        %1771 = vmatprep.subr.mxu0 0.0
        %1772 = vmatpush2.msra.mxu0 0.0
        %1773 = vmatprep.subr.mxu0 0.0
        %1774 = vmatpush2.msra.mxu0 0.0
        %1775 = vmatprep.subr.mxu0 0.0
        %1776 = vmatpush2.msra.mxu0 0.0
        %1777 = vmatprep.subr.mxu0 0.0
        %1778 = vmatpush2.msra.mxu0 0.0
        %1779 = vmatprep.subr.mxu0 0.0
        %1780 = vmatpush2.msra.mxu0 0.0
        %1781 = vmatprep.subr.mxu0 0.0
        %1782 = vmatpush2.msra.mxu0 0.0
        %1783 = vmatprep.subr.mxu0 0.0
        %1784 = vmatpush2.msra.mxu0 0.0
        %1785 = vmatprep.subr.mxu0 0.0
        %1786 = vmatpush2.msra.mxu0 0.0
        %1787 = vmatprep.subr.mxu0 0.0
        %1788 = vmatpush2.msra.mxu0 0.0
        %1789 = vmatprep.subr.mxu0 0.0
        %1790 = vmatpush2.msra.mxu0 0.0
        %1791 = vmatprep.subr.mxu0 0.0
        %1792 = vmatpush2.msra.mxu0 0.0
        %1793 = vmatprep.mubr.f32.mxu0 0.0
        %1794 = vmatmul.mubr.f32.gmra.mxu0 %v1724
        %v1795 = vpop.f32.mrf.mxu0
        %v1796 = vadd.f32 %v1721, %v1795
        %v1797 = vpop.f32.mrf.mxu0
        %1798 = vmatprep.mubr.f32.mxu0 0.0
        %1799 = vmatmul.mubr.f32.gmra.mxu0 %v1727
        %v1800 = vpop.f32.mrf.mxu0
        %v1801 = vadd.f32 %v1721, %v1800
        %v1802 = vpop.f32.mrf.mxu0
        %1803 = vdwg.mxu0
        %1805 = vrot.lane.b32.xlu0 %v1709, 120
        %v1806 = vpop.permute.xlu0 %1805
        %1807 = vrot.lane.b32.xlu0 %v1709, 112
        %v1808 = vpop.permute.xlu0 %1807
        %1809 = vrot.lane.b32.xlu0 %v1709, 104
        %v1810 = vpop.permute.xlu0 %1809
        %1813 = vrot.lane.b32.xlu0 %v1796, 120
        %v1814 = vpop.permute.xlu0 %1813
        %1815 = vrot.lane.b32.xlu0 %v1801, 120
        %v1816 = vpop.permute.xlu0 %1815
        %1817 = vrot.lane.b32.xlu0 %v1796, 112
        %v1818 = vpop.permute.xlu0 %1817
        %1819 = vrot.lane.b32.xlu0 %v1801, 112
        %v1820 = vpop.permute.xlu0 %1819
        %1821 = vrot.lane.b32.xlu0 %v1796, 104
        %v1822 = vpop.permute.xlu0 %1821
        %1823 = vrot.lane.b32.xlu0 %v1801, 104
        %v1824 = vpop.permute.xlu0 %1823
        %v1825 = vsel %vm845, %v1709, 0
        %v1827 = vsel %vm845, %v1796, 0
        %v1829 = vsel %vm845, %v1801, 0
        %1831 = vmatprep.subr.mxu0 0.0
        %1832 = vmatpush1.xpose.msra.mxu0 0.0
        %1833 = vmatprep.subr.mxu0 0.0
        %1834 = vmatpush1.xpose.msra.mxu0 0.0
        %1835 = vmatprep.subr.mxu0 0.0
        %1836 = vmatpush1.xpose.msra.mxu0 0.0
        %1837 = vmatprep.subr.mxu0 0.0
        %1838 = vmatpush1.xpose.msra.mxu0 0.0
        %1839 = vmatprep.subr.mxu0 0.0
        %1840 = vmatpush1.xpose.msra.mxu0 0.0
        %1841 = vmatprep.subr.mxu0 0.0
        %1842 = vmatpush1.xpose.msra.mxu0 0.0
        %1843 = vmatprep.subr.mxu0 0.0
        %1844 = vmatpush1.xpose.msra.mxu0 0.0
        %1845 = vmatprep.subr.mxu0 0.0
        %1846 = vmatpush1.xpose.msra.mxu0 0.0
        %1847 = vmatprep.subr.mxu0 0.0
        %1848 = vmatpush1.xpose.msra.mxu0 0.0
        %1849 = vmatprep.subr.mxu0 0.0
        %1850 = vmatpush1.xpose.msra.mxu0 0.0
        %1851 = vmatprep.subr.mxu0 0.0
        %1852 = vmatpush1.xpose.msra.mxu0 0.0
        %1853 = vmatprep.subr.mxu0 0.0
        %1854 = vmatpush1.xpose.msra.mxu0 0.0
        %1855 = vmatprep.subr.mxu0 0.0
        %1856 = vmatpush1.xpose.msra.mxu0 0.0
        %1857 = vmatprep.subr.mxu0 0.0
        %1858 = vmatpush1.xpose.msra.mxu0 0.0
        %1859 = vmatprep.subr.mxu0 0.0
        %1860 = vmatpush1.xpose.msra.mxu0 %v1829
        %1861 = vmatprep.subr.mxu0 0.0
        %1862 = vmatpush1.xpose.msra.mxu0 %v1827
        %1863 = vmatprep.subr.mxu0 0.0
        %1864 = vmatpush2.xpose.msra.mxu0 0.0
        %1865 = vmatprep.subr.mxu0 0.0
        %1866 = vmatpush2.xpose.msra.mxu0 0.0
        %1867 = vmatprep.subr.mxu0 0.0
        %1868 = vmatpush2.xpose.msra.mxu0 0.0
        %1869 = vmatprep.subr.mxu0 0.0
        %1870 = vmatpush2.xpose.msra.mxu0 0.0
        %1871 = vmatprep.subr.mxu0 0.0
        %1872 = vmatpush2.xpose.msra.mxu0 0.0
        %1873 = vmatprep.subr.mxu0 0.0
        %1874 = vmatpush2.xpose.msra.mxu0 0.0
        %1875 = vmatprep.subr.mxu0 0.0
        %1876 = vmatpush2.xpose.msra.mxu0 0.0
        %1877 = vmatprep.subr.mxu0 0.0
        %1878 = vmatpush2.xpose.msra.mxu0 0.0
        %1879 = vmatprep.subr.mxu0 0.0
        %1880 = vmatpush2.xpose.msra.mxu0 0.0
        %1881 = vmatprep.subr.mxu0 0.0
        %1882 = vmatpush2.xpose.msra.mxu0 0.0
        %1883 = vmatprep.subr.mxu0 0.0
        %1884 = vmatpush2.xpose.msra.mxu0 0.0
        %1885 = vmatprep.subr.mxu0 0.0
        %1886 = vmatpush2.xpose.msra.mxu0 0.0
        %1887 = vmatprep.subr.mxu0 0.0
        %1888 = vmatpush2.xpose.msra.mxu0 0.0
        %1889 = vmatprep.subr.mxu0 0.0
        %1890 = vmatpush2.xpose.msra.mxu0 0.0
        %1891 = vmatprep.subr.mxu0 0.0
        %1892 = vmatpush2.xpose.msra.mxu0 0.0
        %1893 = vmatprep.subr.mxu0 0.0
        %1894 = vmatpush2.xpose.msra.mxu0 0.0
        %1895 = vmatprep.mubr.f32.mxu0 0.0
        %1896 = vmatmul.mubr.f32.gmra.mxu0 %v1825
        %v1897 = vpop.f32.mrf.mxu0
        %v1898 = vadd.f32 0.0, %v1897
        %v1899 = vpop.f32.mrf.mxu0
        %1900 = vdwg.mxu0
        %v1901 = vsel %vm845, %v1806, 0
        %v1903 = vsel %vm845, %v1814, 0
        %v1905 = vsel %vm845, %v1816, 0
        %1907 = vmatprep.subr.mxu0 0.0
        %1908 = vmatpush1.xpose.msra.mxu0 0.0
        %1909 = vmatprep.subr.mxu0 0.0
        %1910 = vmatpush1.xpose.msra.mxu0 0.0
        %1911 = vmatprep.subr.mxu0 0.0
        %1912 = vmatpush1.xpose.msra.mxu0 0.0
        %1913 = vmatprep.subr.mxu0 0.0
        %1914 = vmatpush1.xpose.msra.mxu0 0.0
        %1915 = vmatprep.subr.mxu0 0.0
        %1916 = vmatpush1.xpose.msra.mxu0 0.0
        %1917 = vmatprep.subr.mxu0 0.0
        %1918 = vmatpush1.xpose.msra.mxu0 0.0
        %1919 = vmatprep.subr.mxu0 0.0
        %1920 = vmatpush1.xpose.msra.mxu0 0.0
        %1921 = vmatprep.subr.mxu0 0.0
        %1922 = vmatpush1.xpose.msra.mxu0 0.0
        %1923 = vmatprep.subr.mxu0 0.0
        %1924 = vmatpush1.xpose.msra.mxu0 0.0
        %1925 = vmatprep.subr.mxu0 0.0
        %1926 = vmatpush1.xpose.msra.mxu0 0.0
        %1927 = vmatprep.subr.mxu0 0.0
        %1928 = vmatpush1.xpose.msra.mxu0 0.0
        %1929 = vmatprep.subr.mxu0 0.0
        %1930 = vmatpush1.xpose.msra.mxu0 0.0
        %1931 = vmatprep.subr.mxu0 0.0
        %1932 = vmatpush1.xpose.msra.mxu0 0.0
        %1933 = vmatprep.subr.mxu0 0.0
        %1934 = vmatpush1.xpose.msra.mxu0 0.0
        %1935 = vmatprep.subr.mxu0 0.0
        %1936 = vmatpush1.xpose.msra.mxu0 %v1905
        %1937 = vmatprep.subr.mxu0 0.0
        %1938 = vmatpush1.xpose.msra.mxu0 %v1903
        %1939 = vmatprep.subr.mxu0 0.0
        %1940 = vmatpush2.xpose.msra.mxu0 0.0
        %1941 = vmatprep.subr.mxu0 0.0
        %1942 = vmatpush2.xpose.msra.mxu0 0.0
        %1943 = vmatprep.subr.mxu0 0.0
        %1944 = vmatpush2.xpose.msra.mxu0 0.0
        %1945 = vmatprep.subr.mxu0 0.0
        %1946 = vmatpush2.xpose.msra.mxu0 0.0
        %1947 = vmatprep.subr.mxu0 0.0
        %1948 = vmatpush2.xpose.msra.mxu0 0.0
        %1949 = vmatprep.subr.mxu0 0.0
        %1950 = vmatpush2.xpose.msra.mxu0 0.0
        %1951 = vmatprep.subr.mxu0 0.0
        %1952 = vmatpush2.xpose.msra.mxu0 0.0
        %1953 = vmatprep.subr.mxu0 0.0
        %1954 = vmatpush2.xpose.msra.mxu0 0.0
        %1955 = vmatprep.subr.mxu0 0.0
        %1956 = vmatpush2.xpose.msra.mxu0 0.0
        %1957 = vmatprep.subr.mxu0 0.0
        %1958 = vmatpush2.xpose.msra.mxu0 0.0
        %1959 = vmatprep.subr.mxu0 0.0
        %1960 = vmatpush2.xpose.msra.mxu0 0.0
        %1961 = vmatprep.subr.mxu0 0.0
        %1962 = vmatpush2.xpose.msra.mxu0 0.0
        %1963 = vmatprep.subr.mxu0 0.0
        %1964 = vmatpush2.xpose.msra.mxu0 0.0
        %1965 = vmatprep.subr.mxu0 0.0
        %1966 = vmatpush2.xpose.msra.mxu0 0.0
        %1967 = vmatprep.subr.mxu0 0.0
        %1968 = vmatpush2.xpose.msra.mxu0 0.0
        %1969 = vmatprep.subr.mxu0 0.0
        %1970 = vmatpush2.xpose.msra.mxu0 0.0
        %1971 = vmatprep.mubr.f32.mxu0 0.0
        %1972 = vmatmul.mubr.f32.gmra.mxu0 %v1901
        %v1973 = vpop.f32.mrf.mxu0
        %v1974 = vadd.f32 0.0, %v1973
        %v1975 = vpop.f32.mrf.mxu0
        %1976 = vdwg.mxu0
        %v1977 = vsel %vm845, %v1808, 0
        %v1979 = vsel %vm845, %v1818, 0
        %v1981 = vsel %vm845, %v1820, 0
        %1983 = vmatprep.subr.mxu0 0.0
        %1984 = vmatpush1.xpose.msra.mxu0 0.0
        %1985 = vmatprep.subr.mxu0 0.0
        %1986 = vmatpush1.xpose.msra.mxu0 0.0
        %1987 = vmatprep.subr.mxu0 0.0
        %1988 = vmatpush1.xpose.msra.mxu0 0.0
        %1989 = vmatprep.subr.mxu0 0.0
        %1990 = vmatpush1.xpose.msra.mxu0 0.0
        %1991 = vmatprep.subr.mxu0 0.0
        %1992 = vmatpush1.xpose.msra.mxu0 0.0
        %1993 = vmatprep.subr.mxu0 0.0
        %1994 = vmatpush1.xpose.msra.mxu0 0.0
        %1995 = vmatprep.subr.mxu0 0.0
        %1996 = vmatpush1.xpose.msra.mxu0 0.0
        %1997 = vmatprep.subr.mxu0 0.0
        %1998 = vmatpush1.xpose.msra.mxu0 0.0
        %1999 = vmatprep.subr.mxu0 0.0
        %2000 = vmatpush1.xpose.msra.mxu0 0.0
        %2001 = vmatprep.subr.mxu0 0.0
        %2002 = vmatpush1.xpose.msra.mxu0 0.0
        %2003 = vmatprep.subr.mxu0 0.0
        %2004 = vmatpush1.xpose.msra.mxu0 0.0
        %2005 = vmatprep.subr.mxu0 0.0
        %2006 = vmatpush1.xpose.msra.mxu0 0.0
        %2007 = vmatprep.subr.mxu0 0.0
        %2008 = vmatpush1.xpose.msra.mxu0 0.0
        %2009 = vmatprep.subr.mxu0 0.0
        %2010 = vmatpush1.xpose.msra.mxu0 0.0
        %2011 = vmatprep.subr.mxu0 0.0
        %2012 = vmatpush1.xpose.msra.mxu0 %v1981
        %2013 = vmatprep.subr.mxu0 0.0
        %2014 = vmatpush1.xpose.msra.mxu0 %v1979
        %2015 = vmatprep.subr.mxu0 0.0
        %2016 = vmatpush2.xpose.msra.mxu0 0.0
        %2017 = vmatprep.subr.mxu0 0.0
        %2018 = vmatpush2.xpose.msra.mxu0 0.0
        %2019 = vmatprep.subr.mxu0 0.0
        %2020 = vmatpush2.xpose.msra.mxu0 0.0
        %2021 = vmatprep.subr.mxu0 0.0
        %2022 = vmatpush2.xpose.msra.mxu0 0.0
        %2023 = vmatprep.subr.mxu0 0.0
        %2024 = vmatpush2.xpose.msra.mxu0 0.0
        %2025 = vmatprep.subr.mxu0 0.0
        %2026 = vmatpush2.xpose.msra.mxu0 0.0
        %2027 = vmatprep.subr.mxu0 0.0
        %2028 = vmatpush2.xpose.msra.mxu0 0.0
        %2029 = vmatprep.subr.mxu0 0.0
        %2030 = vmatpush2.xpose.msra.mxu0 0.0
        %2031 = vmatprep.subr.mxu0 0.0
        %2032 = vmatpush2.xpose.msra.mxu0 0.0
        %2033 = vmatprep.subr.mxu0 0.0
        %2034 = vmatpush2.xpose.msra.mxu0 0.0
        %2035 = vmatprep.subr.mxu0 0.0
        %2036 = vmatpush2.xpose.msra.mxu0 0.0
        %2037 = vmatprep.subr.mxu0 0.0
        %2038 = vmatpush2.xpose.msra.mxu0 0.0
        %2039 = vmatprep.subr.mxu0 0.0
        %2040 = vmatpush2.xpose.msra.mxu0 0.0
        %2041 = vmatprep.subr.mxu0 0.0
        %2042 = vmatpush2.xpose.msra.mxu0 0.0
        %2043 = vmatprep.subr.mxu0 0.0
        %2044 = vmatpush2.xpose.msra.mxu0 0.0
        %2045 = vmatprep.subr.mxu0 0.0
        %2046 = vmatpush2.xpose.msra.mxu0 0.0
        %2047 = vmatprep.mubr.f32.mxu0 0.0
        %2048 = vmatmul.mubr.f32.gmra.mxu0 %v1977
        %v2049 = vpop.f32.mrf.mxu0
        %v2050 = vadd.f32 0.0, %v2049
        %v2051 = vpop.f32.mrf.mxu0
        %2052 = vdwg.mxu0
        %v2053 = vsel %vm845, %v1810, 0
        %v2055 = vsel %vm845, %v1822, 0
        %v2057 = vsel %vm845, %v1824, 0
        %2059 = vmatprep.subr.mxu0 0.0
        %2060 = vmatpush1.xpose.msra.mxu0 0.0
        %2061 = vmatprep.subr.mxu0 0.0
        %2062 = vmatpush1.xpose.msra.mxu0 0.0
        %2063 = vmatprep.subr.mxu0 0.0
        %2064 = vmatpush1.xpose.msra.mxu0 0.0
        %2065 = vmatprep.subr.mxu0 0.0
        %2066 = vmatpush1.xpose.msra.mxu0 0.0
        %2067 = vmatprep.subr.mxu0 0.0
        %2068 = vmatpush1.xpose.msra.mxu0 0.0
        %2069 = vmatprep.subr.mxu0 0.0
        %2070 = vmatpush1.xpose.msra.mxu0 0.0
        %2071 = vmatprep.subr.mxu0 0.0
        %2072 = vmatpush1.xpose.msra.mxu0 0.0
        %2073 = vmatprep.subr.mxu0 0.0
        %2074 = vmatpush1.xpose.msra.mxu0 0.0
        %2075 = vmatprep.subr.mxu0 0.0
        %2076 = vmatpush1.xpose.msra.mxu0 0.0
        %2077 = vmatprep.subr.mxu0 0.0
        %2078 = vmatpush1.xpose.msra.mxu0 0.0
        %2079 = vmatprep.subr.mxu0 0.0
        %2080 = vmatpush1.xpose.msra.mxu0 0.0
        %2081 = vmatprep.subr.mxu0 0.0
        %2082 = vmatpush1.xpose.msra.mxu0 0.0
        %2083 = vmatprep.subr.mxu0 0.0
        %2084 = vmatpush1.xpose.msra.mxu0 0.0
        %2085 = vmatprep.subr.mxu0 0.0
        %2086 = vmatpush1.xpose.msra.mxu0 0.0
        %2087 = vmatprep.subr.mxu0 0.0
        %2088 = vmatpush1.xpose.msra.mxu0 %v2057
        %2089 = vmatprep.subr.mxu0 0.0
        %2090 = vmatpush1.xpose.msra.mxu0 %v2055
        %2091 = vmatprep.subr.mxu0 0.0
        %2092 = vmatpush2.xpose.msra.mxu0 0.0
        %2093 = vmatprep.subr.mxu0 0.0
        %2094 = vmatpush2.xpose.msra.mxu0 0.0
        %2095 = vmatprep.subr.mxu0 0.0
        %2096 = vmatpush2.xpose.msra.mxu0 0.0
        %2097 = vmatprep.subr.mxu0 0.0
        %2098 = vmatpush2.xpose.msra.mxu0 0.0
        %2099 = vmatprep.subr.mxu0 0.0
        %2100 = vmatpush2.xpose.msra.mxu0 0.0
        %2101 = vmatprep.subr.mxu0 0.0
        %2102 = vmatpush2.xpose.msra.mxu0 0.0
        %2103 = vmatprep.subr.mxu0 0.0
        %2104 = vmatpush2.xpose.msra.mxu0 0.0
        %2105 = vmatprep.subr.mxu0 0.0
        %2106 = vmatpush2.xpose.msra.mxu0 0.0
        %2107 = vmatprep.subr.mxu0 0.0
        %2108 = vmatpush2.xpose.msra.mxu0 0.0
        %2109 = vmatprep.subr.mxu0 0.0
        %2110 = vmatpush2.xpose.msra.mxu0 0.0
        %2111 = vmatprep.subr.mxu0 0.0
        %2112 = vmatpush2.xpose.msra.mxu0 0.0
        %2113 = vmatprep.subr.mxu0 0.0
        %2114 = vmatpush2.xpose.msra.mxu0 0.0
        %2115 = vmatprep.subr.mxu0 0.0
        %2116 = vmatpush2.xpose.msra.mxu0 0.0
        %2117 = vmatprep.subr.mxu0 0.0
        %2118 = vmatpush2.xpose.msra.mxu0 0.0
        %2119 = vmatprep.subr.mxu0 0.0
        %2120 = vmatpush2.xpose.msra.mxu0 0.0
        %2121 = vmatprep.subr.mxu0 0.0
        %2122 = vmatpush2.xpose.msra.mxu0 0.0
        %2123 = vmatprep.mubr.f32.mxu0 0.0
        %2124 = vmatmul.mubr.f32.gmra.mxu0 %v2053
        %v2125 = vpop.f32.mrf.mxu0
        %v2126 = vadd.f32 0.0, %v2125
        %v2127 = vpop.f32.mrf.mxu0
        %2128 = vdwg.mxu0
        %v2129 = vsel %vm1509, %v1898, -inf
        %2130 = vmax.xlane.f32.xlu0 %v2129
        %v2131 = vpop.xlane.xlu0 %2130
        %v2132 = vsel %vm1509, %v1974, -inf
        %2133 = vmax.xlane.f32.xlu0 %v2132
        %v2134 = vpop.xlane.xlu0 %2133
        %v2135 = vsel %vm1509, %v2050, -inf
        %2136 = vmax.xlane.f32.xlu0 %v2135
        %v2137 = vpop.xlane.xlu0 %2136
        %v2138 = vsel %vm1509, %v2126, -inf
        %2139 = vmax.xlane.f32.xlu0 %v2138
        %v2140 = vpop.xlane.xlu0 %2139
        %v2141 = vsub.f32 %v1898, %v2131
        %v2142 = vsub.f32 %v1974, %v2134
        %v2143 = vsub.f32 %v2050, %v2137
        %v2144 = vsub.f32 %v2126, %v2140
        %v2145 = vmul.f32 %v2141, 1.442695
        %v2146 = vpow.pop %v2145
        %v2147 = vmul.f32 %v2142, 1.442695
        %v2148 = vpow.pop %v2147
        %v2149 = vmul.f32 %v2143, 1.442695
        %v2150 = vpow.pop %v2149
        %v2151 = vmul.f32 %v2144, 1.442695
        %v2152 = vpow.pop %v2151
        %v2153 = vsel %vm1509, %v2146, 0.0
        %2154 = vadd.xlane.f32.xlu0 %v2153
        %v2155 = vpop.xlane.xlu0 %2154
        %v2156 = vsel %vm1509, %v2148, 0.0
        %2157 = vadd.xlane.f32.xlu0 %v2156
        %v2158 = vpop.xlane.xlu0 %2157
        %v2159 = vsel %vm1509, %v2150, 0.0
        %2160 = vadd.xlane.f32.xlu0 %v2159
        %v2161 = vpop.xlane.xlu0 %2160
        %v2162 = vsel %vm1509, %v2152, 0.0
        %2163 = vadd.xlane.f32.xlu0 %v2162
        %v2164 = vpop.xlane.xlu0 %2163
        %v2165 = vrcp.pop %v2155
        %v2166 = vmul.f32 %v2146, %v2165
        %v2167 = vrcp.pop %v2158
        %v2168 = vmul.f32 %v2148, %v2167
        %v2169 = vrcp.pop %v2161
        %v2170 = vmul.f32 %v2150, %v2169
        %v2171 = vrcp.pop %v2164
        %v2172 = vmul.f32 %v2152, %v2171
        %2173 = vrot.lane.b32.xlu0 %v1796, 96
        %v2174 = vpop.permute.xlu0 %2173
        %2175 = vrot.lane.b32.xlu0 %v1801, 96
        %v2176 = vpop.permute.xlu0 %2175
        %v2180 = vsel %vm1509, %v2166, 0
        %2182 = vmatprep.subr.mxu0 0.0
        %2183 = vmatpush1.msra.mxu0 0.0
        %2184 = vmatprep.subr.mxu0 0.0
        %2185 = vmatpush1.msra.mxu0 0.0
        %2186 = vmatprep.subr.mxu0 0.0
        %2187 = vmatpush1.msra.mxu0 0.0
        %2188 = vmatprep.subr.mxu0 0.0
        %2189 = vmatpush1.msra.mxu0 0.0
        %2190 = vmatprep.subr.mxu0 0.0
        %2191 = vmatpush1.msra.mxu0 0.0
        %2192 = vmatprep.subr.mxu0 0.0
        %2193 = vmatpush1.msra.mxu0 0.0
        %2194 = vmatprep.subr.mxu0 0.0
        %2195 = vmatpush1.msra.mxu0 0.0
        %2196 = vmatprep.subr.mxu0 0.0
        %2197 = vmatpush1.msra.mxu0 0.0
        %2198 = vmatprep.subr.mxu0 0.0
        %2199 = vmatpush1.msra.mxu0 0.0
        %2200 = vmatprep.subr.mxu0 0.0
        %2201 = vmatpush1.msra.mxu0 0.0
        %2202 = vmatprep.subr.mxu0 0.0
        %2203 = vmatpush1.msra.mxu0 0.0
        %2204 = vmatprep.subr.mxu0 0.0
        %2205 = vmatpush1.msra.mxu0 0.0
        %2206 = vmatprep.subr.mxu0 0.0
        %2207 = vmatpush1.msra.mxu0 0.0
        %2208 = vmatprep.subr.mxu0 0.0
        %2209 = vmatpush1.msra.mxu0 0.0
        %2210 = vmatprep.subr.mxu0 0.0
        %2211 = vmatpush1.msra.mxu0 %v2176
        %2212 = vmatprep.subr.mxu0 0.0
        %2213 = vmatpush1.msra.mxu0 %v2174
        %2214 = vmatprep.subr.mxu0 0.0
        %2215 = vmatpush2.msra.mxu0 0.0
        %2216 = vmatprep.subr.mxu0 0.0
        %2217 = vmatpush2.msra.mxu0 0.0
        %2218 = vmatprep.subr.mxu0 0.0
        %2219 = vmatpush2.msra.mxu0 0.0
        %2220 = vmatprep.subr.mxu0 0.0
        %2221 = vmatpush2.msra.mxu0 0.0
        %2222 = vmatprep.subr.mxu0 0.0
        %2223 = vmatpush2.msra.mxu0 0.0
        %2224 = vmatprep.subr.mxu0 0.0
        %2225 = vmatpush2.msra.mxu0 0.0
        %2226 = vmatprep.subr.mxu0 0.0
        %2227 = vmatpush2.msra.mxu0 0.0
        %2228 = vmatprep.subr.mxu0 0.0
        %2229 = vmatpush2.msra.mxu0 0.0
        %2230 = vmatprep.subr.mxu0 0.0
        %2231 = vmatpush2.msra.mxu0 0.0
        %2232 = vmatprep.subr.mxu0 0.0
        %2233 = vmatpush2.msra.mxu0 0.0
        %2234 = vmatprep.subr.mxu0 0.0
        %2235 = vmatpush2.msra.mxu0 0.0
        %2236 = vmatprep.subr.mxu0 0.0
        %2237 = vmatpush2.msra.mxu0 0.0
        %2238 = vmatprep.subr.mxu0 0.0
        %2239 = vmatpush2.msra.mxu0 0.0
        %2240 = vmatprep.subr.mxu0 0.0
        %2241 = vmatpush2.msra.mxu0 0.0
        %2242 = vmatprep.subr.mxu0 0.0
        %2243 = vmatpush2.msra.mxu0 0.0
        %2244 = vmatprep.subr.mxu0 0.0
        %2245 = vmatpush2.msra.mxu0 0.0
        %2246 = vmatprep.mubr.f32.mxu0 0.0
        %2247 = vmatmul.mubr.f32.gmra.mxu0 %v2180
        %v2248 = vpop.f32.mrf.mxu0
        %v2249 = vadd.f32 0.0, %v2248
        %v2250 = vpop.f32.mrf.mxu0
        %2251 = vdwg.mxu0
        %2252 = vrot.lane.b32.xlu0 %v1814, 96
        %v2253 = vpop.permute.xlu0 %2252
        %2254 = vrot.lane.b32.xlu0 %v1816, 96
        %v2255 = vpop.permute.xlu0 %2254
        %v2259 = vsel %vm1509, %v2168, 0
        %2261 = vmatprep.subr.mxu0 0.0
        %2262 = vmatpush1.msra.mxu0 0.0
        %2263 = vmatprep.subr.mxu0 0.0
        %2264 = vmatpush1.msra.mxu0 0.0
        %2265 = vmatprep.subr.mxu0 0.0
        %2266 = vmatpush1.msra.mxu0 0.0
        %2267 = vmatprep.subr.mxu0 0.0
        %2268 = vmatpush1.msra.mxu0 0.0
        %2269 = vmatprep.subr.mxu0 0.0
        %2270 = vmatpush1.msra.mxu0 0.0
        %2271 = vmatprep.subr.mxu0 0.0
        %2272 = vmatpush1.msra.mxu0 0.0
        %2273 = vmatprep.subr.mxu0 0.0
        %2274 = vmatpush1.msra.mxu0 0.0
        %2275 = vmatprep.subr.mxu0 0.0
        %2276 = vmatpush1.msra.mxu0 0.0
        %2277 = vmatprep.subr.mxu0 0.0
        %2278 = vmatpush1.msra.mxu0 0.0
        %2279 = vmatprep.subr.mxu0 0.0
        %2280 = vmatpush1.msra.mxu0 0.0
        %2281 = vmatprep.subr.mxu0 0.0
        %2282 = vmatpush1.msra.mxu0 0.0
        %2283 = vmatprep.subr.mxu0 0.0
        %2284 = vmatpush1.msra.mxu0 0.0
        %2285 = vmatprep.subr.mxu0 0.0
        %2286 = vmatpush1.msra.mxu0 0.0
        %2287 = vmatprep.subr.mxu0 0.0
        %2288 = vmatpush1.msra.mxu0 0.0
        %2289 = vmatprep.subr.mxu0 0.0
        %2290 = vmatpush1.msra.mxu0 %v2255
        %2291 = vmatprep.subr.mxu0 0.0
        %2292 = vmatpush1.msra.mxu0 %v2253
        %2293 = vmatprep.subr.mxu0 0.0
        %2294 = vmatpush2.msra.mxu0 0.0
        %2295 = vmatprep.subr.mxu0 0.0
        %2296 = vmatpush2.msra.mxu0 0.0
        %2297 = vmatprep.subr.mxu0 0.0
        %2298 = vmatpush2.msra.mxu0 0.0
        %2299 = vmatprep.subr.mxu0 0.0
        %2300 = vmatpush2.msra.mxu0 0.0
        %2301 = vmatprep.subr.mxu0 0.0
        %2302 = vmatpush2.msra.mxu0 0.0
        %2303 = vmatprep.subr.mxu0 0.0
        %2304 = vmatpush2.msra.mxu0 0.0
        %2305 = vmatprep.subr.mxu0 0.0
        %2306 = vmatpush2.msra.mxu0 0.0
        %2307 = vmatprep.subr.mxu0 0.0
        %2308 = vmatpush2.msra.mxu0 0.0
        %2309 = vmatprep.subr.mxu0 0.0
        %2310 = vmatpush2.msra.mxu0 0.0
        %2311 = vmatprep.subr.mxu0 0.0
        %2312 = vmatpush2.msra.mxu0 0.0
        %2313 = vmatprep.subr.mxu0 0.0
        %2314 = vmatpush2.msra.mxu0 0.0
        %2315 = vmatprep.subr.mxu0 0.0
        %2316 = vmatpush2.msra.mxu0 0.0
        %2317 = vmatprep.subr.mxu0 0.0
        %2318 = vmatpush2.msra.mxu0 0.0
        %2319 = vmatprep.subr.mxu0 0.0
        %2320 = vmatpush2.msra.mxu0 0.0
        %2321 = vmatprep.subr.mxu0 0.0
        %2322 = vmatpush2.msra.mxu0 0.0
        %2323 = vmatprep.subr.mxu0 0.0
        %2324 = vmatpush2.msra.mxu0 0.0
        %2325 = vmatprep.mubr.f32.mxu0 0.0
        %2326 = vmatmul.mubr.f32.gmra.mxu0 %v2259
        %v2327 = vpop.f32.mrf.mxu0
        %v2328 = vadd.f32 0.0, %v2327
        %v2329 = vpop.f32.mrf.mxu0
        %2330 = vdwg.mxu0
        %2331 = vrot.lane.b32.xlu0 %v1818, 96
        %v2332 = vpop.permute.xlu0 %2331
        %2333 = vrot.lane.b32.xlu0 %v1820, 96
        %v2334 = vpop.permute.xlu0 %2333
        %v2338 = vsel %vm1509, %v2170, 0
        %2340 = vmatprep.subr.mxu0 0.0
        %2341 = vmatpush1.msra.mxu0 0.0
        %2342 = vmatprep.subr.mxu0 0.0
        %2343 = vmatpush1.msra.mxu0 0.0
        %2344 = vmatprep.subr.mxu0 0.0
        %2345 = vmatpush1.msra.mxu0 0.0
        %2346 = vmatprep.subr.mxu0 0.0
        %2347 = vmatpush1.msra.mxu0 0.0
        %2348 = vmatprep.subr.mxu0 0.0
        %2349 = vmatpush1.msra.mxu0 0.0
        %2350 = vmatprep.subr.mxu0 0.0
        %2351 = vmatpush1.msra.mxu0 0.0
        %2352 = vmatprep.subr.mxu0 0.0
        %2353 = vmatpush1.msra.mxu0 0.0
        %2354 = vmatprep.subr.mxu0 0.0
        %2355 = vmatpush1.msra.mxu0 0.0
        %2356 = vmatprep.subr.mxu0 0.0
        %2357 = vmatpush1.msra.mxu0 0.0
        %2358 = vmatprep.subr.mxu0 0.0
        %2359 = vmatpush1.msra.mxu0 0.0
        %2360 = vmatprep.subr.mxu0 0.0
        %2361 = vmatpush1.msra.mxu0 0.0
        %2362 = vmatprep.subr.mxu0 0.0
        %2363 = vmatpush1.msra.mxu0 0.0
        %2364 = vmatprep.subr.mxu0 0.0
        %2365 = vmatpush1.msra.mxu0 0.0
        %2366 = vmatprep.subr.mxu0 0.0
        %2367 = vmatpush1.msra.mxu0 0.0
        %2368 = vmatprep.subr.mxu0 0.0
        %2369 = vmatpush1.msra.mxu0 %v2334
        %2370 = vmatprep.subr.mxu0 0.0
        %2371 = vmatpush1.msra.mxu0 %v2332
        %2372 = vmatprep.subr.mxu0 0.0
        %2373 = vmatpush2.msra.mxu0 0.0
        %2374 = vmatprep.subr.mxu0 0.0
        %2375 = vmatpush2.msra.mxu0 0.0
        %2376 = vmatprep.subr.mxu0 0.0
        %2377 = vmatpush2.msra.mxu0 0.0
        %2378 = vmatprep.subr.mxu0 0.0
        %2379 = vmatpush2.msra.mxu0 0.0
        %2380 = vmatprep.subr.mxu0 0.0
        %2381 = vmatpush2.msra.mxu0 0.0
        %2382 = vmatprep.subr.mxu0 0.0
        %2383 = vmatpush2.msra.mxu0 0.0
        %2384 = vmatprep.subr.mxu0 0.0
        %2385 = vmatpush2.msra.mxu0 0.0
        %2386 = vmatprep.subr.mxu0 0.0
        %2387 = vmatpush2.msra.mxu0 0.0
        %2388 = vmatprep.subr.mxu0 0.0
        %2389 = vmatpush2.msra.mxu0 0.0
        %2390 = vmatprep.subr.mxu0 0.0
        %2391 = vmatpush2.msra.mxu0 0.0
        %2392 = vmatprep.subr.mxu0 0.0
        %2393 = vmatpush2.msra.mxu0 0.0
        %2394 = vmatprep.subr.mxu0 0.0
        %2395 = vmatpush2.msra.mxu0 0.0
        %2396 = vmatprep.subr.mxu0 0.0
        %2397 = vmatpush2.msra.mxu0 0.0
        %2398 = vmatprep.subr.mxu0 0.0
        %2399 = vmatpush2.msra.mxu0 0.0
        %2400 = vmatprep.subr.mxu0 0.0
        %2401 = vmatpush2.msra.mxu0 0.0
        %2402 = vmatprep.subr.mxu0 0.0
        %2403 = vmatpush2.msra.mxu0 0.0
        %2404 = vmatprep.mubr.f32.mxu0 0.0
        %2405 = vmatmul.mubr.f32.gmra.mxu0 %v2338
        %v2406 = vpop.f32.mrf.mxu0
        %v2407 = vadd.f32 0.0, %v2406
        %v2408 = vpop.f32.mrf.mxu0
        %2409 = vdwg.mxu0
        %2410 = vrot.lane.b32.xlu0 %v1822, 96
        %v2411 = vpop.permute.xlu0 %2410
        %2412 = vrot.lane.b32.xlu0 %v1824, 96
        %v2413 = vpop.permute.xlu0 %2412
        %v2417 = vsel %vm1509, %v2172, 0
        %2419 = vmatprep.subr.mxu0 0.0
        %2420 = vmatpush1.msra.mxu0 0.0
        %2421 = vmatprep.subr.mxu0 0.0
        %2422 = vmatpush1.msra.mxu0 0.0
        %2423 = vmatprep.subr.mxu0 0.0
        %2424 = vmatpush1.msra.mxu0 0.0
        %2425 = vmatprep.subr.mxu0 0.0
        %2426 = vmatpush1.msra.mxu0 0.0
        %2427 = vmatprep.subr.mxu0 0.0
        %2428 = vmatpush1.msra.mxu0 0.0
        %2429 = vmatprep.subr.mxu0 0.0
        %2430 = vmatpush1.msra.mxu0 0.0
        %2431 = vmatprep.subr.mxu0 0.0
        %2432 = vmatpush1.msra.mxu0 0.0
        %2433 = vmatprep.subr.mxu0 0.0
        %2434 = vmatpush1.msra.mxu0 0.0
        %2435 = vmatprep.subr.mxu0 0.0
        %2436 = vmatpush1.msra.mxu0 0.0
        %2437 = vmatprep.subr.mxu0 0.0
        %2438 = vmatpush1.msra.mxu0 0.0
        %2439 = vmatprep.subr.mxu0 0.0
        %2440 = vmatpush1.msra.mxu0 0.0
        %2441 = vmatprep.subr.mxu0 0.0
        %2442 = vmatpush1.msra.mxu0 0.0
        %2443 = vmatprep.subr.mxu0 0.0
        %2444 = vmatpush1.msra.mxu0 0.0
        %2445 = vmatprep.subr.mxu0 0.0
        %2446 = vmatpush1.msra.mxu0 0.0
        %2447 = vmatprep.subr.mxu0 0.0
        %2448 = vmatpush1.msra.mxu0 %v2413
        %2449 = vmatprep.subr.mxu0 0.0
        %2450 = vmatpush1.msra.mxu0 %v2411
        %2451 = vmatprep.subr.mxu0 0.0
        %2452 = vmatpush2.msra.mxu0 0.0
        %2453 = vmatprep.subr.mxu0 0.0
        %2454 = vmatpush2.msra.mxu0 0.0
        %2455 = vmatprep.subr.mxu0 0.0
        %2456 = vmatpush2.msra.mxu0 0.0
        %2457 = vmatprep.subr.mxu0 0.0
        %2458 = vmatpush2.msra.mxu0 0.0
        %2459 = vmatprep.subr.mxu0 0.0
        %2460 = vmatpush2.msra.mxu0 0.0
        %2461 = vmatprep.subr.mxu0 0.0
        %2462 = vmatpush2.msra.mxu0 0.0
        %2463 = vmatprep.subr.mxu0 0.0
        %2464 = vmatpush2.msra.mxu0 0.0
        %2465 = vmatprep.subr.mxu0 0.0
        %2466 = vmatpush2.msra.mxu0 0.0
        %2467 = vmatprep.subr.mxu0 0.0
        %2468 = vmatpush2.msra.mxu0 0.0
        %2469 = vmatprep.subr.mxu0 0.0
        %2470 = vmatpush2.msra.mxu0 0.0
        %2471 = vmatprep.subr.mxu0 0.0
        %2472 = vmatpush2.msra.mxu0 0.0
        %2473 = vmatprep.subr.mxu0 0.0
        %2474 = vmatpush2.msra.mxu0 0.0
        %2475 = vmatprep.subr.mxu0 0.0
        %2476 = vmatpush2.msra.mxu0 0.0
        %2477 = vmatprep.subr.mxu0 0.0
        %2478 = vmatpush2.msra.mxu0 0.0
        %2479 = vmatprep.subr.mxu0 0.0
        %2480 = vmatpush2.msra.mxu0 0.0
        %2481 = vmatprep.subr.mxu0 0.0
        %2482 = vmatpush2.msra.mxu0 0.0
        %2483 = vmatprep.mubr.f32.mxu0 0.0
        %2484 = vmatmul.mubr.f32.gmra.mxu0 %v2417
        %v2485 = vpop.f32.mrf.mxu0
        %v2486 = vadd.f32 0.0, %v2485
        %v2487 = vpop.f32.mrf.mxu0
        %2488 = vdwg.mxu0
        %2490 = vrot.lane.b32.xlu0 %v2328, 8
        %v2491 = vpop.permute.xlu0 %2490
        %2494 = vrot.lane.b32.xlu0 %v2407, 16
        %v2495 = vpop.permute.xlu0 %2494
        %2498 = vrot.lane.b32.xlu0 %v2486, 24
        %v2499 = vpop.permute.xlu0 %2498
        %v2501 = vsel %vm845, %v2249, %v2491
        %v2502 = vsel %vm1509, %v2501, %v2495
        %v2503 = vsel %vm1511, %v2502, %v2499
        %v2504 = vld [vmem:[#allocation5] sm:$0xff]
        %v2505 = vld [vmem:[#allocation5 + $0x8] sm:$0xff]
        %v2506 = vld [vmem:[#allocation5 + $0x10] sm:$0xff]
        %v2507 = vld [vmem:[#allocation5 + $0x18] sm:$0xff]
        %v2508 = vld [vmem:[%s11] sm:$0x1]
        %v2510 = vlaneseq
        %v2511 = vshrl.u32 %v2510, 7
        %v2512 = vsub.s32 0, %v2511
        %v2513 = vrot.slane %v2508, %v2512
        %v2516 = vsel %vm762, %v2503, 0
        %2518 = vmatprep.subr.mxu0 0.0
        %2519 = vmatpush1.msra.mxu0 0.0
        %2520 = vmatprep.subr.mxu0 0.0
        %2521 = vmatpush1.msra.mxu0 0.0
        %2522 = vmatprep.subr.mxu0 0.0
        %2523 = vmatpush1.msra.mxu0 0.0
        %2524 = vmatprep.subr.mxu0 0.0
        %2525 = vmatpush1.msra.mxu0 0.0
        %2526 = vmatprep.subr.mxu0 0.0
        %2527 = vmatpush1.msra.mxu0 0.0
        %2528 = vmatprep.subr.mxu0 0.0
        %2529 = vmatpush1.msra.mxu0 0.0
        %2530 = vmatprep.subr.mxu0 0.0
        %2531 = vmatpush1.msra.mxu0 0.0
        %2532 = vmatprep.subr.mxu0 0.0
        %2533 = vmatpush1.msra.mxu0 0.0
        %2534 = vmatprep.subr.mxu0 0.0
        %2535 = vmatpush1.msra.mxu0 0.0
        %2536 = vmatprep.subr.mxu0 0.0
        %2537 = vmatpush1.msra.mxu0 0.0
        %2538 = vmatprep.subr.mxu0 0.0
        %2539 = vmatpush1.msra.mxu0 0.0
        %2540 = vmatprep.subr.mxu0 0.0
        %2541 = vmatpush1.msra.mxu0 0.0
        %2542 = vmatprep.subr.mxu0 0.0
        %2543 = vmatpush1.msra.mxu0 %v2507
        %2544 = vmatprep.subr.mxu0 0.0
        %2545 = vmatpush1.msra.mxu0 %v2506
        %2546 = vmatprep.subr.mxu0 0.0
        %2547 = vmatpush1.msra.mxu0 %v2505
        %2548 = vmatprep.subr.mxu0 0.0
        %2549 = vmatpush1.msra.mxu0 %v2504
        %2550 = vmatprep.subr.mxu0 0.0
        %2551 = vmatpush2.msra.mxu0 0.0
        %2552 = vmatprep.subr.mxu0 0.0
        %2553 = vmatpush2.msra.mxu0 0.0
        %2554 = vmatprep.subr.mxu0 0.0
        %2555 = vmatpush2.msra.mxu0 0.0
        %2556 = vmatprep.subr.mxu0 0.0
        %2557 = vmatpush2.msra.mxu0 0.0
        %2558 = vmatprep.subr.mxu0 0.0
        %2559 = vmatpush2.msra.mxu0 0.0
        %2560 = vmatprep.subr.mxu0 0.0
        %2561 = vmatpush2.msra.mxu0 0.0
        %2562 = vmatprep.subr.mxu0 0.0
        %2563 = vmatpush2.msra.mxu0 0.0
        %2564 = vmatprep.subr.mxu0 0.0
        %2565 = vmatpush2.msra.mxu0 0.0
        %2566 = vmatprep.subr.mxu0 0.0
        %2567 = vmatpush2.msra.mxu0 0.0
        %2568 = vmatprep.subr.mxu0 0.0
        %2569 = vmatpush2.msra.mxu0 0.0
        %2570 = vmatprep.subr.mxu0 0.0
        %2571 = vmatpush2.msra.mxu0 0.0
        %2572 = vmatprep.subr.mxu0 0.0
        %2573 = vmatpush2.msra.mxu0 0.0
        %2574 = vmatprep.subr.mxu0 0.0
        %2575 = vmatpush2.msra.mxu0 0.0
        %2576 = vmatprep.subr.mxu0 0.0
        %2577 = vmatpush2.msra.mxu0 0.0
        %2578 = vmatprep.subr.mxu0 0.0
        %2579 = vmatpush2.msra.mxu0 0.0
        %2580 = vmatprep.subr.mxu0 0.0
        %2581 = vmatpush2.msra.mxu0 0.0
        %2582 = vmatprep.mubr.f32.mxu0 0.0
        %2583 = vmatmul.mubr.f32.gmra.mxu0 %v2516
        %v2584 = vpop.f32.mrf.mxu0
        %v2585 = vadd.f32 %v2513, %v2584
        %v2586 = vpop.f32.mrf.mxu0
        %2587 = vdwg.mxu0
        %v2588 = vadd.f32 %v1627, %v2585
        %v2589 = vld [vmem:[%s18] sm:$0x1]
        %v2590 = vld [vmem:[%s19] sm:$0x1]
        %v2591 = vsel %vm762, %v2588, 0.0
        %2592 = vadd.xlane.f32.xlu0 %v2591
        %v2593 = vpop.xlane.xlu0 %2592
        %v2594 = vmul.f32 %v2593, %v1603
        %v2595 = vsub.f32 %v2588, %v2594
        %v2596 = vmul.f32 %v2595, %v2595
        %v2597 = vsel %vm762, %v2596, 0.0
        %2598 = vadd.xlane.f32.xlu0 %v2597
        %v2599 = vpop.xlane.xlu0 %2598
        %v2600 = vmul.f32 %v2599, %v1603
        %v2601 = vadd.f32 %v2600, 1e-05
        %v2602 = vrsqrt.pop %v2601
        %v2603 = vmul.f32 %v2595, %v2602
        %v2605 = vlaneseq
        %v2606 = vshrl.u32 %v2605, 7
        %v2607 = vsub.s32 0, %v2606
        %v2608 = vrot.slane %v2589, %v2607
        %v2610 = vmul.f32 %v2603, %v2608
        %v2612 = vlaneseq
        %v2613 = vshrl.u32 %v2612, 7
        %v2614 = vsub.s32 0, %v2613
        %v2615 = vrot.slane %v2590, %v2614
        %v2617 = vadd.f32 %v2610, %v2615
        %v2618 = vld [vmem:[#allocation7] sm:$0xff]
        %v2619 = vld [vmem:[#allocation7 + $0x8] sm:$0xff]
        %v2620 = vld [vmem:[#allocation7 + $0x10] sm:$0xff]
        %v2621 = vld [vmem:[#allocation7 + $0x18] sm:$0xff]
        %v2622 = vld [vmem:[%s13] sm:$0x1]
        %v2624 = vlaneseq
        %v2625 = vshrl.u32 %v2624, 7
        %v2626 = vsub.s32 0, %v2625
        %v2627 = vrot.slane %v2622, %v2626
        %v2630 = vsel %vm762, %v2617, 0
        %2632 = vmatprep.subr.mxu0 0.0
        %2633 = vmatpush1.msra.mxu0 0.0
        %2634 = vmatprep.subr.mxu0 0.0
        %2635 = vmatpush1.msra.mxu0 0.0
        %2636 = vmatprep.subr.mxu0 0.0
        %2637 = vmatpush1.msra.mxu0 0.0
        %2638 = vmatprep.subr.mxu0 0.0
        %2639 = vmatpush1.msra.mxu0 0.0
        %2640 = vmatprep.subr.mxu0 0.0
        %2641 = vmatpush1.msra.mxu0 0.0
        %2642 = vmatprep.subr.mxu0 0.0
        %2643 = vmatpush1.msra.mxu0 0.0
        %2644 = vmatprep.subr.mxu0 0.0
        %2645 = vmatpush1.msra.mxu0 0.0
        %2646 = vmatprep.subr.mxu0 0.0
        %2647 = vmatpush1.msra.mxu0 0.0
        %2648 = vmatprep.subr.mxu0 0.0
        %2649 = vmatpush1.msra.mxu0 0.0
        %2650 = vmatprep.subr.mxu0 0.0
        %2651 = vmatpush1.msra.mxu0 0.0
        %2652 = vmatprep.subr.mxu0 0.0
        %2653 = vmatpush1.msra.mxu0 0.0
        %2654 = vmatprep.subr.mxu0 0.0
        %2655 = vmatpush1.msra.mxu0 0.0
        %2656 = vmatprep.subr.mxu0 0.0
        %2657 = vmatpush1.msra.mxu0 %v2621
        %2658 = vmatprep.subr.mxu0 0.0
        %2659 = vmatpush1.msra.mxu0 %v2620
        %2660 = vmatprep.subr.mxu0 0.0
        %2661 = vmatpush1.msra.mxu0 %v2619
        %2662 = vmatprep.subr.mxu0 0.0
        %2663 = vmatpush1.msra.mxu0 %v2618
        %2664 = vmatprep.subr.mxu0 0.0
        %2665 = vmatpush2.msra.mxu0 0.0
        %2666 = vmatprep.subr.mxu0 0.0
        %2667 = vmatpush2.msra.mxu0 0.0
        %2668 = vmatprep.subr.mxu0 0.0
        %2669 = vmatpush2.msra.mxu0 0.0
        %2670 = vmatprep.subr.mxu0 0.0
        %2671 = vmatpush2.msra.mxu0 0.0
        %2672 = vmatprep.subr.mxu0 0.0
        %2673 = vmatpush2.msra.mxu0 0.0
        %2674 = vmatprep.subr.mxu0 0.0
        %2675 = vmatpush2.msra.mxu0 0.0
        %2676 = vmatprep.subr.mxu0 0.0
        %2677 = vmatpush2.msra.mxu0 0.0
        %2678 = vmatprep.subr.mxu0 0.0
        %2679 = vmatpush2.msra.mxu0 0.0
        %2680 = vmatprep.subr.mxu0 0.0
        %2681 = vmatpush2.msra.mxu0 0.0
        %2682 = vmatprep.subr.mxu0 0.0
        %2683 = vmatpush2.msra.mxu0 0.0
        %2684 = vmatprep.subr.mxu0 0.0
        %2685 = vmatpush2.msra.mxu0 0.0
        %2686 = vmatprep.subr.mxu0 0.0
        %2687 = vmatpush2.msra.mxu0 0.0
        %2688 = vmatprep.subr.mxu0 0.0
        %2689 = vmatpush2.msra.mxu0 0.0
        %2690 = vmatprep.subr.mxu0 0.0
        %2691 = vmatpush2.msra.mxu0 0.0
        %2692 = vmatprep.subr.mxu0 0.0
        %2693 = vmatpush2.msra.mxu0 0.0
        %2694 = vmatprep.subr.mxu0 0.0
        %2695 = vmatpush2.msra.mxu0 0.0
        %2696 = vmatprep.mubr.f32.mxu0 0.0
        %2697 = vmatmul.mubr.f32.gmra.mxu0 %v2630
        %v2698 = vpop.f32.mrf.mxu0
        %v2699 = vadd.f32 %v2627, %v2698
        %v2700 = vpop.f32.mrf.mxu0
        %2701 = vdwg.mxu0
        %v2702 = vmul.f32 %v2699, 0.5
        %v2703 = vmul.f32 %v2699, 0.044715
        %v2704 = vmul.f32 %v2703, %v2699
        %v2705 = vmul.f32 %v2704, %v2699
        %v2706 = vadd.f32 %v2699, %v2705
        %v2707 = vmul.f32 %v2706, 0.7978846
        %v2708 = vtanh.pop %v2707
        %v2709 = vadd.f32 %v2708, 1.0
        %v2710 = vmul.f32 %v2702, %v2709
        %v2711 = vld [vmem:[%s14] sm:$0xff]
        %v2712 = vld [vmem:[%s14 + $0x8] sm:$0xff]
        %v2713 = vld [vmem:[%s14 + $0x10] sm:$0xff]
        %v2714 = vld [vmem:[%s14 + $0x18] sm:$0xff]
        %v2715 = vld [vmem:[%s14 + $0x20] sm:$0xff]
        %v2716 = vld [vmem:[%s14 + $0x28] sm:$0xff]
        %v2717 = vld [vmem:[%s14 + $0x30] sm:$0xff]
        %v2718 = vld [vmem:[%s14 + $0x38] sm:$0xff]
        %v2719 = vld [vmem:[%s14 + $0x40] sm:$0xff]
        %v2720 = vld [vmem:[%s14 + $0x48] sm:$0xff]
        %v2721 = vld [vmem:[%s14 + $0x50] sm:$0xff]
        %v2722 = vld [vmem:[%s14 + $0x58] sm:$0xff]
        %v2723 = vld [vmem:[%s14 + $0x60] sm:$0xff]
        %v2724 = vld [vmem:[%s14 + $0x68] sm:$0xff]
        %v2725 = vld [vmem:[%s14 + $0x70] sm:$0xff]
        %v2726 = vld [vmem:[%s14 + $0x78] sm:$0xff]
        %v2727 = vld [vmem:[%s15] sm:$0x1]
        %v2729 = vlaneseq
        %v2730 = vshrl.u32 %v2729, 7
        %v2731 = vsub.s32 0, %v2730
        %v2732 = vrot.slane %v2727, %v2731
        %2734 = vmatprep.subr.mxu0 0.0
        %2735 = vmatpush1.msra.mxu0 %v2726
        %2736 = vmatprep.subr.mxu0 0.0
        %2737 = vmatpush1.msra.mxu0 %v2725
        %2738 = vmatprep.subr.mxu0 0.0
        %2739 = vmatpush1.msra.mxu0 %v2724
        %2740 = vmatprep.subr.mxu0 0.0
        %2741 = vmatpush1.msra.mxu0 %v2723
        %2742 = vmatprep.subr.mxu0 0.0
        %2743 = vmatpush1.msra.mxu0 %v2722
        %2744 = vmatprep.subr.mxu0 0.0
        %2745 = vmatpush1.msra.mxu0 %v2721
        %2746 = vmatprep.subr.mxu0 0.0
        %2747 = vmatpush1.msra.mxu0 %v2720
        %2748 = vmatprep.subr.mxu0 0.0
        %2749 = vmatpush1.msra.mxu0 %v2719
        %2750 = vmatprep.subr.mxu0 0.0
        %2751 = vmatpush1.msra.mxu0 %v2718
        %2752 = vmatprep.subr.mxu0 0.0
        %2753 = vmatpush1.msra.mxu0 %v2717
        %2754 = vmatprep.subr.mxu0 0.0
        %2755 = vmatpush1.msra.mxu0 %v2716
        %2756 = vmatprep.subr.mxu0 0.0
        %2757 = vmatpush1.msra.mxu0 %v2715
        %2758 = vmatprep.subr.mxu0 0.0
        %2759 = vmatpush1.msra.mxu0 %v2714
        %2760 = vmatprep.subr.mxu0 0.0
        %2761 = vmatpush1.msra.mxu0 %v2713
        %2762 = vmatprep.subr.mxu0 0.0
        %2763 = vmatpush1.msra.mxu0 %v2712
        %2764 = vmatprep.subr.mxu0 0.0
        %2765 = vmatpush1.msra.mxu0 %v2711
        %2766 = vmatprep.subr.mxu0 0.0
        %2767 = vmatpush2.msra.mxu0 0.0
        %2768 = vmatprep.subr.mxu0 0.0
        %2769 = vmatpush2.msra.mxu0 0.0
        %2770 = vmatprep.subr.mxu0 0.0
        %2771 = vmatpush2.msra.mxu0 0.0
        %2772 = vmatprep.subr.mxu0 0.0
        %2773 = vmatpush2.msra.mxu0 0.0
        %2774 = vmatprep.subr.mxu0 0.0
        %2775 = vmatpush2.msra.mxu0 0.0
        %2776 = vmatprep.subr.mxu0 0.0
        %2777 = vmatpush2.msra.mxu0 0.0
        %2778 = vmatprep.subr.mxu0 0.0
        %2779 = vmatpush2.msra.mxu0 0.0
        %2780 = vmatprep.subr.mxu0 0.0
        %2781 = vmatpush2.msra.mxu0 0.0
        %2782 = vmatprep.subr.mxu0 0.0
        %2783 = vmatpush2.msra.mxu0 0.0
        %2784 = vmatprep.subr.mxu0 0.0
        %2785 = vmatpush2.msra.mxu0 0.0
        %2786 = vmatprep.subr.mxu0 0.0
        %2787 = vmatpush2.msra.mxu0 0.0
        %2788 = vmatprep.subr.mxu0 0.0
        %2789 = vmatpush2.msra.mxu0 0.0
        %2790 = vmatprep.subr.mxu0 0.0
        %2791 = vmatpush2.msra.mxu0 0.0
        %2792 = vmatprep.subr.mxu0 0.0
        %2793 = vmatpush2.msra.mxu0 0.0
        %2794 = vmatprep.subr.mxu0 0.0
        %2795 = vmatpush2.msra.mxu0 0.0
        %2796 = vmatprep.subr.mxu0 0.0
        %2797 = vmatpush2.msra.mxu0 0.0
        %2798 = vmatprep.mubr.f32.mxu0 0.0
        %2799 = vmatmul.mubr.f32.gmra.mxu0 %v2710
        %v2800 = vpop.f32.mrf.mxu0
        %v2801 = vadd.f32 %v2732, %v2800
        %v2802 = vpop.f32.mrf.mxu0
        %2803 = vdwg.mxu0
        %v2804 = vadd.f32 %v2617, %v2801
        %v2805 = vld [vmem:[%s20] sm:$0x1]
        %v2806 = vld [vmem:[%s21] sm:$0x1]
        %v2807 = vsel %vm762, %v2804, 0.0
        %2808 = vadd.xlane.f32.xlu0 %v2807
        %v2809 = vpop.xlane.xlu0 %2808
        %v2810 = vmul.f32 %v2809, %v1603
        %v2811 = vsub.f32 %v2804, %v2810
        %v2812 = vmul.f32 %v2811, %v2811
        %v2813 = vsel %vm762, %v2812, 0.0
        %2814 = vadd.xlane.f32.xlu0 %v2813
        %v2815 = vpop.xlane.xlu0 %2814
        %v2816 = vmul.f32 %v2815, %v1603
        %v2817 = vadd.f32 %v2816, 1e-05
        %v2818 = vrsqrt.pop %v2817
        %v2819 = vmul.f32 %v2811, %v2818
        %v2821 = vlaneseq
        %v2822 = vshrl.u32 %v2821, 7
        %v2823 = vsub.s32 0, %v2822
        %v2824 = vrot.slane %v2805, %v2823
        %v2826 = vmul.f32 %v2819, %v2824
        %v2828 = vlaneseq
        %v2829 = vshrl.u32 %v2828, 7
        %v2830 = vsub.s32 0, %v2829
        %v2831 = vrot.slane %v2806, %v2830
        %v2833 = vadd.f32 %v2826, %v2831
        %2834 = vst.msk [vmem:[%s742] sm:$0xff] %vm762, %v2833
        %s2835 = sand.u32 %s520, 1
        %s2836 = scalar_lea.sflag [#allocation4], %s2835
        %s2837 = sand.u32 %s520, 1
        %s2838 = smul.addr %s2837, 8
        %s2839 = scalar_lea.vmem [#allocation8], %s2838
        // Predicated region
        $region121: #{tpu_custom_call.1} parent=107 // pred_check
          %p2840 = pneg %p530
        $region122: #{tpu_custom_call.1} parent=107 // pred_check_branch
          %2842 = sbr.rel (%p2840) target = $region124
        $region123: #{tpu_custom_call.1} parent=107 // pred_region
          %s2844 = ssub.s32 128, 128
          %2845 = vsyncadd %s2836, %s2844
          %s2846 = smul.addr %s40, 128
          %s2847 = scalar_lea.hbm %s22, %s2846
          %s2849 = sshll.u32 %s2839, 4
          %s2850 = int_to_ptr.vmem [resolvable:$true] %s2849
          %2852 = dma.vmem_to_hbm [thread:$0]  %s2850, 128, %s2847, %s2836
        $region124: #{tpu_custom_call.1} parent=107 // pred_fallthru
          _
      $region108: #{tpu_custom_call.1} parent=5 // pred_fallthru
        _
      %p2853 = scmp.le.s32.totalorder 2, %s35
      // Predicated region
      $region125: #{tpu_custom_call.1} parent=5 // pred_check
        %p2854 = pneg %p2853
      $region126: #{tpu_custom_call.1} parent=5 // pred_check_branch
        %2856 = sbr.rel (%p2854) target = $region128
      $region127: #{tpu_custom_call.1} parent=5 // pred_region
        %s2857 = ssub.s32 %s35, 2
        // Predicated region
        $region129: #{tpu_custom_call.1} parent=127 // pred_check
          %p2858 = pneg %p536
        $region130: #{tpu_custom_call.1} parent=127 // pred_check_branch
          %2860 = sbr.rel (%p2858) target = $region132
        $region131: #{tpu_custom_call.1} parent=127 // pred_region
          %s2861 = sand.u32 %s521, 1
          %s2862 = scalar_lea.sflag [#allocation4], %s2861
          %s2863 = sand.u32 %s521, 1
          %s2864 = smul.addr %s2863, 8
          %s2865 = scalar_lea.vmem [#allocation8], %s2864
          %2866 = dma.done %s2862, 128
        $region132: #{tpu_custom_call.1} parent=127 // pred_fallthru
          _
      $region128: #{tpu_custom_call.1} parent=5 // pred_fallthru
        _
    $region6: #{tpu_custom_call.1} parent=1 // loop_footer
      %s39 = sadd.s32 1, %s35
    $region7: #{tpu_custom_call.1} parent=1 // loop_footer_branch
      %34 = sbr.rel target = $region3
    $region8: #{tpu_custom_call.1} parent=1 // loop_exit
      _
    %2867 = vsyncpa [#allocation3], 1
    %s2868 = scalar_lea.sflag [#allocation3], 1
    %2869 = vsyncpa %s2868, 1
    %2870 = vsyncpa [#allocation6], 1
    %2871 = vsyncpa [#allocation4], 1
    %s2872 = scalar_lea.sflag [#allocation4], 1
    %2873 = vsyncpa %s2872, 1

// kernel: tpu_custom_call.1
$region0: #{tpu_custom_call.1}
  #allocation0 [shape = 'u32[]', space=smem, size = 0x4, offset = 0x4, fixed_abs, tag = 'smem constant byte address 0x4 - core index']
  #allocation1 [shape = 'u32[144,128]{1,0:T(1,128)}', space=vmem, size = 0x12000, scoped, tag = 'internal scratch']
  %s0 = inlined_call_operand.hbm [shape: f32[2,8,32], index: 0, kind: input, shape index: {}]
  %s1 = inlined_call_operand.vmem [shape: f32[2,16,32], index: 1, kind: input, shape index: {}]
  %s2 = inlined_call_operand.vmem [shape: f32[32,96], index: 2, kind: input, shape index: {}]
  %s3 = inlined_call_operand.vmem [shape: f32[1,96], index: 3, kind: input, shape index: {}]
  %s4 = inlined_call_operand.vmem [shape: f32[32,32], index: 4, kind: input, shape index: {}]
  %s5 = inlined_call_operand.vmem [shape: f32[1,32], index: 5, kind: input, shape index: {}]
  %s6 = inlined_call_operand.vmem [shape: f32[32,32], index: 6, kind: input, shape index: {}]
  %s7 = inlined_call_operand.vmem [shape: f32[1,32], index: 7, kind: input, shape index: {}]
  %s8 = inlined_call_operand.vmem [shape: f32[32,64], index: 8, kind: input, shape index: {}]
  %s9 = inlined_call_operand.vmem [shape: f32[1,64], index: 9, kind: input, shape index: {}]
  %s10 = inlined_call_operand.hbm [shape: f32[32,32], index: 10, kind: input, shape index: {}]
  %s11 = inlined_call_operand.vmem [shape: f32[1,32], index: 11, kind: input, shape index: {}]
  %s12 = inlined_call_operand.hbm [shape: f32[32,128], index: 12, kind: input, shape index: {}]
  %s13 = inlined_call_operand.vmem [shape: f32[1,128], index: 13, kind: input, shape index: {}]
  %s14 = inlined_call_operand.vmem [shape: f32[128,32], index: 14, kind: input, shape index: {}]
  %s15 = inlined_call_operand.vmem [shape: f32[1,32], index: 15, kind: input, shape index: {}]
  %s16 = inlined_call_operand.vmem [shape: f32[1,32], index: 16, kind: input, shape index: {}]
  %s17 = inlined_call_operand.vmem [shape: f32[1,32], index: 17, kind: input, shape index: {}]
  %s18 = inlined_call_operand.vmem [shape: f32[1,32], index: 18, kind: input, shape index: {}]
  %s19 = inlined_call_operand.vmem [shape: f32[1,32], index: 19, kind: input, shape index: {}]
  %s20 = inlined_call_operand.vmem [shape: f32[1,32], index: 20, kind: input, shape index: {}]
  %s21 = inlined_call_operand.vmem [shape: f32[1,32], index: 21, kind: input, shape index: {}]
  %s22 = inlined_call_operand.hbm [shape: f32[2,8,32], index: 22, kind: output, shape index: {}]
  %s23 = sld [smem:[#allocation0]]
  $region133: #{tpu_custom_call.1} parent=0
    _
  %s25 = ssub.s32 1, %s23
  %s26 = scalar_select 0, %s25, %s23
  $region1: #{tpu_custom_call.1} parent=0
    #allocation2 [shape = 'u8[8192]{0}', space=vmem, size = 0x2000, scoped, tag = 'input window, operand 0']
    #allocation3 [shape = 's32[2]{0}', space=sflag, size = 0x8, scoped, tag = 'scoped memory for tpu_custom_call.1']
    #allocation4 [shape = 's32[2]{0}', space=sflag, size = 0x8, scoped, tag = 'scoped memory for tpu_custom_call.1']
    #allocation5 [shape = 'u8[16384]{0}', space=vmem, size = 0x4000, scoped, tag = 'input window, operand 10, single buffered']
    #allocation6 [shape = 's32[1]{0}', space=sflag, size = 0x4, scoped, tag = 'scoped memory for tpu_custom_call.1']
    #allocation7 [shape = 'u8[16384]{0}', space=vmem, size = 0x4000, scoped, tag = 'input window, operand 12, single buffered']
    #allocation8 [shape = 'u8[8192]{0}', space=vmem, size = 0x2000, scoped, tag = 'output window, operand 0']
    %27 = vsyncpa [#allocation3], 0
    %s28 = scalar_lea.sflag [#allocation3], 1
    %29 = vsyncpa %s28, 0
    %30 = vsyncpa [#allocation6], 0
    %31 = vsyncpa [#allocation4], 0
    %s32 = scalar_lea.sflag [#allocation4], 1
    %33 = vsyncpa %s32, 0
    loop: start=0, step=1, limit=4
    $region2: #{tpu_custom_call.1} parent=1 // loop_pre_header
      _
    $region3: #{tpu_custom_call.1} parent=1 // loop_header
      %s35 = sphi 0, %s39
      %p36 = scmp.ge.s32.totalorder %s35, 4
      %s45 = sphi 0, %s47
      %s48 = sphi 0, %s45
      %s49 = sphi 0, %s48
      %s65 = sphi 0, %s49
      %s71 = sphi 0, %s73
      %s74 = sphi 0, %s71
      %s75 = sphi 0, %s74
      %s91 = sphi 0, %s75
      %s95 = sphi 0, %s95
      %s97 = sphi 0, %s95
      %s98 = sphi 0, %s97
      %s112 = sphi 0, %s98
      %s116 = sphi 0, %s116
      %s118 = sphi 0, %s116
      %s119 = sphi 0, %s118
      %s133 = sphi 0, %s119
      %s137 = sphi 0, %s137
      %s139 = sphi 0, %s137
      %s140 = sphi 0, %s139
      %s154 = sphi 0, %s140
      %s158 = sphi 0, %s158
      %s160 = sphi 0, %s158
      %s161 = sphi 0, %s160
      %s175 = sphi 0, %s161
      %s179 = sphi 0, %s179
      %s181 = sphi 0, %s179
      %s182 = sphi 0, %s181
      %s196 = sphi 0, %s182
      %s200 = sphi 0, %s200
      %s202 = sphi 0, %s200
      %s203 = sphi 0, %s202
      %s217 = sphi 0, %s203
      %s221 = sphi 0, %s221
      %s223 = sphi 0, %s221
      %s224 = sphi 0, %s223
      %s238 = sphi 0, %s224
      %s242 = sphi 0, %s242
      %s244 = sphi 0, %s242
      %s245 = sphi 0, %s244
      %s259 = sphi 0, %s245
      %s263 = sphi 0, %s263
      %s265 = sphi 0, %s263
      %s266 = sphi 0, %s265
      %s280 = sphi 0, %s266
      %s284 = sphi 0, %s284
      %s286 = sphi 0, %s284
      %s287 = sphi 0, %s286
      %s301 = sphi 0, %s287
      %s305 = sphi 0, %s305
      %s307 = sphi 0, %s305
      %s308 = sphi 0, %s307
      %s322 = sphi 0, %s308
      %s326 = sphi 0, %s326
      %s328 = sphi 0, %s326
      %s329 = sphi 0, %s328
      %s343 = sphi 0, %s329
      %s347 = sphi 0, %s347
      %s349 = sphi 0, %s347
      %s350 = sphi 0, %s349
      %s364 = sphi 0, %s350
      %s368 = sphi 0, %s368
      %s370 = sphi 0, %s368
      %s371 = sphi 0, %s370
      %s385 = sphi 0, %s371
      %s389 = sphi 0, %s389
      %s391 = sphi 0, %s389
      %s392 = sphi 0, %s391
      %s406 = sphi 0, %s392
      %s410 = sphi 0, %s410
      %s412 = sphi 0, %s410
      %s413 = sphi 0, %s412
      %s427 = sphi 0, %s413
      %s431 = sphi 0, %s431
      %s433 = sphi 0, %s431
      %s434 = sphi 0, %s433
      %s448 = sphi 0, %s434
      %s452 = sphi 0, %s452
      %s454 = sphi 0, %s452
      %s455 = sphi 0, %s454
      %s469 = sphi 0, %s455
      %s473 = sphi 0, %s473
      %s475 = sphi 0, %s473
      %s476 = sphi 0, %s475
      %s490 = sphi 0, %s476
      %s494 = sphi 0, %s494
      %s496 = sphi 0, %s494
      %s497 = sphi 0, %s496
      %s511 = sphi 0, %s497
      %s517 = sphi 0, %s519
      %s520 = sphi 0, %s517
      %s521 = sphi 0, %s520
      %s537 = sphi 0, %s521
    $region4: #{tpu_custom_call.1} parent=1 // loop_header_branch
      %38 = sbr.rel (%p36) target = $region8
    $region5: #{tpu_custom_call.1} parent=1 // loop_body
      %s40 = ssub.s32 %s35, 1
      %s41 = ssub.s32 %s35, 2
      %s42 = sadd.s32 %s35, 1
      %s43 = ssub.s32 %s35, %s42
      %p44 = scmp.eq.s32.totalorder %s43, 0
      %s46 = sadd.s32 %s45, 1
      %s47 = scalar_select %p44, %s45, %s46
      %p50 = pneg %p44
      %p51 = scmp.eq.s32.totalorder %s35, 1
      %p52 = por %p50, %p51
      %p53 = scmp.ne.s32.totalorder %s45, %s48
      %p54 = scmp.eq.s32.totalorder %s35, 0
      %p55 = por %p53, %p54
      %p56 = scmp.ne.s32.totalorder %s45, %s48
      %p57 = scmp.eq.s32.totalorder %s40, 1
      %p58 = por %p56, %p57
      %p59 = scmp.ne.s32.totalorder %s48, %s49
      %p60 = scmp.eq.s32.totalorder %s40, 0
      %p61 = por %p59, %p60
      %p62 = scmp.ne.s32.totalorder %s48, %s49
      %p63 = scmp.eq.s32.totalorder %s41, 1
      %p64 = por %p62, %p63
      %p66 = scmp.ne.s32.totalorder %s49, %s65
      %p67 = scmp.eq.s32.totalorder %s41, 0
      %p68 = por %p66, %p67
      %s69 = ssub.s32 %s35, %s42
      %p70 = scmp.eq.s32.totalorder %s69, 0
      %s72 = sadd.s32 %s71, 1
      %s73 = scalar_select %p70, %s71, %s72
      %p76 = pneg %p70
      %p77 = scmp.eq.s32.totalorder %s35, 1
      %p78 = por %p76, %p77
      %p79 = scmp.ne.s32.totalorder %s71, %s74
      %p80 = scmp.eq.s32.totalorder %s35, 0
      %p81 = por %p79, %p80
      %p82 = scmp.ne.s32.totalorder %s71, %s74
      %p83 = scmp.eq.s32.totalorder %s40, 1
      %p84 = por %p82, %p83
      %p85 = scmp.ne.s32.totalorder %s74, %s75
      %p86 = scmp.eq.s32.totalorder %s40, 0
      %p87 = por %p85, %p86
      %p88 = scmp.ne.s32.totalorder %s74, %s75
      %p89 = scmp.eq.s32.totalorder %s41, 1
      %p90 = por %p88, %p89
      %p92 = scmp.ne.s32.totalorder %s75, %s91
      %p93 = scmp.eq.s32.totalorder %s41, 0
      %p94 = por %p92, %p93
      %s96 = sadd.s32 %s95, 1
      %p99 = scmp.eq.s32.totalorder %s35, 1
      %p100 = scmp.ne.s32.totalorder %s95, %s97
      %p101 = scmp.eq.s32.totalorder %s35, 0
      %p102 = por %p100, %p101
      %p103 = scmp.ne.s32.totalorder %s95, %s97
      %p104 = scmp.eq.s32.totalorder %s40, 1
      %p105 = por %p103, %p104
      %p106 = scmp.ne.s32.totalorder %s97, %s98
      %p107 = scmp.eq.s32.totalorder %s40, 0
      %p108 = por %p106, %p107
      %p109 = scmp.ne.s32.totalorder %s97, %s98
      %p110 = scmp.eq.s32.totalorder %s41, 1
      %p111 = por %p109, %p110
      %p113 = scmp.ne.s32.totalorder %s98, %s112
      %p114 = scmp.eq.s32.totalorder %s41, 0
      %p115 = por %p113, %p114
      %s117 = sadd.s32 %s116, 1
      %p120 = scmp.eq.s32.totalorder %s35, 1
      %p121 = scmp.ne.s32.totalorder %s116, %s118
      %p122 = scmp.eq.s32.totalorder %s35, 0
      %p123 = por %p121, %p122
      %p124 = scmp.ne.s32.totalorder %s116, %s118
      %p125 = scmp.eq.s32.totalorder %s40, 1
      %p126 = por %p124, %p125
      %p127 = scmp.ne.s32.totalorder %s118, %s119
      %p128 = scmp.eq.s32.totalorder %s40, 0
      %p129 = por %p127, %p128
      %p130 = scmp.ne.s32.totalorder %s118, %s119
      %p131 = scmp.eq.s32.totalorder %s41, 1
      %p132 = por %p130, %p131
      %p134 = scmp.ne.s32.totalorder %s119, %s133
      %p135 = scmp.eq.s32.totalorder %s41, 0
      %p136 = por %p134, %p135
      %s138 = sadd.s32 %s137, 1
      %p141 = scmp.eq.s32.totalorder %s35, 1
      %p142 = scmp.ne.s32.totalorder %s137, %s139
      %p143 = scmp.eq.s32.totalorder %s35, 0
      %p144 = por %p142, %p143
      %p145 = scmp.ne.s32.totalorder %s137, %s139
      %p146 = scmp.eq.s32.totalorder %s40, 1
      %p147 = por %p145, %p146
      %p148 = scmp.ne.s32.totalorder %s139, %s140
      %p149 = scmp.eq.s32.totalorder %s40, 0
      %p150 = por %p148, %p149
      %p151 = scmp.ne.s32.totalorder %s139, %s140
      %p152 = scmp.eq.s32.totalorder %s41, 1
      %p153 = por %p151, %p152
      %p155 = scmp.ne.s32.totalorder %s140, %s154
      %p156 = scmp.eq.s32.totalorder %s41, 0
      %p157 = por %p155, %p156
      %s159 = sadd.s32 %s158, 1
      %p162 = scmp.eq.s32.totalorder %s35, 1
      %p163 = scmp.ne.s32.totalorder %s158, %s160
      %p164 = scmp.eq.s32.totalorder %s35, 0
      %p165 = por %p163, %p164
      %p166 = scmp.ne.s32.totalorder %s158, %s160
      %p167 = scmp.eq.s32.totalorder %s40, 1
      %p168 = por %p166, %p167
      %p169 = scmp.ne.s32.totalorder %s160, %s161
      %p170 = scmp.eq.s32.totalorder %s40, 0
      %p171 = por %p169, %p170
      %p172 = scmp.ne.s32.totalorder %s160, %s161
      %p173 = scmp.eq.s32.totalorder %s41, 1
      %p174 = por %p172, %p173
      %p176 = scmp.ne.s32.totalorder %s161, %s175
      %p177 = scmp.eq.s32.totalorder %s41, 0
      %p178 = por %p176, %p177
      %s180 = sadd.s32 %s179, 1
      %p183 = scmp.eq.s32.totalorder %s35, 1
      %p184 = scmp.ne.s32.totalorder %s179, %s181
      %p185 = scmp.eq.s32.totalorder %s35, 0
      %p186 = por %p184, %p185
      %p187 = scmp.ne.s32.totalorder %s179, %s181
      %p188 = scmp.eq.s32.totalorder %s40, 1
      %p189 = por %p187, %p188
      %p190 = scmp.ne.s32.totalorder %s181, %s182
      %p191 = scmp.eq.s32.totalorder %s40, 0
      %p192 = por %p190, %p191
      %p193 = scmp.ne.s32.totalorder %s181, %s182
      %p194 = scmp.eq.s32.totalorder %s41, 1
      %p195 = por %p193, %p194
      %p197 = scmp.ne.s32.totalorder %s182, %s196
      %p198 = scmp.eq.s32.totalorder %s41, 0
      %p199 = por %p197, %p198
      %s201 = sadd.s32 %s200, 1
      %p204 = scmp.eq.s32.totalorder %s35, 1
      %p205 = scmp.ne.s32.totalorder %s200, %s202
      %p206 = scmp.eq.s32.totalorder %s35, 0
      %p207 = por %p205, %p206
      %p208 = scmp.ne.s32.totalorder %s200, %s202
      %p209 = scmp.eq.s32.totalorder %s40, 1
      %p210 = por %p208, %p209
      %p211 = scmp.ne.s32.totalorder %s202, %s203
      %p212 = scmp.eq.s32.totalorder %s40, 0
      %p213 = por %p211, %p212
      %p214 = scmp.ne.s32.totalorder %s202, %s203
      %p215 = scmp.eq.s32.totalorder %s41, 1
      %p216 = por %p214, %p215
      %p218 = scmp.ne.s32.totalorder %s203, %s217
      %p219 = scmp.eq.s32.totalorder %s41, 0
      %p220 = por %p218, %p219
      %s222 = sadd.s32 %s221, 1
      %p225 = scmp.eq.s32.totalorder %s35, 1
      %p226 = scmp.ne.s32.totalorder %s221, %s223
      %p227 = scmp.eq.s32.totalorder %s35, 0
      %p228 = por %p226, %p227
      %p229 = scmp.ne.s32.totalorder %s221, %s223
      %p230 = scmp.eq.s32.totalorder %s40, 1
      %p231 = por %p229, %p230
      %p232 = scmp.ne.s32.totalorder %s223, %s224
      %p233 = scmp.eq.s32.totalorder %s40, 0
      %p234 = por %p232, %p233
      %p235 = scmp.ne.s32.totalorder %s223, %s224
      %p236 = scmp.eq.s32.totalorder %s41, 1
      %p237 = por %p235, %p236
      %p239 = scmp.ne.s32.totalorder %s224, %s238
      %p240 = scmp.eq.s32.totalorder %s41, 0
      %p241 = por %p239, %p240
      %s243 = sadd.s32 %s242, 1
      %p246 = scmp.eq.s32.totalorder %s35, 1
      %p247 = scmp.ne.s32.totalorder %s242, %s244
      %p248 = scmp.eq.s32.totalorder %s35, 0
      %p249 = por %p247, %p248
      %p250 = scmp.ne.s32.totalorder %s242, %s244
      %p251 = scmp.eq.s32.totalorder %s40, 1
      %p252 = por %p250, %p251
      %p253 = scmp.ne.s32.totalorder %s244, %s245
      %p254 = scmp.eq.s32.totalorder %s40, 0
      %p255 = por %p253, %p254
      %p256 = scmp.ne.s32.totalorder %s244, %s245
      %p257 = scmp.eq.s32.totalorder %s41, 1
      %p258 = por %p256, %p257
      %p260 = scmp.ne.s32.totalorder %s245, %s259
      %p261 = scmp.eq.s32.totalorder %s41, 0
      %p262 = por %p260, %p261
      %s264 = sadd.s32 %s263, 1
      %p267 = scmp.eq.s32.totalorder %s35, 1
      %p268 = scmp.ne.s32.totalorder %s263, %s265
      %p269 = scmp.eq.s32.totalorder %s35, 0
      %p270 = por %p268, %p269
      %p271 = scmp.ne.s32.totalorder %s263, %s265
      %p272 = scmp.eq.s32.totalorder %s40, 1
      %p273 = por %p271, %p272
      %p274 = scmp.ne.s32.totalorder %s265, %s266
      %p275 = scmp.eq.s32.totalorder %s40, 0
      %p276 = por %p274, %p275
      %p277 = scmp.ne.s32.totalorder %s265, %s266
      %p278 = scmp.eq.s32.totalorder %s41, 1
      %p279 = por %p277, %p278
      %p281 = scmp.ne.s32.totalorder %s266, %s280
      %p282 = scmp.eq.s32.totalorder %s41, 0
      %p283 = por %p281, %p282
      %s285 = sadd.s32 %s284, 1
      %p288 = scmp.eq.s32.totalorder %s35, 1
      %p289 = scmp.ne.s32.totalorder %s284, %s286
      %p290 = scmp.eq.s32.totalorder %s35, 0
      %p291 = por %p289, %p290
      %p292 = scmp.ne.s32.totalorder %s284, %s286
      %p293 = scmp.eq.s32.totalorder %s40, 1
      %p294 = por %p292, %p293
      %p295 = scmp.ne.s32.totalorder %s286, %s287
      %p296 = scmp.eq.s32.totalorder %s40, 0
      %p297 = por %p295, %p296
      %p298 = scmp.ne.s32.totalorder %s286, %s287
      %p299 = scmp.eq.s32.totalorder %s41, 1
      %p300 = por %p298, %p299
      %p302 = scmp.ne.s32.totalorder %s287, %s301
      %p303 = scmp.eq.s32.totalorder %s41, 0
      %p304 = por %p302, %p303
      %s306 = sadd.s32 %s305, 1
      %p309 = scmp.eq.s32.totalorder %s35, 1
      %p310 = scmp.ne.s32.totalorder %s305, %s307
      %p311 = scmp.eq.s32.totalorder %s35, 0
      %p312 = por %p310, %p311
      %p313 = scmp.ne.s32.totalorder %s305, %s307
      %p314 = scmp.eq.s32.totalorder %s40, 1
      %p315 = por %p313, %p314
      %p316 = scmp.ne.s32.totalorder %s307, %s308
      %p317 = scmp.eq.s32.totalorder %s40, 0
      %p318 = por %p316, %p317
      %p319 = scmp.ne.s32.totalorder %s307, %s308
      %p320 = scmp.eq.s32.totalorder %s41, 1
      %p321 = por %p319, %p320
      %p323 = scmp.ne.s32.totalorder %s308, %s322
      %p324 = scmp.eq.s32.totalorder %s41, 0
      %p325 = por %p323, %p324
      %s327 = sadd.s32 %s326, 1
      %p330 = scmp.eq.s32.totalorder %s35, 1
      %p331 = scmp.ne.s32.totalorder %s326, %s328
      %p332 = scmp.eq.s32.totalorder %s35, 0
      %p333 = por %p331, %p332
      %p334 = scmp.ne.s32.totalorder %s326, %s328
      %p335 = scmp.eq.s32.totalorder %s40, 1
      %p336 = por %p334, %p335
      %p337 = scmp.ne.s32.totalorder %s328, %s329
      %p338 = scmp.eq.s32.totalorder %s40, 0
      %p339 = por %p337, %p338
      %p340 = scmp.ne.s32.totalorder %s328, %s329
      %p341 = scmp.eq.s32.totalorder %s41, 1
      %p342 = por %p340, %p341
      %p344 = scmp.ne.s32.totalorder %s329, %s343
      %p345 = scmp.eq.s32.totalorder %s41, 0
      %p346 = por %p344, %p345
      %s348 = sadd.s32 %s347, 1
      %p351 = scmp.eq.s32.totalorder %s35, 1
      %p352 = scmp.ne.s32.totalorder %s347, %s349
      %p353 = scmp.eq.s32.totalorder %s35, 0
      %p354 = por %p352, %p353
      %p355 = scmp.ne.s32.totalorder %s347, %s349
      %p356 = scmp.eq.s32.totalorder %s40, 1
      %p357 = por %p355, %p356
      %p358 = scmp.ne.s32.totalorder %s349, %s350
      %p359 = scmp.eq.s32.totalorder %s40, 0
      %p360 = por %p358, %p359
      %p361 = scmp.ne.s32.totalorder %s349, %s350
      %p362 = scmp.eq.s32.totalorder %s41, 1
      %p363 = por %p361, %p362
      %p365 = scmp.ne.s32.totalorder %s350, %s364
      %p366 = scmp.eq.s32.totalorder %s41, 0
      %p367 = por %p365, %p366
      %s369 = sadd.s32 %s368, 1
      %p372 = scmp.eq.s32.totalorder %s35, 1
      %p373 = scmp.ne.s32.totalorder %s368, %s370
      %p374 = scmp.eq.s32.totalorder %s35, 0
      %p375 = por %p373, %p374
      %p376 = scmp.ne.s32.totalorder %s368, %s370
      %p377 = scmp.eq.s32.totalorder %s40, 1
      %p378 = por %p376, %p377
      %p379 = scmp.ne.s32.totalorder %s370, %s371
      %p380 = scmp.eq.s32.totalorder %s40, 0
      %p381 = por %p379, %p380
      %p382 = scmp.ne.s32.totalorder %s370, %s371
      %p383 = scmp.eq.s32.totalorder %s41, 1
      %p384 = por %p382, %p383
      %p386 = scmp.ne.s32.totalorder %s371, %s385
      %p387 = scmp.eq.s32.totalorder %s41, 0
      %p388 = por %p386, %p387
      %s390 = sadd.s32 %s389, 1
      %p393 = scmp.eq.s32.totalorder %s35, 1
      %p394 = scmp.ne.s32.totalorder %s389, %s391
      %p395 = scmp.eq.s32.totalorder %s35, 0
      %p396 = por %p394, %p395
      %p397 = scmp.ne.s32.totalorder %s389, %s391
      %p398 = scmp.eq.s32.totalorder %s40, 1
      %p399 = por %p397, %p398
      %p400 = scmp.ne.s32.totalorder %s391, %s392
      %p401 = scmp.eq.s32.totalorder %s40, 0
      %p402 = por %p400, %p401
      %p403 = scmp.ne.s32.totalorder %s391, %s392
      %p404 = scmp.eq.s32.totalorder %s41, 1
      %p405 = por %p403, %p404
      %p407 = scmp.ne.s32.totalorder %s392, %s406
      %p408 = scmp.eq.s32.totalorder %s41, 0
      %p409 = por %p407, %p408
      %s411 = sadd.s32 %s410, 1
      %p414 = scmp.eq.s32.totalorder %s35, 1
      %p415 = scmp.ne.s32.totalorder %s410, %s412
      %p416 = scmp.eq.s32.totalorder %s35, 0
      %p417 = por %p415, %p416
      %p418 = scmp.ne.s32.totalorder %s410, %s412
      %p419 = scmp.eq.s32.totalorder %s40, 1
      %p420 = por %p418, %p419
      %p421 = scmp.ne.s32.totalorder %s412, %s413
      %p422 = scmp.eq.s32.totalorder %s40, 0
      %p423 = por %p421, %p422
      %p424 = scmp.ne.s32.totalorder %s412, %s413
      %p425 = scmp.eq.s32.totalorder %s41, 1
      %p426 = por %p424, %p425
      %p428 = scmp.ne.s32.totalorder %s413, %s427
      %p429 = scmp.eq.s32.totalorder %s41, 0
      %p430 = por %p428, %p429
      %s432 = sadd.s32 %s431, 1
      %p435 = scmp.eq.s32.totalorder %s35, 1
      %p436 = scmp.ne.s32.totalorder %s431, %s433
      %p437 = scmp.eq.s32.totalorder %s35, 0
      %p438 = por %p436, %p437
      %p439 = scmp.ne.s32.totalorder %s431, %s433
      %p440 = scmp.eq.s32.totalorder %s40, 1
      %p441 = por %p439, %p440
      %p442 = scmp.ne.s32.totalorder %s433, %s434
      %p443 = scmp.eq.s32.totalorder %s40, 0
      %p444 = por %p442, %p443
      %p445 = scmp.ne.s32.totalorder %s433, %s434
      %p446 = scmp.eq.s32.totalorder %s41, 1
      %p447 = por %p445, %p446
      %p449 = scmp.ne.s32.totalorder %s434, %s448
      %p450 = scmp.eq.s32.totalorder %s41, 0
      %p451 = por %p449, %p450
      %s453 = sadd.s32 %s452, 1
      %p456 = scmp.eq.s32.totalorder %s35, 1
      %p457 = scmp.ne.s32.totalorder %s452, %s454
      %p458 = scmp.eq.s32.totalorder %s35, 0
      %p459 = por %p457, %p458
      %p460 = scmp.ne.s32.totalorder %s452, %s454
      %p461 = scmp.eq.s32.totalorder %s40, 1
      %p462 = por %p460, %p461
      %p463 = scmp.ne.s32.totalorder %s454, %s455
      %p464 = scmp.eq.s32.totalorder %s40, 0
      %p465 = por %p463, %p464
      %p466 = scmp.ne.s32.totalorder %s454, %s455
      %p467 = scmp.eq.s32.totalorder %s41, 1
      %p468 = por %p466, %p467
      %p470 = scmp.ne.s32.totalorder %s455, %s469
      %p471 = scmp.eq.s32.totalorder %s41, 0
      %p472 = por %p470, %p471
      %s474 = sadd.s32 %s473, 1
      %p477 = scmp.eq.s32.totalorder %s35, 1
      %p478 = scmp.ne.s32.totalorder %s473, %s475
      %p479 = scmp.eq.s32.totalorder %s35, 0
      %p480 = por %p478, %p479
      %p481 = scmp.ne.s32.totalorder %s473, %s475
      %p482 = scmp.eq.s32.totalorder %s40, 1
      %p483 = por %p481, %p482
      %p484 = scmp.ne.s32.totalorder %s475, %s476
      %p485 = scmp.eq.s32.totalorder %s40, 0
      %p486 = por %p484, %p485
      %p487 = scmp.ne.s32.totalorder %s475, %s476
      %p488 = scmp.eq.s32.totalorder %s41, 1
      %p489 = por %p487, %p488
      %p491 = scmp.ne.s32.totalorder %s476, %s490
      %p492 = scmp.eq.s32.totalorder %s41, 0
      %p493 = por %p491, %p492
      %s495 = sadd.s32 %s494, 1
      %p498 = scmp.eq.s32.totalorder %s35, 1
      %p499 = scmp.ne.s32.totalorder %s494, %s496
      %p500 = scmp.eq.s32.totalorder %s35, 0
      %p501 = por %p499, %p500
      %p502 = scmp.ne.s32.totalorder %s494, %s496
      %p503 = scmp.eq.s32.totalorder %s40, 1
      %p504 = por %p502, %p503
      %p505 = scmp.ne.s32.totalorder %s496, %s497
      %p506 = scmp.eq.s32.totalorder %s40, 0
      %p507 = por %p505, %p506
      %p508 = scmp.ne.s32.totalorder %s496, %s497
      %p509 = scmp.eq.s32.totalorder %s41, 1
      %p510 = por %p508, %p509
      %p512 = scmp.ne.s32.totalorder %s497, %s511
      %p513 = scmp.eq.s32.totalorder %s41, 0
      %p514 = por %p512, %p513
      %s515 = ssub.s32 %s35, %s42
      %p516 = scmp.eq.s32.totalorder %s515, 0
      %s518 = sadd.s32 %s517, 1
      %s519 = scalar_select %p516, %s517, %s518
      %p522 = pneg %p516
      %p523 = scmp.eq.s32.totalorder %s35, 1
      %p524 = por %p522, %p523
      %p525 = scmp.ne.s32.totalorder %s517, %s520
      %p526 = scmp.eq.s32.totalorder %s35, 0
      %p527 = por %p525, %p526
      %p528 = scmp.ne.s32.totalorder %s517, %s520
      %p529 = scmp.eq.s32.totalorder %s40, 1
      %p530 = por %p528, %p529
      %p531 = scmp.ne.s32.totalorder %s520, %s521
      %p532 = scmp.eq.s32.totalorder %s40, 0
      %p533 = por %p531, %p532
      %p534 = scmp.ne.s32.totalorder %s520, %s521
      %p535 = scmp.eq.s32.totalorder %s41, 1
      %p536 = por %p534, %p535
      %p538 = scmp.ne.s32.totalorder %s521, %s537
      %p539 = scmp.eq.s32.totalorder %s41, 0
      %p540 = por %p538, %p539
      %p541 = scmp.le.s32.totalorder 1, %s35
      %p542 = scmp.lt.s32.totalorder %s35, 3
      %p543 = pnand %p541, %p542
      %p544 = pneg %p543
      // Predicated region
      $region9: #{tpu_custom_call.1} parent=5 // pred_check
        _
      $region10: #{tpu_custom_call.1} parent=5 // pred_check_branch
        %546 = sbr.rel (%p543) target = $region12
      $region11: #{tpu_custom_call.1} parent=5 // pred_region
        %s547 = ssub.s32 %s35, 1
        // Predicated region
        $region13: #{tpu_custom_call.1} parent=11 // pred_check
          %p548 = pneg %p108
        $region14: #{tpu_custom_call.1} parent=11 // pred_check_branch
          %550 = sbr.rel (%p548) target = $region16
        $region15: #{tpu_custom_call.1} parent=11 // pred_region
          _
        $region16: #{tpu_custom_call.1} parent=11 // pred_fallthru
          _
        // Predicated region
        $region17: #{tpu_custom_call.1} parent=11 // pred_check
          %p551 = pneg %p129
        $region18: #{tpu_custom_call.1} parent=11 // pred_check_branch
          %553 = sbr.rel (%p551) target = $region20
        $region19: #{tpu_custom_call.1} parent=11 // pred_region
          _
        $region20: #{tpu_custom_call.1} parent=11 // pred_fallthru
          _
        // Predicated region
        $region21: #{tpu_custom_call.1} parent=11 // pred_check
          %p554 = pneg %p150
        $region22: #{tpu_custom_call.1} parent=11 // pred_check_branch
          %556 = sbr.rel (%p554) target = $region24
        $region23: #{tpu_custom_call.1} parent=11 // pred_region
          _
        $region24: #{tpu_custom_call.1} parent=11 // pred_fallthru
          _
        // Predicated region
        $region25: #{tpu_custom_call.1} parent=11 // pred_check
          %p557 = pneg %p171
        $region26: #{tpu_custom_call.1} parent=11 // pred_check_branch
          %559 = sbr.rel (%p557) target = $region28
        $region27: #{tpu_custom_call.1} parent=11 // pred_region
          _
        $region28: #{tpu_custom_call.1} parent=11 // pred_fallthru
          _
        // Predicated region
        $region29: #{tpu_custom_call.1} parent=11 // pred_check
          %p560 = pneg %p192
        $region30: #{tpu_custom_call.1} parent=11 // pred_check_branch
          %562 = sbr.rel (%p560) target = $region32
        $region31: #{tpu_custom_call.1} parent=11 // pred_region
          _
        $region32: #{tpu_custom_call.1} parent=11 // pred_fallthru
          _
        // Predicated region
        $region33: #{tpu_custom_call.1} parent=11 // pred_check
          %p563 = pneg %p213
        $region34: #{tpu_custom_call.1} parent=11 // pred_check_branch
          %565 = sbr.rel (%p563) target = $region36
        $region35: #{tpu_custom_call.1} parent=11 // pred_region
          _
        $region36: #{tpu_custom_call.1} parent=11 // pred_fallthru
          _
        // Predicated region
        $region37: #{tpu_custom_call.1} parent=11 // pred_check
          %p566 = pneg %p234
        $region38: #{tpu_custom_call.1} parent=11 // pred_check_branch
          %568 = sbr.rel (%p566) target = $region40
        $region39: #{tpu_custom_call.1} parent=11 // pred_region
          _
        $region40: #{tpu_custom_call.1} parent=11 // pred_fallthru
          _
        // Predicated region
        $region41: #{tpu_custom_call.1} parent=11 // pred_check
          %p569 = pneg %p255
        $region42: #{tpu_custom_call.1} parent=11 // pred_check_branch
          %571 = sbr.rel (%p569) target = $region44
        $region43: #{tpu_custom_call.1} parent=11 // pred_region
          _
        $region44: #{tpu_custom_call.1} parent=11 // pred_fallthru
          _
        // Predicated region
        $region45: #{tpu_custom_call.1} parent=11 // pred_check
          %p572 = pneg %p276
        $region46: #{tpu_custom_call.1} parent=11 // pred_check_branch
          %574 = sbr.rel (%p572) target = $region48
        $region47: #{tpu_custom_call.1} parent=11 // pred_region
          %s576 = ssub.s32 512, 512
          %577 = vsyncadd [#allocation6], %s576
          %s578 = sshll.u32 [#allocation5], 4
          %s579 = int_to_ptr.vmem [resolvable:$true] %s578
          %584 = dma.hbm_to_vmem [thread:$0]  %s10, 512, %s579, [#allocation6], 128, 128, 8
        $region48: #{tpu_custom_call.1} parent=11 // pred_fallthru
          _
        // Predicated region
        $region49: #{tpu_custom_call.1} parent=11 // pred_check
          %p585 = pneg %p297
        $region50: #{tpu_custom_call.1} parent=11 // pred_check_branch
          %587 = sbr.rel (%p585) target = $region52
        $region51: #{tpu_custom_call.1} parent=11 // pred_region
          _
        $region52: #{tpu_custom_call.1} parent=11 // pred_fallthru
          _
        // Predicated region
        $region53: #{tpu_custom_call.1} parent=11 // pred_check
          %p588 = pneg %p318
        $region54: #{tpu_custom_call.1} parent=11 // pred_check_branch
          %590 = sbr.rel (%p588) target = $region56
        $region55: #{tpu_custom_call.1} parent=11 // pred_region
          %s592 = ssub.s32 512, 512
          %593 = vsyncadd [#allocation6], %s592
          %s594 = sshll.u32 [#allocation7], 4
          %s595 = int_to_ptr.vmem [resolvable:$true] %s594
          %600 = dma.hbm_to_vmem [thread:$0]  %s12, 512, %s595, [#allocation6], 128, 128, 8
        $region56: #{tpu_custom_call.1} parent=11 // pred_fallthru
          _
        // Predicated region
        $region57: #{tpu_custom_call.1} parent=11 // pred_check
          %p601 = pneg %p339
        $region58: #{tpu_custom_call.1} parent=11 // pred_check_branch
          %603 = sbr.rel (%p601) target = $region60
        $region59: #{tpu_custom_call.1} parent=11 // pred_region
          _
        $region60: #{tpu_custom_call.1} parent=11 // pred_fallthru
          _
        // Predicated region
        $region61: #{tpu_custom_call.1} parent=11 // pred_check
          %p604 = pneg %p360
        $region62: #{tpu_custom_call.1} parent=11 // pred_check_branch
          %606 = sbr.rel (%p604) target = $region64
        $region63: #{tpu_custom_call.1} parent=11 // pred_region
          _
        $region64: #{tpu_custom_call.1} parent=11 // pred_fallthru
          _
        // Predicated region
        $region65: #{tpu_custom_call.1} parent=11 // pred_check
          %p607 = pneg %p381
        $region66: #{tpu_custom_call.1} parent=11 // pred_check_branch
          %609 = sbr.rel (%p607) target = $region68
        $region67: #{tpu_custom_call.1} parent=11 // pred_region
          _
        $region68: #{tpu_custom_call.1} parent=11 // pred_fallthru
          _
        // Predicated region
        $region69: #{tpu_custom_call.1} parent=11 // pred_check
          %p610 = pneg %p402
        $region70: #{tpu_custom_call.1} parent=11 // pred_check_branch
          %612 = sbr.rel (%p610) target = $region72
        $region71: #{tpu_custom_call.1} parent=11 // pred_region
          _
        $region72: #{tpu_custom_call.1} parent=11 // pred_fallthru
          _
        // Predicated region
        $region73: #{tpu_custom_call.1} parent=11 // pred_check
          %p613 = pneg %p423
        $region74: #{tpu_custom_call.1} parent=11 // pred_check_branch
          %615 = sbr.rel (%p613) target = $region76
        $region75: #{tpu_custom_call.1} parent=11 // pred_region
          _
        $region76: #{tpu_custom_call.1} parent=11 // pred_fallthru
          _
        // Predicated region
        $region77: #{tpu_custom_call.1} parent=11 // pred_check
          %p616 = pneg %p444
        $region78: #{tpu_custom_call.1} parent=11 // pred_check_branch
          %618 = sbr.rel (%p616) target = $region80
        $region79: #{tpu_custom_call.1} parent=11 // pred_region
          _
        $region80: #{tpu_custom_call.1} parent=11 // pred_fallthru
          _
        // Predicated region
        $region81: #{tpu_custom_call.1} parent=11 // pred_check
          %p619 = pneg %p465
        $region82: #{tpu_custom_call.1} parent=11 // pred_check_branch
          %621 = sbr.rel (%p619) target = $region84
        $region83: #{tpu_custom_call.1} parent=11 // pred_region
          _
        $region84: #{tpu_custom_call.1} parent=11 // pred_fallthru
          _
        // Predicated region
        $region85: #{tpu_custom_call.1} parent=11 // pred_check
          %p622 = pneg %p486
        $region86: #{tpu_custom_call.1} parent=11 // pred_check_branch
          %624 = sbr.rel (%p622) target = $region88
        $region87: #{tpu_custom_call.1} parent=11 // pred_region
          _
        $region88: #{tpu_custom_call.1} parent=11 // pred_fallthru
          _
        // Predicated region
        $region89: #{tpu_custom_call.1} parent=11 // pred_check
          %p625 = pneg %p507
        $region90: #{tpu_custom_call.1} parent=11 // pred_check_branch
          %627 = sbr.rel (%p625) target = $region92
        $region91: #{tpu_custom_call.1} parent=11 // pred_region
          _
        $region92: #{tpu_custom_call.1} parent=11 // pred_fallthru
          _
      $region12: #{tpu_custom_call.1} parent=5 // pred_fallthru
        _
      %p628 = scmp.lt.s32.totalorder %s35, 2
      // Predicated region
      $region93: #{tpu_custom_call.1} parent=5 // pred_check
        %p629 = pneg %p628
      $region94: #{tpu_custom_call.1} parent=5 // pred_check_branch
        %631 = sbr.rel (%p629) target = $region96
      $region95: #{tpu_custom_call.1} parent=5 // pred_region
        // Predicated region
        $region97: #{tpu_custom_call.1} parent=95 // pred_check
          %p632 = pneg %p55
        $region98: #{tpu_custom_call.1} parent=95 // pred_check_branch
          %634 = sbr.rel (%p632) target = $region100
        $region99: #{tpu_custom_call.1} parent=95 // pred_region
          %s635 = sand.u32 %s45, 1
          %s636 = scalar_lea.sflag [#allocation3], %s635
          %s637 = sand.u32 %s45, 1
          %s638 = smul.addr %s637, 8
          %s639 = scalar_lea.vmem [#allocation2], %s638
          %s641 = ssub.s32 128, 128
          %642 = vsyncadd %s636, %s641
          %s643 = smul.addr %s35, 128
          %s644 = scalar_lea.hbm %s0, %s643
          %s646 = sshll.u32 %s639, 4
          %s647 = int_to_ptr.vmem [resolvable:$true] %s646
          %649 = dma.hbm_to_vmem [thread:$0]  %s644, 128, %s647, %s636
        $region100: #{tpu_custom_call.1} parent=95 // pred_fallthru
          _
        // Predicated region
        $region101: #{tpu_custom_call.1} parent=95 // pred_check
          %p650 = pneg %p81
        $region102: #{tpu_custom_call.1} parent=95 // pred_check_branch
          %652 = sbr.rel (%p650) target = $region104
        $region103: #{tpu_custom_call.1} parent=95 // pred_region
          %p653 = scmp.lt.s32.totalorder %s35, 1
          %s654 = scalar_select %p653, %s35, 1
          %s655 = smul.addr %s654, 2
          %s656 = smul.addr %s655, 8
          %s657 = scalar_lea.vmem %s1, %s656
        $region104: #{tpu_custom_call.1} parent=95 // pred_fallthru
          _
      $region96: #{tpu_custom_call.1} parent=5 // pred_fallthru
        _
      %p658 = scmp.le.s32.totalorder 1, %s35
      %p659 = scmp.lt.s32.totalorder %s35, 3
      %p660 = pnand %p658, %p659
      %p661 = pneg %p660
      // Predicated region
      $region105: #{tpu_custom_call.1} parent=5 // pred_check
        _
      $region106: #{tpu_custom_call.1} parent=5 // pred_check_branch
        %663 = sbr.rel (%p660) target = $region108
      $region107: #{tpu_custom_call.1} parent=5 // pred_region
        %s664 = ssub.s32 %s35, 1
        %s665 = sand.u32 %s48, 1
        %s666 = scalar_lea.sflag [#allocation3], %s665
        %s667 = sand.u32 %s48, 1
        %s668 = smul.addr %s667, 8
        %s669 = scalar_lea.vmem [#allocation2], %s668
        // Predicated region
        $region109: #{tpu_custom_call.1} parent=107 // pred_check
          %p670 = pneg %p61
        $region110: #{tpu_custom_call.1} parent=107 // pred_check_branch
          %672 = sbr.rel (%p670) target = $region112
        $region111: #{tpu_custom_call.1} parent=107 // pred_region
          %673 = dma.done %s666, 128
        $region112: #{tpu_custom_call.1} parent=107 // pred_fallthru
          _
        // Predicated region
        $region113: #{tpu_custom_call.1} parent=107 // pred_check
          %p674 = pneg %p276
        $region114: #{tpu_custom_call.1} parent=107 // pred_check_branch
          %676 = sbr.rel (%p674) target = $region116
        $region115: #{tpu_custom_call.1} parent=107 // pred_region
          %677 = dma.done [#allocation6], 512
        $region116: #{tpu_custom_call.1} parent=107 // pred_fallthru
          _
        // Predicated region
        $region117: #{tpu_custom_call.1} parent=107 // pred_check
          %p678 = pneg %p318
        $region118: #{tpu_custom_call.1} parent=107 // pred_check_branch
          %680 = sbr.rel (%p678) target = $region120
        $region119: #{tpu_custom_call.1} parent=107 // pred_region
          %681 = dma.done [#allocation6], 512
        $region120: #{tpu_custom_call.1} parent=107 // pred_fallthru
          _
        %s682 = sand.u32 %s48, 1
        %s683 = scalar_lea.sflag [#allocation3], %s682
        %s684 = sand.u32 %s48, 1
        %s685 = smul.addr %s684, 8
        %s686 = scalar_lea.vmem [#allocation2], %s685
        %p687 = pneg %p61
        %p688 = pneg %p58
        %p689 = scmp.lt.s32.totalorder %s40, 1
        %s690 = scalar_select %p689, %s40, 1
        %s691 = smul.addr %s690, 2
        %s692 = smul.addr %s691, 8
        %s693 = scalar_lea.vmem %s1, %s692
        %p694 = pneg %p87
        %p695 = pneg %p84
        %p696 = pneg %p108
        %p697 = pneg %p105
        %p698 = pneg %p129
        %p699 = pneg %p126
        %p700 = pneg %p150
        %p701 = pneg %p147
        %p702 = pneg %p171
        %p703 = pneg %p168
        %p704 = pneg %p192
        %p705 = pneg %p189
        %p706 = pneg %p213
        %p707 = pneg %p210
        %p708 = pneg %p234
        %p709 = pneg %p231
        %p710 = pneg %p255
        %p711 = pneg %p252
        %p712 = pneg %p276
        %p713 = pneg %p273
        %p714 = pneg %p297
        %p715 = pneg %p294
        %p716 = pneg %p318
        %p717 = pneg %p315
        %p718 = pneg %p339
        %p719 = pneg %p336
        %p720 = pneg %p360
        %p721 = pneg %p357
        %p722 = pneg %p381
        %p723 = pneg %p378
        %p724 = pneg %p402
        %p725 = pneg %p399
        %p726 = pneg %p423
        %p727 = pneg %p420
        %p728 = pneg %p444
        %p729 = pneg %p441
        %p730 = pneg %p465
        %p731 = pneg %p462
        %p732 = pneg %p486
        %p733 = pneg %p483
        %p734 = pneg %p507
        %p735 = pneg %p504
        %p736 = pneg %p533
        %p737 = pneg %p530
        %s738 = sand.u32 %s520, 1
        %s739 = scalar_lea.sflag [#allocation4], %s738
        %s740 = sand.u32 %s520, 1
        %s741 = smul.addr %s740, 8
        %s742 = scalar_lea.vmem [#allocation8], %s741
        %p743 = scmp.lt.s32.totalorder %s40, 1
        %s744 = scalar_select %p743, %s40, 1
        %s745 = smul.addr %s744, 2
        %s746 = smul.addr %s745, 8
        %s747 = scalar_lea.vmem %s1, %s746
        %v748 = vld [vmem:[%s669] sm:$0xff]
        %v749 = vld [vmem:[%s747] sm:$0xff]
        %v750 = vld [vmem:[%s747 + $0x8] sm:$0xff]
        %v751 = vld [vmem:[%s2] sm:$0xff]
        %v752 = vld [vmem:[%s2 + $0x8] sm:$0xff]
        %v753 = vld [vmem:[%s2 + $0x10] sm:$0xff]
        %v754 = vld [vmem:[%s2 + $0x18] sm:$0xff]
        %v755 = vld [vmem:[%s3] sm:$0x1]
        %v757 = vlaneseq
        %v758 = vshrl.u32 %v757, 7
        %v759 = vsub.s32 0, %v758
        %v760 = vrot.slane %v755, %v759
        %vm762 = vcmask 261120
        %v764 = vsel %vm762, %v748, 0
        %766 = vmatprep.subr.mxu0 0.0
        %767 = vmatpush1.msra.mxu0 0.0
        %768 = vmatprep.subr.mxu0 0.0
        %769 = vmatpush1.msra.mxu0 0.0
        %770 = vmatprep.subr.mxu0 0.0
        %771 = vmatpush1.msra.mxu0 0.0
        %772 = vmatprep.subr.mxu0 0.0
        %773 = vmatpush1.msra.mxu0 0.0
        %774 = vmatprep.subr.mxu0 0.0
        %775 = vmatpush1.msra.mxu0 0.0
        %776 = vmatprep.subr.mxu0 0.0
        %777 = vmatpush1.msra.mxu0 0.0
        %778 = vmatprep.subr.mxu0 0.0
        %779 = vmatpush1.msra.mxu0 0.0
        %780 = vmatprep.subr.mxu0 0.0
        %781 = vmatpush1.msra.mxu0 0.0
        %782 = vmatprep.subr.mxu0 0.0
        %783 = vmatpush1.msra.mxu0 0.0
        %784 = vmatprep.subr.mxu0 0.0
        %785 = vmatpush1.msra.mxu0 0.0
        %786 = vmatprep.subr.mxu0 0.0
        %787 = vmatpush1.msra.mxu0 0.0
        %788 = vmatprep.subr.mxu0 0.0
        %789 = vmatpush1.msra.mxu0 0.0
        %790 = vmatprep.subr.mxu0 0.0
        %791 = vmatpush1.msra.mxu0 %v754
        %792 = vmatprep.subr.mxu0 0.0
        %793 = vmatpush1.msra.mxu0 %v753
        %794 = vmatprep.subr.mxu0 0.0
        %795 = vmatpush1.msra.mxu0 %v752
        %796 = vmatprep.subr.mxu0 0.0
        %797 = vmatpush1.msra.mxu0 %v751
        %798 = vmatprep.subr.mxu0 0.0
        %799 = vmatpush2.msra.mxu0 0.0
        %800 = vmatprep.subr.mxu0 0.0
        %801 = vmatpush2.msra.mxu0 0.0
        %802 = vmatprep.subr.mxu0 0.0
        %803 = vmatpush2.msra.mxu0 0.0
        %804 = vmatprep.subr.mxu0 0.0
        %805 = vmatpush2.msra.mxu0 0.0
        %806 = vmatprep.subr.mxu0 0.0
        %807 = vmatpush2.msra.mxu0 0.0
        %808 = vmatprep.subr.mxu0 0.0
        %809 = vmatpush2.msra.mxu0 0.0
        %810 = vmatprep.subr.mxu0 0.0
        %811 = vmatpush2.msra.mxu0 0.0
        %812 = vmatprep.subr.mxu0 0.0
        %813 = vmatpush2.msra.mxu0 0.0
        %814 = vmatprep.subr.mxu0 0.0
        %815 = vmatpush2.msra.mxu0 0.0
        %816 = vmatprep.subr.mxu0 0.0
        %817 = vmatpush2.msra.mxu0 0.0
        %818 = vmatprep.subr.mxu0 0.0
        %819 = vmatpush2.msra.mxu0 0.0
        %820 = vmatprep.subr.mxu0 0.0
        %821 = vmatpush2.msra.mxu0 0.0
        %822 = vmatprep.subr.mxu0 0.0
        %823 = vmatpush2.msra.mxu0 0.0
        %824 = vmatprep.subr.mxu0 0.0
        %825 = vmatpush2.msra.mxu0 0.0
        %826 = vmatprep.subr.mxu0 0.0
        %827 = vmatpush2.msra.mxu0 0.0
        %828 = vmatprep.subr.mxu0 0.0
        %829 = vmatpush2.msra.mxu0 0.0
        %830 = vmatprep.mubr.f32.mxu0 0.0
        %831 = vmatmul.mubr.f32.gmra.mxu0 %v764
        %v832 = vpop.f32.mrf.mxu0
        %v833 = vadd.f32 %v760, %v832
        %v834 = vpop.f32.mrf.mxu0
        %835 = vdwg.mxu0
        %837 = vrot.lane.b32.xlu0 %v833, 120
        %v838 = vpop.permute.xlu0 %837
        %839 = vrot.lane.b32.xlu0 %v833, 112
        %v840 = vpop.permute.xlu0 %839
        %841 = vrot.lane.b32.xlu0 %v833, 104
        %v842 = vpop.permute.xlu0 %841
        %843 = vrot.lane.b32.xlu0 %v833, 96
        %v844 = vpop.permute.xlu0 %843
        %vm845 = vcmask 64512
        %v846 = vsel %vm845, %v833, 0
        %v848 = vsel %vm845, %v844, 0
        %850 = vmatprep.subr.mxu0 0.0
        %851 = vmatpush1.xpose.msra.mxu0 0.0
        %852 = vmatprep.subr.mxu0 0.0
        %853 = vmatpush1.xpose.msra.mxu0 0.0
        %854 = vmatprep.subr.mxu0 0.0
        %855 = vmatpush1.xpose.msra.mxu0 0.0
        %856 = vmatprep.subr.mxu0 0.0
        %857 = vmatpush1.xpose.msra.mxu0 0.0
        %858 = vmatprep.subr.mxu0 0.0
        %859 = vmatpush1.xpose.msra.mxu0 0.0
        %860 = vmatprep.subr.mxu0 0.0
        %861 = vmatpush1.xpose.msra.mxu0 0.0
        %862 = vmatprep.subr.mxu0 0.0
        %863 = vmatpush1.xpose.msra.mxu0 0.0
        %864 = vmatprep.subr.mxu0 0.0
        %865 = vmatpush1.xpose.msra.mxu0 0.0
        %866 = vmatprep.subr.mxu0 0.0
        %867 = vmatpush1.xpose.msra.mxu0 0.0
        %868 = vmatprep.subr.mxu0 0.0
        %869 = vmatpush1.xpose.msra.mxu0 0.0
        %870 = vmatprep.subr.mxu0 0.0
        %871 = vmatpush1.xpose.msra.mxu0 0.0
        %872 = vmatprep.subr.mxu0 0.0
        %873 = vmatpush1.xpose.msra.mxu0 0.0
        %874 = vmatprep.subr.mxu0 0.0
        %875 = vmatpush1.xpose.msra.mxu0 0.0
        %876 = vmatprep.subr.mxu0 0.0
        %877 = vmatpush1.xpose.msra.mxu0 0.0
        %878 = vmatprep.subr.mxu0 0.0
        %879 = vmatpush1.xpose.msra.mxu0 0.0
        %880 = vmatprep.subr.mxu0 0.0
        %881 = vmatpush1.xpose.msra.mxu0 %v848
        %882 = vmatprep.subr.mxu0 0.0
        %883 = vmatpush2.xpose.msra.mxu0 0.0
        %884 = vmatprep.subr.mxu0 0.0
        %885 = vmatpush2.xpose.msra.mxu0 0.0
        %886 = vmatprep.subr.mxu0 0.0
        %887 = vmatpush2.xpose.msra.mxu0 0.0
        %888 = vmatprep.subr.mxu0 0.0
        %889 = vmatpush2.xpose.msra.mxu0 0.0
        %890 = vmatprep.subr.mxu0 0.0
        %891 = vmatpush2.xpose.msra.mxu0 0.0
        %892 = vmatprep.subr.mxu0 0.0
        %893 = vmatpush2.xpose.msra.mxu0 0.0
        %894 = vmatprep.subr.mxu0 0.0
        %895 = vmatpush2.xpose.msra.mxu0 0.0
        %896 = vmatprep.subr.mxu0 0.0
        %897 = vmatpush2.xpose.msra.mxu0 0.0
        %898 = vmatprep.subr.mxu0 0.0
        %899 = vmatpush2.xpose.msra.mxu0 0.0
        %900 = vmatprep.subr.mxu0 0.0
        %901 = vmatpush2.xpose.msra.mxu0 0.0
        %902 = vmatprep.subr.mxu0 0.0
        %903 = vmatpush2.xpose.msra.mxu0 0.0
        %904 = vmatprep.subr.mxu0 0.0
        %905 = vmatpush2.xpose.msra.mxu0 0.0
        %906 = vmatprep.subr.mxu0 0.0
        %907 = vmatpush2.xpose.msra.mxu0 0.0
        %908 = vmatprep.subr.mxu0 0.0
        %909 = vmatpush2.xpose.msra.mxu0 0.0
        %910 = vmatprep.subr.mxu0 0.0
        %911 = vmatpush2.xpose.msra.mxu0 0.0
        %912 = vmatprep.subr.mxu0 0.0
        %913 = vmatpush2.xpose.msra.mxu0 0.0
        %914 = vmatprep.mubr.f32.mxu0 0.0
        %915 = vmatmul.mubr.f32.gmra.mxu0 %v846
        %v916 = vpop.f32.mrf.mxu0
        %v917 = vadd.f32 0.0, %v916
        %v918 = vpop.f32.mrf.mxu0
        %919 = vdwg.mxu0
        %920 = vrot.lane.b32.xlu0 %v838, 96
        %v921 = vpop.permute.xlu0 %920
        %v922 = vsel %vm845, %v838, 0
        %v924 = vsel %vm845, %v921, 0
        %926 = vmatprep.subr.mxu0 0.0
        %927 = vmatpush1.xpose.msra.mxu0 0.0
        %928 = vmatprep.subr.mxu0 0.0
        %929 = vmatpush1.xpose.msra.mxu0 0.0
        %930 = vmatprep.subr.mxu0 0.0
        %931 = vmatpush1.xpose.msra.mxu0 0.0
        %932 = vmatprep.subr.mxu0 0.0
        %933 = vmatpush1.xpose.msra.mxu0 0.0
        %934 = vmatprep.subr.mxu0 0.0
        %935 = vmatpush1.xpose.msra.mxu0 0.0
        %936 = vmatprep.subr.mxu0 0.0
        %937 = vmatpush1.xpose.msra.mxu0 0.0
        %938 = vmatprep.subr.mxu0 0.0
        %939 = vmatpush1.xpose.msra.mxu0 0.0
        %940 = vmatprep.subr.mxu0 0.0
        %941 = vmatpush1.xpose.msra.mxu0 0.0
        %942 = vmatprep.subr.mxu0 0.0
        %943 = vmatpush1.xpose.msra.mxu0 0.0
        %944 = vmatprep.subr.mxu0 0.0
        %945 = vmatpush1.xpose.msra.mxu0 0.0
        %946 = vmatprep.subr.mxu0 0.0
        %947 = vmatpush1.xpose.msra.mxu0 0.0
        %948 = vmatprep.subr.mxu0 0.0
        %949 = vmatpush1.xpose.msra.mxu0 0.0
        %950 = vmatprep.subr.mxu0 0.0
        %951 = vmatpush1.xpose.msra.mxu0 0.0
        %952 = vmatprep.subr.mxu0 0.0
        %953 = vmatpush1.xpose.msra.mxu0 0.0
        %954 = vmatprep.subr.mxu0 0.0
        %955 = vmatpush1.xpose.msra.mxu0 0.0
        %956 = vmatprep.subr.mxu0 0.0
        %957 = vmatpush1.xpose.msra.mxu0 %v924
        %958 = vmatprep.subr.mxu0 0.0
        %959 = vmatpush2.xpose.msra.mxu0 0.0
        %960 = vmatprep.subr.mxu0 0.0
        %961 = vmatpush2.xpose.msra.mxu0 0.0
        %962 = vmatprep.subr.mxu0 0.0
        %963 = vmatpush2.xpose.msra.mxu0 0.0
        %964 = vmatprep.subr.mxu0 0.0
        %965 = vmatpush2.xpose.msra.mxu0 0.0
        %966 = vmatprep.subr.mxu0 0.0
        %967 = vmatpush2.xpose.msra.mxu0 0.0
        %968 = vmatprep.subr.mxu0 0.0
        %969 = vmatpush2.xpose.msra.mxu0 0.0
        %970 = vmatprep.subr.mxu0 0.0
        %971 = vmatpush2.xpose.msra.mxu0 0.0
        %972 = vmatprep.subr.mxu0 0.0
        %973 = vmatpush2.xpose.msra.mxu0 0.0
        %974 = vmatprep.subr.mxu0 0.0
        %975 = vmatpush2.xpose.msra.mxu0 0.0
        %976 = vmatprep.subr.mxu0 0.0
        %977 = vmatpush2.xpose.msra.mxu0 0.0
        %978 = vmatprep.subr.mxu0 0.0
        %979 = vmatpush2.xpose.msra.mxu0 0.0
        %980 = vmatprep.subr.mxu0 0.0
        %981 = vmatpush2.xpose.msra.mxu0 0.0
        %982 = vmatprep.subr.mxu0 0.0
        %983 = vmatpush2.xpose.msra.mxu0 0.0
        %984 = vmatprep.subr.mxu0 0.0
        %985 = vmatpush2.xpose.msra.mxu0 0.0
        %986 = vmatprep.subr.mxu0 0.0
        %987 = vmatpush2.xpose.msra.mxu0 0.0
        %988 = vmatprep.subr.mxu0 0.0
        %989 = vmatpush2.xpose.msra.mxu0 0.0
        %990 = vmatprep.mubr.f32.mxu0 0.0
        %991 = vmatmul.mubr.f32.gmra.mxu0 %v922
        %v992 = vpop.f32.mrf.mxu0
        %v993 = vadd.f32 0.0, %v992
        %v994 = vpop.f32.mrf.mxu0
        %995 = vdwg.mxu0
        %996 = vrot.lane.b32.xlu0 %v840, 96
        %v997 = vpop.permute.xlu0 %996
        %v998 = vsel %vm845, %v840, 0
        %v1000 = vsel %vm845, %v997, 0
        %1002 = vmatprep.subr.mxu0 0.0
        %1003 = vmatpush1.xpose.msra.mxu0 0.0
        %1004 = vmatprep.subr.mxu0 0.0
        %1005 = vmatpush1.xpose.msra.mxu0 0.0
        %1006 = vmatprep.subr.mxu0 0.0
        %1007 = vmatpush1.xpose.msra.mxu0 0.0
        %1008 = vmatprep.subr.mxu0 0.0
        %1009 = vmatpush1.xpose.msra.mxu0 0.0
        %1010 = vmatprep.subr.mxu0 0.0
        %1011 = vmatpush1.xpose.msra.mxu0 0.0
        %1012 = vmatprep.subr.mxu0 0.0
        %1013 = vmatpush1.xpose.msra.mxu0 0.0
        %1014 = vmatprep.subr.mxu0 0.0
        %1015 = vmatpush1.xpose.msra.mxu0 0.0
        %1016 = vmatprep.subr.mxu0 0.0
        %1017 = vmatpush1.xpose.msra.mxu0 0.0
        %1018 = vmatprep.subr.mxu0 0.0
        %1019 = vmatpush1.xpose.msra.mxu0 0.0
        %1020 = vmatprep.subr.mxu0 0.0
        %1021 = vmatpush1.xpose.msra.mxu0 0.0
        %1022 = vmatprep.subr.mxu0 0.0
        %1023 = vmatpush1.xpose.msra.mxu0 0.0
        %1024 = vmatprep.subr.mxu0 0.0
        %1025 = vmatpush1.xpose.msra.mxu0 0.0
        %1026 = vmatprep.subr.mxu0 0.0
        %1027 = vmatpush1.xpose.msra.mxu0 0.0
        %1028 = vmatprep.subr.mxu0 0.0
        %1029 = vmatpush1.xpose.msra.mxu0 0.0
        %1030 = vmatprep.subr.mxu0 0.0
        %1031 = vmatpush1.xpose.msra.mxu0 0.0
        %1032 = vmatprep.subr.mxu0 0.0
        %1033 = vmatpush1.xpose.msra.mxu0 %v1000
        %1034 = vmatprep.subr.mxu0 0.0
        %1035 = vmatpush2.xpose.msra.mxu0 0.0
        %1036 = vmatprep.subr.mxu0 0.0
        %1037 = vmatpush2.xpose.msra.mxu0 0.0
        %1038 = vmatprep.subr.mxu0 0.0
        %1039 = vmatpush2.xpose.msra.mxu0 0.0
        %1040 = vmatprep.subr.mxu0 0.0
        %1041 = vmatpush2.xpose.msra.mxu0 0.0
        %1042 = vmatprep.subr.mxu0 0.0
        %1043 = vmatpush2.xpose.msra.mxu0 0.0
        %1044 = vmatprep.subr.mxu0 0.0
        %1045 = vmatpush2.xpose.msra.mxu0 0.0
        %1046 = vmatprep.subr.mxu0 0.0
        %1047 = vmatpush2.xpose.msra.mxu0 0.0
        %1048 = vmatprep.subr.mxu0 0.0
        %1049 = vmatpush2.xpose.msra.mxu0 0.0
        %1050 = vmatprep.subr.mxu0 0.0
        %1051 = vmatpush2.xpose.msra.mxu0 0.0
        %1052 = vmatprep.subr.mxu0 0.0
        %1053 = vmatpush2.xpose.msra.mxu0 0.0
        %1054 = vmatprep.subr.mxu0 0.0
        %1055 = vmatpush2.xpose.msra.mxu0 0.0
        %1056 = vmatprep.subr.mxu0 0.0
        %1057 = vmatpush2.xpose.msra.mxu0 0.0
        %1058 = vmatprep.subr.mxu0 0.0
        %1059 = vmatpush2.xpose.msra.mxu0 0.0
        %1060 = vmatprep.subr.mxu0 0.0
        %1061 = vmatpush2.xpose.msra.mxu0 0.0
        %1062 = vmatprep.subr.mxu0 0.0
        %1063 = vmatpush2.xpose.msra.mxu0 0.0
        %1064 = vmatprep.subr.mxu0 0.0
        %1065 = vmatpush2.xpose.msra.mxu0 0.0
        %1066 = vmatprep.mubr.f32.mxu0 0.0
        %1067 = vmatmul.mubr.f32.gmra.mxu0 %v998
        %v1068 = vpop.f32.mrf.mxu0
        %v1069 = vadd.f32 0.0, %v1068
        %v1070 = vpop.f32.mrf.mxu0
        %1071 = vdwg.mxu0
        %1072 = vrot.lane.b32.xlu0 %v842, 96
        %v1073 = vpop.permute.xlu0 %1072
        %v1074 = vsel %vm845, %v842, 0
        %v1076 = vsel %vm845, %v1073, 0
        %1078 = vmatprep.subr.mxu0 0.0
        %1079 = vmatpush1.xpose.msra.mxu0 0.0
        %1080 = vmatprep.subr.mxu0 0.0
        %1081 = vmatpush1.xpose.msra.mxu0 0.0
        %1082 = vmatprep.subr.mxu0 0.0
        %1083 = vmatpush1.xpose.msra.mxu0 0.0
        %1084 = vmatprep.subr.mxu0 0.0
        %1085 = vmatpush1.xpose.msra.mxu0 0.0
        %1086 = vmatprep.subr.mxu0 0.0
        %1087 = vmatpush1.xpose.msra.mxu0 0.0
        %1088 = vmatprep.subr.mxu0 0.0
        %1089 = vmatpush1.xpose.msra.mxu0 0.0
        %1090 = vmatprep.subr.mxu0 0.0
        %1091 = vmatpush1.xpose.msra.mxu0 0.0
        %1092 = vmatprep.subr.mxu0 0.0
        %1093 = vmatpush1.xpose.msra.mxu0 0.0
        %1094 = vmatprep.subr.mxu0 0.0
        %1095 = vmatpush1.xpose.msra.mxu0 0.0
        %1096 = vmatprep.subr.mxu0 0.0
        %1097 = vmatpush1.xpose.msra.mxu0 0.0
        %1098 = vmatprep.subr.mxu0 0.0
        %1099 = vmatpush1.xpose.msra.mxu0 0.0
        %1100 = vmatprep.subr.mxu0 0.0
        %1101 = vmatpush1.xpose.msra.mxu0 0.0
        %1102 = vmatprep.subr.mxu0 0.0
        %1103 = vmatpush1.xpose.msra.mxu0 0.0
        %1104 = vmatprep.subr.mxu0 0.0
        %1105 = vmatpush1.xpose.msra.mxu0 0.0
        %1106 = vmatprep.subr.mxu0 0.0
        %1107 = vmatpush1.xpose.msra.mxu0 0.0
        %1108 = vmatprep.subr.mxu0 0.0
        %1109 = vmatpush1.xpose.msra.mxu0 %v1076
        %1110 = vmatprep.subr.mxu0 0.0
        %1111 = vmatpush2.xpose.msra.mxu0 0.0
        %1112 = vmatprep.subr.mxu0 0.0
        %1113 = vmatpush2.xpose.msra.mxu0 0.0
        %1114 = vmatprep.subr.mxu0 0.0
        %1115 = vmatpush2.xpose.msra.mxu0 0.0
        %1116 = vmatprep.subr.mxu0 0.0
        %1117 = vmatpush2.xpose.msra.mxu0 0.0
        %1118 = vmatprep.subr.mxu0 0.0
        %1119 = vmatpush2.xpose.msra.mxu0 0.0
        %1120 = vmatprep.subr.mxu0 0.0
        %1121 = vmatpush2.xpose.msra.mxu0 0.0
        %1122 = vmatprep.subr.mxu0 0.0
        %1123 = vmatpush2.xpose.msra.mxu0 0.0
        %1124 = vmatprep.subr.mxu0 0.0
        %1125 = vmatpush2.xpose.msra.mxu0 0.0
        %1126 = vmatprep.subr.mxu0 0.0
        %1127 = vmatpush2.xpose.msra.mxu0 0.0
        %1128 = vmatprep.subr.mxu0 0.0
        %1129 = vmatpush2.xpose.msra.mxu0 0.0
        %1130 = vmatprep.subr.mxu0 0.0
        %1131 = vmatpush2.xpose.msra.mxu0 0.0
        %1132 = vmatprep.subr.mxu0 0.0
        %1133 = vmatpush2.xpose.msra.mxu0 0.0
        %1134 = vmatprep.subr.mxu0 0.0
        %1135 = vmatpush2.xpose.msra.mxu0 0.0
        %1136 = vmatprep.subr.mxu0 0.0
        %1137 = vmatpush2.xpose.msra.mxu0 0.0
        %1138 = vmatprep.subr.mxu0 0.0
        %1139 = vmatpush2.xpose.msra.mxu0 0.0
        %1140 = vmatprep.subr.mxu0 0.0
        %1141 = vmatpush2.xpose.msra.mxu0 0.0
        %1142 = vmatprep.mubr.f32.mxu0 0.0
        %1143 = vmatmul.mubr.f32.gmra.mxu0 %v1074
        %v1144 = vpop.f32.mrf.mxu0
        %v1145 = vadd.f32 0.0, %v1144
        %v1146 = vpop.f32.mrf.mxu0
        %1147 = vdwg.mxu0
        %v1148 = vsel %vm845, %v917, -inf
        %1149 = vmax.xlane.f32.xlu0 %v1148
        %v1150 = vpop.xlane.xlu0 %1149
        %v1151 = vsel %vm845, %v993, -inf
        %1152 = vmax.xlane.f32.xlu0 %v1151
        %v1153 = vpop.xlane.xlu0 %1152
        %v1154 = vsel %vm845, %v1069, -inf
        %1155 = vmax.xlane.f32.xlu0 %v1154
        %v1156 = vpop.xlane.xlu0 %1155
        %v1157 = vsel %vm845, %v1145, -inf
        %1158 = vmax.xlane.f32.xlu0 %v1157
        %v1159 = vpop.xlane.xlu0 %1158
        %v1160 = vsub.f32 %v917, %v1150
        %v1161 = vsub.f32 %v993, %v1153
        %v1162 = vsub.f32 %v1069, %v1156
        %v1163 = vsub.f32 %v1145, %v1159
        %v1164 = vmul.f32 %v1160, 1.442695
        %v1165 = vpow.pop %v1164
        %v1166 = vmul.f32 %v1161, 1.442695
        %v1167 = vpow.pop %v1166
        %v1168 = vmul.f32 %v1162, 1.442695
        %v1169 = vpow.pop %v1168
        %v1170 = vmul.f32 %v1163, 1.442695
        %v1171 = vpow.pop %v1170
        %v1172 = vsel %vm845, %v1165, 0.0
        %1173 = vadd.xlane.f32.xlu0 %v1172
        %v1174 = vpop.xlane.xlu0 %1173
        %v1175 = vsel %vm845, %v1167, 0.0
        %1176 = vadd.xlane.f32.xlu0 %v1175
        %v1177 = vpop.xlane.xlu0 %1176
        %v1178 = vsel %vm845, %v1169, 0.0
        %1179 = vadd.xlane.f32.xlu0 %v1178
        %v1180 = vpop.xlane.xlu0 %1179
        %v1181 = vsel %vm845, %v1171, 0.0
        %1182 = vadd.xlane.f32.xlu0 %v1181
        %v1183 = vpop.xlane.xlu0 %1182
        %v1184 = vrcp.pop %v1174
        %v1185 = vmul.f32 %v1165, %v1184
        %v1186 = vrcp.pop %v1177
        %v1187 = vmul.f32 %v1167, %v1186
        %v1188 = vrcp.pop %v1180
        %v1189 = vmul.f32 %v1169, %v1188
        %v1190 = vrcp.pop %v1183
        %v1191 = vmul.f32 %v1171, %v1190
        %1192 = vrot.lane.b32.xlu0 %v833, 64
        %v1193 = vpop.permute.xlu0 %1192
        %v1196 = vsel %vm845, %v1185, 0
        %1198 = vmatprep.subr.mxu0 0.0
        %1199 = vmatpush1.msra.mxu0 0.0
        %1200 = vmatprep.subr.mxu0 0.0
        %1201 = vmatpush1.msra.mxu0 0.0
        %1202 = vmatprep.subr.mxu0 0.0
        %1203 = vmatpush1.msra.mxu0 0.0
        %1204 = vmatprep.subr.mxu0 0.0
        %1205 = vmatpush1.msra.mxu0 0.0
        %1206 = vmatprep.subr.mxu0 0.0
        %1207 = vmatpush1.msra.mxu0 0.0
        %1208 = vmatprep.subr.mxu0 0.0
        %1209 = vmatpush1.msra.mxu0 0.0
        %1210 = vmatprep.subr.mxu0 0.0
        %1211 = vmatpush1.msra.mxu0 0.0
        %1212 = vmatprep.subr.mxu0 0.0
        %1213 = vmatpush1.msra.mxu0 0.0
        %1214 = vmatprep.subr.mxu0 0.0
        %1215 = vmatpush1.msra.mxu0 0.0
        %1216 = vmatprep.subr.mxu0 0.0
        %1217 = vmatpush1.msra.mxu0 0.0
        %1218 = vmatprep.subr.mxu0 0.0
        %1219 = vmatpush1.msra.mxu0 0.0
        %1220 = vmatprep.subr.mxu0 0.0
        %1221 = vmatpush1.msra.mxu0 0.0
        %1222 = vmatprep.subr.mxu0 0.0
        %1223 = vmatpush1.msra.mxu0 0.0
        %1224 = vmatprep.subr.mxu0 0.0
        %1225 = vmatpush1.msra.mxu0 0.0
        %1226 = vmatprep.subr.mxu0 0.0
        %1227 = vmatpush1.msra.mxu0 0.0
        %1228 = vmatprep.subr.mxu0 0.0
        %1229 = vmatpush1.msra.mxu0 %v1193
        %1230 = vmatprep.subr.mxu0 0.0
        %1231 = vmatpush2.msra.mxu0 0.0
        %1232 = vmatprep.subr.mxu0 0.0
        %1233 = vmatpush2.msra.mxu0 0.0
        %1234 = vmatprep.subr.mxu0 0.0
        %1235 = vmatpush2.msra.mxu0 0.0
        %1236 = vmatprep.subr.mxu0 0.0
        %1237 = vmatpush2.msra.mxu0 0.0
        %1238 = vmatprep.subr.mxu0 0.0
        %1239 = vmatpush2.msra.mxu0 0.0
        %1240 = vmatprep.subr.mxu0 0.0
        %1241 = vmatpush2.msra.mxu0 0.0
        %1242 = vmatprep.subr.mxu0 0.0
        %1243 = vmatpush2.msra.mxu0 0.0
        %1244 = vmatprep.subr.mxu0 0.0
        %1245 = vmatpush2.msra.mxu0 0.0
        %1246 = vmatprep.subr.mxu0 0.0
        %1247 = vmatpush2.msra.mxu0 0.0
        %1248 = vmatprep.subr.mxu0 0.0
        %1249 = vmatpush2.msra.mxu0 0.0
        %1250 = vmatprep.subr.mxu0 0.0
        %1251 = vmatpush2.msra.mxu0 0.0
        %1252 = vmatprep.subr.mxu0 0.0
        %1253 = vmatpush2.msra.mxu0 0.0
        %1254 = vmatprep.subr.mxu0 0.0
        %1255 = vmatpush2.msra.mxu0 0.0
        %1256 = vmatprep.subr.mxu0 0.0
        %1257 = vmatpush2.msra.mxu0 0.0
        %1258 = vmatprep.subr.mxu0 0.0
        %1259 = vmatpush2.msra.mxu0 0.0
        %1260 = vmatprep.subr.mxu0 0.0
        %1261 = vmatpush2.msra.mxu0 0.0
        %1262 = vmatprep.mubr.f32.mxu0 0.0
        %1263 = vmatmul.mubr.f32.gmra.mxu0 %v1196
        %v1264 = vpop.f32.mrf.mxu0
        %v1265 = vadd.f32 0.0, %v1264
        %v1266 = vpop.f32.mrf.mxu0
        %1267 = vdwg.mxu0
        %1268 = vrot.lane.b32.xlu0 %v838, 64
        %v1269 = vpop.permute.xlu0 %1268
        %v1272 = vsel %vm845, %v1187, 0
        %1274 = vmatprep.subr.mxu0 0.0
        %1275 = vmatpush1.msra.mxu0 0.0
        %1276 = vmatprep.subr.mxu0 0.0
        %1277 = vmatpush1.msra.mxu0 0.0
        %1278 = vmatprep.subr.mxu0 0.0
        %1279 = vmatpush1.msra.mxu0 0.0
        %1280 = vmatprep.subr.mxu0 0.0
        %1281 = vmatpush1.msra.mxu0 0.0
        %1282 = vmatprep.subr.mxu0 0.0
        %1283 = vmatpush1.msra.mxu0 0.0
        %1284 = vmatprep.subr.mxu0 0.0
        %1285 = vmatpush1.msra.mxu0 0.0
        %1286 = vmatprep.subr.mxu0 0.0
        %1287 = vmatpush1.msra.mxu0 0.0
        %1288 = vmatprep.subr.mxu0 0.0
        %1289 = vmatpush1.msra.mxu0 0.0
        %1290 = vmatprep.subr.mxu0 0.0
        %1291 = vmatpush1.msra.mxu0 0.0
        %1292 = vmatprep.subr.mxu0 0.0
        %1293 = vmatpush1.msra.mxu0 0.0
        %1294 = vmatprep.subr.mxu0 0.0
        %1295 = vmatpush1.msra.mxu0 0.0
        %1296 = vmatprep.subr.mxu0 0.0
        %1297 = vmatpush1.msra.mxu0 0.0
        %1298 = vmatprep.subr.mxu0 0.0
        %1299 = vmatpush1.msra.mxu0 0.0
        %1300 = vmatprep.subr.mxu0 0.0
        %1301 = vmatpush1.msra.mxu0 0.0
        %1302 = vmatprep.subr.mxu0 0.0
        %1303 = vmatpush1.msra.mxu0 0.0
        %1304 = vmatprep.subr.mxu0 0.0
        %1305 = vmatpush1.msra.mxu0 %v1269
        %1306 = vmatprep.subr.mxu0 0.0
        %1307 = vmatpush2.msra.mxu0 0.0
        %1308 = vmatprep.subr.mxu0 0.0
        %1309 = vmatpush2.msra.mxu0 0.0
        %1310 = vmatprep.subr.mxu0 0.0
        %1311 = vmatpush2.msra.mxu0 0.0
        %1312 = vmatprep.subr.mxu0 0.0
        %1313 = vmatpush2.msra.mxu0 0.0
        %1314 = vmatprep.subr.mxu0 0.0
        %1315 = vmatpush2.msra.mxu0 0.0
        %1316 = vmatprep.subr.mxu0 0.0
        %1317 = vmatpush2.msra.mxu0 0.0
        %1318 = vmatprep.subr.mxu0 0.0
        %1319 = vmatpush2.msra.mxu0 0.0
        %1320 = vmatprep.subr.mxu0 0.0
        %1321 = vmatpush2.msra.mxu0 0.0
        %1322 = vmatprep.subr.mxu0 0.0
        %1323 = vmatpush2.msra.mxu0 0.0
        %1324 = vmatprep.subr.mxu0 0.0
        %1325 = vmatpush2.msra.mxu0 0.0
        %1326 = vmatprep.subr.mxu0 0.0
        %1327 = vmatpush2.msra.mxu0 0.0
        %1328 = vmatprep.subr.mxu0 0.0
        %1329 = vmatpush2.msra.mxu0 0.0
        %1330 = vmatprep.subr.mxu0 0.0
        %1331 = vmatpush2.msra.mxu0 0.0
        %1332 = vmatprep.subr.mxu0 0.0
        %1333 = vmatpush2.msra.mxu0 0.0
        %1334 = vmatprep.subr.mxu0 0.0
        %1335 = vmatpush2.msra.mxu0 0.0
        %1336 = vmatprep.subr.mxu0 0.0
        %1337 = vmatpush2.msra.mxu0 0.0
        %1338 = vmatprep.mubr.f32.mxu0 0.0
        %1339 = vmatmul.mubr.f32.gmra.mxu0 %v1272
        %v1340 = vpop.f32.mrf.mxu0
        %v1341 = vadd.f32 0.0, %v1340
        %v1342 = vpop.f32.mrf.mxu0
        %1343 = vdwg.mxu0
        %1344 = vrot.lane.b32.xlu0 %v840, 64
        %v1345 = vpop.permute.xlu0 %1344
        %v1348 = vsel %vm845, %v1189, 0
        %1350 = vmatprep.subr.mxu0 0.0
        %1351 = vmatpush1.msra.mxu0 0.0
        %1352 = vmatprep.subr.mxu0 0.0
        %1353 = vmatpush1.msra.mxu0 0.0
        %1354 = vmatprep.subr.mxu0 0.0
        %1355 = vmatpush1.msra.mxu0 0.0
        %1356 = vmatprep.subr.mxu0 0.0
        %1357 = vmatpush1.msra.mxu0 0.0
        %1358 = vmatprep.subr.mxu0 0.0
        %1359 = vmatpush1.msra.mxu0 0.0
        %1360 = vmatprep.subr.mxu0 0.0
        %1361 = vmatpush1.msra.mxu0 0.0
        %1362 = vmatprep.subr.mxu0 0.0
        %1363 = vmatpush1.msra.mxu0 0.0
        %1364 = vmatprep.subr.mxu0 0.0
        %1365 = vmatpush1.msra.mxu0 0.0
        %1366 = vmatprep.subr.mxu0 0.0
        %1367 = vmatpush1.msra.mxu0 0.0
        %1368 = vmatprep.subr.mxu0 0.0
        %1369 = vmatpush1.msra.mxu0 0.0
        %1370 = vmatprep.subr.mxu0 0.0
        %1371 = vmatpush1.msra.mxu0 0.0
        %1372 = vmatprep.subr.mxu0 0.0
        %1373 = vmatpush1.msra.mxu0 0.0
        %1374 = vmatprep.subr.mxu0 0.0
        %1375 = vmatpush1.msra.mxu0 0.0
        %1376 = vmatprep.subr.mxu0 0.0
        %1377 = vmatpush1.msra.mxu0 0.0
        %1378 = vmatprep.subr.mxu0 0.0
        %1379 = vmatpush1.msra.mxu0 0.0
        %1380 = vmatprep.subr.mxu0 0.0
        %1381 = vmatpush1.msra.mxu0 %v1345
        %1382 = vmatprep.subr.mxu0 0.0
        %1383 = vmatpush2.msra.mxu0 0.0
        %1384 = vmatprep.subr.mxu0 0.0
        %1385 = vmatpush2.msra.mxu0 0.0
        %1386 = vmatprep.subr.mxu0 0.0
        %1387 = vmatpush2.msra.mxu0 0.0
        %1388 = vmatprep.subr.mxu0 0.0
        %1389 = vmatpush2.msra.mxu0 0.0
        %1390 = vmatprep.subr.mxu0 0.0
        %1391 = vmatpush2.msra.mxu0 0.0
        %1392 = vmatprep.subr.mxu0 0.0
        %1393 = vmatpush2.msra.mxu0 0.0
        %1394 = vmatprep.subr.mxu0 0.0
        %1395 = vmatpush2.msra.mxu0 0.0
        %1396 = vmatprep.subr.mxu0 0.0
        %1397 = vmatpush2.msra.mxu0 0.0
        %1398 = vmatprep.subr.mxu0 0.0
        %1399 = vmatpush2.msra.mxu0 0.0
        %1400 = vmatprep.subr.mxu0 0.0
        %1401 = vmatpush2.msra.mxu0 0.0
        %1402 = vmatprep.subr.mxu0 0.0
        %1403 = vmatpush2.msra.mxu0 0.0
        %1404 = vmatprep.subr.mxu0 0.0
        %1405 = vmatpush2.msra.mxu0 0.0
        %1406 = vmatprep.subr.mxu0 0.0
        %1407 = vmatpush2.msra.mxu0 0.0
        %1408 = vmatprep.subr.mxu0 0.0
        %1409 = vmatpush2.msra.mxu0 0.0
        %1410 = vmatprep.subr.mxu0 0.0
        %1411 = vmatpush2.msra.mxu0 0.0
        %1412 = vmatprep.subr.mxu0 0.0
        %1413 = vmatpush2.msra.mxu0 0.0
        %1414 = vmatprep.mubr.f32.mxu0 0.0
        %1415 = vmatmul.mubr.f32.gmra.mxu0 %v1348
        %v1416 = vpop.f32.mrf.mxu0
        %v1417 = vadd.f32 0.0, %v1416
        %v1418 = vpop.f32.mrf.mxu0
        %1419 = vdwg.mxu0
        %1420 = vrot.lane.b32.xlu0 %v842, 64
        %v1421 = vpop.permute.xlu0 %1420
        %v1424 = vsel %vm845, %v1191, 0
        %1426 = vmatprep.subr.mxu0 0.0
        %1427 = vmatpush1.msra.mxu0 0.0
        %1428 = vmatprep.subr.mxu0 0.0
        %1429 = vmatpush1.msra.mxu0 0.0
        %1430 = vmatprep.subr.mxu0 0.0
        %1431 = vmatpush1.msra.mxu0 0.0
        %1432 = vmatprep.subr.mxu0 0.0
        %1433 = vmatpush1.msra.mxu0 0.0
        %1434 = vmatprep.subr.mxu0 0.0
        %1435 = vmatpush1.msra.mxu0 0.0
        %1436 = vmatprep.subr.mxu0 0.0
        %1437 = vmatpush1.msra.mxu0 0.0
        %1438 = vmatprep.subr.mxu0 0.0
        %1439 = vmatpush1.msra.mxu0 0.0
        %1440 = vmatprep.subr.mxu0 0.0
        %1441 = vmatpush1.msra.mxu0 0.0
        %1442 = vmatprep.subr.mxu0 0.0
        %1443 = vmatpush1.msra.mxu0 0.0
        %1444 = vmatprep.subr.mxu0 0.0
        %1445 = vmatpush1.msra.mxu0 0.0
        %1446 = vmatprep.subr.mxu0 0.0
        %1447 = vmatpush1.msra.mxu0 0.0
        %1448 = vmatprep.subr.mxu0 0.0
        %1449 = vmatpush1.msra.mxu0 0.0
        %1450 = vmatprep.subr.mxu0 0.0
        %1451 = vmatpush1.msra.mxu0 0.0
        %1452 = vmatprep.subr.mxu0 0.0
        %1453 = vmatpush1.msra.mxu0 0.0
        %1454 = vmatprep.subr.mxu0 0.0
        %1455 = vmatpush1.msra.mxu0 0.0
        %1456 = vmatprep.subr.mxu0 0.0
        %1457 = vmatpush1.msra.mxu0 %v1421
        %1458 = vmatprep.subr.mxu0 0.0
        %1459 = vmatpush2.msra.mxu0 0.0
        %1460 = vmatprep.subr.mxu0 0.0
        %1461 = vmatpush2.msra.mxu0 0.0
        %1462 = vmatprep.subr.mxu0 0.0
        %1463 = vmatpush2.msra.mxu0 0.0
        %1464 = vmatprep.subr.mxu0 0.0
        %1465 = vmatpush2.msra.mxu0 0.0
        %1466 = vmatprep.subr.mxu0 0.0
        %1467 = vmatpush2.msra.mxu0 0.0
        %1468 = vmatprep.subr.mxu0 0.0
        %1469 = vmatpush2.msra.mxu0 0.0
        %1470 = vmatprep.subr.mxu0 0.0
        %1471 = vmatpush2.msra.mxu0 0.0
        %1472 = vmatprep.subr.mxu0 0.0
        %1473 = vmatpush2.msra.mxu0 0.0
        %1474 = vmatprep.subr.mxu0 0.0
        %1475 = vmatpush2.msra.mxu0 0.0
        %1476 = vmatprep.subr.mxu0 0.0
        %1477 = vmatpush2.msra.mxu0 0.0
        %1478 = vmatprep.subr.mxu0 0.0
        %1479 = vmatpush2.msra.mxu0 0.0
        %1480 = vmatprep.subr.mxu0 0.0
        %1481 = vmatpush2.msra.mxu0 0.0
        %1482 = vmatprep.subr.mxu0 0.0
        %1483 = vmatpush2.msra.mxu0 0.0
        %1484 = vmatprep.subr.mxu0 0.0
        %1485 = vmatpush2.msra.mxu0 0.0
        %1486 = vmatprep.subr.mxu0 0.0
        %1487 = vmatpush2.msra.mxu0 0.0
        %1488 = vmatprep.subr.mxu0 0.0
        %1489 = vmatpush2.msra.mxu0 0.0
        %1490 = vmatprep.mubr.f32.mxu0 0.0
        %1491 = vmatmul.mubr.f32.gmra.mxu0 %v1424
        %v1492 = vpop.f32.mrf.mxu0
        %v1493 = vadd.f32 0.0, %v1492
        %v1494 = vpop.f32.mrf.mxu0
        %1495 = vdwg.mxu0
        %1497 = vrot.lane.b32.xlu0 %v1341, 8
        %v1498 = vpop.permute.xlu0 %1497
        %1501 = vrot.lane.b32.xlu0 %v1417, 16
        %v1502 = vpop.permute.xlu0 %1501
        %1505 = vrot.lane.b32.xlu0 %v1493, 24
        %v1506 = vpop.permute.xlu0 %1505
        %v1508 = vsel %vm845, %v1265, %v1498
        %vm1509 = vcmask 130048
        %v1510 = vsel %vm1509, %v1508, %v1502
        %vm1511 = vcmask 195584
        %v1512 = vsel %vm1511, %v1510, %v1506
        %v1513 = vld [vmem:[%s4] sm:$0xff]
        %v1514 = vld [vmem:[%s4 + $0x8] sm:$0xff]
        %v1515 = vld [vmem:[%s4 + $0x10] sm:$0xff]
        %v1516 = vld [vmem:[%s4 + $0x18] sm:$0xff]
        %v1517 = vld [vmem:[%s5] sm:$0x1]
        %v1519 = vlaneseq
        %v1520 = vshrl.u32 %v1519, 7
        %v1521 = vsub.s32 0, %v1520
        %v1522 = vrot.slane %v1517, %v1521
        %v1525 = vsel %vm762, %v1512, 0
        %1527 = vmatprep.subr.mxu0 0.0
        %1528 = vmatpush1.msra.mxu0 0.0
        %1529 = vmatprep.subr.mxu0 0.0
        %1530 = vmatpush1.msra.mxu0 0.0
        %1531 = vmatprep.subr.mxu0 0.0
        %1532 = vmatpush1.msra.mxu0 0.0
        %1533 = vmatprep.subr.mxu0 0.0
        %1534 = vmatpush1.msra.mxu0 0.0
        %1535 = vmatprep.subr.mxu0 0.0
        %1536 = vmatpush1.msra.mxu0 0.0
        %1537 = vmatprep.subr.mxu0 0.0
        %1538 = vmatpush1.msra.mxu0 0.0
        %1539 = vmatprep.subr.mxu0 0.0
        %1540 = vmatpush1.msra.mxu0 0.0
        %1541 = vmatprep.subr.mxu0 0.0
        %1542 = vmatpush1.msra.mxu0 0.0
        %1543 = vmatprep.subr.mxu0 0.0
        %1544 = vmatpush1.msra.mxu0 0.0
        %1545 = vmatprep.subr.mxu0 0.0
        %1546 = vmatpush1.msra.mxu0 0.0
        %1547 = vmatprep.subr.mxu0 0.0
        %1548 = vmatpush1.msra.mxu0 0.0
        %1549 = vmatprep.subr.mxu0 0.0
        %1550 = vmatpush1.msra.mxu0 0.0
        %1551 = vmatprep.subr.mxu0 0.0
        %1552 = vmatpush1.msra.mxu0 %v1516
        %1553 = vmatprep.subr.mxu0 0.0
        %1554 = vmatpush1.msra.mxu0 %v1515
        %1555 = vmatprep.subr.mxu0 0.0
        %1556 = vmatpush1.msra.mxu0 %v1514
        %1557 = vmatprep.subr.mxu0 0.0
        %1558 = vmatpush1.msra.mxu0 %v1513
        %1559 = vmatprep.subr.mxu0 0.0
        %1560 = vmatpush2.msra.mxu0 0.0
        %1561 = vmatprep.subr.mxu0 0.0
        %1562 = vmatpush2.msra.mxu0 0.0
        %1563 = vmatprep.subr.mxu0 0.0
        %1564 = vmatpush2.msra.mxu0 0.0
        %1565 = vmatprep.subr.mxu0 0.0
        %1566 = vmatpush2.msra.mxu0 0.0
        %1567 = vmatprep.subr.mxu0 0.0
        %1568 = vmatpush2.msra.mxu0 0.0
        %1569 = vmatprep.subr.mxu0 0.0
        %1570 = vmatpush2.msra.mxu0 0.0
        %1571 = vmatprep.subr.mxu0 0.0
        %1572 = vmatpush2.msra.mxu0 0.0
        %1573 = vmatprep.subr.mxu0 0.0
        %1574 = vmatpush2.msra.mxu0 0.0
        %1575 = vmatprep.subr.mxu0 0.0
        %1576 = vmatpush2.msra.mxu0 0.0
        %1577 = vmatprep.subr.mxu0 0.0
        %1578 = vmatpush2.msra.mxu0 0.0
        %1579 = vmatprep.subr.mxu0 0.0
        %1580 = vmatpush2.msra.mxu0 0.0
        %1581 = vmatprep.subr.mxu0 0.0
        %1582 = vmatpush2.msra.mxu0 0.0
        %1583 = vmatprep.subr.mxu0 0.0
        %1584 = vmatpush2.msra.mxu0 0.0
        %1585 = vmatprep.subr.mxu0 0.0
        %1586 = vmatpush2.msra.mxu0 0.0
        %1587 = vmatprep.subr.mxu0 0.0
        %1588 = vmatpush2.msra.mxu0 0.0
        %1589 = vmatprep.subr.mxu0 0.0
        %1590 = vmatpush2.msra.mxu0 0.0
        %1591 = vmatprep.mubr.f32.mxu0 0.0
        %1592 = vmatmul.mubr.f32.gmra.mxu0 %v1525
        %v1593 = vpop.f32.mrf.mxu0
        %v1594 = vadd.f32 %v1522, %v1593
        %v1595 = vpop.f32.mrf.mxu0
        %1596 = vdwg.mxu0
        %v1597 = vadd.f32 %v748, %v1594
        %v1598 = vld [vmem:[%s16] sm:$0x1]
        %v1599 = vld [vmem:[%s17] sm:$0x1]
        %v1600 = vsel %vm762, %v1597, 0.0
        %1601 = vadd.xlane.f32.xlu0 %v1600
        %v1602 = vpop.xlane.xlu0 %1601
        %v1603 = vrcp.pop 32.0
        %v1604 = vmul.f32 %v1602, %v1603
        %v1605 = vsub.f32 %v1597, %v1604
        %v1606 = vmul.f32 %v1605, %v1605
        %v1607 = vsel %vm762, %v1606, 0.0
        %1608 = vadd.xlane.f32.xlu0 %v1607
        %v1609 = vpop.xlane.xlu0 %1608
        %v1610 = vmul.f32 %v1609, %v1603
        %v1611 = vadd.f32 %v1610, 1e-05
        %v1612 = vrsqrt.pop %v1611
        %v1613 = vmul.f32 %v1605, %v1612
        %v1615 = vlaneseq
        %v1616 = vshrl.u32 %v1615, 7
        %v1617 = vsub.s32 0, %v1616
        %v1618 = vrot.slane %v1598, %v1617
        %v1620 = vmul.f32 %v1613, %v1618
        %v1622 = vlaneseq
        %v1623 = vshrl.u32 %v1622, 7
        %v1624 = vsub.s32 0, %v1623
        %v1625 = vrot.slane %v1599, %v1624
        %v1627 = vadd.f32 %v1620, %v1625
        %v1628 = vld [vmem:[%s6] sm:$0xff]
        %v1629 = vld [vmem:[%s6 + $0x8] sm:$0xff]
        %v1630 = vld [vmem:[%s6 + $0x10] sm:$0xff]
        %v1631 = vld [vmem:[%s6 + $0x18] sm:$0xff]
        %v1632 = vld [vmem:[%s7] sm:$0x1]
        %v1634 = vlaneseq
        %v1635 = vshrl.u32 %v1634, 7
        %v1636 = vsub.s32 0, %v1635
        %v1637 = vrot.slane %v1632, %v1636
        %v1640 = vsel %vm762, %v1627, 0
        %1642 = vmatprep.subr.mxu0 0.0
        %1643 = vmatpush1.msra.mxu0 0.0
        %1644 = vmatprep.subr.mxu0 0.0
        %1645 = vmatpush1.msra.mxu0 0.0
        %1646 = vmatprep.subr.mxu0 0.0
        %1647 = vmatpush1.msra.mxu0 0.0
        %1648 = vmatprep.subr.mxu0 0.0
        %1649 = vmatpush1.msra.mxu0 0.0
        %1650 = vmatprep.subr.mxu0 0.0
        %1651 = vmatpush1.msra.mxu0 0.0
        %1652 = vmatprep.subr.mxu0 0.0
        %1653 = vmatpush1.msra.mxu0 0.0
        %1654 = vmatprep.subr.mxu0 0.0
        %1655 = vmatpush1.msra.mxu0 0.0
        %1656 = vmatprep.subr.mxu0 0.0
        %1657 = vmatpush1.msra.mxu0 0.0
        %1658 = vmatprep.subr.mxu0 0.0
        %1659 = vmatpush1.msra.mxu0 0.0
        %1660 = vmatprep.subr.mxu0 0.0
        %1661 = vmatpush1.msra.mxu0 0.0
        %1662 = vmatprep.subr.mxu0 0.0
        %1663 = vmatpush1.msra.mxu0 0.0
        %1664 = vmatprep.subr.mxu0 0.0
        %1665 = vmatpush1.msra.mxu0 0.0
        %1666 = vmatprep.subr.mxu0 0.0
        %1667 = vmatpush1.msra.mxu0 %v1631
        %1668 = vmatprep.subr.mxu0 0.0
        %1669 = vmatpush1.msra.mxu0 %v1630
        %1670 = vmatprep.subr.mxu0 0.0
        %1671 = vmatpush1.msra.mxu0 %v1629
        %1672 = vmatprep.subr.mxu0 0.0
        %1673 = vmatpush1.msra.mxu0 %v1628
        %1674 = vmatprep.subr.mxu0 0.0
        %1675 = vmatpush2.msra.mxu0 0.0
        %1676 = vmatprep.subr.mxu0 0.0
        %1677 = vmatpush2.msra.mxu0 0.0
        %1678 = vmatprep.subr.mxu0 0.0
        %1679 = vmatpush2.msra.mxu0 0.0
        %1680 = vmatprep.subr.mxu0 0.0
        %1681 = vmatpush2.msra.mxu0 0.0
        %1682 = vmatprep.subr.mxu0 0.0
        %1683 = vmatpush2.msra.mxu0 0.0
        %1684 = vmatprep.subr.mxu0 0.0
        %1685 = vmatpush2.msra.mxu0 0.0
        %1686 = vmatprep.subr.mxu0 0.0
        %1687 = vmatpush2.msra.mxu0 0.0
        %1688 = vmatprep.subr.mxu0 0.0
        %1689 = vmatpush2.msra.mxu0 0.0
        %1690 = vmatprep.subr.mxu0 0.0
        %1691 = vmatpush2.msra.mxu0 0.0
        %1692 = vmatprep.subr.mxu0 0.0
        %1693 = vmatpush2.msra.mxu0 0.0
        %1694 = vmatprep.subr.mxu0 0.0
        %1695 = vmatpush2.msra.mxu0 0.0
        %1696 = vmatprep.subr.mxu0 0.0
        %1697 = vmatpush2.msra.mxu0 0.0
        %1698 = vmatprep.subr.mxu0 0.0
        %1699 = vmatpush2.msra.mxu0 0.0
        %1700 = vmatprep.subr.mxu0 0.0
        %1701 = vmatpush2.msra.mxu0 0.0
        %1702 = vmatprep.subr.mxu0 0.0
        %1703 = vmatpush2.msra.mxu0 0.0
        %1704 = vmatprep.subr.mxu0 0.0
        %1705 = vmatpush2.msra.mxu0 0.0
        %1706 = vmatprep.mubr.f32.mxu0 0.0
        %1707 = vmatmul.mubr.f32.gmra.mxu0 %v1640
        %v1708 = vpop.f32.mrf.mxu0
        %v1709 = vadd.f32 %v1637, %v1708
        %v1710 = vpop.f32.mrf.mxu0
        %1711 = vdwg.mxu0
        %v1712 = vld [vmem:[%s8] sm:$0xff]
        %v1713 = vld [vmem:[%s8 + $0x8] sm:$0xff]
        %v1714 = vld [vmem:[%s8 + $0x10] sm:$0xff]
        %v1715 = vld [vmem:[%s8 + $0x18] sm:$0xff]
        %v1716 = vld [vmem:[%s9] sm:$0x1]
        %v1718 = vlaneseq
        %v1719 = vshrl.u32 %v1718, 7
        %v1720 = vsub.s32 0, %v1719
        %v1721 = vrot.slane %v1716, %v1720
        %v1724 = vsel %vm762, %v749, 0
        %v1727 = vsel %vm762, %v750, 0
        %1729 = vmatprep.subr.mxu0 0.0
        %1730 = vmatpush1.msra.mxu0 0.0
        %1731 = vmatprep.subr.mxu0 0.0
        %1732 = vmatpush1.msra.mxu0 0.0
        %1733 = vmatprep.subr.mxu0 0.0
        %1734 = vmatpush1.msra.mxu0 0.0
        %1735 = vmatprep.subr.mxu0 0.0
        %1736 = vmatpush1.msra.mxu0 0.0
        %1737 = vmatprep.subr.mxu0 0.0
        %1738 = vmatpush1.msra.mxu0 0.0
        %1739 = vmatprep.subr.mxu0 0.0
        %1740 = vmatpush1.msra.mxu0 0.0
        %1741 = vmatprep.subr.mxu0 0.0
        %1742 = vmatpush1.msra.mxu0 0.0
        %1743 = vmatprep.subr.mxu0 0.0
        %1744 = vmatpush1.msra.mxu0 0.0
        %1745 = vmatprep.subr.mxu0 0.0
        %1746 = vmatpush1.msra.mxu0 0.0
        %1747 = vmatprep.subr.mxu0 0.0
        %1748 = vmatpush1.msra.mxu0 0.0
        %1749 = vmatprep.subr.mxu0 0.0
        %1750 = vmatpush1.msra.mxu0 0.0
        %1751 = vmatprep.subr.mxu0 0.0
        %1752 = vmatpush1.msra.mxu0 0.0
        %1753 = vmatprep.subr.mxu0 0.0
        %1754 = vmatpush1.msra.mxu0 %v1715
        %1755 = vmatprep.subr.mxu0 0.0
        %1756 = vmatpush1.msra.mxu0 %v1714
        %1757 = vmatprep.subr.mxu0 0.0
        %1758 = vmatpush1.msra.mxu0 %v1713
        %1759 = vmatprep.subr.mxu0 0.0
        %1760 = vmatpush1.msra.mxu0 %v1712
        %1761 = vmatprep.subr.mxu0 0.0
        %1762 = vmatpush2.msra.mxu0 0.0
        %1763 = vmatprep.subr.mxu0 0.0
        %1764 = vmatpush2.msra.mxu0 0.0
        %1765 = vmatprep.subr.mxu0 0.0
        %1766 = vmatpush2.msra.mxu0 0.0
        %1767 = vmatprep.subr.mxu0 0.0
        %1768 = vmatpush2.msra.mxu0 0.0
        %1769 = vmatprep.subr.mxu0 0.0
        %1770 = vmatpush2.msra.mxu0 0.0
        %1771 = vmatprep.subr.mxu0 0.0
        %1772 = vmatpush2.msra.mxu0 0.0
        %1773 = vmatprep.subr.mxu0 0.0
        %1774 = vmatpush2.msra.mxu0 0.0
        %1775 = vmatprep.subr.mxu0 0.0
        %1776 = vmatpush2.msra.mxu0 0.0
        %1777 = vmatprep.subr.mxu0 0.0
        %1778 = vmatpush2.msra.mxu0 0.0
        %1779 = vmatprep.subr.mxu0 0.0
        %1780 = vmatpush2.msra.mxu0 0.0
        %1781 = vmatprep.subr.mxu0 0.0
        %1782 = vmatpush2.msra.mxu0 0.0
        %1783 = vmatprep.subr.mxu0 0.0
        %1784 = vmatpush2.msra.mxu0 0.0
        %1785 = vmatprep.subr.mxu0 0.0
        %1786 = vmatpush2.msra.mxu0 0.0
        %1787 = vmatprep.subr.mxu0 0.0
        %1788 = vmatpush2.msra.mxu0 0.0
        %1789 = vmatprep.subr.mxu0 0.0
        %1790 = vmatpush2.msra.mxu0 0.0
        %1791 = vmatprep.subr.mxu0 0.0
        %1792 = vmatpush2.msra.mxu0 0.0
        %1793 = vmatprep.mubr.f32.mxu0 0.0
        %1794 = vmatmul.mubr.f32.gmra.mxu0 %v1724
        %v1795 = vpop.f32.mrf.mxu0
        %v1796 = vadd.f32 %v1721, %v1795
        %v1797 = vpop.f32.mrf.mxu0
        %1798 = vmatprep.mubr.f32.mxu0 0.0
        %1799 = vmatmul.mubr.f32.gmra.mxu0 %v1727
        %v1800 = vpop.f32.mrf.mxu0
        %v1801 = vadd.f32 %v1721, %v1800
        %v1802 = vpop.f32.mrf.mxu0
        %1803 = vdwg.mxu0
        %1805 = vrot.lane.b32.xlu0 %v1709, 120
        %v1806 = vpop.permute.xlu0 %1805
        %1807 = vrot.lane.b32.xlu0 %v1709, 112
        %v1808 = vpop.permute.xlu0 %1807
        %1809 = vrot.lane.b32.xlu0 %v1709, 104
        %v1810 = vpop.permute.xlu0 %1809
        %1813 = vrot.lane.b32.xlu0 %v1796, 120
        %v1814 = vpop.permute.xlu0 %1813
        %1815 = vrot.lane.b32.xlu0 %v1801, 120
        %v1816 = vpop.permute.xlu0 %1815
        %1817 = vrot.lane.b32.xlu0 %v1796, 112
        %v1818 = vpop.permute.xlu0 %1817
        %1819 = vrot.lane.b32.xlu0 %v1801, 112
        %v1820 = vpop.permute.xlu0 %1819
        %1821 = vrot.lane.b32.xlu0 %v1796, 104
        %v1822 = vpop.permute.xlu0 %1821
        %1823 = vrot.lane.b32.xlu0 %v1801, 104
        %v1824 = vpop.permute.xlu0 %1823
        %v1825 = vsel %vm845, %v1709, 0
        %v1827 = vsel %vm845, %v1796, 0
        %v1829 = vsel %vm845, %v1801, 0
        %1831 = vmatprep.subr.mxu0 0.0
        %1832 = vmatpush1.xpose.msra.mxu0 0.0
        %1833 = vmatprep.subr.mxu0 0.0
        %1834 = vmatpush1.xpose.msra.mxu0 0.0
        %1835 = vmatprep.subr.mxu0 0.0
        %1836 = vmatpush1.xpose.msra.mxu0 0.0
        %1837 = vmatprep.subr.mxu0 0.0
        %1838 = vmatpush1.xpose.msra.mxu0 0.0
        %1839 = vmatprep.subr.mxu0 0.0
        %1840 = vmatpush1.xpose.msra.mxu0 0.0
        %1841 = vmatprep.subr.mxu0 0.0
        %1842 = vmatpush1.xpose.msra.mxu0 0.0
        %1843 = vmatprep.subr.mxu0 0.0
        %1844 = vmatpush1.xpose.msra.mxu0 0.0
        %1845 = vmatprep.subr.mxu0 0.0
        %1846 = vmatpush1.xpose.msra.mxu0 0.0
        %1847 = vmatprep.subr.mxu0 0.0
        %1848 = vmatpush1.xpose.msra.mxu0 0.0
        %1849 = vmatprep.subr.mxu0 0.0
        %1850 = vmatpush1.xpose.msra.mxu0 0.0
        %1851 = vmatprep.subr.mxu0 0.0
        %1852 = vmatpush1.xpose.msra.mxu0 0.0
        %1853 = vmatprep.subr.mxu0 0.0
        %1854 = vmatpush1.xpose.msra.mxu0 0.0
        %1855 = vmatprep.subr.mxu0 0.0
        %1856 = vmatpush1.xpose.msra.mxu0 0.0
        %1857 = vmatprep.subr.mxu0 0.0
        %1858 = vmatpush1.xpose.msra.mxu0 0.0
        %1859 = vmatprep.subr.mxu0 0.0
        %1860 = vmatpush1.xpose.msra.mxu0 %v1829
        %1861 = vmatprep.subr.mxu0 0.0
        %1862 = vmatpush1.xpose.msra.mxu0 %v1827
        %1863 = vmatprep.subr.mxu0 0.0
        %1864 = vmatpush2.xpose.msra.mxu0 0.0
        %1865 = vmatprep.subr.mxu0 0.0
        %1866 = vmatpush2.xpose.msra.mxu0 0.0
        %1867 = vmatprep.subr.mxu0 0.0
        %1868 = vmatpush2.xpose.msra.mxu0 0.0
        %1869 = vmatprep.subr.mxu0 0.0
        %1870 = vmatpush2.xpose.msra.mxu0 0.0
        %1871 = vmatprep.subr.mxu0 0.0
        %1872 = vmatpush2.xpose.msra.mxu0 0.0
        %1873 = vmatprep.subr.mxu0 0.0
        %1874 = vmatpush2.xpose.msra.mxu0 0.0
        %1875 = vmatprep.subr.mxu0 0.0
        %1876 = vmatpush2.xpose.msra.mxu0 0.0
        %1877 = vmatprep.subr.mxu0 0.0
        %1878 = vmatpush2.xpose.msra.mxu0 0.0
        %1879 = vmatprep.subr.mxu0 0.0
        %1880 = vmatpush2.xpose.msra.mxu0 0.0
        %1881 = vmatprep.subr.mxu0 0.0
        %1882 = vmatpush2.xpose.msra.mxu0 0.0
        %1883 = vmatprep.subr.mxu0 0.0
        %1884 = vmatpush2.xpose.msra.mxu0 0.0
        %1885 = vmatprep.subr.mxu0 0.0
        %1886 = vmatpush2.xpose.msra.mxu0 0.0
        %1887 = vmatprep.subr.mxu0 0.0
        %1888 = vmatpush2.xpose.msra.mxu0 0.0
        %1889 = vmatprep.subr.mxu0 0.0
        %1890 = vmatpush2.xpose.msra.mxu0 0.0
        %1891 = vmatprep.subr.mxu0 0.0
        %1892 = vmatpush2.xpose.msra.mxu0 0.0
        %1893 = vmatprep.subr.mxu0 0.0
        %1894 = vmatpush2.xpose.msra.mxu0 0.0
        %1895 = vmatprep.mubr.f32.mxu0 0.0
        %1896 = vmatmul.mubr.f32.gmra.mxu0 %v1825
        %v1897 = vpop.f32.mrf.mxu0
        %v1898 = vadd.f32 0.0, %v1897
        %v1899 = vpop.f32.mrf.mxu0
        %1900 = vdwg.mxu0
        %v1901 = vsel %vm845, %v1806, 0
        %v1903 = vsel %vm845, %v1814, 0
        %v1905 = vsel %vm845, %v1816, 0
        %1907 = vmatprep.subr.mxu0 0.0
        %1908 = vmatpush1.xpose.msra.mxu0 0.0
        %1909 = vmatprep.subr.mxu0 0.0
        %1910 = vmatpush1.xpose.msra.mxu0 0.0
        %1911 = vmatprep.subr.mxu0 0.0
        %1912 = vmatpush1.xpose.msra.mxu0 0.0
        %1913 = vmatprep.subr.mxu0 0.0
        %1914 = vmatpush1.xpose.msra.mxu0 0.0
        %1915 = vmatprep.subr.mxu0 0.0
        %1916 = vmatpush1.xpose.msra.mxu0 0.0
        %1917 = vmatprep.subr.mxu0 0.0
        %1918 = vmatpush1.xpose.msra.mxu0 0.0
        %1919 = vmatprep.subr.mxu0 0.0
        %1920 = vmatpush1.xpose.msra.mxu0 0.0
        %1921 = vmatprep.subr.mxu0 0.0
        %1922 = vmatpush1.xpose.msra.mxu0 0.0
        %1923 = vmatprep.subr.mxu0 0.0
        %1924 = vmatpush1.xpose.msra.mxu0 0.0
        %1925 = vmatprep.subr.mxu0 0.0
        %1926 = vmatpush1.xpose.msra.mxu0 0.0
        %1927 = vmatprep.subr.mxu0 0.0
        %1928 = vmatpush1.xpose.msra.mxu0 0.0
        %1929 = vmatprep.subr.mxu0 0.0
        %1930 = vmatpush1.xpose.msra.mxu0 0.0
        %1931 = vmatprep.subr.mxu0 0.0
        %1932 = vmatpush1.xpose.msra.mxu0 0.0
        %1933 = vmatprep.subr.mxu0 0.0
        %1934 = vmatpush1.xpose.msra.mxu0 0.0
        %1935 = vmatprep.subr.mxu0 0.0
        %1936 = vmatpush1.xpose.msra.mxu0 %v1905
        %1937 = vmatprep.subr.mxu0 0.0
        %1938 = vmatpush1.xpose.msra.mxu0 %v1903
        %1939 = vmatprep.subr.mxu0 0.0
        %1940 = vmatpush2.xpose.msra.mxu0 0.0
        %1941 = vmatprep.subr.mxu0 0.0
        %1942 = vmatpush2.xpose.msra.mxu0 0.0
        %1943 = vmatprep.subr.mxu0 0.0
        %1944 = vmatpush2.xpose.msra.mxu0 0.0
        %1945 = vmatprep.subr.mxu0 0.0
        %1946 = vmatpush2.xpose.msra.mxu0 0.0
        %1947 = vmatprep.subr.mxu0 0.0
        %1948 = vmatpush2.xpose.msra.mxu0 0.0
        %1949 = vmatprep.subr.mxu0 0.0
        %1950 = vmatpush2.xpose.msra.mxu0 0.0
        %1951 = vmatprep.subr.mxu0 0.0
        %1952 = vmatpush2.xpose.msra.mxu0 0.0
        %1953 = vmatprep.subr.mxu0 0.0
        %1954 = vmatpush2.xpose.msra.mxu0 0.0
        %1955 = vmatprep.subr.mxu0 0.0
        %1956 = vmatpush2.xpose.msra.mxu0 0.0
        %1957 = vmatprep.subr.mxu0 0.0
        %1958 = vmatpush2.xpose.msra.mxu0 0.0
        %1959 = vmatprep.subr.mxu0 0.0
        %1960 = vmatpush2.xpose.msra.mxu0 0.0
        %1961 = vmatprep.subr.mxu0 0.0
        %1962 = vmatpush2.xpose.msra.mxu0 0.0
        %1963 = vmatprep.subr.mxu0 0.0
        %1964 = vmatpush2.xpose.msra.mxu0 0.0
        %1965 = vmatprep.subr.mxu0 0.0
        %1966 = vmatpush2.xpose.msra.mxu0 0.0
        %1967 = vmatprep.subr.mxu0 0.0
        %1968 = vmatpush2.xpose.msra.mxu0 0.0
        %1969 = vmatprep.subr.mxu0 0.0
        %1970 = vmatpush2.xpose.msra.mxu0 0.0
        %1971 = vmatprep.mubr.f32.mxu0 0.0
        %1972 = vmatmul.mubr.f32.gmra.mxu0 %v1901
        %v1973 = vpop.f32.mrf.mxu0
        %v1974 = vadd.f32 0.0, %v1973
        %v1975 = vpop.f32.mrf.mxu0
        %1976 = vdwg.mxu0
        %v1977 = vsel %vm845, %v1808, 0
        %v1979 = vsel %vm845, %v1818, 0
        %v1981 = vsel %vm845, %v1820, 0
        %1983 = vmatprep.subr.mxu0 0.0
        %1984 = vmatpush1.xpose.msra.mxu0 0.0
        %1985 = vmatprep.subr.mxu0 0.0
        %1986 = vmatpush1.xpose.msra.mxu0 0.0
        %1987 = vmatprep.subr.mxu0 0.0
        %1988 = vmatpush1.xpose.msra.mxu0 0.0
        %1989 = vmatprep.subr.mxu0 0.0
        %1990 = vmatpush1.xpose.msra.mxu0 0.0
        %1991 = vmatprep.subr.mxu0 0.0
        %1992 = vmatpush1.xpose.msra.mxu0 0.0
        %1993 = vmatprep.subr.mxu0 0.0
        %1994 = vmatpush1.xpose.msra.mxu0 0.0
        %1995 = vmatprep.subr.mxu0 0.0
        %1996 = vmatpush1.xpose.msra.mxu0 0.0
        %1997 = vmatprep.subr.mxu0 0.0
        %1998 = vmatpush1.xpose.msra.mxu0 0.0
        %1999 = vmatprep.subr.mxu0 0.0
        %2000 = vmatpush1.xpose.msra.mxu0 0.0
        %2001 = vmatprep.subr.mxu0 0.0
        %2002 = vmatpush1.xpose.msra.mxu0 0.0
        %2003 = vmatprep.subr.mxu0 0.0
        %2004 = vmatpush1.xpose.msra.mxu0 0.0
        %2005 = vmatprep.subr.mxu0 0.0
        %2006 = vmatpush1.xpose.msra.mxu0 0.0
        %2007 = vmatprep.subr.mxu0 0.0
        %2008 = vmatpush1.xpose.msra.mxu0 0.0
        %2009 = vmatprep.subr.mxu0 0.0
        %2010 = vmatpush1.xpose.msra.mxu0 0.0
        %2011 = vmatprep.subr.mxu0 0.0
        %2012 = vmatpush1.xpose.msra.mxu0 %v1981
        %2013 = vmatprep.subr.mxu0 0.0
        %2014 = vmatpush1.xpose.msra.mxu0 %v1979
        %2015 = vmatprep.subr.mxu0 0.0
        %2016 = vmatpush2.xpose.msra.mxu0 0.0
        %2017 = vmatprep.subr.mxu0 0.0
        %2018 = vmatpush2.xpose.msra.mxu0 0.0
        %2019 = vmatprep.subr.mxu0 0.0
        %2020 = vmatpush2.xpose.msra.mxu0 0.0
        %2021 = vmatprep.subr.mxu0 0.0
        %2022 = vmatpush2.xpose.msra.mxu0 0.0
        %2023 = vmatprep.subr.mxu0 0.0
        %2024 = vmatpush2.xpose.msra.mxu0 0.0
        %2025 = vmatprep.subr.mxu0 0.0
        %2026 = vmatpush2.xpose.msra.mxu0 0.0
        %2027 = vmatprep.subr.mxu0 0.0
        %2028 = vmatpush2.xpose.msra.mxu0 0.0
        %2029 = vmatprep.subr.mxu0 0.0
        %2030 = vmatpush2.xpose.msra.mxu0 0.0
        %2031 = vmatprep.subr.mxu0 0.0
        %2032 = vmatpush2.xpose.msra.mxu0 0.0
        %2033 = vmatprep.subr.mxu0 0.0
        %2034 = vmatpush2.xpose.msra.mxu0 0.0
        %2035 = vmatprep.subr.mxu0 0.0
        %2036 = vmatpush2.xpose.msra.mxu0 0.0
        %2037 = vmatprep.subr.mxu0 0.0
        %2038 = vmatpush2.xpose.msra.mxu0 0.0
        %2039 = vmatprep.subr.mxu0 0.0
        %2040 = vmatpush2.xpose.msra.mxu0 0.0
        %2041 = vmatprep.subr.mxu0 0.0
        %2042 = vmatpush2.xpose.msra.mxu0 0.0
        %2043 = vmatprep.subr.mxu0 0.0
        %2044 = vmatpush2.xpose.msra.mxu0 0.0
        %2045 = vmatprep.subr.mxu0 0.0
        %2046 = vmatpush2.xpose.msra.mxu0 0.0
        %2047 = vmatprep.mubr.f32.mxu0 0.0
        %2048 = vmatmul.mubr.f32.gmra.mxu0 %v1977
        %v2049 = vpop.f32.mrf.mxu0
        %v2050 = vadd.f32 0.0, %v2049
        %v2051 = vpop.f32.mrf.mxu0
        %2052 = vdwg.mxu0
        %v2053 = vsel %vm845, %v1810, 0
        %v2055 = vsel %vm845, %v1822, 0
        %v2057 = vsel %vm845, %v1824, 0
        %2059 = vmatprep.subr.mxu0 0.0
        %2060 = vmatpush1.xpose.msra.mxu0 0.0
        %2061 = vmatprep.subr.mxu0 0.0
        %2062 = vmatpush1.xpose.msra.mxu0 0.0
        %2063 = vmatprep.subr.mxu0 0.0
        %2064 = vmatpush1.xpose.msra.mxu0 0.0
        %2065 = vmatprep.subr.mxu0 0.0
        %2066 = vmatpush1.xpose.msra.mxu0 0.0
        %2067 = vmatprep.subr.mxu0 0.0
        %2068 = vmatpush1.xpose.msra.mxu0 0.0
        %2069 = vmatprep.subr.mxu0 0.0
        %2070 = vmatpush1.xpose.msra.mxu0 0.0
        %2071 = vmatprep.subr.mxu0 0.0
        %2072 = vmatpush1.xpose.msra.mxu0 0.0
        %2073 = vmatprep.subr.mxu0 0.0
        %2074 = vmatpush1.xpose.msra.mxu0 0.0
        %2075 = vmatprep.subr.mxu0 0.0
        %2076 = vmatpush1.xpose.msra.mxu0 0.0
        %2077 = vmatprep.subr.mxu0 0.0
        %2078 = vmatpush1.xpose.msra.mxu0 0.0
        %2079 = vmatprep.subr.mxu0 0.0
        %2080 = vmatpush1.xpose.msra.mxu0 0.0
        %2081 = vmatprep.subr.mxu0 0.0
        %2082 = vmatpush1.xpose.msra.mxu0 0.0
        %2083 = vmatprep.subr.mxu0 0.0
        %2084 = vmatpush1.xpose.msra.mxu0 0.0
        %2085 = vmatprep.subr.mxu0 0.0
        %2086 = vmatpush1.xpose.msra.mxu0 0.0
        %2087 = vmatprep.subr.mxu0 0.0
        %2088 = vmatpush1.xpose.msra.mxu0 %v2057
        %2089 = vmatprep.subr.mxu0 0.0
        %2090 = vmatpush1.xpose.msra.mxu0 %v2055
        %2091 = vmatprep.subr.mxu0 0.0
        %2092 = vmatpush2.xpose.msra.mxu0 0.0
        %2093 = vmatprep.subr.mxu0 0.0
        %2094 = vmatpush2.xpose.msra.mxu0 0.0
        %2095 = vmatprep.subr.mxu0 0.0
        %2096 = vmatpush2.xpose.msra.mxu0 0.0
        %2097 = vmatprep.subr.mxu0 0.0
        %2098 = vmatpush2.xpose.msra.mxu0 0.0
        %2099 = vmatprep.subr.mxu0 0.0
        %2100 = vmatpush2.xpose.msra.mxu0 0.0
        %2101 = vmatprep.subr.mxu0 0.0
        %2102 = vmatpush2.xpose.msra.mxu0 0.0
        %2103 = vmatprep.subr.mxu0 0.0
        %2104 = vmatpush2.xpose.msra.mxu0 0.0
        %2105 = vmatprep.subr.mxu0 0.0
        %2106 = vmatpush2.xpose.msra.mxu0 0.0
        %2107 = vmatprep.subr.mxu0 0.0
        %2108 = vmatpush2.xpose.msra.mxu0 0.0
        %2109 = vmatprep.subr.mxu0 0.0
        %2110 = vmatpush2.xpose.msra.mxu0 0.0
        %2111 = vmatprep.subr.mxu0 0.0
        %2112 = vmatpush2.xpose.msra.mxu0 0.0
        %2113 = vmatprep.subr.mxu0 0.0
        %2114 = vmatpush2.xpose.msra.mxu0 0.0
        %2115 = vmatprep.subr.mxu0 0.0
        %2116 = vmatpush2.xpose.msra.mxu0 0.0
        %2117 = vmatprep.subr.mxu0 0.0
        %2118 = vmatpush2.xpose.msra.mxu0 0.0
        %2119 = vmatprep.subr.mxu0 0.0
        %2120 = vmatpush2.xpose.msra.mxu0 0.0
        %2121 = vmatprep.subr.mxu0 0.0
        %2122 = vmatpush2.xpose.msra.mxu0 0.0
        %2123 = vmatprep.mubr.f32.mxu0 0.0
        %2124 = vmatmul.mubr.f32.gmra.mxu0 %v2053
        %v2125 = vpop.f32.mrf.mxu0
        %v2126 = vadd.f32 0.0, %v2125
        %v2127 = vpop.f32.mrf.mxu0
        %2128 = vdwg.mxu0
        %v2129 = vsel %vm1509, %v1898, -inf
        %2130 = vmax.xlane.f32.xlu0 %v2129
        %v2131 = vpop.xlane.xlu0 %2130
        %v2132 = vsel %vm1509, %v1974, -inf
        %2133 = vmax.xlane.f32.xlu0 %v2132
        %v2134 = vpop.xlane.xlu0 %2133
        %v2135 = vsel %vm1509, %v2050, -inf
        %2136 = vmax.xlane.f32.xlu0 %v2135
        %v2137 = vpop.xlane.xlu0 %2136
        %v2138 = vsel %vm1509, %v2126, -inf
        %2139 = vmax.xlane.f32.xlu0 %v2138
        %v2140 = vpop.xlane.xlu0 %2139
        %v2141 = vsub.f32 %v1898, %v2131
        %v2142 = vsub.f32 %v1974, %v2134
        %v2143 = vsub.f32 %v2050, %v2137
        %v2144 = vsub.f32 %v2126, %v2140
        %v2145 = vmul.f32 %v2141, 1.442695
        %v2146 = vpow.pop %v2145
        %v2147 = vmul.f32 %v2142, 1.442695
        %v2148 = vpow.pop %v2147
        %v2149 = vmul.f32 %v2143, 1.442695
        %v2150 = vpow.pop %v2149
        %v2151 = vmul.f32 %v2144, 1.442695
        %v2152 = vpow.pop %v2151
        %v2153 = vsel %vm1509, %v2146, 0.0
        %2154 = vadd.xlane.f32.xlu0 %v2153
        %v2155 = vpop.xlane.xlu0 %2154
        %v2156 = vsel %vm1509, %v2148, 0.0
        %2157 = vadd.xlane.f32.xlu0 %v2156
        %v2158 = vpop.xlane.xlu0 %2157
        %v2159 = vsel %vm1509, %v2150, 0.0
        %2160 = vadd.xlane.f32.xlu0 %v2159
        %v2161 = vpop.xlane.xlu0 %2160
        %v2162 = vsel %vm1509, %v2152, 0.0
        %2163 = vadd.xlane.f32.xlu0 %v2162
        %v2164 = vpop.xlane.xlu0 %2163
        %v2165 = vrcp.pop %v2155
        %v2166 = vmul.f32 %v2146, %v2165
        %v2167 = vrcp.pop %v2158
        %v2168 = vmul.f32 %v2148, %v2167
        %v2169 = vrcp.pop %v2161
        %v2170 = vmul.f32 %v2150, %v2169
        %v2171 = vrcp.pop %v2164
        %v2172 = vmul.f32 %v2152, %v2171
        %2173 = vrot.lane.b32.xlu0 %v1796, 96
        %v2174 = vpop.permute.xlu0 %2173
        %2175 = vrot.lane.b32.xlu0 %v1801, 96
        %v2176 = vpop.permute.xlu0 %2175
        %v2180 = vsel %vm1509, %v2166, 0
        %2182 = vmatprep.subr.mxu0 0.0
        %2183 = vmatpush1.msra.mxu0 0.0
        %2184 = vmatprep.subr.mxu0 0.0
        %2185 = vmatpush1.msra.mxu0 0.0
        %2186 = vmatprep.subr.mxu0 0.0
        %2187 = vmatpush1.msra.mxu0 0.0
        %2188 = vmatprep.subr.mxu0 0.0
        %2189 = vmatpush1.msra.mxu0 0.0
        %2190 = vmatprep.subr.mxu0 0.0
        %2191 = vmatpush1.msra.mxu0 0.0
        %2192 = vmatprep.subr.mxu0 0.0
        %2193 = vmatpush1.msra.mxu0 0.0
        %2194 = vmatprep.subr.mxu0 0.0
        %2195 = vmatpush1.msra.mxu0 0.0
        %2196 = vmatprep.subr.mxu0 0.0
        %2197 = vmatpush1.msra.mxu0 0.0
        %2198 = vmatprep.subr.mxu0 0.0
        %2199 = vmatpush1.msra.mxu0 0.0
        %2200 = vmatprep.subr.mxu0 0.0
        %2201 = vmatpush1.msra.mxu0 0.0
        %2202 = vmatprep.subr.mxu0 0.0
        %2203 = vmatpush1.msra.mxu0 0.0
        %2204 = vmatprep.subr.mxu0 0.0
        %2205 = vmatpush1.msra.mxu0 0.0
        %2206 = vmatprep.subr.mxu0 0.0
        %2207 = vmatpush1.msra.mxu0 0.0
        %2208 = vmatprep.subr.mxu0 0.0
        %2209 = vmatpush1.msra.mxu0 0.0
        %2210 = vmatprep.subr.mxu0 0.0
        %2211 = vmatpush1.msra.mxu0 %v2176
        %2212 = vmatprep.subr.mxu0 0.0
        %2213 = vmatpush1.msra.mxu0 %v2174
        %2214 = vmatprep.subr.mxu0 0.0
        %2215 = vmatpush2.msra.mxu0 0.0
        %2216 = vmatprep.subr.mxu0 0.0
        %2217 = vmatpush2.msra.mxu0 0.0
        %2218 = vmatprep.subr.mxu0 0.0
        %2219 = vmatpush2.msra.mxu0 0.0
        %2220 = vmatprep.subr.mxu0 0.0
        %2221 = vmatpush2.msra.mxu0 0.0
        %2222 = vmatprep.subr.mxu0 0.0
        %2223 = vmatpush2.msra.mxu0 0.0
        %2224 = vmatprep.subr.mxu0 0.0
        %2225 = vmatpush2.msra.mxu0 0.0
        %2226 = vmatprep.subr.mxu0 0.0
        %2227 = vmatpush2.msra.mxu0 0.0
        %2228 = vmatprep.subr.mxu0 0.0
        %2229 = vmatpush2.msra.mxu0 0.0
        %2230 = vmatprep.subr.mxu0 0.0
        %2231 = vmatpush2.msra.mxu0 0.0
        %2232 = vmatprep.subr.mxu0 0.0
        %2233 = vmatpush2.msra.mxu0 0.0
        %2234 = vmatprep.subr.mxu0 0.0
        %2235 = vmatpush2.msra.mxu0 0.0
        %2236 = vmatprep.subr.mxu0 0.0
        %2237 = vmatpush2.msra.mxu0 0.0
        %2238 = vmatprep.subr.mxu0 0.0
        %2239 = vmatpush2.msra.mxu0 0.0
        %2240 = vmatprep.subr.mxu0 0.0
        %2241 = vmatpush2.msra.mxu0 0.0
        %2242 = vmatprep.subr.mxu0 0.0
        %2243 = vmatpush2.msra.mxu0 0.0
        %2244 = vmatprep.subr.mxu0 0.0
        %2245 = vmatpush2.msra.mxu0 0.0
        %2246 = vmatprep.mubr.f32.mxu0 0.0
        %2247 = vmatmul.mubr.f32.gmra.mxu0 %v2180
        %v2248 = vpop.f32.mrf.mxu0
        %v2249 = vadd.f32 0.0, %v2248
        %v2250 = vpop.f32.mrf.mxu0
        %2251 = vdwg.mxu0
        %2252 = vrot.lane.b32.xlu0 %v1814, 96
        %v2253 = vpop.permute.xlu0 %2252
        %2254 = vrot.lane.b32.xlu0 %v1816, 96
        %v2255 = vpop.permute.xlu0 %2254
        %v2259 = vsel %vm1509, %v2168, 0
        %2261 = vmatprep.subr.mxu0 0.0
        %2262 = vmatpush1.msra.mxu0 0.0
        %2263 = vmatprep.subr.mxu0 0.0
        %2264 = vmatpush1.msra.mxu0 0.0
        %2265 = vmatprep.subr.mxu0 0.0
        %2266 = vmatpush1.msra.mxu0 0.0
        %2267 = vmatprep.subr.mxu0 0.0
        %2268 = vmatpush1.msra.mxu0 0.0
        %2269 = vmatprep.subr.mxu0 0.0
        %2270 = vmatpush1.msra.mxu0 0.0
        %2271 = vmatprep.subr.mxu0 0.0
        %2272 = vmatpush1.msra.mxu0 0.0
        %2273 = vmatprep.subr.mxu0 0.0
        %2274 = vmatpush1.msra.mxu0 0.0
        %2275 = vmatprep.subr.mxu0 0.0
        %2276 = vmatpush1.msra.mxu0 0.0
        %2277 = vmatprep.subr.mxu0 0.0
        %2278 = vmatpush1.msra.mxu0 0.0
        %2279 = vmatprep.subr.mxu0 0.0
        %2280 = vmatpush1.msra.mxu0 0.0
        %2281 = vmatprep.subr.mxu0 0.0
        %2282 = vmatpush1.msra.mxu0 0.0
        %2283 = vmatprep.subr.mxu0 0.0
        %2284 = vmatpush1.msra.mxu0 0.0
        %2285 = vmatprep.subr.mxu0 0.0
        %2286 = vmatpush1.msra.mxu0 0.0
        %2287 = vmatprep.subr.mxu0 0.0
        %2288 = vmatpush1.msra.mxu0 0.0
        %2289 = vmatprep.subr.mxu0 0.0
        %2290 = vmatpush1.msra.mxu0 %v2255
        %2291 = vmatprep.subr.mxu0 0.0
        %2292 = vmatpush1.msra.mxu0 %v2253
        %2293 = vmatprep.subr.mxu0 0.0
        %2294 = vmatpush2.msra.mxu0 0.0
        %2295 = vmatprep.subr.mxu0 0.0
        %2296 = vmatpush2.msra.mxu0 0.0
        %2297 = vmatprep.subr.mxu0 0.0
        %2298 = vmatpush2.msra.mxu0 0.0
        %2299 = vmatprep.subr.mxu0 0.0
        %2300 = vmatpush2.msra.mxu0 0.0
        %2301 = vmatprep.subr.mxu0 0.0
        %2302 = vmatpush2.msra.mxu0 0.0
        %2303 = vmatprep.subr.mxu0 0.0
        %2304 = vmatpush2.msra.mxu0 0.0
        %2305 = vmatprep.subr.mxu0 0.0
        %2306 = vmatpush2.msra.mxu0 0.0
        %2307 = vmatprep.subr.mxu0 0.0
        %2308 = vmatpush2.msra.mxu0 0.0
        %2309 = vmatprep.subr.mxu0 0.0
        %2310 = vmatpush2.msra.mxu0 0.0
        %2311 = vmatprep.subr.mxu0 0.0
        %2312 = vmatpush2.msra.mxu0 0.0
        %2313 = vmatprep.subr.mxu0 0.0
        %2314 = vmatpush2.msra.mxu0 0.0
        %2315 = vmatprep.subr.mxu0 0.0
        %2316 = vmatpush2.msra.mxu0 0.0
        %2317 = vmatprep.subr.mxu0 0.0
        %2318 = vmatpush2.msra.mxu0 0.0
        %2319 = vmatprep.subr.mxu0 0.0
        %2320 = vmatpush2.msra.mxu0 0.0
        %2321 = vmatprep.subr.mxu0 0.0
        %2322 = vmatpush2.msra.mxu0 0.0
        %2323 = vmatprep.subr.mxu0 0.0
        %2324 = vmatpush2.msra.mxu0 0.0
        %2325 = vmatprep.mubr.f32.mxu0 0.0
        %2326 = vmatmul.mubr.f32.gmra.mxu0 %v2259
        %v2327 = vpop.f32.mrf.mxu0
        %v2328 = vadd.f32 0.0, %v2327
        %v2329 = vpop.f32.mrf.mxu0
        %2330 = vdwg.mxu0
        %2331 = vrot.lane.b32.xlu0 %v1818, 96
        %v2332 = vpop.permute.xlu0 %2331
        %2333 = vrot.lane.b32.xlu0 %v1820, 96
        %v2334 = vpop.permute.xlu0 %2333
        %v2338 = vsel %vm1509, %v2170, 0
        %2340 = vmatprep.subr.mxu0 0.0
        %2341 = vmatpush1.msra.mxu0 0.0
        %2342 = vmatprep.subr.mxu0 0.0
        %2343 = vmatpush1.msra.mxu0 0.0
        %2344 = vmatprep.subr.mxu0 0.0
        %2345 = vmatpush1.msra.mxu0 0.0
        %2346 = vmatprep.subr.mxu0 0.0
        %2347 = vmatpush1.msra.mxu0 0.0
        %2348 = vmatprep.subr.mxu0 0.0
        %2349 = vmatpush1.msra.mxu0 0.0
        %2350 = vmatprep.subr.mxu0 0.0
        %2351 = vmatpush1.msra.mxu0 0.0
        %2352 = vmatprep.subr.mxu0 0.0
        %2353 = vmatpush1.msra.mxu0 0.0
        %2354 = vmatprep.subr.mxu0 0.0
        %2355 = vmatpush1.msra.mxu0 0.0
        %2356 = vmatprep.subr.mxu0 0.0
        %2357 = vmatpush1.msra.mxu0 0.0
        %2358 = vmatprep.subr.mxu0 0.0
        %2359 = vmatpush1.msra.mxu0 0.0
        %2360 = vmatprep.subr.mxu0 0.0
        %2361 = vmatpush1.msra.mxu0 0.0
        %2362 = vmatprep.subr.mxu0 0.0
        %2363 = vmatpush1.msra.mxu0 0.0
        %2364 = vmatprep.subr.mxu0 0.0
        %2365 = vmatpush1.msra.mxu0 0.0
        %2366 = vmatprep.subr.mxu0 0.0
        %2367 = vmatpush1.msra.mxu0 0.0
        %2368 = vmatprep.subr.mxu0 0.0
        %2369 = vmatpush1.msra.mxu0 %v2334
        %2370 = vmatprep.subr.mxu0 0.0
        %2371 = vmatpush1.msra.mxu0 %v2332
        %2372 = vmatprep.subr.mxu0 0.0
        %2373 = vmatpush2.msra.mxu0 0.0
        %2374 = vmatprep.subr.mxu0 0.0
        %2375 = vmatpush2.msra.mxu0 0.0
        %2376 = vmatprep.subr.mxu0 0.0
        %2377 = vmatpush2.msra.mxu0 0.0
        %2378 = vmatprep.subr.mxu0 0.0
        %2379 = vmatpush2.msra.mxu0 0.0
        %2380 = vmatprep.subr.mxu0 0.0
        %2381 = vmatpush2.msra.mxu0 0.0
        %2382 = vmatprep.subr.mxu0 0.0
        %2383 = vmatpush2.msra.mxu0 0.0
        %2384 = vmatprep.subr.mxu0 0.0
        %2385 = vmatpush2.msra.mxu0 0.0
        %2386 = vmatprep.subr.mxu0 0.0
        %2387 = vmatpush2.msra.mxu0 0.0
        %2388 = vmatprep.subr.mxu0 0.0
        %2389 = vmatpush2.msra.mxu0 0.0
        %2390 = vmatprep.subr.mxu0 0.0
        %2391 = vmatpush2.msra.mxu0 0.0
        %2392 = vmatprep.subr.mxu0 0.0
        %2393 = vmatpush2.msra.mxu0 0.0
        %2394 = vmatprep.subr.mxu0 0.0
        %2395 = vmatpush2.msra.mxu0 0.0
        %2396 = vmatprep.subr.mxu0 0.0
        %2397 = vmatpush2.msra.mxu0 0.0
        %2398 = vmatprep.subr.mxu0 0.0
        %2399 = vmatpush2.msra.mxu0 0.0
        %2400 = vmatprep.subr.mxu0 0.0
        %2401 = vmatpush2.msra.mxu0 0.0
        %2402 = vmatprep.subr.mxu0 0.0
        %2403 = vmatpush2.msra.mxu0 0.0
        %2404 = vmatprep.mubr.f32.mxu0 0.0
        %2405 = vmatmul.mubr.f32.gmra.mxu0 %v2338
        %v2406 = vpop.f32.mrf.mxu0
        %v2407 = vadd.f32 0.0, %v2406
        %v2408 = vpop.f32.mrf.mxu0
        %2409 = vdwg.mxu0
        %2410 = vrot.lane.b32.xlu0 %v1822, 96
        %v2411 = vpop.permute.xlu0 %2410
        %2412 = vrot.lane.b32.xlu0 %v1824, 96
        %v2413 = vpop.permute.xlu0 %2412
        %v2417 = vsel %vm1509, %v2172, 0
        %2419 = vmatprep.subr.mxu0 0.0
        %2420 = vmatpush1.msra.mxu0 0.0
        %2421 = vmatprep.subr.mxu0 0.0
        %2422 = vmatpush1.msra.mxu0 0.0
        %2423 = vmatprep.subr.mxu0 0.0
        %2424 = vmatpush1.msra.mxu0 0.0
        %2425 = vmatprep.subr.mxu0 0.0
        %2426 = vmatpush1.msra.mxu0 0.0
        %2427 = vmatprep.subr.mxu0 0.0
        %2428 = vmatpush1.msra.mxu0 0.0
        %2429 = vmatprep.subr.mxu0 0.0
        %2430 = vmatpush1.msra.mxu0 0.0
        %2431 = vmatprep.subr.mxu0 0.0
        %2432 = vmatpush1.msra.mxu0 0.0
        %2433 = vmatprep.subr.mxu0 0.0
        %2434 = vmatpush1.msra.mxu0 0.0
        %2435 = vmatprep.subr.mxu0 0.0
        %2436 = vmatpush1.msra.mxu0 0.0
        %2437 = vmatprep.subr.mxu0 0.0
        %2438 = vmatpush1.msra.mxu0 0.0
        %2439 = vmatprep.subr.mxu0 0.0
        %2440 = vmatpush1.msra.mxu0 0.0
        %2441 = vmatprep.subr.mxu0 0.0
        %2442 = vmatpush1.msra.mxu0 0.0
        %2443 = vmatprep.subr.mxu0 0.0
        %2444 = vmatpush1.msra.mxu0 0.0
        %2445 = vmatprep.subr.mxu0 0.0
        %2446 = vmatpush1.msra.mxu0 0.0
        %2447 = vmatprep.subr.mxu0 0.0
        %2448 = vmatpush1.msra.mxu0 %v2413
        %2449 = vmatprep.subr.mxu0 0.0
        %2450 = vmatpush1.msra.mxu0 %v2411
        %2451 = vmatprep.subr.mxu0 0.0
        %2452 = vmatpush2.msra.mxu0 0.0
        %2453 = vmatprep.subr.mxu0 0.0
        %2454 = vmatpush2.msra.mxu0 0.0
        %2455 = vmatprep.subr.mxu0 0.0
        %2456 = vmatpush2.msra.mxu0 0.0
        %2457 = vmatprep.subr.mxu0 0.0
        %2458 = vmatpush2.msra.mxu0 0.0
        %2459 = vmatprep.subr.mxu0 0.0
        %2460 = vmatpush2.msra.mxu0 0.0
        %2461 = vmatprep.subr.mxu0 0.0
        %2462 = vmatpush2.msra.mxu0 0.0
        %2463 = vmatprep.subr.mxu0 0.0
        %2464 = vmatpush2.msra.mxu0 0.0
        %2465 = vmatprep.subr.mxu0 0.0
        %2466 = vmatpush2.msra.mxu0 0.0
        %2467 = vmatprep.subr.mxu0 0.0
        %2468 = vmatpush2.msra.mxu0 0.0
        %2469 = vmatprep.subr.mxu0 0.0
        %2470 = vmatpush2.msra.mxu0 0.0
        %2471 = vmatprep.subr.mxu0 0.0
        %2472 = vmatpush2.msra.mxu0 0.0
        %2473 = vmatprep.subr.mxu0 0.0
        %2474 = vmatpush2.msra.mxu0 0.0
        %2475 = vmatprep.subr.mxu0 0.0
        %2476 = vmatpush2.msra.mxu0 0.0
        %2477 = vmatprep.subr.mxu0 0.0
        %2478 = vmatpush2.msra.mxu0 0.0
        %2479 = vmatprep.subr.mxu0 0.0
        %2480 = vmatpush2.msra.mxu0 0.0
        %2481 = vmatprep.subr.mxu0 0.0
        %2482 = vmatpush2.msra.mxu0 0.0
        %2483 = vmatprep.mubr.f32.mxu0 0.0
        %2484 = vmatmul.mubr.f32.gmra.mxu0 %v2417
        %v2485 = vpop.f32.mrf.mxu0
        %v2486 = vadd.f32 0.0, %v2485
        %v2487 = vpop.f32.mrf.mxu0
        %2488 = vdwg.mxu0
        %2490 = vrot.lane.b32.xlu0 %v2328, 8
        %v2491 = vpop.permute.xlu0 %2490
        %2494 = vrot.lane.b32.xlu0 %v2407, 16
        %v2495 = vpop.permute.xlu0 %2494
        %2498 = vrot.lane.b32.xlu0 %v2486, 24
        %v2499 = vpop.permute.xlu0 %2498
        %v2501 = vsel %vm845, %v2249, %v2491
        %v2502 = vsel %vm1509, %v2501, %v2495
        %v2503 = vsel %vm1511, %v2502, %v2499
        %v2504 = vld [vmem:[#allocation5] sm:$0xff]
        %v2505 = vld [vmem:[#allocation5 + $0x8] sm:$0xff]
        %v2506 = vld [vmem:[#allocation5 + $0x10] sm:$0xff]
        %v2507 = vld [vmem:[#allocation5 + $0x18] sm:$0xff]
        %v2508 = vld [vmem:[%s11] sm:$0x1]
        %v2510 = vlaneseq
        %v2511 = vshrl.u32 %v2510, 7
        %v2512 = vsub.s32 0, %v2511
        %v2513 = vrot.slane %v2508, %v2512
        %v2516 = vsel %vm762, %v2503, 0
        %2518 = vmatprep.subr.mxu0 0.0
        %2519 = vmatpush1.msra.mxu0 0.0
        %2520 = vmatprep.subr.mxu0 0.0
        %2521 = vmatpush1.msra.mxu0 0.0
        %2522 = vmatprep.subr.mxu0 0.0
        %2523 = vmatpush1.msra.mxu0 0.0
        %2524 = vmatprep.subr.mxu0 0.0
        %2525 = vmatpush1.msra.mxu0 0.0
        %2526 = vmatprep.subr.mxu0 0.0
        %2527 = vmatpush1.msra.mxu0 0.0
        %2528 = vmatprep.subr.mxu0 0.0
        %2529 = vmatpush1.msra.mxu0 0.0
        %2530 = vmatprep.subr.mxu0 0.0
        %2531 = vmatpush1.msra.mxu0 0.0
        %2532 = vmatprep.subr.mxu0 0.0
        %2533 = vmatpush1.msra.mxu0 0.0
        %2534 = vmatprep.subr.mxu0 0.0
        %2535 = vmatpush1.msra.mxu0 0.0
        %2536 = vmatprep.subr.mxu0 0.0
        %2537 = vmatpush1.msra.mxu0 0.0
        %2538 = vmatprep.subr.mxu0 0.0
        %2539 = vmatpush1.msra.mxu0 0.0
        %2540 = vmatprep.subr.mxu0 0.0
        %2541 = vmatpush1.msra.mxu0 0.0
        %2542 = vmatprep.subr.mxu0 0.0
        %2543 = vmatpush1.msra.mxu0 %v2507
        %2544 = vmatprep.subr.mxu0 0.0
        %2545 = vmatpush1.msra.mxu0 %v2506
        %2546 = vmatprep.subr.mxu0 0.0
        %2547 = vmatpush1.msra.mxu0 %v2505
        %2548 = vmatprep.subr.mxu0 0.0
        %2549 = vmatpush1.msra.mxu0 %v2504
        %2550 = vmatprep.subr.mxu0 0.0
        %2551 = vmatpush2.msra.mxu0 0.0
        %2552 = vmatprep.subr.mxu0 0.0
        %2553 = vmatpush2.msra.mxu0 0.0
        %2554 = vmatprep.subr.mxu0 0.0
        %2555 = vmatpush2.msra.mxu0 0.0
        %2556 = vmatprep.subr.mxu0 0.0
        %2557 = vmatpush2.msra.mxu0 0.0
        %2558 = vmatprep.subr.mxu0 0.0
        %2559 = vmatpush2.msra.mxu0 0.0
        %2560 = vmatprep.subr.mxu0 0.0
        %2561 = vmatpush2.msra.mxu0 0.0
        %2562 = vmatprep.subr.mxu0 0.0
        %2563 = vmatpush2.msra.mxu0 0.0
        %2564 = vmatprep.subr.mxu0 0.0
        %2565 = vmatpush2.msra.mxu0 0.0
        %2566 = vmatprep.subr.mxu0 0.0
        %2567 = vmatpush2.msra.mxu0 0.0
        %2568 = vmatprep.subr.mxu0 0.0
        %2569 = vmatpush2.msra.mxu0 0.0
        %2570 = vmatprep.subr.mxu0 0.0
        %2571 = vmatpush2.msra.mxu0 0.0
        %2572 = vmatprep.subr.mxu0 0.0
        %2573 = vmatpush2.msra.mxu0 0.0
        %2574 = vmatprep.subr.mxu0 0.0
        %2575 = vmatpush2.msra.mxu0 0.0
        %2576 = vmatprep.subr.mxu0 0.0
        %2577 = vmatpush2.msra.mxu0 0.0
        %2578 = vmatprep.subr.mxu0 0.0
        %2579 = vmatpush2.msra.mxu0 0.0
        %2580 = vmatprep.subr.mxu0 0.0
        %2581 = vmatpush2.msra.mxu0 0.0
        %2582 = vmatprep.mubr.f32.mxu0 0.0
        %2583 = vmatmul.mubr.f32.gmra.mxu0 %v2516
        %v2584 = vpop.f32.mrf.mxu0
        %v2585 = vadd.f32 %v2513, %v2584
        %v2586 = vpop.f32.mrf.mxu0
        %2587 = vdwg.mxu0
        %v2588 = vadd.f32 %v1627, %v2585
        %v2589 = vld [vmem:[%s18] sm:$0x1]
        %v2590 = vld [vmem:[%s19] sm:$0x1]
        %v2591 = vsel %vm762, %v2588, 0.0
        %2592 = vadd.xlane.f32.xlu0 %v2591
        %v2593 = vpop.xlane.xlu0 %2592
        %v2594 = vmul.f32 %v2593, %v1603
        %v2595 = vsub.f32 %v2588, %v2594
        %v2596 = vmul.f32 %v2595, %v2595
        %v2597 = vsel %vm762, %v2596, 0.0
        %2598 = vadd.xlane.f32.xlu0 %v2597
        %v2599 = vpop.xlane.xlu0 %2598
        %v2600 = vmul.f32 %v2599, %v1603
        %v2601 = vadd.f32 %v2600, 1e-05
        %v2602 = vrsqrt.pop %v2601
        %v2603 = vmul.f32 %v2595, %v2602
        %v2605 = vlaneseq
        %v2606 = vshrl.u32 %v2605, 7
        %v2607 = vsub.s32 0, %v2606
        %v2608 = vrot.slane %v2589, %v2607
        %v2610 = vmul.f32 %v2603, %v2608
        %v2612 = vlaneseq
        %v2613 = vshrl.u32 %v2612, 7
        %v2614 = vsub.s32 0, %v2613
        %v2615 = vrot.slane %v2590, %v2614
        %v2617 = vadd.f32 %v2610, %v2615
        %v2618 = vld [vmem:[#allocation7] sm:$0xff]
        %v2619 = vld [vmem:[#allocation7 + $0x8] sm:$0xff]
        %v2620 = vld [vmem:[#allocation7 + $0x10] sm:$0xff]
        %v2621 = vld [vmem:[#allocation7 + $0x18] sm:$0xff]
        %v2622 = vld [vmem:[%s13] sm:$0x1]
        %v2624 = vlaneseq
        %v2625 = vshrl.u32 %v2624, 7
        %v2626 = vsub.s32 0, %v2625
        %v2627 = vrot.slane %v2622, %v2626
        %v2630 = vsel %vm762, %v2617, 0
        %2632 = vmatprep.subr.mxu0 0.0
        %2633 = vmatpush1.msra.mxu0 0.0
        %2634 = vmatprep.subr.mxu0 0.0
        %2635 = vmatpush1.msra.mxu0 0.0
        %2636 = vmatprep.subr.mxu0 0.0
        %2637 = vmatpush1.msra.mxu0 0.0
        %2638 = vmatprep.subr.mxu0 0.0
        %2639 = vmatpush1.msra.mxu0 0.0
        %2640 = vmatprep.subr.mxu0 0.0
        %2641 = vmatpush1.msra.mxu0 0.0
        %2642 = vmatprep.subr.mxu0 0.0
        %2643 = vmatpush1.msra.mxu0 0.0
        %2644 = vmatprep.subr.mxu0 0.0
        %2645 = vmatpush1.msra.mxu0 0.0
        %2646 = vmatprep.subr.mxu0 0.0
        %2647 = vmatpush1.msra.mxu0 0.0
        %2648 = vmatprep.subr.mxu0 0.0
        %2649 = vmatpush1.msra.mxu0 0.0
        %2650 = vmatprep.subr.mxu0 0.0
        %2651 = vmatpush1.msra.mxu0 0.0
        %2652 = vmatprep.subr.mxu0 0.0
        %2653 = vmatpush1.msra.mxu0 0.0
        %2654 = vmatprep.subr.mxu0 0.0
        %2655 = vmatpush1.msra.mxu0 0.0
        %2656 = vmatprep.subr.mxu0 0.0
        %2657 = vmatpush1.msra.mxu0 %v2621
        %2658 = vmatprep.subr.mxu0 0.0
        %2659 = vmatpush1.msra.mxu0 %v2620
        %2660 = vmatprep.subr.mxu0 0.0
        %2661 = vmatpush1.msra.mxu0 %v2619
        %2662 = vmatprep.subr.mxu0 0.0
        %2663 = vmatpush1.msra.mxu0 %v2618
        %2664 = vmatprep.subr.mxu0 0.0
        %2665 = vmatpush2.msra.mxu0 0.0
        %2666 = vmatprep.subr.mxu0 0.0
        %2667 = vmatpush2.msra.mxu0 0.0
        %2668 = vmatprep.subr.mxu0 0.0
        %2669 = vmatpush2.msra.mxu0 0.0
        %2670 = vmatprep.subr.mxu0 0.0
        %2671 = vmatpush2.msra.mxu0 0.0
        %2672 = vmatprep.subr.mxu0 0.0
        %2673 = vmatpush2.msra.mxu0 0.0
        %2674 = vmatprep.subr.mxu0 0.0
        %2675 = vmatpush2.msra.mxu0 0.0
        %2676 = vmatprep.subr.mxu0 0.0
        %2677 = vmatpush2.msra.mxu0 0.0
        %2678 = vmatprep.subr.mxu0 0.0
        %2679 = vmatpush2.msra.mxu0 0.0
        %2680 = vmatprep.subr.mxu0 0.0
        %2681 = vmatpush2.msra.mxu0 0.0
        %2682 = vmatprep.subr.mxu0 0.0
        %2683 = vmatpush2.msra.mxu0 0.0
        %2684 = vmatprep.subr.mxu0 0.0
        %2685 = vmatpush2.msra.mxu0 0.0
        %2686 = vmatprep.subr.mxu0 0.0
        %2687 = vmatpush2.msra.mxu0 0.0
        %2688 = vmatprep.subr.mxu0 0.0
        %2689 = vmatpush2.msra.mxu0 0.0
        %2690 = vmatprep.subr.mxu0 0.0
        %2691 = vmatpush2.msra.mxu0 0.0
        %2692 = vmatprep.subr.mxu0 0.0
        %2693 = vmatpush2.msra.mxu0 0.0
        %2694 = vmatprep.subr.mxu0 0.0
        %2695 = vmatpush2.msra.mxu0 0.0
        %2696 = vmatprep.mubr.f32.mxu0 0.0
        %2697 = vmatmul.mubr.f32.gmra.mxu0 %v2630
        %v2698 = vpop.f32.mrf.mxu0
        %v2699 = vadd.f32 %v2627, %v2698
        %v2700 = vpop.f32.mrf.mxu0
        %2701 = vdwg.mxu0
        %v2702 = vmul.f32 %v2699, 0.5
        %v2703 = vmul.f32 %v2699, 0.044715
        %v2704 = vmul.f32 %v2703, %v2699
        %v2705 = vmul.f32 %v2704, %v2699
        %v2706 = vadd.f32 %v2699, %v2705
        %v2707 = vmul.f32 %v2706, 0.7978846
        %v2708 = vtanh.pop %v2707
        %v2709 = vadd.f32 %v2708, 1.0
        %v2710 = vmul.f32 %v2702, %v2709
        %v2711 = vld [vmem:[%s14] sm:$0xff]
        %v2712 = vld [vmem:[%s14 + $0x8] sm:$0xff]
        %v2713 = vld [vmem:[%s14 + $0x10] sm:$0xff]
        %v2714 = vld [vmem:[%s14 + $0x18] sm:$0xff]
        %v2715 = vld [vmem:[%s14 + $0x20] sm:$0xff]
        %v2716 = vld [vmem:[%s14 + $0x28] sm:$0xff]
        %v2717 = vld [vmem:[%s14 + $0x30] sm:$0xff]
        %v2718 = vld [vmem:[%s14 + $0x38] sm:$0xff]
        %v2719 = vld [vmem:[%s14 + $0x40] sm:$0xff]
        %v2720 = vld [vmem:[%s14 + $0x48] sm:$0xff]
        %v2721 = vld [vmem:[%s14 + $0x50] sm:$0xff]
        %v2722 = vld [vmem:[%s14 + $0x58] sm:$0xff]
        %v2723 = vld [vmem:[%s14 + $0x60] sm:$0xff]
        %v2724 = vld [vmem:[%s14 + $0x68] sm:$0xff]
        %v2725 = vld [vmem:[%s14 + $0x70] sm:$0xff]
        %v2726 = vld [vmem:[%s14 + $0x78] sm:$0xff]
        %v2727 = vld [vmem:[%s15] sm:$0x1]
        %v2729 = vlaneseq
        %v2730 = vshrl.u32 %v2729, 7
        %v2731 = vsub.s32 0, %v2730
        %v2732 = vrot.slane %v2727, %v2731
        %2734 = vmatprep.subr.mxu0 0.0
        %2735 = vmatpush1.msra.mxu0 %v2726
        %2736 = vmatprep.subr.mxu0 0.0
        %2737 = vmatpush1.msra.mxu0 %v2725
        %2738 = vmatprep.subr.mxu0 0.0
        %2739 = vmatpush1.msra.mxu0 %v2724
        %2740 = vmatprep.subr.mxu0 0.0
        %2741 = vmatpush1.msra.mxu0 %v2723
        %2742 = vmatprep.subr.mxu0 0.0
        %2743 = vmatpush1.msra.mxu0 %v2722
        %2744 = vmatprep.subr.mxu0 0.0
        %2745 = vmatpush1.msra.mxu0 %v2721
        %2746 = vmatprep.subr.mxu0 0.0
        %2747 = vmatpush1.msra.mxu0 %v2720
        %2748 = vmatprep.subr.mxu0 0.0
        %2749 = vmatpush1.msra.mxu0 %v2719
        %2750 = vmatprep.subr.mxu0 0.0
        %2751 = vmatpush1.msra.mxu0 %v2718
        %2752 = vmatprep.subr.mxu0 0.0
        %2753 = vmatpush1.msra.mxu0 %v2717
        %2754 = vmatprep.subr.mxu0 0.0
        %2755 = vmatpush1.msra.mxu0 %v2716
        %2756 = vmatprep.subr.mxu0 0.0
        %2757 = vmatpush1.msra.mxu0 %v2715
        %2758 = vmatprep.subr.mxu0 0.0
        %2759 = vmatpush1.msra.mxu0 %v2714
        %2760 = vmatprep.subr.mxu0 0.0
        %2761 = vmatpush1.msra.mxu0 %v2713
        %2762 = vmatprep.subr.mxu0 0.0
        %2763 = vmatpush1.msra.mxu0 %v2712
        %2764 = vmatprep.subr.mxu0 0.0
        %2765 = vmatpush1.msra.mxu0 %v2711
        %2766 = vmatprep.subr.mxu0 0.0
        %2767 = vmatpush2.msra.mxu0 0.0
        %2768 = vmatprep.subr.mxu0 0.0
        %2769 = vmatpush2.msra.mxu0 0.0
        %2770 = vmatprep.subr.mxu0 0.0
        %2771 = vmatpush2.msra.mxu0 0.0
        %2772 = vmatprep.subr.mxu0 0.0
        %2773 = vmatpush2.msra.mxu0 0.0
        %2774 = vmatprep.subr.mxu0 0.0
        %2775 = vmatpush2.msra.mxu0 0.0
        %2776 = vmatprep.subr.mxu0 0.0
        %2777 = vmatpush2.msra.mxu0 0.0
        %2778 = vmatprep.subr.mxu0 0.0
        %2779 = vmatpush2.msra.mxu0 0.0
        %2780 = vmatprep.subr.mxu0 0.0
        %2781 = vmatpush2.msra.mxu0 0.0
        %2782 = vmatprep.subr.mxu0 0.0
        %2783 = vmatpush2.msra.mxu0 0.0
        %2784 = vmatprep.subr.mxu0 0.0
        %2785 = vmatpush2.msra.mxu0 0.0
        %2786 = vmatprep.subr.mxu0 0.0
        %2787 = vmatpush2.msra.mxu0 0.0
        %2788 = vmatprep.subr.mxu0 0.0
        %2789 = vmatpush2.msra.mxu0 0.0
        %2790 = vmatprep.subr.mxu0 0.0
        %2791 = vmatpush2.msra.mxu0 0.0
        %2792 = vmatprep.subr.mxu0 0.0
        %2793 = vmatpush2.msra.mxu0 0.0
        %2794 = vmatprep.subr.mxu0 0.0
        %2795 = vmatpush2.msra.mxu0 0.0
        %2796 = vmatprep.subr.mxu0 0.0
        %2797 = vmatpush2.msra.mxu0 0.0
        %2798 = vmatprep.mubr.f32.mxu0 0.0
        %2799 = vmatmul.mubr.f32.gmra.mxu0 %v2710
        %v2800 = vpop.f32.mrf.mxu0
        %v2801 = vadd.f32 %v2732, %v2800
        %v2802 = vpop.f32.mrf.mxu0
        %2803 = vdwg.mxu0
        %v2804 = vadd.f32 %v2617, %v2801
        %v2805 = vld [vmem:[%s20] sm:$0x1]
        %v2806 = vld [vmem:[%s21] sm:$0x1]
        %v2807 = vsel %vm762, %v2804, 0.0
        %2808 = vadd.xlane.f32.xlu0 %v2807
        %v2809 = vpop.xlane.xlu0 %2808
        %v2810 = vmul.f32 %v2809, %v1603
        %v2811 = vsub.f32 %v2804, %v2810
        %v2812 = vmul.f32 %v2811, %v2811
        %v2813 = vsel %vm762, %v2812, 0.0
        %2814 = vadd.xlane.f32.xlu0 %v2813
        %v2815 = vpop.xlane.xlu0 %2814
        %v2816 = vmul.f32 %v2815, %v1603
        %v2817 = vadd.f32 %v2816, 1e-05
        %v2818 = vrsqrt.pop %v2817
        %v2819 = vmul.f32 %v2811, %v2818
        %v2821 = vlaneseq
        %v2822 = vshrl.u32 %v2821, 7
        %v2823 = vsub.s32 0, %v2822
        %v2824 = vrot.slane %v2805, %v2823
        %v2826 = vmul.f32 %v2819, %v2824
        %v2828 = vlaneseq
        %v2829 = vshrl.u32 %v2828, 7
        %v2830 = vsub.s32 0, %v2829
        %v2831 = vrot.slane %v2806, %v2830
        %v2833 = vadd.f32 %v2826, %v2831
        %2834 = vst.msk [vmem:[%s742] sm:$0xff] %vm762, %v2833
        %s2835 = sand.u32 %s520, 1
        %s2836 = scalar_lea.sflag [#allocation4], %s2835
        %s2837 = sand.u32 %s520, 1
        %s2838 = smul.addr %s2837, 8
        %s2839 = scalar_lea.vmem [#allocation8], %s2838
        // Predicated region
        $region121: #{tpu_custom_call.1} parent=107 // pred_check
          %p2840 = pneg %p530
        $region122: #{tpu_custom_call.1} parent=107 // pred_check_branch
          %2842 = sbr.rel (%p2840) target = $region124
        $region123: #{tpu_custom_call.1} parent=107 // pred_region
          %s2844 = ssub.s32 128, 128
          %2845 = vsyncadd %s2836, %s2844
          %s2846 = smul.addr %s40, 128
          %s2847 = scalar_lea.hbm %s22, %s2846
          %s2849 = sshll.u32 %s2839, 4
          %s2850 = int_to_ptr.vmem [resolvable:$true] %s2849
          %2852 = dma.vmem_to_hbm [thread:$0]  %s2850, 128, %s2847, %s2836
        $region124: #{tpu_custom_call.1} parent=107 // pred_fallthru
          _
      $region108: #{tpu_custom_call.1} parent=5 // pred_fallthru
        _
      %p2853 = scmp.le.s32.totalorder 2, %s35
      // Predicated region
      $region125: #{tpu_custom_call.1} parent=5 // pred_check
        %p2854 = pneg %p2853
      $region126: #{tpu_custom_call.1} parent=5 // pred_check_branch
        %2856 = sbr.rel (%p2854) target = $region128
      $region127: #{tpu_custom_call.1} parent=5 // pred_region
        %s2857 = ssub.s32 %s35, 2
        // Predicated region
        $region129: #{tpu_custom_call.1} parent=127 // pred_check
          %p2858 = pneg %p536
        $region130: #{tpu_custom_call.1} parent=127 // pred_check_branch
          %2860 = sbr.rel (%p2858) target = $region132
        $region131: #{tpu_custom_call.1} parent=127 // pred_region
          %s2861 = sand.u32 %s521, 1
          %s2862 = scalar_lea.sflag [#allocation4], %s2861
          %s2863 = sand.u32 %s521, 1
          %s2864 = smul.addr %s2863, 8
          %s2865 = scalar_lea.vmem [#allocation8], %s2864
          %2866 = dma.done %s2862, 128
        $region132: #{tpu_custom_call.1} parent=127 // pred_fallthru
          _
      $region128: #{tpu_custom_call.1} parent=5 // pred_fallthru
        _
    $region6: #{tpu_custom_call.1} parent=1 // loop_footer
      %s39 = sadd.s32 1, %s35
    $region7: #{tpu_custom_call.1} parent=1 // loop_footer_branch
      %34 = sbr.rel target = $region3
    $region8: #{tpu_custom_call.1} parent=1 // loop_exit
      _
    %2867 = vsyncpa [#allocation3], 1
    %s2868 = scalar_lea.sflag [#allocation3], 1
    %2869 = vsyncpa %s2868, 1
    %2870 = vsyncpa [#allocation6], 1
    %2871 = vsyncpa [#allocation4], 1
    %s2872 = scalar_lea.sflag [#allocation4], 1
    %2873 = vsyncpa %s2872, 1

</llo_original>
